<compile_context>
chip_gen: v6e
topology: v6e:2x2x1
jax: 0.10.0
libtpu: 0.0.40
codegen_flags: <defaults>
</compile_context>

<pallas_src>
import jax
import jax.numpy as jnp
from jax.experimental import pallas as pl
from jax.experimental.pallas import tpu as pltpu

D_IN = 28 * 28      # 784 (full-dim feature block, no padding)
D_HID = 100
D_OUT = 10

# Lane-aligned (multiple-of-128) padded hidden/output sizes.
D_HID_P = 128
D_OUT_P = 128

TB = 512            # batch tile (rows per grid step)


def mlp_kernel(x_ref, w1_ref, b1_ref, w2_ref, b2_ref, w3_ref, b3_ref, out_ref):
    # fc1 + ReLU  (bf16 operands, f32 accumulation on the MXU)
    x = x_ref[...].astype(jnp.bfloat16)          # cast inside kernel (no HBM copy)
    h = jnp.dot(x, w1_ref[...], preferred_element_type=jnp.float32)
    h = jnp.maximum(h + b1_ref[...], 0.0)
    # fc2 + ReLU
    h = jnp.dot(h.astype(jnp.bfloat16), w2_ref[...],
                preferred_element_type=jnp.float32)
    h = jnp.maximum(h + b2_ref[...], 0.0)
    # fc3 (no activation), bf16 store (f32 accumulate + f32 bias add)
    h = jnp.dot(h.astype(jnp.bfloat16), w3_ref[...],
                preferred_element_type=jnp.float32)
    out_ref[...] = (h + b3_ref[...]).astype(out_ref.dtype)


def _pad2(a, shape):
    out = jnp.zeros(shape, a.dtype)
    return out.at[: a.shape[0], : a.shape[1]].set(a)


def init_params(key):
    """PyTorch nn.Linear-style init: U(-1/sqrt(fan_in), 1/sqrt(fan_in))."""
    keys = jax.random.split(key, 6)

    def linear(kw, kb, fan_in, fan_out):
        bound = 1.0 / float(fan_in) ** 0.5
        w = jax.random.uniform(kw, (fan_in, fan_out), jnp.float32, -bound, bound)
        b = jax.random.uniform(kb, (fan_out,), jnp.float32, -bound, bound)
        return w, b

    w1, b1 = linear(keys[0], keys[1], D_IN, D_HID)
    w2, b2 = linear(keys[2], keys[3], D_HID, D_HID)
    w3, b3 = linear(keys[4], keys[5], D_HID, D_OUT)
    return (w1, b1, w2, b2, w3, b3)


def pack_params(params):
    """Zero-pad hidden/output dims to 128 lanes; weights bf16, biases f32 (1, D)."""
    w1, b1, w2, b2, w3, b3 = params
    w1p = _pad2(w1, (D_IN, D_HID_P)).astype(jnp.bfloat16)      # no K padding
    w2p = _pad2(w2, (D_HID_P, D_HID_P)).astype(jnp.bfloat16)
    w3p = _pad2(w3, (D_HID_P, D_OUT_P)).astype(jnp.bfloat16)
    b1p = _pad2(b1[None, :], (1, D_HID_P))
    b2p = _pad2(b2[None, :], (1, D_HID_P))
    b3p = _pad2(b3[None, :], (1, D_OUT_P))
    return (w1p, b1p, w2p, b2p, w3p, b3p)


@jax.jit
def mlp_forward(x, packed):
    w1p, b1p, w2p, b2p, w3p, b3p = packed
    x2 = x.reshape(-1, D_IN)                 # f32, no padded copy materialized
    B = x2.shape[0]
    grid_b = pl.cdiv(B, TB)                  # partial last block handled by Pallas
    B_work = grid_b * TB                     # rows actually pushed through the MXU

    flops = 2 * B_work * (D_IN * D_HID_P + D_HID_P * D_HID_P + D_HID_P * D_OUT_P)
    bytes_accessed = (
        B * D_IN * 4                          # x stream (f32, read in place)
        + B * D_OUT_P * 2                     # output (bf16)
        + sum(int(p.size) * p.dtype.itemsize for p in packed)
    )

    const = lambda i: (0, 0)   # weights/biases: same block every step (VMEM-resident)

    out = pl.pallas_call(
        mlp_kernel,
        out_shape=jax.ShapeDtypeStruct((B, D_OUT_P), jnp.bfloat16),
        grid=(grid_b,),
        in_specs=[
            pl.BlockSpec((TB, D_IN), lambda i: (i, 0)),      # x: streamed per tile
            pl.BlockSpec((D_IN, D_HID_P), const),            # w1 (full-dim block)
            pl.BlockSpec((1, D_HID_P), const),               # b1
            pl.BlockSpec((D_HID_P, D_HID_P), const),         # w2
            pl.BlockSpec((1, D_HID_P), const),               # b2
            pl.BlockSpec((D_HID_P, D_OUT_P), const),         # w3
            pl.BlockSpec((1, D_OUT_P), const),               # b3
        ],
        out_specs=pl.BlockSpec((TB, D_OUT_P), lambda i: (i, 0)),
        compiler_params=pltpu.CompilerParams(
            dimension_semantics=("parallel",),   # batch axis shards across TCs (v7x)
        ),
        cost_estimate=pl.CostEstimate(
            flops=flops, transcendentals=0, bytes_accessed=bytes_accessed),
    )(x2, w1p, b1p, w2p, b2p, w3p, b3p)

    # Slice off output-column padding; return f32 to match the module's dtype.
    return out[:, :D_OUT].astype(jnp.float32)


def mlp_forward_ref(x, params):
    """Pure-JAX fp32 reference of the PyTorch MLP forward."""
    w1, b1, w2, b2, w3, b3 = params
    h = x.reshape(-1, D_IN).astype(jnp.float32)
    h = jnp.maximum(h @ w1 + b1, 0.0)
    h = jnp.maximum(h @ w2 + b2, 0.0)
    return h @ w3 + b3


if __name__ == "__main__":
    key = jax.random.PRNGKey(0)
    k_params, k_x = jax.random.split(key)
    params = init_params(k_params)
    packed = pack_params(params)

    # Small MNIST-like input: batch=2, NCHW (1 channel, 28x28)
    x = jax.random.normal(k_x, (2, 1, 28, 28), dtype=jnp.float32)

    out = mlp_forward(x, packed)
    out = jax.block_until_ready(out)

    ref = mlp_forward_ref(x, params)
    assert out.shape == (2, D_OUT), out.shape
    # bf16 operands + bf16 output store with f32 accumulation -> loosened tolerance.
    assert jnp.allclose(out, ref, atol=2e-2, rtol=2e-2), "mismatch vs reference"

    print("KERNEL_OK")
</pallas_src>

<mosaic_0001>
module attributes {stable_mosaic.version = 11 : i64} {
  func.func @mlp_kernel(%arg0: i32, %arg1: memref<512x784xf32, #tpu.memory_space<vmem>>, %arg2: memref<784x128xbf16, #tpu.memory_space<vmem>>, %arg3: memref<1x128xf32, #tpu.memory_space<vmem>>, %arg4: memref<128x128xbf16, #tpu.memory_space<vmem>>, %arg5: memref<1x128xf32, #tpu.memory_space<vmem>>, %arg6: memref<128x128xbf16, #tpu.memory_space<vmem>>, %arg7: memref<1x128xf32, #tpu.memory_space<vmem>>, %arg8: memref<512x128xbf16, #tpu.memory_space<vmem>>) attributes {dimension_semantics = [#tpu.dimension_semantics<parallel>], iteration_bounds = array<i64: 1>, scalar_prefetch = 0 : i64, scratch_operands = 0 : i64, tpu.core_type = #tpu.core_type<tc>, window_params = [{transform_indices = @transform_0, window_bounds = array<i64: 512, 784>}, {pipeline_mode = #tpu.pipeline_mode<synchronous>, transform_indices = @transform_1, window_bounds = array<i64: 784, 128>}, {pipeline_mode = #tpu.pipeline_mode<synchronous>, transform_indices = @transform_2, window_bounds = array<i64: 1, 128>}, {pipeline_mode = #tpu.pipeline_mode<synchronous>, transform_indices = @transform_3, window_bounds = array<i64: 128, 128>}, {pipeline_mode = #tpu.pipeline_mode<synchronous>, transform_indices = @transform_4, window_bounds = array<i64: 1, 128>}, {pipeline_mode = #tpu.pipeline_mode<synchronous>, transform_indices = @transform_5, window_bounds = array<i64: 128, 128>}, {pipeline_mode = #tpu.pipeline_mode<synchronous>, transform_indices = @transform_6, window_bounds = array<i64: 1, 128>}, {transform_indices = @transform_7, window_bounds = array<i64: 512, 128>}]} {
    %c0 = arith.constant 0 : index
    %c0_0 = arith.constant 0 : index
    %0 = vector.load %arg1[%c0, %c0_0] : memref<512x784xf32, #tpu.memory_space<vmem>>, vector<512x784xf32>
    %1 = arith.truncf %0 : vector<512x784xf32> to vector<512x784xbf16>
    %c0_1 = arith.constant 0 : index
    %c0_2 = arith.constant 0 : index
    %2 = vector.load %arg2[%c0_1, %c0_2] : memref<784x128xbf16, #tpu.memory_space<vmem>>, vector<784x128xbf16>
    %cst = arith.constant dense<0.000000e+00> : vector<512x128xf32>
    %3 = tpu.matmul %1, %2, %cst {dimension_numbers = #tpu.dot_dimension_numbers<[1], [0], [0], [1], [0, 0, 1, 1], [], []>} : vector<512x784xbf16>, vector<784x128xbf16>, vector<512x128xf32> -> vector<512x128xf32>
    %c0_3 = arith.constant 0 : index
    %c0_4 = arith.constant 0 : index
    %4 = vector.load %arg3[%c0_3, %c0_4] : memref<1x128xf32, #tpu.memory_space<vmem>>, vector<1x128xf32>
    %5 = vector.broadcast %4 : vector<1x128xf32> to vector<512x128xf32>
    %6 = arith.addf %3, %5 : vector<512x128xf32>
    %cst_5 = arith.constant 0.000000e+00 : f32
    %7 = vector.broadcast %cst_5 : f32 to vector<512x128xf32>
    %8 = arith.maximumf %6, %7 : vector<512x128xf32>
    %9 = arith.truncf %8 : vector<512x128xf32> to vector<512x128xbf16>
    %c0_6 = arith.constant 0 : index
    %c0_7 = arith.constant 0 : index
    %10 = vector.load %arg4[%c0_6, %c0_7] : memref<128x128xbf16, #tpu.memory_space<vmem>>, vector<128x128xbf16>
    %cst_8 = arith.constant dense<0.000000e+00> : vector<512x128xf32>
    %11 = tpu.matmul %9, %10, %cst_8 {dimension_numbers = #tpu.dot_dimension_numbers<[1], [0], [0], [1], [0, 0, 1, 1], [], []>} : vector<512x128xbf16>, vector<128x128xbf16>, vector<512x128xf32> -> vector<512x128xf32>
    %c0_9 = arith.constant 0 : index
    %c0_10 = arith.constant 0 : index
    %12 = vector.load %arg5[%c0_9, %c0_10] : memref<1x128xf32, #tpu.memory_space<vmem>>, vector<1x128xf32>
    %13 = vector.broadcast %12 : vector<1x128xf32> to vector<512x128xf32>
    %14 = arith.addf %11, %13 : vector<512x128xf32>
    %cst_11 = arith.constant 0.000000e+00 : f32
    %15 = vector.broadcast %cst_11 : f32 to vector<512x128xf32>
    %16 = arith.maximumf %14, %15 : vector<512x128xf32>
    %17 = arith.truncf %16 : vector<512x128xf32> to vector<512x128xbf16>
    %c0_12 = arith.constant 0 : index
    %c0_13 = arith.constant 0 : index
    %18 = vector.load %arg6[%c0_12, %c0_13] : memref<128x128xbf16, #tpu.memory_space<vmem>>, vector<128x128xbf16>
    %cst_14 = arith.constant dense<0.000000e+00> : vector<512x128xf32>
    %19 = tpu.matmul %17, %18, %cst_14 {dimension_numbers = #tpu.dot_dimension_numbers<[1], [0], [0], [1], [0, 0, 1, 1], [], []>} : vector<512x128xbf16>, vector<128x128xbf16>, vector<512x128xf32> -> vector<512x128xf32>
    %c0_15 = arith.constant 0 : index
    %c0_16 = arith.constant 0 : index
    %20 = vector.load %arg7[%c0_15, %c0_16] : memref<1x128xf32, #tpu.memory_space<vmem>>, vector<1x128xf32>
    %21 = vector.broadcast %20 : vector<1x128xf32> to vector<512x128xf32>
    %22 = arith.addf %19, %21 : vector<512x128xf32>
    %23 = arith.truncf %22 : vector<512x128xf32> to vector<512x128xbf16>
    %c0_17 = arith.constant 0 : index
    %c0_18 = arith.constant 0 : index
    %24 = vector.load %arg8[%c0_17, %c0_18] : memref<512x128xbf16, #tpu.memory_space<vmem>>, vector<512x128xbf16>
    tpu.vector_store %arg8[%c0_17, %c0_18], %23 {strides = array<i32>} : memref<512x128xbf16, #tpu.memory_space<vmem>>, vector<512x128xbf16>,
    return
  }
  func.func @transform_0(%arg0: i32) -> (i32, i32) {
    %c0_i32 = arith.constant 0 : i32
    %c0_i32_0 = arith.constant 0 : i32
    return %arg0, %c0_i32 : i32, i32
  }
  func.func @transform_1(%arg0: i32) -> (i32, i32) {
    %c0_i32 = arith.constant 0 : i32
    %c0_i32_0 = arith.constant 0 : i32
    %c0_i32_1 = arith.constant 0 : i32
    return %c0_i32, %c0_i32_0 : i32, i32
  }
  func.func @transform_2(%arg0: i32) -> (i32, i32) {
    %c0_i32 = arith.constant 0 : i32
    %c0_i32_0 = arith.constant 0 : i32
    %c0_i32_1 = arith.constant 0 : i32
    return %c0_i32, %c0_i32_0 : i32, i32
  }
  func.func @transform_3(%arg0: i32) -> (i32, i32) {
    %c0_i32 = arith.constant 0 : i32
    %c0_i32_0 = arith.constant 0 : i32
    %c0_i32_1 = arith.constant 0 : i32
    return %c0_i32, %c0_i32_0 : i32, i32
  }
  func.func @transform_4(%arg0: i32) -> (i32, i32) {
    %c0_i32 = arith.constant 0 : i32
    %c0_i32_0 = arith.constant 0 : i32
    %c0_i32_1 = arith.constant 0 : i32
    return %c0_i32, %c0_i32_0 : i32, i32
  }
  func.func @transform_5(%arg0: i32) -> (i32, i32) {
    %c0_i32 = arith.constant 0 : i32
    %c0_i32_0 = arith.constant 0 : i32
    %c0_i32_1 = arith.constant 0 : i32
    return %c0_i32, %c0_i32_0 : i32, i32
  }
  func.func @transform_6(%arg0: i32) -> (i32, i32) {
    %c0_i32 = arith.constant 0 : i32
    %c0_i32_0 = arith.constant 0 : i32
    %c0_i32_1 = arith.constant 0 : i32
    return %c0_i32, %c0_i32_0 : i32, i32
  }
  func.func @transform_7(%arg0: i32) -> (i32, i32) {
    %c0_i32 = arith.constant 0 : i32
    %c0_i32_0 = arith.constant 0 : i32
    return %arg0, %c0_i32 : i32, i32
  }
}

</mosaic_0001>

<llo_original>
// kernel: mlp_forward.1
$region0: #{mlp_forward.1}
  #allocation0 [shape = 'u32[]', space=smem, size = 0x4, offset = 0x4, fixed_abs, tag = 'smem constant byte address 0x4 - core index']
  #allocation1 [shape = 'u32[144,128]{1,0:T(1,128)}', space=vmem, size = 0x12000, scoped, tag = 'internal scratch']
  %s0 = inlined_call_operand.vmem [shape: f32[2,784], index: 0, kind: input, shape index: {}]
  %s1 = inlined_call_operand.hbm [shape: bf16[784,128], index: 1, kind: input, shape index: {}]
  %s2 = inlined_call_operand.vmem [shape: f32[1,128], index: 2, kind: input, shape index: {}]
  %s3 = inlined_call_operand.vmem [shape: bf16[128,128], index: 3, kind: input, shape index: {}]
  %s4 = inlined_call_operand.vmem [shape: f32[1,128], index: 4, kind: input, shape index: {}]
  %s5 = inlined_call_operand.vmem [shape: bf16[128,128], index: 5, kind: input, shape index: {}]
  %s6 = inlined_call_operand.vmem [shape: f32[1,128], index: 6, kind: input, shape index: {}]
  %s7 = inlined_call_operand.vmem [shape: bf16[2,128], index: 7, kind: output, shape index: {}]
  %s8 = sld [smem:[#allocation0]]
  $region72: #{mlp_forward.1} parent=0
    _
  %s10 = ssub.s32 1, %s8
  %s11 = scalar_select 0, %s10, %s8
  $region1: #{mlp_forward.1} parent=0
    #allocation2 [shape = 'u8[200704]{0}', space=vmem, size = 0x31000, scoped, tag = 'input window, operand 1, single buffered']
    #allocation3 [shape = 's32[1]{0}', space=sflag, size = 0x4, scoped, tag = 'scoped memory for mlp_forward.1']
    #allocation4 [shape = 'u8[131072]{0}', space=vmem, size = 0x20000, scoped, tag = 'output window, operand 0, single buffered']
    %12 = vsyncpa [#allocation3], 0
    // Predicated region
    $region2: #{mlp_forward.1} parent=1 // pred_check
      _
    $region3: #{mlp_forward.1} parent=1 // pred_check_branch
      %14 = sbr.rel (0) target = $region5
    $region4: #{mlp_forward.1} parent=1 // pred_region
      _
    $region5: #{mlp_forward.1} parent=1 // pred_fallthru
      _
    // Predicated region
    $region6: #{mlp_forward.1} parent=1 // pred_check
      _
    $region7: #{mlp_forward.1} parent=1 // pred_check_branch
      %16 = sbr.rel (0) target = $region9
    $region8: #{mlp_forward.1} parent=1 // pred_region
      %s18 = ssub.s32 6272, 6272
      %19 = vsyncadd [#allocation3], %s18
      %s20 = sshll.u32 [#allocation2], 4
      %s21 = int_to_ptr.vmem [resolvable:$true] %s20
      %26 = dma.hbm_to_vmem [thread:$0]  %s1, 6272, %s21, [#allocation3], 64, 64, 4
    $region9: #{mlp_forward.1} parent=1 // pred_fallthru
      _
    // Predicated region
    $region10: #{mlp_forward.1} parent=1 // pred_check
      _
    $region11: #{mlp_forward.1} parent=1 // pred_check_branch
      %28 = sbr.rel (0) target = $region13
    $region12: #{mlp_forward.1} parent=1 // pred_region
      _
    $region13: #{mlp_forward.1} parent=1 // pred_fallthru
      _
    // Predicated region
    $region14: #{mlp_forward.1} parent=1 // pred_check
      _
    $region15: #{mlp_forward.1} parent=1 // pred_check_branch
      %30 = sbr.rel (0) target = $region17
    $region16: #{mlp_forward.1} parent=1 // pred_region
      _
    $region17: #{mlp_forward.1} parent=1 // pred_fallthru
      _
    // Predicated region
    $region18: #{mlp_forward.1} parent=1 // pred_check
      _
    $region19: #{mlp_forward.1} parent=1 // pred_check_branch
      %32 = sbr.rel (0) target = $region21
    $region20: #{mlp_forward.1} parent=1 // pred_region
      _
    $region21: #{mlp_forward.1} parent=1 // pred_fallthru
      _
    // Predicated region
    $region22: #{mlp_forward.1} parent=1 // pred_check
      _
    $region23: #{mlp_forward.1} parent=1 // pred_check_branch
      %34 = sbr.rel (0) target = $region25
    $region24: #{mlp_forward.1} parent=1 // pred_region
      _
    $region25: #{mlp_forward.1} parent=1 // pred_fallthru
      _
    // Predicated region
    $region26: #{mlp_forward.1} parent=1 // pred_check
      _
    $region27: #{mlp_forward.1} parent=1 // pred_check_branch
      %36 = sbr.rel (0) target = $region29
    $region28: #{mlp_forward.1} parent=1 // pred_region
      _
    $region29: #{mlp_forward.1} parent=1 // pred_fallthru
      _
    // Predicated region
    $region30: #{mlp_forward.1} parent=1 // pred_check
      _
    $region31: #{mlp_forward.1} parent=1 // pred_check_branch
      %38 = sbr.rel (0) target = $region33
    $region32: #{mlp_forward.1} parent=1 // pred_region
      %39 = dma.done [#allocation3], 6272
    $region33: #{mlp_forward.1} parent=1 // pred_fallthru
      _
    %v41 = vld [vmem:[%s0] sm:$0xff]
    %v42 = vld [vmem:[%s0 + $0x8] sm:$0x3f]
    %v43 = vld [vmem:[%s0 + $0xe] sm:$0xff]
    %v44 = vld [vmem:[%s0 + $0x16] sm:$0x3f]
    %v45 = vld [vmem:[%s0 + $0x1c] sm:$0xff]
    %v46 = vld [vmem:[%s0 + $0x24] sm:$0x3f]
    %v47 = vld [vmem:[%s0 + $0x2a] sm:$0xff]
    %v48 = vld [vmem:[%s0 + $0x32] sm:$0x3f]
    %v49 = vld [vmem:[%s0 + $0x38] sm:$0xff]
    %v50 = vld [vmem:[%s0 + $0x40] sm:$0x3f]
    %v51 = vld [vmem:[%s0 + $0x46] sm:$0xff]
    %v52 = vld [vmem:[%s0 + $0x4e] sm:$0x3f]
    %v53 = vld [vmem:[%s0 + $0x54] sm:$0xff]
    %v54 = vld [vmem:[%s0 + $0x5c] sm:$0x3f]
    %v55 = vld [vmem:[%s0 + $0x62] sm:$0xff]
    %v56 = vld [vmem:[%s0 + $0x6a] sm:$0x3f]
    %v57 = vld [vmem:[%s0 + $0x70] sm:$0xff]
    %v58 = vld [vmem:[%s0 + $0x78] sm:$0x3f]
    %v59 = vld [vmem:[%s0 + $0x7e] sm:$0xff]
    %v60 = vld [vmem:[%s0 + $0x86] sm:$0x3f]
    %v61 = vld [vmem:[%s0 + $0x8c] sm:$0xff]
    %v62 = vld [vmem:[%s0 + $0x94] sm:$0x3f]
    %v63 = vld [vmem:[%s0 + $0x9a] sm:$0xff]
    %v64 = vld [vmem:[%s0 + $0xa2] sm:$0x3f]
    %v65 = vld [vmem:[%s0 + $0xa8] sm:$0xff]
    %v66 = vld [vmem:[%s0 + $0xb0] sm:$0x3f]
    %v67 = vld [vmem:[%s0 + $0xb6] sm:$0xff]
    %v68 = vld [vmem:[%s0 + $0xbe] sm:$0x3f]
    %v69 = vld [vmem:[%s0 + $0xc4] sm:$0xff]
    %v70 = vld [vmem:[%s0 + $0xcc] sm:$0x3f]
    %v71 = vld [vmem:[%s0 + $0xd2] sm:$0xff]
    %v72 = vld [vmem:[%s0 + $0xda] sm:$0x3f]
    %v73 = vld [vmem:[%s0 + $0xe0] sm:$0xff]
    %v74 = vld [vmem:[%s0 + $0xe8] sm:$0x3f]
    %v75 = vld [vmem:[%s0 + $0xee] sm:$0xff]
    %v76 = vld [vmem:[%s0 + $0xf6] sm:$0x3f]
    %v77 = vld [vmem:[%s0 + $0xfc] sm:$0xff]
    %v78 = vld [vmem:[%s0 + $0x104] sm:$0x3f]
    %v79 = vld [vmem:[%s0 + $0x10a] sm:$0xff]
    %v80 = vld [vmem:[%s0 + $0x112] sm:$0x3f]
    %v81 = vld [vmem:[%s0 + $0x118] sm:$0xff]
    %v82 = vld [vmem:[%s0 + $0x120] sm:$0x3f]
    %v83 = vld [vmem:[%s0 + $0x126] sm:$0xff]
    %v84 = vld [vmem:[%s0 + $0x12e] sm:$0x3f]
    %v85 = vld [vmem:[%s0 + $0x134] sm:$0xff]
    %v86 = vld [vmem:[%s0 + $0x13c] sm:$0x3f]
    %v87 = vld [vmem:[%s0 + $0x142] sm:$0xff]
    %v88 = vld [vmem:[%s0 + $0x14a] sm:$0x3f]
    %v89 = vld [vmem:[%s0 + $0x150] sm:$0xff]
    %v90 = vld [vmem:[%s0 + $0x158] sm:$0x3f]
    %v91 = vld [vmem:[%s0 + $0x15e] sm:$0xff]
    %v92 = vld [vmem:[%s0 + $0x166] sm:$0x3f]
    %v93 = vld [vmem:[%s0 + $0x16c] sm:$0xff]
    %v94 = vld [vmem:[%s0 + $0x174] sm:$0x3f]
    %v95 = vld [vmem:[%s0 + $0x17a] sm:$0xff]
    %v96 = vld [vmem:[%s0 + $0x182] sm:$0x3f]
    %v97 = vld [vmem:[%s0 + $0x188] sm:$0xff]
    %v98 = vld [vmem:[%s0 + $0x190] sm:$0x3f]
    %v99 = vld [vmem:[%s0 + $0x196] sm:$0xff]
    %v100 = vld [vmem:[%s0 + $0x19e] sm:$0x3f]
    %v101 = vld [vmem:[%s0 + $0x1a4] sm:$0xff]
    %v102 = vld [vmem:[%s0 + $0x1ac] sm:$0x3f]
    %v103 = vld [vmem:[%s0 + $0x1b2] sm:$0xff]
    %v104 = vld [vmem:[%s0 + $0x1ba] sm:$0x3f]
    %v105 = vld [vmem:[%s0 + $0x1c0] sm:$0xff]
    %v106 = vld [vmem:[%s0 + $0x1c8] sm:$0x3f]
    %v107 = vld [vmem:[%s0 + $0x1ce] sm:$0xff]
    %v108 = vld [vmem:[%s0 + $0x1d6] sm:$0x3f]
    %v109 = vld [vmem:[%s0 + $0x1dc] sm:$0xff]
    %v110 = vld [vmem:[%s0 + $0x1e4] sm:$0x3f]
    %v111 = vld [vmem:[%s0 + $0x1ea] sm:$0xff]
    %v112 = vld [vmem:[%s0 + $0x1f2] sm:$0x3f]
    %v113 = vld [vmem:[%s0 + $0x1f8] sm:$0xff]
    %v114 = vld [vmem:[%s0 + $0x200] sm:$0x3f]
    %v115 = vld [vmem:[%s0 + $0x206] sm:$0xff]
    %v116 = vld [vmem:[%s0 + $0x20e] sm:$0x3f]
    %v117 = vld [vmem:[%s0 + $0x214] sm:$0xff]
    %v118 = vld [vmem:[%s0 + $0x21c] sm:$0x3f]
    %v119 = vld [vmem:[%s0 + $0x222] sm:$0xff]
    %v120 = vld [vmem:[%s0 + $0x22a] sm:$0x3f]
    %v121 = vld [vmem:[%s0 + $0x230] sm:$0xff]
    %v122 = vld [vmem:[%s0 + $0x238] sm:$0x3f]
    %v123 = vld [vmem:[%s0 + $0x23e] sm:$0xff]
    %v124 = vld [vmem:[%s0 + $0x246] sm:$0x3f]
    %v125 = vld [vmem:[%s0 + $0x24c] sm:$0xff]
    %v126 = vld [vmem:[%s0 + $0x254] sm:$0x3f]
    %v127 = vld [vmem:[%s0 + $0x25a] sm:$0xff]
    %v128 = vld [vmem:[%s0 + $0x262] sm:$0x3f]
    %v129 = vld [vmem:[%s0 + $0x268] sm:$0xff]
    %v130 = vld [vmem:[%s0 + $0x270] sm:$0x3f]
    %v131 = vld [vmem:[%s0 + $0x276] sm:$0xff]
    %v132 = vld [vmem:[%s0 + $0x27e] sm:$0x3f]
    %v133 = vld [vmem:[%s0 + $0x284] sm:$0xff]
    %v134 = vld [vmem:[%s0 + $0x28c] sm:$0x3f]
    %v135 = vld [vmem:[%s0 + $0x292] sm:$0xff]
    %v136 = vld [vmem:[%s0 + $0x29a] sm:$0x3f]
    %v137 = vld [vmem:[%s0 + $0x2a0] sm:$0xff]
    %v138 = vld [vmem:[%s0 + $0x2a8] sm:$0x3f]
    %v139 = vld [vmem:[%s0 + $0x2ae] sm:$0xff]
    %v140 = vld [vmem:[%s0 + $0x2b6] sm:$0x3f]
    %v141 = vld [vmem:[%s0 + $0x2bc] sm:$0xff]
    %v142 = vld [vmem:[%s0 + $0x2c4] sm:$0x3f]
    %v143 = vld [vmem:[%s0 + $0x2ca] sm:$0xff]
    %v144 = vld [vmem:[%s0 + $0x2d2] sm:$0x3f]
    %v145 = vld [vmem:[%s0 + $0x2d8] sm:$0xff]
    %v146 = vld [vmem:[%s0 + $0x2e0] sm:$0x3f]
    %v147 = vld [vmem:[%s0 + $0x2e6] sm:$0xff]
    %v148 = vld [vmem:[%s0 + $0x2ee] sm:$0x3f]
    %v149 = vld [vmem:[%s0 + $0x2f4] sm:$0xff]
    %v150 = vld [vmem:[%s0 + $0x2fc] sm:$0x3f]
    %v151 = vld [vmem:[%s0 + $0x302] sm:$0xff]
    %v152 = vld [vmem:[%s0 + $0x30a] sm:$0x3f]
    %v153 = vld [vmem:[%s0 + $0x310] sm:$0xff]
    %v154 = vld [vmem:[%s0 + $0x318] sm:$0x3f]
    %v155 = vld [vmem:[%s0 + $0x31e] sm:$0xff]
    %v156 = vld [vmem:[%s0 + $0x326] sm:$0x3f]
    %v157 = vld [vmem:[%s0 + $0x32c] sm:$0xff]
    %v158 = vld [vmem:[%s0 + $0x334] sm:$0x3f]
    %v159 = vld [vmem:[%s0 + $0x33a] sm:$0xff]
    %v160 = vld [vmem:[%s0 + $0x342] sm:$0x3f]
    %v161 = vld [vmem:[%s0 + $0x348] sm:$0xff]
    %v162 = vld [vmem:[%s0 + $0x350] sm:$0x3f]
    %v163 = vld [vmem:[%s0 + $0x356] sm:$0xff]
    %v164 = vld [vmem:[%s0 + $0x35e] sm:$0x3f]
    %v165 = vld [vmem:[%s0 + $0x364] sm:$0xff]
    %v166 = vld [vmem:[%s0 + $0x36c] sm:$0x3f]
    %v167 = vld [vmem:[%s0 + $0x372] sm:$0xff]
    %v168 = vld [vmem:[%s0 + $0x37a] sm:$0x3f]
    %v169 = vld [vmem:[%s0 + $0x380] sm:$0xff]
    %v170 = vld [vmem:[%s0 + $0x388] sm:$0x3f]
    %v171 = vld [vmem:[%s0 + $0x38e] sm:$0xff]
    %v172 = vld [vmem:[%s0 + $0x396] sm:$0x3f]
    %v173 = vld [vmem:[%s0 + $0x39c] sm:$0xff]
    %v174 = vld [vmem:[%s0 + $0x3a4] sm:$0x3f]
    %v175 = vld [vmem:[%s0 + $0x3aa] sm:$0xff]
    %v176 = vld [vmem:[%s0 + $0x3b2] sm:$0x3f]
    %v177 = vld [vmem:[%s0 + $0x3b8] sm:$0xff]
    %v178 = vld [vmem:[%s0 + $0x3c0] sm:$0x3f]
    %v179 = vld [vmem:[%s0 + $0x3c6] sm:$0xff]
    %v180 = vld [vmem:[%s0 + $0x3ce] sm:$0x3f]
    %v181 = vld [vmem:[%s0 + $0x3d4] sm:$0xff]
    %v182 = vld [vmem:[%s0 + $0x3dc] sm:$0x3f]
    %v183 = vld [vmem:[%s0 + $0x3e2] sm:$0xff]
    %v184 = vld [vmem:[%s0 + $0x3ea] sm:$0x3f]
    %v185 = vld [vmem:[%s0 + $0x3f0] sm:$0xff]
    %v186 = vld [vmem:[%s0 + $0x3f8] sm:$0x3f]
    %v187 = vld [vmem:[%s0 + $0x3fe] sm:$0xff]
    %v188 = vld [vmem:[%s0 + $0x406] sm:$0x3f]
    %v189 = vld [vmem:[%s0 + $0x40c] sm:$0xff]
    %v190 = vld [vmem:[%s0 + $0x414] sm:$0x3f]
    %v191 = vld [vmem:[%s0 + $0x41a] sm:$0xff]
    %v192 = vld [vmem:[%s0 + $0x422] sm:$0x3f]
    %v193 = vld [vmem:[%s0 + $0x428] sm:$0xff]
    %v194 = vld [vmem:[%s0 + $0x430] sm:$0x3f]
    %v195 = vld [vmem:[%s0 + $0x436] sm:$0xff]
    %v196 = vld [vmem:[%s0 + $0x43e] sm:$0x3f]
    %v197 = vld [vmem:[%s0 + $0x444] sm:$0xff]
    %v198 = vld [vmem:[%s0 + $0x44c] sm:$0x3f]
    %v199 = vld [vmem:[%s0 + $0x452] sm:$0xff]
    %v200 = vld [vmem:[%s0 + $0x45a] sm:$0x3f]
    %v201 = vld [vmem:[%s0 + $0x460] sm:$0xff]
    %v202 = vld [vmem:[%s0 + $0x468] sm:$0x3f]
    %v203 = vld [vmem:[%s0 + $0x46e] sm:$0xff]
    %v204 = vld [vmem:[%s0 + $0x476] sm:$0x3f]
    %v205 = vld [vmem:[%s0 + $0x47c] sm:$0xff]
    %v206 = vld [vmem:[%s0 + $0x484] sm:$0x3f]
    %v207 = vld [vmem:[%s0 + $0x48a] sm:$0xff]
    %v208 = vld [vmem:[%s0 + $0x492] sm:$0x3f]
    %v209 = vld [vmem:[%s0 + $0x498] sm:$0xff]
    %v210 = vld [vmem:[%s0 + $0x4a0] sm:$0x3f]
    %v211 = vld [vmem:[%s0 + $0x4a6] sm:$0xff]
    %v212 = vld [vmem:[%s0 + $0x4ae] sm:$0x3f]
    %v213 = vld [vmem:[%s0 + $0x4b4] sm:$0xff]
    %v214 = vld [vmem:[%s0 + $0x4bc] sm:$0x3f]
    %v215 = vld [vmem:[%s0 + $0x4c2] sm:$0xff]
    %v216 = vld [vmem:[%s0 + $0x4ca] sm:$0x3f]
    %v217 = vld [vmem:[%s0 + $0x4d0] sm:$0xff]
    %v218 = vld [vmem:[%s0 + $0x4d8] sm:$0x3f]
    %v219 = vld [vmem:[%s0 + $0x4de] sm:$0xff]
    %v220 = vld [vmem:[%s0 + $0x4e6] sm:$0x3f]
    %v221 = vld [vmem:[%s0 + $0x4ec] sm:$0xff]
    %v222 = vld [vmem:[%s0 + $0x4f4] sm:$0x3f]
    %v223 = vld [vmem:[%s0 + $0x4fa] sm:$0xff]
    %v224 = vld [vmem:[%s0 + $0x502] sm:$0x3f]
    %v225 = vld [vmem:[%s0 + $0x508] sm:$0xff]
    %v226 = vld [vmem:[%s0 + $0x510] sm:$0x3f]
    %v227 = vld [vmem:[%s0 + $0x516] sm:$0xff]
    %v228 = vld [vmem:[%s0 + $0x51e] sm:$0x3f]
    %v229 = vld [vmem:[%s0 + $0x524] sm:$0xff]
    %v230 = vld [vmem:[%s0 + $0x52c] sm:$0x3f]
    %v231 = vld [vmem:[%s0 + $0x532] sm:$0xff]
    %v232 = vld [vmem:[%s0 + $0x53a] sm:$0x3f]
    %v233 = vld [vmem:[%s0 + $0x540] sm:$0xff]
    %v234 = vld [vmem:[%s0 + $0x548] sm:$0x3f]
    %v235 = vld [vmem:[%s0 + $0x54e] sm:$0xff]
    %v236 = vld [vmem:[%s0 + $0x556] sm:$0x3f]
    %v237 = vld [vmem:[%s0 + $0x55c] sm:$0xff]
    %v238 = vld [vmem:[%s0 + $0x564] sm:$0x3f]
    %v239 = vld [vmem:[%s0 + $0x56a] sm:$0xff]
    %v240 = vld [vmem:[%s0 + $0x572] sm:$0x3f]
    %v241 = vld [vmem:[%s0 + $0x578] sm:$0xff]
    %v242 = vld [vmem:[%s0 + $0x580] sm:$0x3f]
    %v243 = vld [vmem:[%s0 + $0x586] sm:$0xff]
    %v244 = vld [vmem:[%s0 + $0x58e] sm:$0x3f]
    %v245 = vld [vmem:[%s0 + $0x594] sm:$0xff]
    %v246 = vld [vmem:[%s0 + $0x59c] sm:$0x3f]
    %v247 = vld [vmem:[%s0 + $0x5a2] sm:$0xff]
    %v248 = vld [vmem:[%s0 + $0x5aa] sm:$0x3f]
    %v249 = vld [vmem:[%s0 + $0x5b0] sm:$0xff]
    %v250 = vld [vmem:[%s0 + $0x5b8] sm:$0x3f]
    %v251 = vld [vmem:[%s0 + $0x5be] sm:$0xff]
    %v252 = vld [vmem:[%s0 + $0x5c6] sm:$0x3f]
    %v253 = vld [vmem:[%s0 + $0x5cc] sm:$0xff]
    %v254 = vld [vmem:[%s0 + $0x5d4] sm:$0x3f]
    %v255 = vld [vmem:[%s0 + $0x5da] sm:$0xff]
    %v256 = vld [vmem:[%s0 + $0x5e2] sm:$0x3f]
    %v257 = vld [vmem:[%s0 + $0x5e8] sm:$0xff]
    %v258 = vld [vmem:[%s0 + $0x5f0] sm:$0x3f]
    %v259 = vld [vmem:[%s0 + $0x5f6] sm:$0xff]
    %v260 = vld [vmem:[%s0 + $0x5fe] sm:$0x3f]
    %v261 = vld [vmem:[%s0 + $0x604] sm:$0xff]
    %v262 = vld [vmem:[%s0 + $0x60c] sm:$0x3f]
    %v263 = vld [vmem:[%s0 + $0x612] sm:$0xff]
    %v264 = vld [vmem:[%s0 + $0x61a] sm:$0x3f]
    %v265 = vld [vmem:[%s0 + $0x620] sm:$0xff]
    %v266 = vld [vmem:[%s0 + $0x628] sm:$0x3f]
    %v267 = vld [vmem:[%s0 + $0x62e] sm:$0xff]
    %v268 = vld [vmem:[%s0 + $0x636] sm:$0x3f]
    %v269 = vld [vmem:[%s0 + $0x63c] sm:$0xff]
    %v270 = vld [vmem:[%s0 + $0x644] sm:$0x3f]
    %v271 = vld [vmem:[%s0 + $0x64a] sm:$0xff]
    %v272 = vld [vmem:[%s0 + $0x652] sm:$0x3f]
    %v273 = vld [vmem:[%s0 + $0x658] sm:$0xff]
    %v274 = vld [vmem:[%s0 + $0x660] sm:$0x3f]
    %v275 = vld [vmem:[%s0 + $0x666] sm:$0xff]
    %v276 = vld [vmem:[%s0 + $0x66e] sm:$0x3f]
    %v277 = vld [vmem:[%s0 + $0x674] sm:$0xff]
    %v278 = vld [vmem:[%s0 + $0x67c] sm:$0x3f]
    %v279 = vld [vmem:[%s0 + $0x682] sm:$0xff]
    %v280 = vld [vmem:[%s0 + $0x68a] sm:$0x3f]
    %v281 = vld [vmem:[%s0 + $0x690] sm:$0xff]
    %v282 = vld [vmem:[%s0 + $0x698] sm:$0x3f]
    %v283 = vld [vmem:[%s0 + $0x69e] sm:$0xff]
    %v284 = vld [vmem:[%s0 + $0x6a6] sm:$0x3f]
    %v285 = vld [vmem:[%s0 + $0x6ac] sm:$0xff]
    %v286 = vld [vmem:[%s0 + $0x6b4] sm:$0x3f]
    %v287 = vld [vmem:[%s0 + $0x6ba] sm:$0xff]
    %v288 = vld [vmem:[%s0 + $0x6c2] sm:$0x3f]
    %v289 = vld [vmem:[%s0 + $0x6c8] sm:$0xff]
    %v290 = vld [vmem:[%s0 + $0x6d0] sm:$0x3f]
    %v291 = vld [vmem:[%s0 + $0x6d6] sm:$0xff]
    %v292 = vld [vmem:[%s0 + $0x6de] sm:$0x3f]
    %v293 = vld [vmem:[%s0 + $0x6e4] sm:$0xff]
    %v294 = vld [vmem:[%s0 + $0x6ec] sm:$0x3f]
    %v295 = vld [vmem:[%s0 + $0x6f2] sm:$0xff]
    %v296 = vld [vmem:[%s0 + $0x6fa] sm:$0x3f]
    %v297 = vld [vmem:[%s0 + $0x700] sm:$0xff]
    %v298 = vld [vmem:[%s0 + $0x708] sm:$0x3f]
    %v299 = vld [vmem:[%s0 + $0x70e] sm:$0xff]
    %v300 = vld [vmem:[%s0 + $0x716] sm:$0x3f]
    %v301 = vld [vmem:[%s0 + $0x71c] sm:$0xff]
    %v302 = vld [vmem:[%s0 + $0x724] sm:$0x3f]
    %v303 = vld [vmem:[%s0 + $0x72a] sm:$0xff]
    %v304 = vld [vmem:[%s0 + $0x732] sm:$0x3f]
    %v305 = vld [vmem:[%s0 + $0x738] sm:$0xff]
    %v306 = vld [vmem:[%s0 + $0x740] sm:$0x3f]
    %v307 = vld [vmem:[%s0 + $0x746] sm:$0xff]
    %v308 = vld [vmem:[%s0 + $0x74e] sm:$0x3f]
    %v309 = vld [vmem:[%s0 + $0x754] sm:$0xff]
    %v310 = vld [vmem:[%s0 + $0x75c] sm:$0x3f]
    %v311 = vld [vmem:[%s0 + $0x762] sm:$0xff]
    %v312 = vld [vmem:[%s0 + $0x76a] sm:$0x3f]
    %v313 = vld [vmem:[%s0 + $0x770] sm:$0xff]
    %v314 = vld [vmem:[%s0 + $0x778] sm:$0x3f]
    %v315 = vld [vmem:[%s0 + $0x77e] sm:$0xff]
    %v316 = vld [vmem:[%s0 + $0x786] sm:$0x3f]
    %v317 = vld [vmem:[%s0 + $0x78c] sm:$0xff]
    %v318 = vld [vmem:[%s0 + $0x794] sm:$0x3f]
    %v319 = vld [vmem:[%s0 + $0x79a] sm:$0xff]
    %v320 = vld [vmem:[%s0 + $0x7a2] sm:$0x3f]
    %v321 = vld [vmem:[%s0 + $0x7a8] sm:$0xff]
    %v322 = vld [vmem:[%s0 + $0x7b0] sm:$0x3f]
    %v323 = vld [vmem:[%s0 + $0x7b6] sm:$0xff]
    %v324 = vld [vmem:[%s0 + $0x7be] sm:$0x3f]
    %v325 = vld [vmem:[%s0 + $0x7c4] sm:$0xff]
    %v326 = vld [vmem:[%s0 + $0x7cc] sm:$0x3f]
    %v327 = vld [vmem:[%s0 + $0x7d2] sm:$0xff]
    %v328 = vld [vmem:[%s0 + $0x7da] sm:$0x3f]
    %v329 = vld [vmem:[%s0 + $0x7e0] sm:$0xff]
    %v330 = vld [vmem:[%s0 + $0x7e8] sm:$0x3f]
    %v331 = vld [vmem:[%s0 + $0x7ee] sm:$0xff]
    %v332 = vld [vmem:[%s0 + $0x7f6] sm:$0x3f]
    %v333 = vld [vmem:[%s0 + $0x7fc] sm:$0xff]
    %v334 = vld [vmem:[%s0 + $0x804] sm:$0x3f]
    %v335 = vld [vmem:[%s0 + $0x80a] sm:$0xff]
    %v336 = vld [vmem:[%s0 + $0x812] sm:$0x3f]
    %v337 = vld [vmem:[%s0 + $0x818] sm:$0xff]
    %v338 = vld [vmem:[%s0 + $0x820] sm:$0x3f]
    %v339 = vld [vmem:[%s0 + $0x826] sm:$0xff]
    %v340 = vld [vmem:[%s0 + $0x82e] sm:$0x3f]
    %v341 = vld [vmem:[%s0 + $0x834] sm:$0xff]
    %v342 = vld [vmem:[%s0 + $0x83c] sm:$0x3f]
    %v343 = vld [vmem:[%s0 + $0x842] sm:$0xff]
    %v344 = vld [vmem:[%s0 + $0x84a] sm:$0x3f]
    %v345 = vld [vmem:[%s0 + $0x850] sm:$0xff]
    %v346 = vld [vmem:[%s0 + $0x858] sm:$0x3f]
    %v347 = vld [vmem:[%s0 + $0x85e] sm:$0xff]
    %v348 = vld [vmem:[%s0 + $0x866] sm:$0x3f]
    %v349 = vld [vmem:[%s0 + $0x86c] sm:$0xff]
    %v350 = vld [vmem:[%s0 + $0x874] sm:$0x3f]
    %v351 = vld [vmem:[%s0 + $0x87a] sm:$0xff]
    %v352 = vld [vmem:[%s0 + $0x882] sm:$0x3f]
    %v353 = vld [vmem:[%s0 + $0x888] sm:$0xff]
    %v354 = vld [vmem:[%s0 + $0x890] sm:$0x3f]
    %v355 = vld [vmem:[%s0 + $0x896] sm:$0xff]
    %v356 = vld [vmem:[%s0 + $0x89e] sm:$0x3f]
    %v357 = vld [vmem:[%s0 + $0x8a4] sm:$0xff]
    %v358 = vld [vmem:[%s0 + $0x8ac] sm:$0x3f]
    %v359 = vld [vmem:[%s0 + $0x8b2] sm:$0xff]
    %v360 = vld [vmem:[%s0 + $0x8ba] sm:$0x3f]
    %v361 = vld [vmem:[%s0 + $0x8c0] sm:$0xff]
    %v362 = vld [vmem:[%s0 + $0x8c8] sm:$0x3f]
    %v363 = vld [vmem:[%s0 + $0x8ce] sm:$0xff]
    %v364 = vld [vmem:[%s0 + $0x8d6] sm:$0x3f]
    %v365 = vld [vmem:[%s0 + $0x8dc] sm:$0xff]
    %v366 = vld [vmem:[%s0 + $0x8e4] sm:$0x3f]
    %v367 = vld [vmem:[%s0 + $0x8ea] sm:$0xff]
    %v368 = vld [vmem:[%s0 + $0x8f2] sm:$0x3f]
    %v369 = vld [vmem:[%s0 + $0x8f8] sm:$0xff]
    %v370 = vld [vmem:[%s0 + $0x900] sm:$0x3f]
    %v371 = vld [vmem:[%s0 + $0x906] sm:$0xff]
    %v372 = vld [vmem:[%s0 + $0x90e] sm:$0x3f]
    %v373 = vld [vmem:[%s0 + $0x914] sm:$0xff]
    %v374 = vld [vmem:[%s0 + $0x91c] sm:$0x3f]
    %v375 = vld [vmem:[%s0 + $0x922] sm:$0xff]
    %v376 = vld [vmem:[%s0 + $0x92a] sm:$0x3f]
    %v377 = vld [vmem:[%s0 + $0x930] sm:$0xff]
    %v378 = vld [vmem:[%s0 + $0x938] sm:$0x3f]
    %v379 = vld [vmem:[%s0 + $0x93e] sm:$0xff]
    %v380 = vld [vmem:[%s0 + $0x946] sm:$0x3f]
    %v381 = vld [vmem:[%s0 + $0x94c] sm:$0xff]
    %v382 = vld [vmem:[%s0 + $0x954] sm:$0x3f]
    %v383 = vld [vmem:[%s0 + $0x95a] sm:$0xff]
    %v384 = vld [vmem:[%s0 + $0x962] sm:$0x3f]
    %v385 = vld [vmem:[%s0 + $0x968] sm:$0xff]
    %v386 = vld [vmem:[%s0 + $0x970] sm:$0x3f]
    %v387 = vld [vmem:[%s0 + $0x976] sm:$0xff]
    %v388 = vld [vmem:[%s0 + $0x97e] sm:$0x3f]
    %v389 = vld [vmem:[%s0 + $0x984] sm:$0xff]
    %v390 = vld [vmem:[%s0 + $0x98c] sm:$0x3f]
    %v391 = vld [vmem:[%s0 + $0x992] sm:$0xff]
    %v392 = vld [vmem:[%s0 + $0x99a] sm:$0x3f]
    %v393 = vld [vmem:[%s0 + $0x9a0] sm:$0xff]
    %v394 = vld [vmem:[%s0 + $0x9a8] sm:$0x3f]
    %v395 = vld [vmem:[%s0 + $0x9ae] sm:$0xff]
    %v396 = vld [vmem:[%s0 + $0x9b6] sm:$0x3f]
    %v397 = vld [vmem:[%s0 + $0x9bc] sm:$0xff]
    %v398 = vld [vmem:[%s0 + $0x9c4] sm:$0x3f]
    %v399 = vld [vmem:[%s0 + $0x9ca] sm:$0xff]
    %v400 = vld [vmem:[%s0 + $0x9d2] sm:$0x3f]
    %v401 = vld [vmem:[%s0 + $0x9d8] sm:$0xff]
    %v402 = vld [vmem:[%s0 + $0x9e0] sm:$0x3f]
    %v403 = vld [vmem:[%s0 + $0x9e6] sm:$0xff]
    %v404 = vld [vmem:[%s0 + $0x9ee] sm:$0x3f]
    %v405 = vld [vmem:[%s0 + $0x9f4] sm:$0xff]
    %v406 = vld [vmem:[%s0 + $0x9fc] sm:$0x3f]
    %v407 = vld [vmem:[%s0 + $0xa02] sm:$0xff]
    %v408 = vld [vmem:[%s0 + $0xa0a] sm:$0x3f]
    %v409 = vld [vmem:[%s0 + $0xa10] sm:$0xff]
    %v410 = vld [vmem:[%s0 + $0xa18] sm:$0x3f]
    %v411 = vld [vmem:[%s0 + $0xa1e] sm:$0xff]
    %v412 = vld [vmem:[%s0 + $0xa26] sm:$0x3f]
    %v413 = vld [vmem:[%s0 + $0xa2c] sm:$0xff]
    %v414 = vld [vmem:[%s0 + $0xa34] sm:$0x3f]
    %v415 = vld [vmem:[%s0 + $0xa3a] sm:$0xff]
    %v416 = vld [vmem:[%s0 + $0xa42] sm:$0x3f]
    %v417 = vld [vmem:[%s0 + $0xa48] sm:$0xff]
    %v418 = vld [vmem:[%s0 + $0xa50] sm:$0x3f]
    %v419 = vld [vmem:[%s0 + $0xa56] sm:$0xff]
    %v420 = vld [vmem:[%s0 + $0xa5e] sm:$0x3f]
    %v421 = vld [vmem:[%s0 + $0xa64] sm:$0xff]
    %v422 = vld [vmem:[%s0 + $0xa6c] sm:$0x3f]
    %v423 = vld [vmem:[%s0 + $0xa72] sm:$0xff]
    %v424 = vld [vmem:[%s0 + $0xa7a] sm:$0x3f]
    %v425 = vld [vmem:[%s0 + $0xa80] sm:$0xff]
    %v426 = vld [vmem:[%s0 + $0xa88] sm:$0x3f]
    %v427 = vld [vmem:[%s0 + $0xa8e] sm:$0xff]
    %v428 = vld [vmem:[%s0 + $0xa96] sm:$0x3f]
    %v429 = vld [vmem:[%s0 + $0xa9c] sm:$0xff]
    %v430 = vld [vmem:[%s0 + $0xaa4] sm:$0x3f]
    %v431 = vld [vmem:[%s0 + $0xaaa] sm:$0xff]
    %v432 = vld [vmem:[%s0 + $0xab2] sm:$0x3f]
    %v433 = vld [vmem:[%s0 + $0xab8] sm:$0xff]
    %v434 = vld [vmem:[%s0 + $0xac0] sm:$0x3f]
    %v435 = vld [vmem:[%s0 + $0xac6] sm:$0xff]
    %v436 = vld [vmem:[%s0 + $0xace] sm:$0x3f]
    %v437 = vld [vmem:[%s0 + $0xad4] sm:$0xff]
    %v438 = vld [vmem:[%s0 + $0xadc] sm:$0x3f]
    %v439 = vld [vmem:[%s0 + $0xae2] sm:$0xff]
    %v440 = vld [vmem:[%s0 + $0xaea] sm:$0x3f]
    %v441 = vld [vmem:[%s0 + $0xaf0] sm:$0xff]
    %v442 = vld [vmem:[%s0 + $0xaf8] sm:$0x3f]
    %v443 = vld [vmem:[%s0 + $0xafe] sm:$0xff]
    %v444 = vld [vmem:[%s0 + $0xb06] sm:$0x3f]
    %v445 = vld [vmem:[%s0 + $0xb0c] sm:$0xff]
    %v446 = vld [vmem:[%s0 + $0xb14] sm:$0x3f]
    %v447 = vld [vmem:[%s0 + $0xb1a] sm:$0xff]
    %v448 = vld [vmem:[%s0 + $0xb22] sm:$0x3f]
    %v449 = vld [vmem:[%s0 + $0xb28] sm:$0xff]
    %v450 = vld [vmem:[%s0 + $0xb30] sm:$0x3f]
    %v451 = vld [vmem:[%s0 + $0xb36] sm:$0xff]
    %v452 = vld [vmem:[%s0 + $0xb3e] sm:$0x3f]
    %v453 = vld [vmem:[%s0 + $0xb44] sm:$0xff]
    %v454 = vld [vmem:[%s0 + $0xb4c] sm:$0x3f]
    %v455 = vld [vmem:[%s0 + $0xb52] sm:$0xff]
    %v456 = vld [vmem:[%s0 + $0xb5a] sm:$0x3f]
    %v457 = vld [vmem:[%s0 + $0xb60] sm:$0xff]
    %v458 = vld [vmem:[%s0 + $0xb68] sm:$0x3f]
    %v459 = vld [vmem:[%s0 + $0xb6e] sm:$0xff]
    %v460 = vld [vmem:[%s0 + $0xb76] sm:$0x3f]
    %v461 = vld [vmem:[%s0 + $0xb7c] sm:$0xff]
    %v462 = vld [vmem:[%s0 + $0xb84] sm:$0x3f]
    %v463 = vld [vmem:[%s0 + $0xb8a] sm:$0xff]
    %v464 = vld [vmem:[%s0 + $0xb92] sm:$0x3f]
    %v465 = vld [vmem:[%s0 + $0xb98] sm:$0xff]
    %v466 = vld [vmem:[%s0 + $0xba0] sm:$0x3f]
    %v467 = vld [vmem:[%s0 + $0xba6] sm:$0xff]
    %v468 = vld [vmem:[%s0 + $0xbae] sm:$0x3f]
    %v469 = vld [vmem:[%s0 + $0xbb4] sm:$0xff]
    %v470 = vld [vmem:[%s0 + $0xbbc] sm:$0x3f]
    %v471 = vld [vmem:[%s0 + $0xbc2] sm:$0xff]
    %v472 = vld [vmem:[%s0 + $0xbca] sm:$0x3f]
    %v473 = vld [vmem:[%s0 + $0xbd0] sm:$0xff]
    %v474 = vld [vmem:[%s0 + $0xbd8] sm:$0x3f]
    %v475 = vld [vmem:[%s0 + $0xbde] sm:$0xff]
    %v476 = vld [vmem:[%s0 + $0xbe6] sm:$0x3f]
    %v477 = vld [vmem:[%s0 + $0xbec] sm:$0xff]
    %v478 = vld [vmem:[%s0 + $0xbf4] sm:$0x3f]
    %v479 = vld [vmem:[%s0 + $0xbfa] sm:$0xff]
    %v480 = vld [vmem:[%s0 + $0xc02] sm:$0x3f]
    %v481 = vld [vmem:[%s0 + $0xc08] sm:$0xff]
    %v482 = vld [vmem:[%s0 + $0xc10] sm:$0x3f]
    %v483 = vld [vmem:[%s0 + $0xc16] sm:$0xff]
    %v484 = vld [vmem:[%s0 + $0xc1e] sm:$0x3f]
    %v485 = vld [vmem:[%s0 + $0xc24] sm:$0xff]
    %v486 = vld [vmem:[%s0 + $0xc2c] sm:$0x3f]
    %v487 = vld [vmem:[%s0 + $0xc32] sm:$0xff]
    %v488 = vld [vmem:[%s0 + $0xc3a] sm:$0x3f]
    %v489 = vld [vmem:[%s0 + $0xc40] sm:$0xff]
    %v490 = vld [vmem:[%s0 + $0xc48] sm:$0x3f]
    %v491 = vld [vmem:[%s0 + $0xc4e] sm:$0xff]
    %v492 = vld [vmem:[%s0 + $0xc56] sm:$0x3f]
    %v493 = vld [vmem:[%s0 + $0xc5c] sm:$0xff]
    %v494 = vld [vmem:[%s0 + $0xc64] sm:$0x3f]
    %v495 = vld [vmem:[%s0 + $0xc6a] sm:$0xff]
    %v496 = vld [vmem:[%s0 + $0xc72] sm:$0x3f]
    %v497 = vld [vmem:[%s0 + $0xc78] sm:$0xff]
    %v498 = vld [vmem:[%s0 + $0xc80] sm:$0x3f]
    %v499 = vld [vmem:[%s0 + $0xc86] sm:$0xff]
    %v500 = vld [vmem:[%s0 + $0xc8e] sm:$0x3f]
    %v501 = vld [vmem:[%s0 + $0xc94] sm:$0xff]
    %v502 = vld [vmem:[%s0 + $0xc9c] sm:$0x3f]
    %v503 = vld [vmem:[%s0 + $0xca2] sm:$0xff]
    %v504 = vld [vmem:[%s0 + $0xcaa] sm:$0x3f]
    %v505 = vld [vmem:[%s0 + $0xcb0] sm:$0xff]
    %v506 = vld [vmem:[%s0 + $0xcb8] sm:$0x3f]
    %v507 = vld [vmem:[%s0 + $0xcbe] sm:$0xff]
    %v508 = vld [vmem:[%s0 + $0xcc6] sm:$0x3f]
    %v509 = vld [vmem:[%s0 + $0xccc] sm:$0xff]
    %v510 = vld [vmem:[%s0 + $0xcd4] sm:$0x3f]
    %v511 = vld [vmem:[%s0 + $0xcda] sm:$0xff]
    %v512 = vld [vmem:[%s0 + $0xce2] sm:$0x3f]
    %v513 = vld [vmem:[%s0 + $0xce8] sm:$0xff]
    %v514 = vld [vmem:[%s0 + $0xcf0] sm:$0x3f]
    %v515 = vld [vmem:[%s0 + $0xcf6] sm:$0xff]
    %v516 = vld [vmem:[%s0 + $0xcfe] sm:$0x3f]
    %v517 = vld [vmem:[%s0 + $0xd04] sm:$0xff]
    %v518 = vld [vmem:[%s0 + $0xd0c] sm:$0x3f]
    %v519 = vld [vmem:[%s0 + $0xd12] sm:$0xff]
    %v520 = vld [vmem:[%s0 + $0xd1a] sm:$0x3f]
    %v521 = vld [vmem:[%s0 + $0xd20] sm:$0xff]
    %v522 = vld [vmem:[%s0 + $0xd28] sm:$0x3f]
    %v523 = vld [vmem:[%s0 + $0xd2e] sm:$0xff]
    %v524 = vld [vmem:[%s0 + $0xd36] sm:$0x3f]
    %v525 = vld [vmem:[%s0 + $0xd3c] sm:$0xff]
    %v526 = vld [vmem:[%s0 + $0xd44] sm:$0x3f]
    %v527 = vld [vmem:[%s0 + $0xd4a] sm:$0xff]
    %v528 = vld [vmem:[%s0 + $0xd52] sm:$0x3f]
    %v529 = vld [vmem:[%s0 + $0xd58] sm:$0xff]
    %v530 = vld [vmem:[%s0 + $0xd60] sm:$0x3f]
    %v531 = vld [vmem:[%s0 + $0xd66] sm:$0xff]
    %v532 = vld [vmem:[%s0 + $0xd6e] sm:$0x3f]
    %v533 = vld [vmem:[%s0 + $0xd74] sm:$0xff]
    %v534 = vld [vmem:[%s0 + $0xd7c] sm:$0x3f]
    %v535 = vld [vmem:[%s0 + $0xd82] sm:$0xff]
    %v536 = vld [vmem:[%s0 + $0xd8a] sm:$0x3f]
    %v537 = vld [vmem:[%s0 + $0xd90] sm:$0xff]
    %v538 = vld [vmem:[%s0 + $0xd98] sm:$0x3f]
    %v539 = vld [vmem:[%s0 + $0xd9e] sm:$0xff]
    %v540 = vld [vmem:[%s0 + $0xda6] sm:$0x3f]
    %v541 = vld [vmem:[%s0 + $0xdac] sm:$0xff]
    %v542 = vld [vmem:[%s0 + $0xdb4] sm:$0x3f]
    %v543 = vld [vmem:[%s0 + $0xdba] sm:$0xff]
    %v544 = vld [vmem:[%s0 + $0xdc2] sm:$0x3f]
    %v545 = vld [vmem:[%s0 + $0xdc8] sm:$0xff]
    %v546 = vld [vmem:[%s0 + $0xdd0] sm:$0x3f]
    %v547 = vld [vmem:[%s0 + $0xdd6] sm:$0xff]
    %v548 = vld [vmem:[%s0 + $0xdde] sm:$0x3f]
    %v549 = vld [vmem:[%s0 + $0xde4] sm:$0xff]
    %v550 = vld [vmem:[%s0 + $0xdec] sm:$0x3f]
    %v551 = vld [vmem:[%s0 + $0xdf2] sm:$0xff]
    %v552 = vld [vmem:[%s0 + $0xdfa] sm:$0x3f]
    %v1065 = vcombine.low %v41, %v43
    %v1066 = vcombine.high %v41, %v43
    %v1067 = vcombine.low %v45, %v47
    %v1068 = vcombine.high %v45, %v47
    %v1070 = vunpack.c.l.s4 1983009808
    %v1071 = vunpack.c.0.s8 %v1070
    %v1072 = vlaneseq
    %v1073 = vshrl.u32 %v1072, 7
    %v1074 = vsub.s32 %v1071, %v1073
    %v1075 = vrot.slane %v1065, %v1074
    %v1077 = vunpack.c.l.s4 1983009808
    %v1078 = vunpack.c.0.s8 %v1077
    %v1079 = vlaneseq
    %v1080 = vshrl.u32 %v1079, 7
    %v1081 = vsub.s32 %v1078, %v1080
    %v1082 = vrot.slane %v1066, %v1081
    %v1084 = vunpack.c.l.s4 1983009808
    %v1085 = vunpack.c.0.s8 %v1084
    %v1086 = vlaneseq
    %v1087 = vshrl.u32 %v1086, 7
    %v1088 = vsub.s32 %v1085, %v1087
    %v1089 = vrot.slane %v1067, %v1088
    %v1091 = vunpack.c.l.s4 1983009808
    %v1092 = vunpack.c.0.s8 %v1091
    %v1093 = vlaneseq
    %v1094 = vshrl.u32 %v1093, 7
    %v1095 = vsub.s32 %v1092, %v1094
    %v1096 = vrot.slane %v1068, %v1095
    %v1097 = vcombine.low %v1075, %v1089
    %v1098 = vcombine.high %v1075, %v1089
    %v1099 = vcombine.low %v1082, %v1096
    %v1100 = vcombine.high %v1082, %v1096
    %v1101 = vcombine.low %v42, %v44
    %v1102 = vcombine.high %v42, %v44
    %v1103 = vcombine.low %v46, %v48
    %v1104 = vcombine.high %v46, %v48
    %v1106 = vunpack.c.l.s4 1983009808
    %v1107 = vunpack.c.0.s8 %v1106
    %v1108 = vlaneseq
    %v1109 = vshrl.u32 %v1108, 7
    %v1110 = vsub.s32 %v1107, %v1109
    %v1111 = vrot.slane %v1101, %v1110
    %v1113 = vunpack.c.l.s4 1983009808
    %v1114 = vunpack.c.0.s8 %v1113
    %v1115 = vlaneseq
    %v1116 = vshrl.u32 %v1115, 7
    %v1117 = vsub.s32 %v1114, %v1116
    %v1118 = vrot.slane %v1102, %v1117
    %v1120 = vunpack.c.l.s4 1983009808
    %v1121 = vunpack.c.0.s8 %v1120
    %v1122 = vlaneseq
    %v1123 = vshrl.u32 %v1122, 7
    %v1124 = vsub.s32 %v1121, %v1123
    %v1125 = vrot.slane %v1103, %v1124
    %v1127 = vunpack.c.l.s4 1983009808
    %v1128 = vunpack.c.0.s8 %v1127
    %v1129 = vlaneseq
    %v1130 = vshrl.u32 %v1129, 7
    %v1131 = vsub.s32 %v1128, %v1130
    %v1132 = vrot.slane %v1104, %v1131
    %v1133 = vcombine.low %v1111, %v1125
    %v1134 = vcombine.high %v1111, %v1125
    %v1135 = vcombine.low %v1118, %v1132
    %v1136 = vcombine.low %v49, %v51
    %v1137 = vcombine.high %v49, %v51
    %v1138 = vcombine.low %v53, %v55
    %v1139 = vcombine.high %v53, %v55
    %v1141 = vunpack.c.l.s4 1983009808
    %v1142 = vunpack.c.0.s8 %v1141
    %v1143 = vlaneseq
    %v1144 = vshrl.u32 %v1143, 7
    %v1145 = vsub.s32 %v1142, %v1144
    %v1146 = vrot.slane %v1136, %v1145
    %v1148 = vunpack.c.l.s4 1983009808
    %v1149 = vunpack.c.0.s8 %v1148
    %v1150 = vlaneseq
    %v1151 = vshrl.u32 %v1150, 7
    %v1152 = vsub.s32 %v1149, %v1151
    %v1153 = vrot.slane %v1137, %v1152
    %v1155 = vunpack.c.l.s4 1983009808
    %v1156 = vunpack.c.0.s8 %v1155
    %v1157 = vlaneseq
    %v1158 = vshrl.u32 %v1157, 7
    %v1159 = vsub.s32 %v1156, %v1158
    %v1160 = vrot.slane %v1138, %v1159
    %v1162 = vunpack.c.l.s4 1983009808
    %v1163 = vunpack.c.0.s8 %v1162
    %v1164 = vlaneseq
    %v1165 = vshrl.u32 %v1164, 7
    %v1166 = vsub.s32 %v1163, %v1165
    %v1167 = vrot.slane %v1139, %v1166
    %v1168 = vcombine.low %v1146, %v1160
    %v1169 = vcombine.high %v1146, %v1160
    %v1170 = vcombine.low %v1153, %v1167
    %v1171 = vcombine.high %v1153, %v1167
    %v1172 = vcombine.low %v50, %v52
    %v1173 = vcombine.high %v50, %v52
    %v1174 = vcombine.low %v54, %v56
    %v1175 = vcombine.high %v54, %v56
    %v1177 = vunpack.c.l.s4 1983009808
    %v1178 = vunpack.c.0.s8 %v1177
    %v1179 = vlaneseq
    %v1180 = vshrl.u32 %v1179, 7
    %v1181 = vsub.s32 %v1178, %v1180
    %v1182 = vrot.slane %v1172, %v1181
    %v1184 = vunpack.c.l.s4 1983009808
    %v1185 = vunpack.c.0.s8 %v1184
    %v1186 = vlaneseq
    %v1187 = vshrl.u32 %v1186, 7
    %v1188 = vsub.s32 %v1185, %v1187
    %v1189 = vrot.slane %v1173, %v1188
    %v1191 = vunpack.c.l.s4 1983009808
    %v1192 = vunpack.c.0.s8 %v1191
    %v1193 = vlaneseq
    %v1194 = vshrl.u32 %v1193, 7
    %v1195 = vsub.s32 %v1192, %v1194
    %v1196 = vrot.slane %v1174, %v1195
    %v1198 = vunpack.c.l.s4 1983009808
    %v1199 = vunpack.c.0.s8 %v1198
    %v1200 = vlaneseq
    %v1201 = vshrl.u32 %v1200, 7
    %v1202 = vsub.s32 %v1199, %v1201
    %v1203 = vrot.slane %v1175, %v1202
    %v1204 = vcombine.low %v1182, %v1196
    %v1205 = vcombine.high %v1182, %v1196
    %v1206 = vcombine.low %v1189, %v1203
    %v1207 = vcombine.low %v57, %v59
    %v1208 = vcombine.high %v57, %v59
    %v1209 = vcombine.low %v61, %v63
    %v1210 = vcombine.high %v61, %v63
    %v1212 = vunpack.c.l.s4 1983009808
    %v1213 = vunpack.c.0.s8 %v1212
    %v1214 = vlaneseq
    %v1215 = vshrl.u32 %v1214, 7
    %v1216 = vsub.s32 %v1213, %v1215
    %v1217 = vrot.slane %v1207, %v1216
    %v1219 = vunpack.c.l.s4 1983009808
    %v1220 = vunpack.c.0.s8 %v1219
    %v1221 = vlaneseq
    %v1222 = vshrl.u32 %v1221, 7
    %v1223 = vsub.s32 %v1220, %v1222
    %v1224 = vrot.slane %v1208, %v1223
    %v1226 = vunpack.c.l.s4 1983009808
    %v1227 = vunpack.c.0.s8 %v1226
    %v1228 = vlaneseq
    %v1229 = vshrl.u32 %v1228, 7
    %v1230 = vsub.s32 %v1227, %v1229
    %v1231 = vrot.slane %v1209, %v1230
    %v1233 = vunpack.c.l.s4 1983009808
    %v1234 = vunpack.c.0.s8 %v1233
    %v1235 = vlaneseq
    %v1236 = vshrl.u32 %v1235, 7
    %v1237 = vsub.s32 %v1234, %v1236
    %v1238 = vrot.slane %v1210, %v1237
    %v1239 = vcombine.low %v1217, %v1231
    %v1240 = vcombine.high %v1217, %v1231
    %v1241 = vcombine.low %v1224, %v1238
    %v1242 = vcombine.high %v1224, %v1238
    %v1243 = vcombine.low %v58, %v60
    %v1244 = vcombine.high %v58, %v60
    %v1245 = vcombine.low %v62, %v64
    %v1246 = vcombine.high %v62, %v64
    %v1248 = vunpack.c.l.s4 1983009808
    %v1249 = vunpack.c.0.s8 %v1248
    %v1250 = vlaneseq
    %v1251 = vshrl.u32 %v1250, 7
    %v1252 = vsub.s32 %v1249, %v1251
    %v1253 = vrot.slane %v1243, %v1252
    %v1255 = vunpack.c.l.s4 1983009808
    %v1256 = vunpack.c.0.s8 %v1255
    %v1257 = vlaneseq
    %v1258 = vshrl.u32 %v1257, 7
    %v1259 = vsub.s32 %v1256, %v1258
    %v1260 = vrot.slane %v1244, %v1259
    %v1262 = vunpack.c.l.s4 1983009808
    %v1263 = vunpack.c.0.s8 %v1262
    %v1264 = vlaneseq
    %v1265 = vshrl.u32 %v1264, 7
    %v1266 = vsub.s32 %v1263, %v1265
    %v1267 = vrot.slane %v1245, %v1266
    %v1269 = vunpack.c.l.s4 1983009808
    %v1270 = vunpack.c.0.s8 %v1269
    %v1271 = vlaneseq
    %v1272 = vshrl.u32 %v1271, 7
    %v1273 = vsub.s32 %v1270, %v1272
    %v1274 = vrot.slane %v1246, %v1273
    %v1275 = vcombine.low %v1253, %v1267
    %v1276 = vcombine.high %v1253, %v1267
    %v1277 = vcombine.low %v1260, %v1274
    %v1278 = vcombine.low %v65, %v67
    %v1279 = vcombine.high %v65, %v67
    %v1280 = vcombine.low %v69, %v71
    %v1281 = vcombine.high %v69, %v71
    %v1283 = vunpack.c.l.s4 1983009808
    %v1284 = vunpack.c.0.s8 %v1283
    %v1285 = vlaneseq
    %v1286 = vshrl.u32 %v1285, 7
    %v1287 = vsub.s32 %v1284, %v1286
    %v1288 = vrot.slane %v1278, %v1287
    %v1290 = vunpack.c.l.s4 1983009808
    %v1291 = vunpack.c.0.s8 %v1290
    %v1292 = vlaneseq
    %v1293 = vshrl.u32 %v1292, 7
    %v1294 = vsub.s32 %v1291, %v1293
    %v1295 = vrot.slane %v1279, %v1294
    %v1297 = vunpack.c.l.s4 1983009808
    %v1298 = vunpack.c.0.s8 %v1297
    %v1299 = vlaneseq
    %v1300 = vshrl.u32 %v1299, 7
    %v1301 = vsub.s32 %v1298, %v1300
    %v1302 = vrot.slane %v1280, %v1301
    %v1304 = vunpack.c.l.s4 1983009808
    %v1305 = vunpack.c.0.s8 %v1304
    %v1306 = vlaneseq
    %v1307 = vshrl.u32 %v1306, 7
    %v1308 = vsub.s32 %v1305, %v1307
    %v1309 = vrot.slane %v1281, %v1308
    %v1310 = vcombine.low %v1288, %v1302
    %v1311 = vcombine.high %v1288, %v1302
    %v1312 = vcombine.low %v1295, %v1309
    %v1313 = vcombine.high %v1295, %v1309
    %v1314 = vcombine.low %v66, %v68
    %v1315 = vcombine.high %v66, %v68
    %v1316 = vcombine.low %v70, %v72
    %v1317 = vcombine.high %v70, %v72
    %v1319 = vunpack.c.l.s4 1983009808
    %v1320 = vunpack.c.0.s8 %v1319
    %v1321 = vlaneseq
    %v1322 = vshrl.u32 %v1321, 7
    %v1323 = vsub.s32 %v1320, %v1322
    %v1324 = vrot.slane %v1314, %v1323
    %v1326 = vunpack.c.l.s4 1983009808
    %v1327 = vunpack.c.0.s8 %v1326
    %v1328 = vlaneseq
    %v1329 = vshrl.u32 %v1328, 7
    %v1330 = vsub.s32 %v1327, %v1329
    %v1331 = vrot.slane %v1315, %v1330
    %v1333 = vunpack.c.l.s4 1983009808
    %v1334 = vunpack.c.0.s8 %v1333
    %v1335 = vlaneseq
    %v1336 = vshrl.u32 %v1335, 7
    %v1337 = vsub.s32 %v1334, %v1336
    %v1338 = vrot.slane %v1316, %v1337
    %v1340 = vunpack.c.l.s4 1983009808
    %v1341 = vunpack.c.0.s8 %v1340
    %v1342 = vlaneseq
    %v1343 = vshrl.u32 %v1342, 7
    %v1344 = vsub.s32 %v1341, %v1343
    %v1345 = vrot.slane %v1317, %v1344
    %v1346 = vcombine.low %v1324, %v1338
    %v1347 = vcombine.high %v1324, %v1338
    %v1348 = vcombine.low %v1331, %v1345
    %v1349 = vcombine.low %v73, %v75
    %v1350 = vcombine.high %v73, %v75
    %v1351 = vcombine.low %v77, %v79
    %v1352 = vcombine.high %v77, %v79
    %v1354 = vunpack.c.l.s4 1983009808
    %v1355 = vunpack.c.0.s8 %v1354
    %v1356 = vlaneseq
    %v1357 = vshrl.u32 %v1356, 7
    %v1358 = vsub.s32 %v1355, %v1357
    %v1359 = vrot.slane %v1349, %v1358
    %v1361 = vunpack.c.l.s4 1983009808
    %v1362 = vunpack.c.0.s8 %v1361
    %v1363 = vlaneseq
    %v1364 = vshrl.u32 %v1363, 7
    %v1365 = vsub.s32 %v1362, %v1364
    %v1366 = vrot.slane %v1350, %v1365
    %v1368 = vunpack.c.l.s4 1983009808
    %v1369 = vunpack.c.0.s8 %v1368
    %v1370 = vlaneseq
    %v1371 = vshrl.u32 %v1370, 7
    %v1372 = vsub.s32 %v1369, %v1371
    %v1373 = vrot.slane %v1351, %v1372
    %v1375 = vunpack.c.l.s4 1983009808
    %v1376 = vunpack.c.0.s8 %v1375
    %v1377 = vlaneseq
    %v1378 = vshrl.u32 %v1377, 7
    %v1379 = vsub.s32 %v1376, %v1378
    %v1380 = vrot.slane %v1352, %v1379
    %v1381 = vcombine.low %v1359, %v1373
    %v1382 = vcombine.high %v1359, %v1373
    %v1383 = vcombine.low %v1366, %v1380
    %v1384 = vcombine.high %v1366, %v1380
    %v1385 = vcombine.low %v74, %v76
    %v1386 = vcombine.high %v74, %v76
    %v1387 = vcombine.low %v78, %v80
    %v1388 = vcombine.high %v78, %v80
    %v1390 = vunpack.c.l.s4 1983009808
    %v1391 = vunpack.c.0.s8 %v1390
    %v1392 = vlaneseq
    %v1393 = vshrl.u32 %v1392, 7
    %v1394 = vsub.s32 %v1391, %v1393
    %v1395 = vrot.slane %v1385, %v1394
    %v1397 = vunpack.c.l.s4 1983009808
    %v1398 = vunpack.c.0.s8 %v1397
    %v1399 = vlaneseq
    %v1400 = vshrl.u32 %v1399, 7
    %v1401 = vsub.s32 %v1398, %v1400
    %v1402 = vrot.slane %v1386, %v1401
    %v1404 = vunpack.c.l.s4 1983009808
    %v1405 = vunpack.c.0.s8 %v1404
    %v1406 = vlaneseq
    %v1407 = vshrl.u32 %v1406, 7
    %v1408 = vsub.s32 %v1405, %v1407
    %v1409 = vrot.slane %v1387, %v1408
    %v1411 = vunpack.c.l.s4 1983009808
    %v1412 = vunpack.c.0.s8 %v1411
    %v1413 = vlaneseq
    %v1414 = vshrl.u32 %v1413, 7
    %v1415 = vsub.s32 %v1412, %v1414
    %v1416 = vrot.slane %v1388, %v1415
    %v1417 = vcombine.low %v1395, %v1409
    %v1418 = vcombine.high %v1395, %v1409
    %v1419 = vcombine.low %v1402, %v1416
    %v1420 = vcombine.low %v81, %v83
    %v1421 = vcombine.high %v81, %v83
    %v1422 = vcombine.low %v85, %v87
    %v1423 = vcombine.high %v85, %v87
    %v1425 = vunpack.c.l.s4 1983009808
    %v1426 = vunpack.c.0.s8 %v1425
    %v1427 = vlaneseq
    %v1428 = vshrl.u32 %v1427, 7
    %v1429 = vsub.s32 %v1426, %v1428
    %v1430 = vrot.slane %v1420, %v1429
    %v1432 = vunpack.c.l.s4 1983009808
    %v1433 = vunpack.c.0.s8 %v1432
    %v1434 = vlaneseq
    %v1435 = vshrl.u32 %v1434, 7
    %v1436 = vsub.s32 %v1433, %v1435
    %v1437 = vrot.slane %v1421, %v1436
    %v1439 = vunpack.c.l.s4 1983009808
    %v1440 = vunpack.c.0.s8 %v1439
    %v1441 = vlaneseq
    %v1442 = vshrl.u32 %v1441, 7
    %v1443 = vsub.s32 %v1440, %v1442
    %v1444 = vrot.slane %v1422, %v1443
    %v1446 = vunpack.c.l.s4 1983009808
    %v1447 = vunpack.c.0.s8 %v1446
    %v1448 = vlaneseq
    %v1449 = vshrl.u32 %v1448, 7
    %v1450 = vsub.s32 %v1447, %v1449
    %v1451 = vrot.slane %v1423, %v1450
    %v1452 = vcombine.low %v1430, %v1444
    %v1453 = vcombine.high %v1430, %v1444
    %v1454 = vcombine.low %v1437, %v1451
    %v1455 = vcombine.high %v1437, %v1451
    %v1456 = vcombine.low %v82, %v84
    %v1457 = vcombine.high %v82, %v84
    %v1458 = vcombine.low %v86, %v88
    %v1459 = vcombine.high %v86, %v88
    %v1461 = vunpack.c.l.s4 1983009808
    %v1462 = vunpack.c.0.s8 %v1461
    %v1463 = vlaneseq
    %v1464 = vshrl.u32 %v1463, 7
    %v1465 = vsub.s32 %v1462, %v1464
    %v1466 = vrot.slane %v1456, %v1465
    %v1468 = vunpack.c.l.s4 1983009808
    %v1469 = vunpack.c.0.s8 %v1468
    %v1470 = vlaneseq
    %v1471 = vshrl.u32 %v1470, 7
    %v1472 = vsub.s32 %v1469, %v1471
    %v1473 = vrot.slane %v1457, %v1472
    %v1475 = vunpack.c.l.s4 1983009808
    %v1476 = vunpack.c.0.s8 %v1475
    %v1477 = vlaneseq
    %v1478 = vshrl.u32 %v1477, 7
    %v1479 = vsub.s32 %v1476, %v1478
    %v1480 = vrot.slane %v1458, %v1479
    %v1482 = vunpack.c.l.s4 1983009808
    %v1483 = vunpack.c.0.s8 %v1482
    %v1484 = vlaneseq
    %v1485 = vshrl.u32 %v1484, 7
    %v1486 = vsub.s32 %v1483, %v1485
    %v1487 = vrot.slane %v1459, %v1486
    %v1488 = vcombine.low %v1466, %v1480
    %v1489 = vcombine.high %v1466, %v1480
    %v1490 = vcombine.low %v1473, %v1487
    %v1491 = vcombine.low %v89, %v91
    %v1492 = vcombine.high %v89, %v91
    %v1493 = vcombine.low %v93, %v95
    %v1494 = vcombine.high %v93, %v95
    %v1496 = vunpack.c.l.s4 1983009808
    %v1497 = vunpack.c.0.s8 %v1496
    %v1498 = vlaneseq
    %v1499 = vshrl.u32 %v1498, 7
    %v1500 = vsub.s32 %v1497, %v1499
    %v1501 = vrot.slane %v1491, %v1500
    %v1503 = vunpack.c.l.s4 1983009808
    %v1504 = vunpack.c.0.s8 %v1503
    %v1505 = vlaneseq
    %v1506 = vshrl.u32 %v1505, 7
    %v1507 = vsub.s32 %v1504, %v1506
    %v1508 = vrot.slane %v1492, %v1507
    %v1510 = vunpack.c.l.s4 1983009808
    %v1511 = vunpack.c.0.s8 %v1510
    %v1512 = vlaneseq
    %v1513 = vshrl.u32 %v1512, 7
    %v1514 = vsub.s32 %v1511, %v1513
    %v1515 = vrot.slane %v1493, %v1514
    %v1517 = vunpack.c.l.s4 1983009808
    %v1518 = vunpack.c.0.s8 %v1517
    %v1519 = vlaneseq
    %v1520 = vshrl.u32 %v1519, 7
    %v1521 = vsub.s32 %v1518, %v1520
    %v1522 = vrot.slane %v1494, %v1521
    %v1523 = vcombine.low %v1501, %v1515
    %v1524 = vcombine.high %v1501, %v1515
    %v1525 = vcombine.low %v1508, %v1522
    %v1526 = vcombine.high %v1508, %v1522
    %v1527 = vcombine.low %v90, %v92
    %v1528 = vcombine.high %v90, %v92
    %v1529 = vcombine.low %v94, %v96
    %v1530 = vcombine.high %v94, %v96
    %v1532 = vunpack.c.l.s4 1983009808
    %v1533 = vunpack.c.0.s8 %v1532
    %v1534 = vlaneseq
    %v1535 = vshrl.u32 %v1534, 7
    %v1536 = vsub.s32 %v1533, %v1535
    %v1537 = vrot.slane %v1527, %v1536
    %v1539 = vunpack.c.l.s4 1983009808
    %v1540 = vunpack.c.0.s8 %v1539
    %v1541 = vlaneseq
    %v1542 = vshrl.u32 %v1541, 7
    %v1543 = vsub.s32 %v1540, %v1542
    %v1544 = vrot.slane %v1528, %v1543
    %v1546 = vunpack.c.l.s4 1983009808
    %v1547 = vunpack.c.0.s8 %v1546
    %v1548 = vlaneseq
    %v1549 = vshrl.u32 %v1548, 7
    %v1550 = vsub.s32 %v1547, %v1549
    %v1551 = vrot.slane %v1529, %v1550
    %v1553 = vunpack.c.l.s4 1983009808
    %v1554 = vunpack.c.0.s8 %v1553
    %v1555 = vlaneseq
    %v1556 = vshrl.u32 %v1555, 7
    %v1557 = vsub.s32 %v1554, %v1556
    %v1558 = vrot.slane %v1530, %v1557
    %v1559 = vcombine.low %v1537, %v1551
    %v1560 = vcombine.high %v1537, %v1551
    %v1561 = vcombine.low %v1544, %v1558
    %v1562 = vcombine.low %v97, %v99
    %v1563 = vcombine.high %v97, %v99
    %v1564 = vcombine.low %v101, %v103
    %v1565 = vcombine.high %v101, %v103
    %v1567 = vunpack.c.l.s4 1983009808
    %v1568 = vunpack.c.0.s8 %v1567
    %v1569 = vlaneseq
    %v1570 = vshrl.u32 %v1569, 7
    %v1571 = vsub.s32 %v1568, %v1570
    %v1572 = vrot.slane %v1562, %v1571
    %v1574 = vunpack.c.l.s4 1983009808
    %v1575 = vunpack.c.0.s8 %v1574
    %v1576 = vlaneseq
    %v1577 = vshrl.u32 %v1576, 7
    %v1578 = vsub.s32 %v1575, %v1577
    %v1579 = vrot.slane %v1563, %v1578
    %v1581 = vunpack.c.l.s4 1983009808
    %v1582 = vunpack.c.0.s8 %v1581
    %v1583 = vlaneseq
    %v1584 = vshrl.u32 %v1583, 7
    %v1585 = vsub.s32 %v1582, %v1584
    %v1586 = vrot.slane %v1564, %v1585
    %v1588 = vunpack.c.l.s4 1983009808
    %v1589 = vunpack.c.0.s8 %v1588
    %v1590 = vlaneseq
    %v1591 = vshrl.u32 %v1590, 7
    %v1592 = vsub.s32 %v1589, %v1591
    %v1593 = vrot.slane %v1565, %v1592
    %v1594 = vcombine.low %v1572, %v1586
    %v1595 = vcombine.high %v1572, %v1586
    %v1596 = vcombine.low %v1579, %v1593
    %v1597 = vcombine.high %v1579, %v1593
    %v1598 = vcombine.low %v98, %v100
    %v1599 = vcombine.high %v98, %v100
    %v1600 = vcombine.low %v102, %v104
    %v1601 = vcombine.high %v102, %v104
    %v1603 = vunpack.c.l.s4 1983009808
    %v1604 = vunpack.c.0.s8 %v1603
    %v1605 = vlaneseq
    %v1606 = vshrl.u32 %v1605, 7
    %v1607 = vsub.s32 %v1604, %v1606
    %v1608 = vrot.slane %v1598, %v1607
    %v1610 = vunpack.c.l.s4 1983009808
    %v1611 = vunpack.c.0.s8 %v1610
    %v1612 = vlaneseq
    %v1613 = vshrl.u32 %v1612, 7
    %v1614 = vsub.s32 %v1611, %v1613
    %v1615 = vrot.slane %v1599, %v1614
    %v1617 = vunpack.c.l.s4 1983009808
    %v1618 = vunpack.c.0.s8 %v1617
    %v1619 = vlaneseq
    %v1620 = vshrl.u32 %v1619, 7
    %v1621 = vsub.s32 %v1618, %v1620
    %v1622 = vrot.slane %v1600, %v1621
    %v1624 = vunpack.c.l.s4 1983009808
    %v1625 = vunpack.c.0.s8 %v1624
    %v1626 = vlaneseq
    %v1627 = vshrl.u32 %v1626, 7
    %v1628 = vsub.s32 %v1625, %v1627
    %v1629 = vrot.slane %v1601, %v1628
    %v1630 = vcombine.low %v1608, %v1622
    %v1631 = vcombine.high %v1608, %v1622
    %v1632 = vcombine.low %v1615, %v1629
    %v1633 = vcombine.low %v105, %v107
    %v1634 = vcombine.high %v105, %v107
    %v1635 = vcombine.low %v109, %v111
    %v1636 = vcombine.high %v109, %v111
    %v1638 = vunpack.c.l.s4 1983009808
    %v1639 = vunpack.c.0.s8 %v1638
    %v1640 = vlaneseq
    %v1641 = vshrl.u32 %v1640, 7
    %v1642 = vsub.s32 %v1639, %v1641
    %v1643 = vrot.slane %v1633, %v1642
    %v1645 = vunpack.c.l.s4 1983009808
    %v1646 = vunpack.c.0.s8 %v1645
    %v1647 = vlaneseq
    %v1648 = vshrl.u32 %v1647, 7
    %v1649 = vsub.s32 %v1646, %v1648
    %v1650 = vrot.slane %v1634, %v1649
    %v1652 = vunpack.c.l.s4 1983009808
    %v1653 = vunpack.c.0.s8 %v1652
    %v1654 = vlaneseq
    %v1655 = vshrl.u32 %v1654, 7
    %v1656 = vsub.s32 %v1653, %v1655
    %v1657 = vrot.slane %v1635, %v1656
    %v1659 = vunpack.c.l.s4 1983009808
    %v1660 = vunpack.c.0.s8 %v1659
    %v1661 = vlaneseq
    %v1662 = vshrl.u32 %v1661, 7
    %v1663 = vsub.s32 %v1660, %v1662
    %v1664 = vrot.slane %v1636, %v1663
    %v1665 = vcombine.low %v1643, %v1657
    %v1666 = vcombine.high %v1643, %v1657
    %v1667 = vcombine.low %v1650, %v1664
    %v1668 = vcombine.high %v1650, %v1664
    %v1669 = vcombine.low %v106, %v108
    %v1670 = vcombine.high %v106, %v108
    %v1671 = vcombine.low %v110, %v112
    %v1672 = vcombine.high %v110, %v112
    %v1674 = vunpack.c.l.s4 1983009808
    %v1675 = vunpack.c.0.s8 %v1674
    %v1676 = vlaneseq
    %v1677 = vshrl.u32 %v1676, 7
    %v1678 = vsub.s32 %v1675, %v1677
    %v1679 = vrot.slane %v1669, %v1678
    %v1681 = vunpack.c.l.s4 1983009808
    %v1682 = vunpack.c.0.s8 %v1681
    %v1683 = vlaneseq
    %v1684 = vshrl.u32 %v1683, 7
    %v1685 = vsub.s32 %v1682, %v1684
    %v1686 = vrot.slane %v1670, %v1685
    %v1688 = vunpack.c.l.s4 1983009808
    %v1689 = vunpack.c.0.s8 %v1688
    %v1690 = vlaneseq
    %v1691 = vshrl.u32 %v1690, 7
    %v1692 = vsub.s32 %v1689, %v1691
    %v1693 = vrot.slane %v1671, %v1692
    %v1695 = vunpack.c.l.s4 1983009808
    %v1696 = vunpack.c.0.s8 %v1695
    %v1697 = vlaneseq
    %v1698 = vshrl.u32 %v1697, 7
    %v1699 = vsub.s32 %v1696, %v1698
    %v1700 = vrot.slane %v1672, %v1699
    %v1701 = vcombine.low %v1679, %v1693
    %v1702 = vcombine.high %v1679, %v1693
    %v1703 = vcombine.low %v1686, %v1700
    %v1704 = vcombine.low %v113, %v115
    %v1705 = vcombine.high %v113, %v115
    %v1706 = vcombine.low %v117, %v119
    %v1707 = vcombine.high %v117, %v119
    %v1709 = vunpack.c.l.s4 1983009808
    %v1710 = vunpack.c.0.s8 %v1709
    %v1711 = vlaneseq
    %v1712 = vshrl.u32 %v1711, 7
    %v1713 = vsub.s32 %v1710, %v1712
    %v1714 = vrot.slane %v1704, %v1713
    %v1716 = vunpack.c.l.s4 1983009808
    %v1717 = vunpack.c.0.s8 %v1716
    %v1718 = vlaneseq
    %v1719 = vshrl.u32 %v1718, 7
    %v1720 = vsub.s32 %v1717, %v1719
    %v1721 = vrot.slane %v1705, %v1720
    %v1723 = vunpack.c.l.s4 1983009808
    %v1724 = vunpack.c.0.s8 %v1723
    %v1725 = vlaneseq
    %v1726 = vshrl.u32 %v1725, 7
    %v1727 = vsub.s32 %v1724, %v1726
    %v1728 = vrot.slane %v1706, %v1727
    %v1730 = vunpack.c.l.s4 1983009808
    %v1731 = vunpack.c.0.s8 %v1730
    %v1732 = vlaneseq
    %v1733 = vshrl.u32 %v1732, 7
    %v1734 = vsub.s32 %v1731, %v1733
    %v1735 = vrot.slane %v1707, %v1734
    %v1736 = vcombine.low %v1714, %v1728
    %v1737 = vcombine.high %v1714, %v1728
    %v1738 = vcombine.low %v1721, %v1735
    %v1739 = vcombine.high %v1721, %v1735
    %v1740 = vcombine.low %v114, %v116
    %v1741 = vcombine.high %v114, %v116
    %v1742 = vcombine.low %v118, %v120
    %v1743 = vcombine.high %v118, %v120
    %v1745 = vunpack.c.l.s4 1983009808
    %v1746 = vunpack.c.0.s8 %v1745
    %v1747 = vlaneseq
    %v1748 = vshrl.u32 %v1747, 7
    %v1749 = vsub.s32 %v1746, %v1748
    %v1750 = vrot.slane %v1740, %v1749
    %v1752 = vunpack.c.l.s4 1983009808
    %v1753 = vunpack.c.0.s8 %v1752
    %v1754 = vlaneseq
    %v1755 = vshrl.u32 %v1754, 7
    %v1756 = vsub.s32 %v1753, %v1755
    %v1757 = vrot.slane %v1741, %v1756
    %v1759 = vunpack.c.l.s4 1983009808
    %v1760 = vunpack.c.0.s8 %v1759
    %v1761 = vlaneseq
    %v1762 = vshrl.u32 %v1761, 7
    %v1763 = vsub.s32 %v1760, %v1762
    %v1764 = vrot.slane %v1742, %v1763
    %v1766 = vunpack.c.l.s4 1983009808
    %v1767 = vunpack.c.0.s8 %v1766
    %v1768 = vlaneseq
    %v1769 = vshrl.u32 %v1768, 7
    %v1770 = vsub.s32 %v1767, %v1769
    %v1771 = vrot.slane %v1743, %v1770
    %v1772 = vcombine.low %v1750, %v1764
    %v1773 = vcombine.high %v1750, %v1764
    %v1774 = vcombine.low %v1757, %v1771
    %v1775 = vcombine.low %v121, %v123
    %v1776 = vcombine.high %v121, %v123
    %v1777 = vcombine.low %v125, %v127
    %v1778 = vcombine.high %v125, %v127
    %v1780 = vunpack.c.l.s4 1983009808
    %v1781 = vunpack.c.0.s8 %v1780
    %v1782 = vlaneseq
    %v1783 = vshrl.u32 %v1782, 7
    %v1784 = vsub.s32 %v1781, %v1783
    %v1785 = vrot.slane %v1775, %v1784
    %v1787 = vunpack.c.l.s4 1983009808
    %v1788 = vunpack.c.0.s8 %v1787
    %v1789 = vlaneseq
    %v1790 = vshrl.u32 %v1789, 7
    %v1791 = vsub.s32 %v1788, %v1790
    %v1792 = vrot.slane %v1776, %v1791
    %v1794 = vunpack.c.l.s4 1983009808
    %v1795 = vunpack.c.0.s8 %v1794
    %v1796 = vlaneseq
    %v1797 = vshrl.u32 %v1796, 7
    %v1798 = vsub.s32 %v1795, %v1797
    %v1799 = vrot.slane %v1777, %v1798
    %v1801 = vunpack.c.l.s4 1983009808
    %v1802 = vunpack.c.0.s8 %v1801
    %v1803 = vlaneseq
    %v1804 = vshrl.u32 %v1803, 7
    %v1805 = vsub.s32 %v1802, %v1804
    %v1806 = vrot.slane %v1778, %v1805
    %v1807 = vcombine.low %v1785, %v1799
    %v1808 = vcombine.high %v1785, %v1799
    %v1809 = vcombine.low %v1792, %v1806
    %v1810 = vcombine.high %v1792, %v1806
    %v1811 = vcombine.low %v122, %v124
    %v1812 = vcombine.high %v122, %v124
    %v1813 = vcombine.low %v126, %v128
    %v1814 = vcombine.high %v126, %v128
    %v1816 = vunpack.c.l.s4 1983009808
    %v1817 = vunpack.c.0.s8 %v1816
    %v1818 = vlaneseq
    %v1819 = vshrl.u32 %v1818, 7
    %v1820 = vsub.s32 %v1817, %v1819
    %v1821 = vrot.slane %v1811, %v1820
    %v1823 = vunpack.c.l.s4 1983009808
    %v1824 = vunpack.c.0.s8 %v1823
    %v1825 = vlaneseq
    %v1826 = vshrl.u32 %v1825, 7
    %v1827 = vsub.s32 %v1824, %v1826
    %v1828 = vrot.slane %v1812, %v1827
    %v1830 = vunpack.c.l.s4 1983009808
    %v1831 = vunpack.c.0.s8 %v1830
    %v1832 = vlaneseq
    %v1833 = vshrl.u32 %v1832, 7
    %v1834 = vsub.s32 %v1831, %v1833
    %v1835 = vrot.slane %v1813, %v1834
    %v1837 = vunpack.c.l.s4 1983009808
    %v1838 = vunpack.c.0.s8 %v1837
    %v1839 = vlaneseq
    %v1840 = vshrl.u32 %v1839, 7
    %v1841 = vsub.s32 %v1838, %v1840
    %v1842 = vrot.slane %v1814, %v1841
    %v1843 = vcombine.low %v1821, %v1835
    %v1844 = vcombine.high %v1821, %v1835
    %v1845 = vcombine.low %v1828, %v1842
    %v1846 = vcombine.low %v129, %v131
    %v1847 = vcombine.high %v129, %v131
    %v1848 = vcombine.low %v133, %v135
    %v1849 = vcombine.high %v133, %v135
    %v1851 = vunpack.c.l.s4 1983009808
    %v1852 = vunpack.c.0.s8 %v1851
    %v1853 = vlaneseq
    %v1854 = vshrl.u32 %v1853, 7
    %v1855 = vsub.s32 %v1852, %v1854
    %v1856 = vrot.slane %v1846, %v1855
    %v1858 = vunpack.c.l.s4 1983009808
    %v1859 = vunpack.c.0.s8 %v1858
    %v1860 = vlaneseq
    %v1861 = vshrl.u32 %v1860, 7
    %v1862 = vsub.s32 %v1859, %v1861
    %v1863 = vrot.slane %v1847, %v1862
    %v1865 = vunpack.c.l.s4 1983009808
    %v1866 = vunpack.c.0.s8 %v1865
    %v1867 = vlaneseq
    %v1868 = vshrl.u32 %v1867, 7
    %v1869 = vsub.s32 %v1866, %v1868
    %v1870 = vrot.slane %v1848, %v1869
    %v1872 = vunpack.c.l.s4 1983009808
    %v1873 = vunpack.c.0.s8 %v1872
    %v1874 = vlaneseq
    %v1875 = vshrl.u32 %v1874, 7
    %v1876 = vsub.s32 %v1873, %v1875
    %v1877 = vrot.slane %v1849, %v1876
    %v1878 = vcombine.low %v1856, %v1870
    %v1879 = vcombine.high %v1856, %v1870
    %v1880 = vcombine.low %v1863, %v1877
    %v1881 = vcombine.high %v1863, %v1877
    %v1882 = vcombine.low %v130, %v132
    %v1883 = vcombine.high %v130, %v132
    %v1884 = vcombine.low %v134, %v136
    %v1885 = vcombine.high %v134, %v136
    %v1887 = vunpack.c.l.s4 1983009808
    %v1888 = vunpack.c.0.s8 %v1887
    %v1889 = vlaneseq
    %v1890 = vshrl.u32 %v1889, 7
    %v1891 = vsub.s32 %v1888, %v1890
    %v1892 = vrot.slane %v1882, %v1891
    %v1894 = vunpack.c.l.s4 1983009808
    %v1895 = vunpack.c.0.s8 %v1894
    %v1896 = vlaneseq
    %v1897 = vshrl.u32 %v1896, 7
    %v1898 = vsub.s32 %v1895, %v1897
    %v1899 = vrot.slane %v1883, %v1898
    %v1901 = vunpack.c.l.s4 1983009808
    %v1902 = vunpack.c.0.s8 %v1901
    %v1903 = vlaneseq
    %v1904 = vshrl.u32 %v1903, 7
    %v1905 = vsub.s32 %v1902, %v1904
    %v1906 = vrot.slane %v1884, %v1905
    %v1908 = vunpack.c.l.s4 1983009808
    %v1909 = vunpack.c.0.s8 %v1908
    %v1910 = vlaneseq
    %v1911 = vshrl.u32 %v1910, 7
    %v1912 = vsub.s32 %v1909, %v1911
    %v1913 = vrot.slane %v1885, %v1912
    %v1914 = vcombine.low %v1892, %v1906
    %v1915 = vcombine.high %v1892, %v1906
    %v1916 = vcombine.low %v1899, %v1913
    %v1917 = vcombine.low %v137, %v139
    %v1918 = vcombine.high %v137, %v139
    %v1919 = vcombine.low %v141, %v143
    %v1920 = vcombine.high %v141, %v143
    %v1922 = vunpack.c.l.s4 1983009808
    %v1923 = vunpack.c.0.s8 %v1922
    %v1924 = vlaneseq
    %v1925 = vshrl.u32 %v1924, 7
    %v1926 = vsub.s32 %v1923, %v1925
    %v1927 = vrot.slane %v1917, %v1926
    %v1929 = vunpack.c.l.s4 1983009808
    %v1930 = vunpack.c.0.s8 %v1929
    %v1931 = vlaneseq
    %v1932 = vshrl.u32 %v1931, 7
    %v1933 = vsub.s32 %v1930, %v1932
    %v1934 = vrot.slane %v1918, %v1933
    %v1936 = vunpack.c.l.s4 1983009808
    %v1937 = vunpack.c.0.s8 %v1936
    %v1938 = vlaneseq
    %v1939 = vshrl.u32 %v1938, 7
    %v1940 = vsub.s32 %v1937, %v1939
    %v1941 = vrot.slane %v1919, %v1940
    %v1943 = vunpack.c.l.s4 1983009808
    %v1944 = vunpack.c.0.s8 %v1943
    %v1945 = vlaneseq
    %v1946 = vshrl.u32 %v1945, 7
    %v1947 = vsub.s32 %v1944, %v1946
    %v1948 = vrot.slane %v1920, %v1947
    %v1949 = vcombine.low %v1927, %v1941
    %v1950 = vcombine.high %v1927, %v1941
    %v1951 = vcombine.low %v1934, %v1948
    %v1952 = vcombine.high %v1934, %v1948
    %v1953 = vcombine.low %v138, %v140
    %v1954 = vcombine.high %v138, %v140
    %v1955 = vcombine.low %v142, %v144
    %v1956 = vcombine.high %v142, %v144
    %v1958 = vunpack.c.l.s4 1983009808
    %v1959 = vunpack.c.0.s8 %v1958
    %v1960 = vlaneseq
    %v1961 = vshrl.u32 %v1960, 7
    %v1962 = vsub.s32 %v1959, %v1961
    %v1963 = vrot.slane %v1953, %v1962
    %v1965 = vunpack.c.l.s4 1983009808
    %v1966 = vunpack.c.0.s8 %v1965
    %v1967 = vlaneseq
    %v1968 = vshrl.u32 %v1967, 7
    %v1969 = vsub.s32 %v1966, %v1968
    %v1970 = vrot.slane %v1954, %v1969
    %v1972 = vunpack.c.l.s4 1983009808
    %v1973 = vunpack.c.0.s8 %v1972
    %v1974 = vlaneseq
    %v1975 = vshrl.u32 %v1974, 7
    %v1976 = vsub.s32 %v1973, %v1975
    %v1977 = vrot.slane %v1955, %v1976
    %v1979 = vunpack.c.l.s4 1983009808
    %v1980 = vunpack.c.0.s8 %v1979
    %v1981 = vlaneseq
    %v1982 = vshrl.u32 %v1981, 7
    %v1983 = vsub.s32 %v1980, %v1982
    %v1984 = vrot.slane %v1956, %v1983
    %v1985 = vcombine.low %v1963, %v1977
    %v1986 = vcombine.high %v1963, %v1977
    %v1987 = vcombine.low %v1970, %v1984
    %v1988 = vcombine.low %v145, %v147
    %v1989 = vcombine.high %v145, %v147
    %v1990 = vcombine.low %v149, %v151
    %v1991 = vcombine.high %v149, %v151
    %v1993 = vunpack.c.l.s4 1983009808
    %v1994 = vunpack.c.0.s8 %v1993
    %v1995 = vlaneseq
    %v1996 = vshrl.u32 %v1995, 7
    %v1997 = vsub.s32 %v1994, %v1996
    %v1998 = vrot.slane %v1988, %v1997
    %v2000 = vunpack.c.l.s4 1983009808
    %v2001 = vunpack.c.0.s8 %v2000
    %v2002 = vlaneseq
    %v2003 = vshrl.u32 %v2002, 7
    %v2004 = vsub.s32 %v2001, %v2003
    %v2005 = vrot.slane %v1989, %v2004
    %v2007 = vunpack.c.l.s4 1983009808
    %v2008 = vunpack.c.0.s8 %v2007
    %v2009 = vlaneseq
    %v2010 = vshrl.u32 %v2009, 7
    %v2011 = vsub.s32 %v2008, %v2010
    %v2012 = vrot.slane %v1990, %v2011
    %v2014 = vunpack.c.l.s4 1983009808
    %v2015 = vunpack.c.0.s8 %v2014
    %v2016 = vlaneseq
    %v2017 = vshrl.u32 %v2016, 7
    %v2018 = vsub.s32 %v2015, %v2017
    %v2019 = vrot.slane %v1991, %v2018
    %v2020 = vcombine.low %v1998, %v2012
    %v2021 = vcombine.high %v1998, %v2012
    %v2022 = vcombine.low %v2005, %v2019
    %v2023 = vcombine.high %v2005, %v2019
    %v2024 = vcombine.low %v146, %v148
    %v2025 = vcombine.high %v146, %v148
    %v2026 = vcombine.low %v150, %v152
    %v2027 = vcombine.high %v150, %v152
    %v2029 = vunpack.c.l.s4 1983009808
    %v2030 = vunpack.c.0.s8 %v2029
    %v2031 = vlaneseq
    %v2032 = vshrl.u32 %v2031, 7
    %v2033 = vsub.s32 %v2030, %v2032
    %v2034 = vrot.slane %v2024, %v2033
    %v2036 = vunpack.c.l.s4 1983009808
    %v2037 = vunpack.c.0.s8 %v2036
    %v2038 = vlaneseq
    %v2039 = vshrl.u32 %v2038, 7
    %v2040 = vsub.s32 %v2037, %v2039
    %v2041 = vrot.slane %v2025, %v2040
    %v2043 = vunpack.c.l.s4 1983009808
    %v2044 = vunpack.c.0.s8 %v2043
    %v2045 = vlaneseq
    %v2046 = vshrl.u32 %v2045, 7
    %v2047 = vsub.s32 %v2044, %v2046
    %v2048 = vrot.slane %v2026, %v2047
    %v2050 = vunpack.c.l.s4 1983009808
    %v2051 = vunpack.c.0.s8 %v2050
    %v2052 = vlaneseq
    %v2053 = vshrl.u32 %v2052, 7
    %v2054 = vsub.s32 %v2051, %v2053
    %v2055 = vrot.slane %v2027, %v2054
    %v2056 = vcombine.low %v2034, %v2048
    %v2057 = vcombine.high %v2034, %v2048
    %v2058 = vcombine.low %v2041, %v2055
    %v2059 = vcombine.low %v153, %v155
    %v2060 = vcombine.high %v153, %v155
    %v2061 = vcombine.low %v157, %v159
    %v2062 = vcombine.high %v157, %v159
    %v2064 = vunpack.c.l.s4 1983009808
    %v2065 = vunpack.c.0.s8 %v2064
    %v2066 = vlaneseq
    %v2067 = vshrl.u32 %v2066, 7
    %v2068 = vsub.s32 %v2065, %v2067
    %v2069 = vrot.slane %v2059, %v2068
    %v2071 = vunpack.c.l.s4 1983009808
    %v2072 = vunpack.c.0.s8 %v2071
    %v2073 = vlaneseq
    %v2074 = vshrl.u32 %v2073, 7
    %v2075 = vsub.s32 %v2072, %v2074
    %v2076 = vrot.slane %v2060, %v2075
    %v2078 = vunpack.c.l.s4 1983009808
    %v2079 = vunpack.c.0.s8 %v2078
    %v2080 = vlaneseq
    %v2081 = vshrl.u32 %v2080, 7
    %v2082 = vsub.s32 %v2079, %v2081
    %v2083 = vrot.slane %v2061, %v2082
    %v2085 = vunpack.c.l.s4 1983009808
    %v2086 = vunpack.c.0.s8 %v2085
    %v2087 = vlaneseq
    %v2088 = vshrl.u32 %v2087, 7
    %v2089 = vsub.s32 %v2086, %v2088
    %v2090 = vrot.slane %v2062, %v2089
    %v2091 = vcombine.low %v2069, %v2083
    %v2092 = vcombine.high %v2069, %v2083
    %v2093 = vcombine.low %v2076, %v2090
    %v2094 = vcombine.high %v2076, %v2090
    %v2095 = vcombine.low %v154, %v156
    %v2096 = vcombine.high %v154, %v156
    %v2097 = vcombine.low %v158, %v160
    %v2098 = vcombine.high %v158, %v160
    %v2100 = vunpack.c.l.s4 1983009808
    %v2101 = vunpack.c.0.s8 %v2100
    %v2102 = vlaneseq
    %v2103 = vshrl.u32 %v2102, 7
    %v2104 = vsub.s32 %v2101, %v2103
    %v2105 = vrot.slane %v2095, %v2104
    %v2107 = vunpack.c.l.s4 1983009808
    %v2108 = vunpack.c.0.s8 %v2107
    %v2109 = vlaneseq
    %v2110 = vshrl.u32 %v2109, 7
    %v2111 = vsub.s32 %v2108, %v2110
    %v2112 = vrot.slane %v2096, %v2111
    %v2114 = vunpack.c.l.s4 1983009808
    %v2115 = vunpack.c.0.s8 %v2114
    %v2116 = vlaneseq
    %v2117 = vshrl.u32 %v2116, 7
    %v2118 = vsub.s32 %v2115, %v2117
    %v2119 = vrot.slane %v2097, %v2118
    %v2121 = vunpack.c.l.s4 1983009808
    %v2122 = vunpack.c.0.s8 %v2121
    %v2123 = vlaneseq
    %v2124 = vshrl.u32 %v2123, 7
    %v2125 = vsub.s32 %v2122, %v2124
    %v2126 = vrot.slane %v2098, %v2125
    %v2127 = vcombine.low %v2105, %v2119
    %v2128 = vcombine.high %v2105, %v2119
    %v2129 = vcombine.low %v2112, %v2126
    %v2130 = vcombine.low %v161, %v163
    %v2131 = vcombine.high %v161, %v163
    %v2132 = vcombine.low %v165, %v167
    %v2133 = vcombine.high %v165, %v167
    %v2135 = vunpack.c.l.s4 1983009808
    %v2136 = vunpack.c.0.s8 %v2135
    %v2137 = vlaneseq
    %v2138 = vshrl.u32 %v2137, 7
    %v2139 = vsub.s32 %v2136, %v2138
    %v2140 = vrot.slane %v2130, %v2139
    %v2142 = vunpack.c.l.s4 1983009808
    %v2143 = vunpack.c.0.s8 %v2142
    %v2144 = vlaneseq
    %v2145 = vshrl.u32 %v2144, 7
    %v2146 = vsub.s32 %v2143, %v2145
    %v2147 = vrot.slane %v2131, %v2146
    %v2149 = vunpack.c.l.s4 1983009808
    %v2150 = vunpack.c.0.s8 %v2149
    %v2151 = vlaneseq
    %v2152 = vshrl.u32 %v2151, 7
    %v2153 = vsub.s32 %v2150, %v2152
    %v2154 = vrot.slane %v2132, %v2153
    %v2156 = vunpack.c.l.s4 1983009808
    %v2157 = vunpack.c.0.s8 %v2156
    %v2158 = vlaneseq
    %v2159 = vshrl.u32 %v2158, 7
    %v2160 = vsub.s32 %v2157, %v2159
    %v2161 = vrot.slane %v2133, %v2160
    %v2162 = vcombine.low %v2140, %v2154
    %v2163 = vcombine.high %v2140, %v2154
    %v2164 = vcombine.low %v2147, %v2161
    %v2165 = vcombine.high %v2147, %v2161
    %v2166 = vcombine.low %v162, %v164
    %v2167 = vcombine.high %v162, %v164
    %v2168 = vcombine.low %v166, %v168
    %v2169 = vcombine.high %v166, %v168
    %v2171 = vunpack.c.l.s4 1983009808
    %v2172 = vunpack.c.0.s8 %v2171
    %v2173 = vlaneseq
    %v2174 = vshrl.u32 %v2173, 7
    %v2175 = vsub.s32 %v2172, %v2174
    %v2176 = vrot.slane %v2166, %v2175
    %v2178 = vunpack.c.l.s4 1983009808
    %v2179 = vunpack.c.0.s8 %v2178
    %v2180 = vlaneseq
    %v2181 = vshrl.u32 %v2180, 7
    %v2182 = vsub.s32 %v2179, %v2181
    %v2183 = vrot.slane %v2167, %v2182
    %v2185 = vunpack.c.l.s4 1983009808
    %v2186 = vunpack.c.0.s8 %v2185
    %v2187 = vlaneseq
    %v2188 = vshrl.u32 %v2187, 7
    %v2189 = vsub.s32 %v2186, %v2188
    %v2190 = vrot.slane %v2168, %v2189
    %v2192 = vunpack.c.l.s4 1983009808
    %v2193 = vunpack.c.0.s8 %v2192
    %v2194 = vlaneseq
    %v2195 = vshrl.u32 %v2194, 7
    %v2196 = vsub.s32 %v2193, %v2195
    %v2197 = vrot.slane %v2169, %v2196
    %v2198 = vcombine.low %v2176, %v2190
    %v2199 = vcombine.high %v2176, %v2190
    %v2200 = vcombine.low %v2183, %v2197
    %v2201 = vcombine.low %v169, %v171
    %v2202 = vcombine.high %v169, %v171
    %v2203 = vcombine.low %v173, %v175
    %v2204 = vcombine.high %v173, %v175
    %v2206 = vunpack.c.l.s4 1983009808
    %v2207 = vunpack.c.0.s8 %v2206
    %v2208 = vlaneseq
    %v2209 = vshrl.u32 %v2208, 7
    %v2210 = vsub.s32 %v2207, %v2209
    %v2211 = vrot.slane %v2201, %v2210
    %v2213 = vunpack.c.l.s4 1983009808
    %v2214 = vunpack.c.0.s8 %v2213
    %v2215 = vlaneseq
    %v2216 = vshrl.u32 %v2215, 7
    %v2217 = vsub.s32 %v2214, %v2216
    %v2218 = vrot.slane %v2202, %v2217
    %v2220 = vunpack.c.l.s4 1983009808
    %v2221 = vunpack.c.0.s8 %v2220
    %v2222 = vlaneseq
    %v2223 = vshrl.u32 %v2222, 7
    %v2224 = vsub.s32 %v2221, %v2223
    %v2225 = vrot.slane %v2203, %v2224
    %v2227 = vunpack.c.l.s4 1983009808
    %v2228 = vunpack.c.0.s8 %v2227
    %v2229 = vlaneseq
    %v2230 = vshrl.u32 %v2229, 7
    %v2231 = vsub.s32 %v2228, %v2230
    %v2232 = vrot.slane %v2204, %v2231
    %v2233 = vcombine.low %v2211, %v2225
    %v2234 = vcombine.high %v2211, %v2225
    %v2235 = vcombine.low %v2218, %v2232
    %v2236 = vcombine.high %v2218, %v2232
    %v2237 = vcombine.low %v170, %v172
    %v2238 = vcombine.high %v170, %v172
    %v2239 = vcombine.low %v174, %v176
    %v2240 = vcombine.high %v174, %v176
    %v2242 = vunpack.c.l.s4 1983009808
    %v2243 = vunpack.c.0.s8 %v2242
    %v2244 = vlaneseq
    %v2245 = vshrl.u32 %v2244, 7
    %v2246 = vsub.s32 %v2243, %v2245
    %v2247 = vrot.slane %v2237, %v2246
    %v2249 = vunpack.c.l.s4 1983009808
    %v2250 = vunpack.c.0.s8 %v2249
    %v2251 = vlaneseq
    %v2252 = vshrl.u32 %v2251, 7
    %v2253 = vsub.s32 %v2250, %v2252
    %v2254 = vrot.slane %v2238, %v2253
    %v2256 = vunpack.c.l.s4 1983009808
    %v2257 = vunpack.c.0.s8 %v2256
    %v2258 = vlaneseq
    %v2259 = vshrl.u32 %v2258, 7
    %v2260 = vsub.s32 %v2257, %v2259
    %v2261 = vrot.slane %v2239, %v2260
    %v2263 = vunpack.c.l.s4 1983009808
    %v2264 = vunpack.c.0.s8 %v2263
    %v2265 = vlaneseq
    %v2266 = vshrl.u32 %v2265, 7
    %v2267 = vsub.s32 %v2264, %v2266
    %v2268 = vrot.slane %v2240, %v2267
    %v2269 = vcombine.low %v2247, %v2261
    %v2270 = vcombine.high %v2247, %v2261
    %v2271 = vcombine.low %v2254, %v2268
    %v2272 = vcombine.low %v177, %v179
    %v2273 = vcombine.high %v177, %v179
    %v2274 = vcombine.low %v181, %v183
    %v2275 = vcombine.high %v181, %v183
    %v2277 = vunpack.c.l.s4 1983009808
    %v2278 = vunpack.c.0.s8 %v2277
    %v2279 = vlaneseq
    %v2280 = vshrl.u32 %v2279, 7
    %v2281 = vsub.s32 %v2278, %v2280
    %v2282 = vrot.slane %v2272, %v2281
    %v2284 = vunpack.c.l.s4 1983009808
    %v2285 = vunpack.c.0.s8 %v2284
    %v2286 = vlaneseq
    %v2287 = vshrl.u32 %v2286, 7
    %v2288 = vsub.s32 %v2285, %v2287
    %v2289 = vrot.slane %v2273, %v2288
    %v2291 = vunpack.c.l.s4 1983009808
    %v2292 = vunpack.c.0.s8 %v2291
    %v2293 = vlaneseq
    %v2294 = vshrl.u32 %v2293, 7
    %v2295 = vsub.s32 %v2292, %v2294
    %v2296 = vrot.slane %v2274, %v2295
    %v2298 = vunpack.c.l.s4 1983009808
    %v2299 = vunpack.c.0.s8 %v2298
    %v2300 = vlaneseq
    %v2301 = vshrl.u32 %v2300, 7
    %v2302 = vsub.s32 %v2299, %v2301
    %v2303 = vrot.slane %v2275, %v2302
    %v2304 = vcombine.low %v2282, %v2296
    %v2305 = vcombine.high %v2282, %v2296
    %v2306 = vcombine.low %v2289, %v2303
    %v2307 = vcombine.high %v2289, %v2303
    %v2308 = vcombine.low %v178, %v180
    %v2309 = vcombine.high %v178, %v180
    %v2310 = vcombine.low %v182, %v184
    %v2311 = vcombine.high %v182, %v184
    %v2313 = vunpack.c.l.s4 1983009808
    %v2314 = vunpack.c.0.s8 %v2313
    %v2315 = vlaneseq
    %v2316 = vshrl.u32 %v2315, 7
    %v2317 = vsub.s32 %v2314, %v2316
    %v2318 = vrot.slane %v2308, %v2317
    %v2320 = vunpack.c.l.s4 1983009808
    %v2321 = vunpack.c.0.s8 %v2320
    %v2322 = vlaneseq
    %v2323 = vshrl.u32 %v2322, 7
    %v2324 = vsub.s32 %v2321, %v2323
    %v2325 = vrot.slane %v2309, %v2324
    %v2327 = vunpack.c.l.s4 1983009808
    %v2328 = vunpack.c.0.s8 %v2327
    %v2329 = vlaneseq
    %v2330 = vshrl.u32 %v2329, 7
    %v2331 = vsub.s32 %v2328, %v2330
    %v2332 = vrot.slane %v2310, %v2331
    %v2334 = vunpack.c.l.s4 1983009808
    %v2335 = vunpack.c.0.s8 %v2334
    %v2336 = vlaneseq
    %v2337 = vshrl.u32 %v2336, 7
    %v2338 = vsub.s32 %v2335, %v2337
    %v2339 = vrot.slane %v2311, %v2338
    %v2340 = vcombine.low %v2318, %v2332
    %v2341 = vcombine.high %v2318, %v2332
    %v2342 = vcombine.low %v2325, %v2339
    %v2343 = vcombine.low %v185, %v187
    %v2344 = vcombine.high %v185, %v187
    %v2345 = vcombine.low %v189, %v191
    %v2346 = vcombine.high %v189, %v191
    %v2348 = vunpack.c.l.s4 1983009808
    %v2349 = vunpack.c.0.s8 %v2348
    %v2350 = vlaneseq
    %v2351 = vshrl.u32 %v2350, 7
    %v2352 = vsub.s32 %v2349, %v2351
    %v2353 = vrot.slane %v2343, %v2352
    %v2355 = vunpack.c.l.s4 1983009808
    %v2356 = vunpack.c.0.s8 %v2355
    %v2357 = vlaneseq
    %v2358 = vshrl.u32 %v2357, 7
    %v2359 = vsub.s32 %v2356, %v2358
    %v2360 = vrot.slane %v2344, %v2359
    %v2362 = vunpack.c.l.s4 1983009808
    %v2363 = vunpack.c.0.s8 %v2362
    %v2364 = vlaneseq
    %v2365 = vshrl.u32 %v2364, 7
    %v2366 = vsub.s32 %v2363, %v2365
    %v2367 = vrot.slane %v2345, %v2366
    %v2369 = vunpack.c.l.s4 1983009808
    %v2370 = vunpack.c.0.s8 %v2369
    %v2371 = vlaneseq
    %v2372 = vshrl.u32 %v2371, 7
    %v2373 = vsub.s32 %v2370, %v2372
    %v2374 = vrot.slane %v2346, %v2373
    %v2375 = vcombine.low %v2353, %v2367
    %v2376 = vcombine.high %v2353, %v2367
    %v2377 = vcombine.low %v2360, %v2374
    %v2378 = vcombine.high %v2360, %v2374
    %v2379 = vcombine.low %v186, %v188
    %v2380 = vcombine.high %v186, %v188
    %v2381 = vcombine.low %v190, %v192
    %v2382 = vcombine.high %v190, %v192
    %v2384 = vunpack.c.l.s4 1983009808
    %v2385 = vunpack.c.0.s8 %v2384
    %v2386 = vlaneseq
    %v2387 = vshrl.u32 %v2386, 7
    %v2388 = vsub.s32 %v2385, %v2387
    %v2389 = vrot.slane %v2379, %v2388
    %v2391 = vunpack.c.l.s4 1983009808
    %v2392 = vunpack.c.0.s8 %v2391
    %v2393 = vlaneseq
    %v2394 = vshrl.u32 %v2393, 7
    %v2395 = vsub.s32 %v2392, %v2394
    %v2396 = vrot.slane %v2380, %v2395
    %v2398 = vunpack.c.l.s4 1983009808
    %v2399 = vunpack.c.0.s8 %v2398
    %v2400 = vlaneseq
    %v2401 = vshrl.u32 %v2400, 7
    %v2402 = vsub.s32 %v2399, %v2401
    %v2403 = vrot.slane %v2381, %v2402
    %v2405 = vunpack.c.l.s4 1983009808
    %v2406 = vunpack.c.0.s8 %v2405
    %v2407 = vlaneseq
    %v2408 = vshrl.u32 %v2407, 7
    %v2409 = vsub.s32 %v2406, %v2408
    %v2410 = vrot.slane %v2382, %v2409
    %v2411 = vcombine.low %v2389, %v2403
    %v2412 = vcombine.high %v2389, %v2403
    %v2413 = vcombine.low %v2396, %v2410
    %v2414 = vcombine.low %v193, %v195
    %v2415 = vcombine.high %v193, %v195
    %v2416 = vcombine.low %v197, %v199
    %v2417 = vcombine.high %v197, %v199
    %v2419 = vunpack.c.l.s4 1983009808
    %v2420 = vunpack.c.0.s8 %v2419
    %v2421 = vlaneseq
    %v2422 = vshrl.u32 %v2421, 7
    %v2423 = vsub.s32 %v2420, %v2422
    %v2424 = vrot.slane %v2414, %v2423
    %v2426 = vunpack.c.l.s4 1983009808
    %v2427 = vunpack.c.0.s8 %v2426
    %v2428 = vlaneseq
    %v2429 = vshrl.u32 %v2428, 7
    %v2430 = vsub.s32 %v2427, %v2429
    %v2431 = vrot.slane %v2415, %v2430
    %v2433 = vunpack.c.l.s4 1983009808
    %v2434 = vunpack.c.0.s8 %v2433
    %v2435 = vlaneseq
    %v2436 = vshrl.u32 %v2435, 7
    %v2437 = vsub.s32 %v2434, %v2436
    %v2438 = vrot.slane %v2416, %v2437
    %v2440 = vunpack.c.l.s4 1983009808
    %v2441 = vunpack.c.0.s8 %v2440
    %v2442 = vlaneseq
    %v2443 = vshrl.u32 %v2442, 7
    %v2444 = vsub.s32 %v2441, %v2443
    %v2445 = vrot.slane %v2417, %v2444
    %v2446 = vcombine.low %v2424, %v2438
    %v2447 = vcombine.high %v2424, %v2438
    %v2448 = vcombine.low %v2431, %v2445
    %v2449 = vcombine.high %v2431, %v2445
    %v2450 = vcombine.low %v194, %v196
    %v2451 = vcombine.high %v194, %v196
    %v2452 = vcombine.low %v198, %v200
    %v2453 = vcombine.high %v198, %v200
    %v2455 = vunpack.c.l.s4 1983009808
    %v2456 = vunpack.c.0.s8 %v2455
    %v2457 = vlaneseq
    %v2458 = vshrl.u32 %v2457, 7
    %v2459 = vsub.s32 %v2456, %v2458
    %v2460 = vrot.slane %v2450, %v2459
    %v2462 = vunpack.c.l.s4 1983009808
    %v2463 = vunpack.c.0.s8 %v2462
    %v2464 = vlaneseq
    %v2465 = vshrl.u32 %v2464, 7
    %v2466 = vsub.s32 %v2463, %v2465
    %v2467 = vrot.slane %v2451, %v2466
    %v2469 = vunpack.c.l.s4 1983009808
    %v2470 = vunpack.c.0.s8 %v2469
    %v2471 = vlaneseq
    %v2472 = vshrl.u32 %v2471, 7
    %v2473 = vsub.s32 %v2470, %v2472
    %v2474 = vrot.slane %v2452, %v2473
    %v2476 = vunpack.c.l.s4 1983009808
    %v2477 = vunpack.c.0.s8 %v2476
    %v2478 = vlaneseq
    %v2479 = vshrl.u32 %v2478, 7
    %v2480 = vsub.s32 %v2477, %v2479
    %v2481 = vrot.slane %v2453, %v2480
    %v2482 = vcombine.low %v2460, %v2474
    %v2483 = vcombine.high %v2460, %v2474
    %v2484 = vcombine.low %v2467, %v2481
    %v2485 = vcombine.low %v201, %v203
    %v2486 = vcombine.high %v201, %v203
    %v2487 = vcombine.low %v205, %v207
    %v2488 = vcombine.high %v205, %v207
    %v2490 = vunpack.c.l.s4 1983009808
    %v2491 = vunpack.c.0.s8 %v2490
    %v2492 = vlaneseq
    %v2493 = vshrl.u32 %v2492, 7
    %v2494 = vsub.s32 %v2491, %v2493
    %v2495 = vrot.slane %v2485, %v2494
    %v2497 = vunpack.c.l.s4 1983009808
    %v2498 = vunpack.c.0.s8 %v2497
    %v2499 = vlaneseq
    %v2500 = vshrl.u32 %v2499, 7
    %v2501 = vsub.s32 %v2498, %v2500
    %v2502 = vrot.slane %v2486, %v2501
    %v2504 = vunpack.c.l.s4 1983009808
    %v2505 = vunpack.c.0.s8 %v2504
    %v2506 = vlaneseq
    %v2507 = vshrl.u32 %v2506, 7
    %v2508 = vsub.s32 %v2505, %v2507
    %v2509 = vrot.slane %v2487, %v2508
    %v2511 = vunpack.c.l.s4 1983009808
    %v2512 = vunpack.c.0.s8 %v2511
    %v2513 = vlaneseq
    %v2514 = vshrl.u32 %v2513, 7
    %v2515 = vsub.s32 %v2512, %v2514
    %v2516 = vrot.slane %v2488, %v2515
    %v2517 = vcombine.low %v2495, %v2509
    %v2518 = vcombine.high %v2495, %v2509
    %v2519 = vcombine.low %v2502, %v2516
    %v2520 = vcombine.high %v2502, %v2516
    %v2521 = vcombine.low %v202, %v204
    %v2522 = vcombine.high %v202, %v204
    %v2523 = vcombine.low %v206, %v208
    %v2524 = vcombine.high %v206, %v208
    %v2526 = vunpack.c.l.s4 1983009808
    %v2527 = vunpack.c.0.s8 %v2526
    %v2528 = vlaneseq
    %v2529 = vshrl.u32 %v2528, 7
    %v2530 = vsub.s32 %v2527, %v2529
    %v2531 = vrot.slane %v2521, %v2530
    %v2533 = vunpack.c.l.s4 1983009808
    %v2534 = vunpack.c.0.s8 %v2533
    %v2535 = vlaneseq
    %v2536 = vshrl.u32 %v2535, 7
    %v2537 = vsub.s32 %v2534, %v2536
    %v2538 = vrot.slane %v2522, %v2537
    %v2540 = vunpack.c.l.s4 1983009808
    %v2541 = vunpack.c.0.s8 %v2540
    %v2542 = vlaneseq
    %v2543 = vshrl.u32 %v2542, 7
    %v2544 = vsub.s32 %v2541, %v2543
    %v2545 = vrot.slane %v2523, %v2544
    %v2547 = vunpack.c.l.s4 1983009808
    %v2548 = vunpack.c.0.s8 %v2547
    %v2549 = vlaneseq
    %v2550 = vshrl.u32 %v2549, 7
    %v2551 = vsub.s32 %v2548, %v2550
    %v2552 = vrot.slane %v2524, %v2551
    %v2553 = vcombine.low %v2531, %v2545
    %v2554 = vcombine.high %v2531, %v2545
    %v2555 = vcombine.low %v2538, %v2552
    %v2556 = vcombine.low %v209, %v211
    %v2557 = vcombine.high %v209, %v211
    %v2558 = vcombine.low %v213, %v215
    %v2559 = vcombine.high %v213, %v215
    %v2561 = vunpack.c.l.s4 1983009808
    %v2562 = vunpack.c.0.s8 %v2561
    %v2563 = vlaneseq
    %v2564 = vshrl.u32 %v2563, 7
    %v2565 = vsub.s32 %v2562, %v2564
    %v2566 = vrot.slane %v2556, %v2565
    %v2568 = vunpack.c.l.s4 1983009808
    %v2569 = vunpack.c.0.s8 %v2568
    %v2570 = vlaneseq
    %v2571 = vshrl.u32 %v2570, 7
    %v2572 = vsub.s32 %v2569, %v2571
    %v2573 = vrot.slane %v2557, %v2572
    %v2575 = vunpack.c.l.s4 1983009808
    %v2576 = vunpack.c.0.s8 %v2575
    %v2577 = vlaneseq
    %v2578 = vshrl.u32 %v2577, 7
    %v2579 = vsub.s32 %v2576, %v2578
    %v2580 = vrot.slane %v2558, %v2579
    %v2582 = vunpack.c.l.s4 1983009808
    %v2583 = vunpack.c.0.s8 %v2582
    %v2584 = vlaneseq
    %v2585 = vshrl.u32 %v2584, 7
    %v2586 = vsub.s32 %v2583, %v2585
    %v2587 = vrot.slane %v2559, %v2586
    %v2588 = vcombine.low %v2566, %v2580
    %v2589 = vcombine.high %v2566, %v2580
    %v2590 = vcombine.low %v2573, %v2587
    %v2591 = vcombine.high %v2573, %v2587
    %v2592 = vcombine.low %v210, %v212
    %v2593 = vcombine.high %v210, %v212
    %v2594 = vcombine.low %v214, %v216
    %v2595 = vcombine.high %v214, %v216
    %v2597 = vunpack.c.l.s4 1983009808
    %v2598 = vunpack.c.0.s8 %v2597
    %v2599 = vlaneseq
    %v2600 = vshrl.u32 %v2599, 7
    %v2601 = vsub.s32 %v2598, %v2600
    %v2602 = vrot.slane %v2592, %v2601
    %v2604 = vunpack.c.l.s4 1983009808
    %v2605 = vunpack.c.0.s8 %v2604
    %v2606 = vlaneseq
    %v2607 = vshrl.u32 %v2606, 7
    %v2608 = vsub.s32 %v2605, %v2607
    %v2609 = vrot.slane %v2593, %v2608
    %v2611 = vunpack.c.l.s4 1983009808
    %v2612 = vunpack.c.0.s8 %v2611
    %v2613 = vlaneseq
    %v2614 = vshrl.u32 %v2613, 7
    %v2615 = vsub.s32 %v2612, %v2614
    %v2616 = vrot.slane %v2594, %v2615
    %v2618 = vunpack.c.l.s4 1983009808
    %v2619 = vunpack.c.0.s8 %v2618
    %v2620 = vlaneseq
    %v2621 = vshrl.u32 %v2620, 7
    %v2622 = vsub.s32 %v2619, %v2621
    %v2623 = vrot.slane %v2595, %v2622
    %v2624 = vcombine.low %v2602, %v2616
    %v2625 = vcombine.high %v2602, %v2616
    %v2626 = vcombine.low %v2609, %v2623
    %v2627 = vcombine.low %v217, %v219
    %v2628 = vcombine.high %v217, %v219
    %v2629 = vcombine.low %v221, %v223
    %v2630 = vcombine.high %v221, %v223
    %v2632 = vunpack.c.l.s4 1983009808
    %v2633 = vunpack.c.0.s8 %v2632
    %v2634 = vlaneseq
    %v2635 = vshrl.u32 %v2634, 7
    %v2636 = vsub.s32 %v2633, %v2635
    %v2637 = vrot.slane %v2627, %v2636
    %v2639 = vunpack.c.l.s4 1983009808
    %v2640 = vunpack.c.0.s8 %v2639
    %v2641 = vlaneseq
    %v2642 = vshrl.u32 %v2641, 7
    %v2643 = vsub.s32 %v2640, %v2642
    %v2644 = vrot.slane %v2628, %v2643
    %v2646 = vunpack.c.l.s4 1983009808
    %v2647 = vunpack.c.0.s8 %v2646
    %v2648 = vlaneseq
    %v2649 = vshrl.u32 %v2648, 7
    %v2650 = vsub.s32 %v2647, %v2649
    %v2651 = vrot.slane %v2629, %v2650
    %v2653 = vunpack.c.l.s4 1983009808
    %v2654 = vunpack.c.0.s8 %v2653
    %v2655 = vlaneseq
    %v2656 = vshrl.u32 %v2655, 7
    %v2657 = vsub.s32 %v2654, %v2656
    %v2658 = vrot.slane %v2630, %v2657
    %v2659 = vcombine.low %v2637, %v2651
    %v2660 = vcombine.high %v2637, %v2651
    %v2661 = vcombine.low %v2644, %v2658
    %v2662 = vcombine.high %v2644, %v2658
    %v2663 = vcombine.low %v218, %v220
    %v2664 = vcombine.high %v218, %v220
    %v2665 = vcombine.low %v222, %v224
    %v2666 = vcombine.high %v222, %v224
    %v2668 = vunpack.c.l.s4 1983009808
    %v2669 = vunpack.c.0.s8 %v2668
    %v2670 = vlaneseq
    %v2671 = vshrl.u32 %v2670, 7
    %v2672 = vsub.s32 %v2669, %v2671
    %v2673 = vrot.slane %v2663, %v2672
    %v2675 = vunpack.c.l.s4 1983009808
    %v2676 = vunpack.c.0.s8 %v2675
    %v2677 = vlaneseq
    %v2678 = vshrl.u32 %v2677, 7
    %v2679 = vsub.s32 %v2676, %v2678
    %v2680 = vrot.slane %v2664, %v2679
    %v2682 = vunpack.c.l.s4 1983009808
    %v2683 = vunpack.c.0.s8 %v2682
    %v2684 = vlaneseq
    %v2685 = vshrl.u32 %v2684, 7
    %v2686 = vsub.s32 %v2683, %v2685
    %v2687 = vrot.slane %v2665, %v2686
    %v2689 = vunpack.c.l.s4 1983009808
    %v2690 = vunpack.c.0.s8 %v2689
    %v2691 = vlaneseq
    %v2692 = vshrl.u32 %v2691, 7
    %v2693 = vsub.s32 %v2690, %v2692
    %v2694 = vrot.slane %v2666, %v2693
    %v2695 = vcombine.low %v2673, %v2687
    %v2696 = vcombine.high %v2673, %v2687
    %v2697 = vcombine.low %v2680, %v2694
    %v2698 = vcombine.low %v225, %v227
    %v2699 = vcombine.high %v225, %v227
    %v2700 = vcombine.low %v229, %v231
    %v2701 = vcombine.high %v229, %v231
    %v2703 = vunpack.c.l.s4 1983009808
    %v2704 = vunpack.c.0.s8 %v2703
    %v2705 = vlaneseq
    %v2706 = vshrl.u32 %v2705, 7
    %v2707 = vsub.s32 %v2704, %v2706
    %v2708 = vrot.slane %v2698, %v2707
    %v2710 = vunpack.c.l.s4 1983009808
    %v2711 = vunpack.c.0.s8 %v2710
    %v2712 = vlaneseq
    %v2713 = vshrl.u32 %v2712, 7
    %v2714 = vsub.s32 %v2711, %v2713
    %v2715 = vrot.slane %v2699, %v2714
    %v2717 = vunpack.c.l.s4 1983009808
    %v2718 = vunpack.c.0.s8 %v2717
    %v2719 = vlaneseq
    %v2720 = vshrl.u32 %v2719, 7
    %v2721 = vsub.s32 %v2718, %v2720
    %v2722 = vrot.slane %v2700, %v2721
    %v2724 = vunpack.c.l.s4 1983009808
    %v2725 = vunpack.c.0.s8 %v2724
    %v2726 = vlaneseq
    %v2727 = vshrl.u32 %v2726, 7
    %v2728 = vsub.s32 %v2725, %v2727
    %v2729 = vrot.slane %v2701, %v2728
    %v2730 = vcombine.low %v2708, %v2722
    %v2731 = vcombine.high %v2708, %v2722
    %v2732 = vcombine.low %v2715, %v2729
    %v2733 = vcombine.high %v2715, %v2729
    %v2734 = vcombine.low %v226, %v228
    %v2735 = vcombine.high %v226, %v228
    %v2736 = vcombine.low %v230, %v232
    %v2737 = vcombine.high %v230, %v232
    %v2739 = vunpack.c.l.s4 1983009808
    %v2740 = vunpack.c.0.s8 %v2739
    %v2741 = vlaneseq
    %v2742 = vshrl.u32 %v2741, 7
    %v2743 = vsub.s32 %v2740, %v2742
    %v2744 = vrot.slane %v2734, %v2743
    %v2746 = vunpack.c.l.s4 1983009808
    %v2747 = vunpack.c.0.s8 %v2746
    %v2748 = vlaneseq
    %v2749 = vshrl.u32 %v2748, 7
    %v2750 = vsub.s32 %v2747, %v2749
    %v2751 = vrot.slane %v2735, %v2750
    %v2753 = vunpack.c.l.s4 1983009808
    %v2754 = vunpack.c.0.s8 %v2753
    %v2755 = vlaneseq
    %v2756 = vshrl.u32 %v2755, 7
    %v2757 = vsub.s32 %v2754, %v2756
    %v2758 = vrot.slane %v2736, %v2757
    %v2760 = vunpack.c.l.s4 1983009808
    %v2761 = vunpack.c.0.s8 %v2760
    %v2762 = vlaneseq
    %v2763 = vshrl.u32 %v2762, 7
    %v2764 = vsub.s32 %v2761, %v2763
    %v2765 = vrot.slane %v2737, %v2764
    %v2766 = vcombine.low %v2744, %v2758
    %v2767 = vcombine.high %v2744, %v2758
    %v2768 = vcombine.low %v2751, %v2765
    %v2769 = vcombine.low %v233, %v235
    %v2770 = vcombine.high %v233, %v235
    %v2771 = vcombine.low %v237, %v239
    %v2772 = vcombine.high %v237, %v239
    %v2774 = vunpack.c.l.s4 1983009808
    %v2775 = vunpack.c.0.s8 %v2774
    %v2776 = vlaneseq
    %v2777 = vshrl.u32 %v2776, 7
    %v2778 = vsub.s32 %v2775, %v2777
    %v2779 = vrot.slane %v2769, %v2778
    %v2781 = vunpack.c.l.s4 1983009808
    %v2782 = vunpack.c.0.s8 %v2781
    %v2783 = vlaneseq
    %v2784 = vshrl.u32 %v2783, 7
    %v2785 = vsub.s32 %v2782, %v2784
    %v2786 = vrot.slane %v2770, %v2785
    %v2788 = vunpack.c.l.s4 1983009808
    %v2789 = vunpack.c.0.s8 %v2788
    %v2790 = vlaneseq
    %v2791 = vshrl.u32 %v2790, 7
    %v2792 = vsub.s32 %v2789, %v2791
    %v2793 = vrot.slane %v2771, %v2792
    %v2795 = vunpack.c.l.s4 1983009808
    %v2796 = vunpack.c.0.s8 %v2795
    %v2797 = vlaneseq
    %v2798 = vshrl.u32 %v2797, 7
    %v2799 = vsub.s32 %v2796, %v2798
    %v2800 = vrot.slane %v2772, %v2799
    %v2801 = vcombine.low %v2779, %v2793
    %v2802 = vcombine.high %v2779, %v2793
    %v2803 = vcombine.low %v2786, %v2800
    %v2804 = vcombine.high %v2786, %v2800
    %v2805 = vcombine.low %v234, %v236
    %v2806 = vcombine.high %v234, %v236
    %v2807 = vcombine.low %v238, %v240
    %v2808 = vcombine.high %v238, %v240
    %v2810 = vunpack.c.l.s4 1983009808
    %v2811 = vunpack.c.0.s8 %v2810
    %v2812 = vlaneseq
    %v2813 = vshrl.u32 %v2812, 7
    %v2814 = vsub.s32 %v2811, %v2813
    %v2815 = vrot.slane %v2805, %v2814
    %v2817 = vunpack.c.l.s4 1983009808
    %v2818 = vunpack.c.0.s8 %v2817
    %v2819 = vlaneseq
    %v2820 = vshrl.u32 %v2819, 7
    %v2821 = vsub.s32 %v2818, %v2820
    %v2822 = vrot.slane %v2806, %v2821
    %v2824 = vunpack.c.l.s4 1983009808
    %v2825 = vunpack.c.0.s8 %v2824
    %v2826 = vlaneseq
    %v2827 = vshrl.u32 %v2826, 7
    %v2828 = vsub.s32 %v2825, %v2827
    %v2829 = vrot.slane %v2807, %v2828
    %v2831 = vunpack.c.l.s4 1983009808
    %v2832 = vunpack.c.0.s8 %v2831
    %v2833 = vlaneseq
    %v2834 = vshrl.u32 %v2833, 7
    %v2835 = vsub.s32 %v2832, %v2834
    %v2836 = vrot.slane %v2808, %v2835
    %v2837 = vcombine.low %v2815, %v2829
    %v2838 = vcombine.high %v2815, %v2829
    %v2839 = vcombine.low %v2822, %v2836
    %v2840 = vcombine.low %v241, %v243
    %v2841 = vcombine.high %v241, %v243
    %v2842 = vcombine.low %v245, %v247
    %v2843 = vcombine.high %v245, %v247
    %v2845 = vunpack.c.l.s4 1983009808
    %v2846 = vunpack.c.0.s8 %v2845
    %v2847 = vlaneseq
    %v2848 = vshrl.u32 %v2847, 7
    %v2849 = vsub.s32 %v2846, %v2848
    %v2850 = vrot.slane %v2840, %v2849
    %v2852 = vunpack.c.l.s4 1983009808
    %v2853 = vunpack.c.0.s8 %v2852
    %v2854 = vlaneseq
    %v2855 = vshrl.u32 %v2854, 7
    %v2856 = vsub.s32 %v2853, %v2855
    %v2857 = vrot.slane %v2841, %v2856
    %v2859 = vunpack.c.l.s4 1983009808
    %v2860 = vunpack.c.0.s8 %v2859
    %v2861 = vlaneseq
    %v2862 = vshrl.u32 %v2861, 7
    %v2863 = vsub.s32 %v2860, %v2862
    %v2864 = vrot.slane %v2842, %v2863
    %v2866 = vunpack.c.l.s4 1983009808
    %v2867 = vunpack.c.0.s8 %v2866
    %v2868 = vlaneseq
    %v2869 = vshrl.u32 %v2868, 7
    %v2870 = vsub.s32 %v2867, %v2869
    %v2871 = vrot.slane %v2843, %v2870
    %v2872 = vcombine.low %v2850, %v2864
    %v2873 = vcombine.high %v2850, %v2864
    %v2874 = vcombine.low %v2857, %v2871
    %v2875 = vcombine.high %v2857, %v2871
    %v2876 = vcombine.low %v242, %v244
    %v2877 = vcombine.high %v242, %v244
    %v2878 = vcombine.low %v246, %v248
    %v2879 = vcombine.high %v246, %v248
    %v2881 = vunpack.c.l.s4 1983009808
    %v2882 = vunpack.c.0.s8 %v2881
    %v2883 = vlaneseq
    %v2884 = vshrl.u32 %v2883, 7
    %v2885 = vsub.s32 %v2882, %v2884
    %v2886 = vrot.slane %v2876, %v2885
    %v2888 = vunpack.c.l.s4 1983009808
    %v2889 = vunpack.c.0.s8 %v2888
    %v2890 = vlaneseq
    %v2891 = vshrl.u32 %v2890, 7
    %v2892 = vsub.s32 %v2889, %v2891
    %v2893 = vrot.slane %v2877, %v2892
    %v2895 = vunpack.c.l.s4 1983009808
    %v2896 = vunpack.c.0.s8 %v2895
    %v2897 = vlaneseq
    %v2898 = vshrl.u32 %v2897, 7
    %v2899 = vsub.s32 %v2896, %v2898
    %v2900 = vrot.slane %v2878, %v2899
    %v2902 = vunpack.c.l.s4 1983009808
    %v2903 = vunpack.c.0.s8 %v2902
    %v2904 = vlaneseq
    %v2905 = vshrl.u32 %v2904, 7
    %v2906 = vsub.s32 %v2903, %v2905
    %v2907 = vrot.slane %v2879, %v2906
    %v2908 = vcombine.low %v2886, %v2900
    %v2909 = vcombine.high %v2886, %v2900
    %v2910 = vcombine.low %v2893, %v2907
    %v2911 = vcombine.low %v249, %v251
    %v2912 = vcombine.high %v249, %v251
    %v2913 = vcombine.low %v253, %v255
    %v2914 = vcombine.high %v253, %v255
    %v2916 = vunpack.c.l.s4 1983009808
    %v2917 = vunpack.c.0.s8 %v2916
    %v2918 = vlaneseq
    %v2919 = vshrl.u32 %v2918, 7
    %v2920 = vsub.s32 %v2917, %v2919
    %v2921 = vrot.slane %v2911, %v2920
    %v2923 = vunpack.c.l.s4 1983009808
    %v2924 = vunpack.c.0.s8 %v2923
    %v2925 = vlaneseq
    %v2926 = vshrl.u32 %v2925, 7
    %v2927 = vsub.s32 %v2924, %v2926
    %v2928 = vrot.slane %v2912, %v2927
    %v2930 = vunpack.c.l.s4 1983009808
    %v2931 = vunpack.c.0.s8 %v2930
    %v2932 = vlaneseq
    %v2933 = vshrl.u32 %v2932, 7
    %v2934 = vsub.s32 %v2931, %v2933
    %v2935 = vrot.slane %v2913, %v2934
    %v2937 = vunpack.c.l.s4 1983009808
    %v2938 = vunpack.c.0.s8 %v2937
    %v2939 = vlaneseq
    %v2940 = vshrl.u32 %v2939, 7
    %v2941 = vsub.s32 %v2938, %v2940
    %v2942 = vrot.slane %v2914, %v2941
    %v2943 = vcombine.low %v2921, %v2935
    %v2944 = vcombine.high %v2921, %v2935
    %v2945 = vcombine.low %v2928, %v2942
    %v2946 = vcombine.high %v2928, %v2942
    %v2947 = vcombine.low %v250, %v252
    %v2948 = vcombine.high %v250, %v252
    %v2949 = vcombine.low %v254, %v256
    %v2950 = vcombine.high %v254, %v256
    %v2952 = vunpack.c.l.s4 1983009808
    %v2953 = vunpack.c.0.s8 %v2952
    %v2954 = vlaneseq
    %v2955 = vshrl.u32 %v2954, 7
    %v2956 = vsub.s32 %v2953, %v2955
    %v2957 = vrot.slane %v2947, %v2956
    %v2959 = vunpack.c.l.s4 1983009808
    %v2960 = vunpack.c.0.s8 %v2959
    %v2961 = vlaneseq
    %v2962 = vshrl.u32 %v2961, 7
    %v2963 = vsub.s32 %v2960, %v2962
    %v2964 = vrot.slane %v2948, %v2963
    %v2966 = vunpack.c.l.s4 1983009808
    %v2967 = vunpack.c.0.s8 %v2966
    %v2968 = vlaneseq
    %v2969 = vshrl.u32 %v2968, 7
    %v2970 = vsub.s32 %v2967, %v2969
    %v2971 = vrot.slane %v2949, %v2970
    %v2973 = vunpack.c.l.s4 1983009808
    %v2974 = vunpack.c.0.s8 %v2973
    %v2975 = vlaneseq
    %v2976 = vshrl.u32 %v2975, 7
    %v2977 = vsub.s32 %v2974, %v2976
    %v2978 = vrot.slane %v2950, %v2977
    %v2979 = vcombine.low %v2957, %v2971
    %v2980 = vcombine.high %v2957, %v2971
    %v2981 = vcombine.low %v2964, %v2978
    %v2982 = vcombine.low %v257, %v259
    %v2983 = vcombine.high %v257, %v259
    %v2984 = vcombine.low %v261, %v263
    %v2985 = vcombine.high %v261, %v263
    %v2987 = vunpack.c.l.s4 1983009808
    %v2988 = vunpack.c.0.s8 %v2987
    %v2989 = vlaneseq
    %v2990 = vshrl.u32 %v2989, 7
    %v2991 = vsub.s32 %v2988, %v2990
    %v2992 = vrot.slane %v2982, %v2991
    %v2994 = vunpack.c.l.s4 1983009808
    %v2995 = vunpack.c.0.s8 %v2994
    %v2996 = vlaneseq
    %v2997 = vshrl.u32 %v2996, 7
    %v2998 = vsub.s32 %v2995, %v2997
    %v2999 = vrot.slane %v2983, %v2998
    %v3001 = vunpack.c.l.s4 1983009808
    %v3002 = vunpack.c.0.s8 %v3001
    %v3003 = vlaneseq
    %v3004 = vshrl.u32 %v3003, 7
    %v3005 = vsub.s32 %v3002, %v3004
    %v3006 = vrot.slane %v2984, %v3005
    %v3008 = vunpack.c.l.s4 1983009808
    %v3009 = vunpack.c.0.s8 %v3008
    %v3010 = vlaneseq
    %v3011 = vshrl.u32 %v3010, 7
    %v3012 = vsub.s32 %v3009, %v3011
    %v3013 = vrot.slane %v2985, %v3012
    %v3014 = vcombine.low %v2992, %v3006
    %v3015 = vcombine.high %v2992, %v3006
    %v3016 = vcombine.low %v2999, %v3013
    %v3017 = vcombine.high %v2999, %v3013
    %v3018 = vcombine.low %v258, %v260
    %v3019 = vcombine.high %v258, %v260
    %v3020 = vcombine.low %v262, %v264
    %v3021 = vcombine.high %v262, %v264
    %v3023 = vunpack.c.l.s4 1983009808
    %v3024 = vunpack.c.0.s8 %v3023
    %v3025 = vlaneseq
    %v3026 = vshrl.u32 %v3025, 7
    %v3027 = vsub.s32 %v3024, %v3026
    %v3028 = vrot.slane %v3018, %v3027
    %v3030 = vunpack.c.l.s4 1983009808
    %v3031 = vunpack.c.0.s8 %v3030
    %v3032 = vlaneseq
    %v3033 = vshrl.u32 %v3032, 7
    %v3034 = vsub.s32 %v3031, %v3033
    %v3035 = vrot.slane %v3019, %v3034
    %v3037 = vunpack.c.l.s4 1983009808
    %v3038 = vunpack.c.0.s8 %v3037
    %v3039 = vlaneseq
    %v3040 = vshrl.u32 %v3039, 7
    %v3041 = vsub.s32 %v3038, %v3040
    %v3042 = vrot.slane %v3020, %v3041
    %v3044 = vunpack.c.l.s4 1983009808
    %v3045 = vunpack.c.0.s8 %v3044
    %v3046 = vlaneseq
    %v3047 = vshrl.u32 %v3046, 7
    %v3048 = vsub.s32 %v3045, %v3047
    %v3049 = vrot.slane %v3021, %v3048
    %v3050 = vcombine.low %v3028, %v3042
    %v3051 = vcombine.high %v3028, %v3042
    %v3052 = vcombine.low %v3035, %v3049
    %v3053 = vcombine.low %v265, %v267
    %v3054 = vcombine.high %v265, %v267
    %v3055 = vcombine.low %v269, %v271
    %v3056 = vcombine.high %v269, %v271
    %v3058 = vunpack.c.l.s4 1983009808
    %v3059 = vunpack.c.0.s8 %v3058
    %v3060 = vlaneseq
    %v3061 = vshrl.u32 %v3060, 7
    %v3062 = vsub.s32 %v3059, %v3061
    %v3063 = vrot.slane %v3053, %v3062
    %v3065 = vunpack.c.l.s4 1983009808
    %v3066 = vunpack.c.0.s8 %v3065
    %v3067 = vlaneseq
    %v3068 = vshrl.u32 %v3067, 7
    %v3069 = vsub.s32 %v3066, %v3068
    %v3070 = vrot.slane %v3054, %v3069
    %v3072 = vunpack.c.l.s4 1983009808
    %v3073 = vunpack.c.0.s8 %v3072
    %v3074 = vlaneseq
    %v3075 = vshrl.u32 %v3074, 7
    %v3076 = vsub.s32 %v3073, %v3075
    %v3077 = vrot.slane %v3055, %v3076
    %v3079 = vunpack.c.l.s4 1983009808
    %v3080 = vunpack.c.0.s8 %v3079
    %v3081 = vlaneseq
    %v3082 = vshrl.u32 %v3081, 7
    %v3083 = vsub.s32 %v3080, %v3082
    %v3084 = vrot.slane %v3056, %v3083
    %v3085 = vcombine.low %v3063, %v3077
    %v3086 = vcombine.high %v3063, %v3077
    %v3087 = vcombine.low %v3070, %v3084
    %v3088 = vcombine.high %v3070, %v3084
    %v3089 = vcombine.low %v266, %v268
    %v3090 = vcombine.high %v266, %v268
    %v3091 = vcombine.low %v270, %v272
    %v3092 = vcombine.high %v270, %v272
    %v3094 = vunpack.c.l.s4 1983009808
    %v3095 = vunpack.c.0.s8 %v3094
    %v3096 = vlaneseq
    %v3097 = vshrl.u32 %v3096, 7
    %v3098 = vsub.s32 %v3095, %v3097
    %v3099 = vrot.slane %v3089, %v3098
    %v3101 = vunpack.c.l.s4 1983009808
    %v3102 = vunpack.c.0.s8 %v3101
    %v3103 = vlaneseq
    %v3104 = vshrl.u32 %v3103, 7
    %v3105 = vsub.s32 %v3102, %v3104
    %v3106 = vrot.slane %v3090, %v3105
    %v3108 = vunpack.c.l.s4 1983009808
    %v3109 = vunpack.c.0.s8 %v3108
    %v3110 = vlaneseq
    %v3111 = vshrl.u32 %v3110, 7
    %v3112 = vsub.s32 %v3109, %v3111
    %v3113 = vrot.slane %v3091, %v3112
    %v3115 = vunpack.c.l.s4 1983009808
    %v3116 = vunpack.c.0.s8 %v3115
    %v3117 = vlaneseq
    %v3118 = vshrl.u32 %v3117, 7
    %v3119 = vsub.s32 %v3116, %v3118
    %v3120 = vrot.slane %v3092, %v3119
    %v3121 = vcombine.low %v3099, %v3113
    %v3122 = vcombine.high %v3099, %v3113
    %v3123 = vcombine.low %v3106, %v3120
    %v3124 = vcombine.low %v273, %v275
    %v3125 = vcombine.high %v273, %v275
    %v3126 = vcombine.low %v277, %v279
    %v3127 = vcombine.high %v277, %v279
    %v3129 = vunpack.c.l.s4 1983009808
    %v3130 = vunpack.c.0.s8 %v3129
    %v3131 = vlaneseq
    %v3132 = vshrl.u32 %v3131, 7
    %v3133 = vsub.s32 %v3130, %v3132
    %v3134 = vrot.slane %v3124, %v3133
    %v3136 = vunpack.c.l.s4 1983009808
    %v3137 = vunpack.c.0.s8 %v3136
    %v3138 = vlaneseq
    %v3139 = vshrl.u32 %v3138, 7
    %v3140 = vsub.s32 %v3137, %v3139
    %v3141 = vrot.slane %v3125, %v3140
    %v3143 = vunpack.c.l.s4 1983009808
    %v3144 = vunpack.c.0.s8 %v3143
    %v3145 = vlaneseq
    %v3146 = vshrl.u32 %v3145, 7
    %v3147 = vsub.s32 %v3144, %v3146
    %v3148 = vrot.slane %v3126, %v3147
    %v3150 = vunpack.c.l.s4 1983009808
    %v3151 = vunpack.c.0.s8 %v3150
    %v3152 = vlaneseq
    %v3153 = vshrl.u32 %v3152, 7
    %v3154 = vsub.s32 %v3151, %v3153
    %v3155 = vrot.slane %v3127, %v3154
    %v3156 = vcombine.low %v3134, %v3148
    %v3157 = vcombine.high %v3134, %v3148
    %v3158 = vcombine.low %v3141, %v3155
    %v3159 = vcombine.high %v3141, %v3155
    %v3160 = vcombine.low %v274, %v276
    %v3161 = vcombine.high %v274, %v276
    %v3162 = vcombine.low %v278, %v280
    %v3163 = vcombine.high %v278, %v280
    %v3165 = vunpack.c.l.s4 1983009808
    %v3166 = vunpack.c.0.s8 %v3165
    %v3167 = vlaneseq
    %v3168 = vshrl.u32 %v3167, 7
    %v3169 = vsub.s32 %v3166, %v3168
    %v3170 = vrot.slane %v3160, %v3169
    %v3172 = vunpack.c.l.s4 1983009808
    %v3173 = vunpack.c.0.s8 %v3172
    %v3174 = vlaneseq
    %v3175 = vshrl.u32 %v3174, 7
    %v3176 = vsub.s32 %v3173, %v3175
    %v3177 = vrot.slane %v3161, %v3176
    %v3179 = vunpack.c.l.s4 1983009808
    %v3180 = vunpack.c.0.s8 %v3179
    %v3181 = vlaneseq
    %v3182 = vshrl.u32 %v3181, 7
    %v3183 = vsub.s32 %v3180, %v3182
    %v3184 = vrot.slane %v3162, %v3183
    %v3186 = vunpack.c.l.s4 1983009808
    %v3187 = vunpack.c.0.s8 %v3186
    %v3188 = vlaneseq
    %v3189 = vshrl.u32 %v3188, 7
    %v3190 = vsub.s32 %v3187, %v3189
    %v3191 = vrot.slane %v3163, %v3190
    %v3192 = vcombine.low %v3170, %v3184
    %v3193 = vcombine.high %v3170, %v3184
    %v3194 = vcombine.low %v3177, %v3191
    %v3195 = vcombine.low %v281, %v283
    %v3196 = vcombine.high %v281, %v283
    %v3197 = vcombine.low %v285, %v287
    %v3198 = vcombine.high %v285, %v287
    %v3200 = vunpack.c.l.s4 1983009808
    %v3201 = vunpack.c.0.s8 %v3200
    %v3202 = vlaneseq
    %v3203 = vshrl.u32 %v3202, 7
    %v3204 = vsub.s32 %v3201, %v3203
    %v3205 = vrot.slane %v3195, %v3204
    %v3207 = vunpack.c.l.s4 1983009808
    %v3208 = vunpack.c.0.s8 %v3207
    %v3209 = vlaneseq
    %v3210 = vshrl.u32 %v3209, 7
    %v3211 = vsub.s32 %v3208, %v3210
    %v3212 = vrot.slane %v3196, %v3211
    %v3214 = vunpack.c.l.s4 1983009808
    %v3215 = vunpack.c.0.s8 %v3214
    %v3216 = vlaneseq
    %v3217 = vshrl.u32 %v3216, 7
    %v3218 = vsub.s32 %v3215, %v3217
    %v3219 = vrot.slane %v3197, %v3218
    %v3221 = vunpack.c.l.s4 1983009808
    %v3222 = vunpack.c.0.s8 %v3221
    %v3223 = vlaneseq
    %v3224 = vshrl.u32 %v3223, 7
    %v3225 = vsub.s32 %v3222, %v3224
    %v3226 = vrot.slane %v3198, %v3225
    %v3227 = vcombine.low %v3205, %v3219
    %v3228 = vcombine.high %v3205, %v3219
    %v3229 = vcombine.low %v3212, %v3226
    %v3230 = vcombine.high %v3212, %v3226
    %v3231 = vcombine.low %v282, %v284
    %v3232 = vcombine.high %v282, %v284
    %v3233 = vcombine.low %v286, %v288
    %v3234 = vcombine.high %v286, %v288
    %v3236 = vunpack.c.l.s4 1983009808
    %v3237 = vunpack.c.0.s8 %v3236
    %v3238 = vlaneseq
    %v3239 = vshrl.u32 %v3238, 7
    %v3240 = vsub.s32 %v3237, %v3239
    %v3241 = vrot.slane %v3231, %v3240
    %v3243 = vunpack.c.l.s4 1983009808
    %v3244 = vunpack.c.0.s8 %v3243
    %v3245 = vlaneseq
    %v3246 = vshrl.u32 %v3245, 7
    %v3247 = vsub.s32 %v3244, %v3246
    %v3248 = vrot.slane %v3232, %v3247
    %v3250 = vunpack.c.l.s4 1983009808
    %v3251 = vunpack.c.0.s8 %v3250
    %v3252 = vlaneseq
    %v3253 = vshrl.u32 %v3252, 7
    %v3254 = vsub.s32 %v3251, %v3253
    %v3255 = vrot.slane %v3233, %v3254
    %v3257 = vunpack.c.l.s4 1983009808
    %v3258 = vunpack.c.0.s8 %v3257
    %v3259 = vlaneseq
    %v3260 = vshrl.u32 %v3259, 7
    %v3261 = vsub.s32 %v3258, %v3260
    %v3262 = vrot.slane %v3234, %v3261
    %v3263 = vcombine.low %v3241, %v3255
    %v3264 = vcombine.high %v3241, %v3255
    %v3265 = vcombine.low %v3248, %v3262
    %v3266 = vcombine.low %v289, %v291
    %v3267 = vcombine.high %v289, %v291
    %v3268 = vcombine.low %v293, %v295
    %v3269 = vcombine.high %v293, %v295
    %v3271 = vunpack.c.l.s4 1983009808
    %v3272 = vunpack.c.0.s8 %v3271
    %v3273 = vlaneseq
    %v3274 = vshrl.u32 %v3273, 7
    %v3275 = vsub.s32 %v3272, %v3274
    %v3276 = vrot.slane %v3266, %v3275
    %v3278 = vunpack.c.l.s4 1983009808
    %v3279 = vunpack.c.0.s8 %v3278
    %v3280 = vlaneseq
    %v3281 = vshrl.u32 %v3280, 7
    %v3282 = vsub.s32 %v3279, %v3281
    %v3283 = vrot.slane %v3267, %v3282
    %v3285 = vunpack.c.l.s4 1983009808
    %v3286 = vunpack.c.0.s8 %v3285
    %v3287 = vlaneseq
    %v3288 = vshrl.u32 %v3287, 7
    %v3289 = vsub.s32 %v3286, %v3288
    %v3290 = vrot.slane %v3268, %v3289
    %v3292 = vunpack.c.l.s4 1983009808
    %v3293 = vunpack.c.0.s8 %v3292
    %v3294 = vlaneseq
    %v3295 = vshrl.u32 %v3294, 7
    %v3296 = vsub.s32 %v3293, %v3295
    %v3297 = vrot.slane %v3269, %v3296
    %v3298 = vcombine.low %v3276, %v3290
    %v3299 = vcombine.high %v3276, %v3290
    %v3300 = vcombine.low %v3283, %v3297
    %v3301 = vcombine.high %v3283, %v3297
    %v3302 = vcombine.low %v290, %v292
    %v3303 = vcombine.high %v290, %v292
    %v3304 = vcombine.low %v294, %v296
    %v3305 = vcombine.high %v294, %v296
    %v3307 = vunpack.c.l.s4 1983009808
    %v3308 = vunpack.c.0.s8 %v3307
    %v3309 = vlaneseq
    %v3310 = vshrl.u32 %v3309, 7
    %v3311 = vsub.s32 %v3308, %v3310
    %v3312 = vrot.slane %v3302, %v3311
    %v3314 = vunpack.c.l.s4 1983009808
    %v3315 = vunpack.c.0.s8 %v3314
    %v3316 = vlaneseq
    %v3317 = vshrl.u32 %v3316, 7
    %v3318 = vsub.s32 %v3315, %v3317
    %v3319 = vrot.slane %v3303, %v3318
    %v3321 = vunpack.c.l.s4 1983009808
    %v3322 = vunpack.c.0.s8 %v3321
    %v3323 = vlaneseq
    %v3324 = vshrl.u32 %v3323, 7
    %v3325 = vsub.s32 %v3322, %v3324
    %v3326 = vrot.slane %v3304, %v3325
    %v3328 = vunpack.c.l.s4 1983009808
    %v3329 = vunpack.c.0.s8 %v3328
    %v3330 = vlaneseq
    %v3331 = vshrl.u32 %v3330, 7
    %v3332 = vsub.s32 %v3329, %v3331
    %v3333 = vrot.slane %v3305, %v3332
    %v3334 = vcombine.low %v3312, %v3326
    %v3335 = vcombine.high %v3312, %v3326
    %v3336 = vcombine.low %v3319, %v3333
    %v3337 = vcombine.low %v297, %v299
    %v3338 = vcombine.high %v297, %v299
    %v3339 = vcombine.low %v301, %v303
    %v3340 = vcombine.high %v301, %v303
    %v3342 = vunpack.c.l.s4 1983009808
    %v3343 = vunpack.c.0.s8 %v3342
    %v3344 = vlaneseq
    %v3345 = vshrl.u32 %v3344, 7
    %v3346 = vsub.s32 %v3343, %v3345
    %v3347 = vrot.slane %v3337, %v3346
    %v3349 = vunpack.c.l.s4 1983009808
    %v3350 = vunpack.c.0.s8 %v3349
    %v3351 = vlaneseq
    %v3352 = vshrl.u32 %v3351, 7
    %v3353 = vsub.s32 %v3350, %v3352
    %v3354 = vrot.slane %v3338, %v3353
    %v3356 = vunpack.c.l.s4 1983009808
    %v3357 = vunpack.c.0.s8 %v3356
    %v3358 = vlaneseq
    %v3359 = vshrl.u32 %v3358, 7
    %v3360 = vsub.s32 %v3357, %v3359
    %v3361 = vrot.slane %v3339, %v3360
    %v3363 = vunpack.c.l.s4 1983009808
    %v3364 = vunpack.c.0.s8 %v3363
    %v3365 = vlaneseq
    %v3366 = vshrl.u32 %v3365, 7
    %v3367 = vsub.s32 %v3364, %v3366
    %v3368 = vrot.slane %v3340, %v3367
    %v3369 = vcombine.low %v3347, %v3361
    %v3370 = vcombine.high %v3347, %v3361
    %v3371 = vcombine.low %v3354, %v3368
    %v3372 = vcombine.high %v3354, %v3368
    %v3373 = vcombine.low %v298, %v300
    %v3374 = vcombine.high %v298, %v300
    %v3375 = vcombine.low %v302, %v304
    %v3376 = vcombine.high %v302, %v304
    %v3378 = vunpack.c.l.s4 1983009808
    %v3379 = vunpack.c.0.s8 %v3378
    %v3380 = vlaneseq
    %v3381 = vshrl.u32 %v3380, 7
    %v3382 = vsub.s32 %v3379, %v3381
    %v3383 = vrot.slane %v3373, %v3382
    %v3385 = vunpack.c.l.s4 1983009808
    %v3386 = vunpack.c.0.s8 %v3385
    %v3387 = vlaneseq
    %v3388 = vshrl.u32 %v3387, 7
    %v3389 = vsub.s32 %v3386, %v3388
    %v3390 = vrot.slane %v3374, %v3389
    %v3392 = vunpack.c.l.s4 1983009808
    %v3393 = vunpack.c.0.s8 %v3392
    %v3394 = vlaneseq
    %v3395 = vshrl.u32 %v3394, 7
    %v3396 = vsub.s32 %v3393, %v3395
    %v3397 = vrot.slane %v3375, %v3396
    %v3399 = vunpack.c.l.s4 1983009808
    %v3400 = vunpack.c.0.s8 %v3399
    %v3401 = vlaneseq
    %v3402 = vshrl.u32 %v3401, 7
    %v3403 = vsub.s32 %v3400, %v3402
    %v3404 = vrot.slane %v3376, %v3403
    %v3405 = vcombine.low %v3383, %v3397
    %v3406 = vcombine.high %v3383, %v3397
    %v3407 = vcombine.low %v3390, %v3404
    %v3408 = vcombine.low %v305, %v307
    %v3409 = vcombine.high %v305, %v307
    %v3410 = vcombine.low %v309, %v311
    %v3411 = vcombine.high %v309, %v311
    %v3413 = vunpack.c.l.s4 1983009808
    %v3414 = vunpack.c.0.s8 %v3413
    %v3415 = vlaneseq
    %v3416 = vshrl.u32 %v3415, 7
    %v3417 = vsub.s32 %v3414, %v3416
    %v3418 = vrot.slane %v3408, %v3417
    %v3420 = vunpack.c.l.s4 1983009808
    %v3421 = vunpack.c.0.s8 %v3420
    %v3422 = vlaneseq
    %v3423 = vshrl.u32 %v3422, 7
    %v3424 = vsub.s32 %v3421, %v3423
    %v3425 = vrot.slane %v3409, %v3424
    %v3427 = vunpack.c.l.s4 1983009808
    %v3428 = vunpack.c.0.s8 %v3427
    %v3429 = vlaneseq
    %v3430 = vshrl.u32 %v3429, 7
    %v3431 = vsub.s32 %v3428, %v3430
    %v3432 = vrot.slane %v3410, %v3431
    %v3434 = vunpack.c.l.s4 1983009808
    %v3435 = vunpack.c.0.s8 %v3434
    %v3436 = vlaneseq
    %v3437 = vshrl.u32 %v3436, 7
    %v3438 = vsub.s32 %v3435, %v3437
    %v3439 = vrot.slane %v3411, %v3438
    %v3440 = vcombine.low %v3418, %v3432
    %v3441 = vcombine.high %v3418, %v3432
    %v3442 = vcombine.low %v3425, %v3439
    %v3443 = vcombine.high %v3425, %v3439
    %v3444 = vcombine.low %v306, %v308
    %v3445 = vcombine.high %v306, %v308
    %v3446 = vcombine.low %v310, %v312
    %v3447 = vcombine.high %v310, %v312
    %v3449 = vunpack.c.l.s4 1983009808
    %v3450 = vunpack.c.0.s8 %v3449
    %v3451 = vlaneseq
    %v3452 = vshrl.u32 %v3451, 7
    %v3453 = vsub.s32 %v3450, %v3452
    %v3454 = vrot.slane %v3444, %v3453
    %v3456 = vunpack.c.l.s4 1983009808
    %v3457 = vunpack.c.0.s8 %v3456
    %v3458 = vlaneseq
    %v3459 = vshrl.u32 %v3458, 7
    %v3460 = vsub.s32 %v3457, %v3459
    %v3461 = vrot.slane %v3445, %v3460
    %v3463 = vunpack.c.l.s4 1983009808
    %v3464 = vunpack.c.0.s8 %v3463
    %v3465 = vlaneseq
    %v3466 = vshrl.u32 %v3465, 7
    %v3467 = vsub.s32 %v3464, %v3466
    %v3468 = vrot.slane %v3446, %v3467
    %v3470 = vunpack.c.l.s4 1983009808
    %v3471 = vunpack.c.0.s8 %v3470
    %v3472 = vlaneseq
    %v3473 = vshrl.u32 %v3472, 7
    %v3474 = vsub.s32 %v3471, %v3473
    %v3475 = vrot.slane %v3447, %v3474
    %v3476 = vcombine.low %v3454, %v3468
    %v3477 = vcombine.high %v3454, %v3468
    %v3478 = vcombine.low %v3461, %v3475
    %v3479 = vcombine.low %v313, %v315
    %v3480 = vcombine.high %v313, %v315
    %v3481 = vcombine.low %v317, %v319
    %v3482 = vcombine.high %v317, %v319
    %v3484 = vunpack.c.l.s4 1983009808
    %v3485 = vunpack.c.0.s8 %v3484
    %v3486 = vlaneseq
    %v3487 = vshrl.u32 %v3486, 7
    %v3488 = vsub.s32 %v3485, %v3487
    %v3489 = vrot.slane %v3479, %v3488
    %v3491 = vunpack.c.l.s4 1983009808
    %v3492 = vunpack.c.0.s8 %v3491
    %v3493 = vlaneseq
    %v3494 = vshrl.u32 %v3493, 7
    %v3495 = vsub.s32 %v3492, %v3494
    %v3496 = vrot.slane %v3480, %v3495
    %v3498 = vunpack.c.l.s4 1983009808
    %v3499 = vunpack.c.0.s8 %v3498
    %v3500 = vlaneseq
    %v3501 = vshrl.u32 %v3500, 7
    %v3502 = vsub.s32 %v3499, %v3501
    %v3503 = vrot.slane %v3481, %v3502
    %v3505 = vunpack.c.l.s4 1983009808
    %v3506 = vunpack.c.0.s8 %v3505
    %v3507 = vlaneseq
    %v3508 = vshrl.u32 %v3507, 7
    %v3509 = vsub.s32 %v3506, %v3508
    %v3510 = vrot.slane %v3482, %v3509
    %v3511 = vcombine.low %v3489, %v3503
    %v3512 = vcombine.high %v3489, %v3503
    %v3513 = vcombine.low %v3496, %v3510
    %v3514 = vcombine.high %v3496, %v3510
    %v3515 = vcombine.low %v314, %v316
    %v3516 = vcombine.high %v314, %v316
    %v3517 = vcombine.low %v318, %v320
    %v3518 = vcombine.high %v318, %v320
    %v3520 = vunpack.c.l.s4 1983009808
    %v3521 = vunpack.c.0.s8 %v3520
    %v3522 = vlaneseq
    %v3523 = vshrl.u32 %v3522, 7
    %v3524 = vsub.s32 %v3521, %v3523
    %v3525 = vrot.slane %v3515, %v3524
    %v3527 = vunpack.c.l.s4 1983009808
    %v3528 = vunpack.c.0.s8 %v3527
    %v3529 = vlaneseq
    %v3530 = vshrl.u32 %v3529, 7
    %v3531 = vsub.s32 %v3528, %v3530
    %v3532 = vrot.slane %v3516, %v3531
    %v3534 = vunpack.c.l.s4 1983009808
    %v3535 = vunpack.c.0.s8 %v3534
    %v3536 = vlaneseq
    %v3537 = vshrl.u32 %v3536, 7
    %v3538 = vsub.s32 %v3535, %v3537
    %v3539 = vrot.slane %v3517, %v3538
    %v3541 = vunpack.c.l.s4 1983009808
    %v3542 = vunpack.c.0.s8 %v3541
    %v3543 = vlaneseq
    %v3544 = vshrl.u32 %v3543, 7
    %v3545 = vsub.s32 %v3542, %v3544
    %v3546 = vrot.slane %v3518, %v3545
    %v3547 = vcombine.low %v3525, %v3539
    %v3548 = vcombine.high %v3525, %v3539
    %v3549 = vcombine.low %v3532, %v3546
    %v3550 = vcombine.low %v321, %v323
    %v3551 = vcombine.high %v321, %v323
    %v3552 = vcombine.low %v325, %v327
    %v3553 = vcombine.high %v325, %v327
    %v3555 = vunpack.c.l.s4 1983009808
    %v3556 = vunpack.c.0.s8 %v3555
    %v3557 = vlaneseq
    %v3558 = vshrl.u32 %v3557, 7
    %v3559 = vsub.s32 %v3556, %v3558
    %v3560 = vrot.slane %v3550, %v3559
    %v3562 = vunpack.c.l.s4 1983009808
    %v3563 = vunpack.c.0.s8 %v3562
    %v3564 = vlaneseq
    %v3565 = vshrl.u32 %v3564, 7
    %v3566 = vsub.s32 %v3563, %v3565
    %v3567 = vrot.slane %v3551, %v3566
    %v3569 = vunpack.c.l.s4 1983009808
    %v3570 = vunpack.c.0.s8 %v3569
    %v3571 = vlaneseq
    %v3572 = vshrl.u32 %v3571, 7
    %v3573 = vsub.s32 %v3570, %v3572
    %v3574 = vrot.slane %v3552, %v3573
    %v3576 = vunpack.c.l.s4 1983009808
    %v3577 = vunpack.c.0.s8 %v3576
    %v3578 = vlaneseq
    %v3579 = vshrl.u32 %v3578, 7
    %v3580 = vsub.s32 %v3577, %v3579
    %v3581 = vrot.slane %v3553, %v3580
    %v3582 = vcombine.low %v3560, %v3574
    %v3583 = vcombine.high %v3560, %v3574
    %v3584 = vcombine.low %v3567, %v3581
    %v3585 = vcombine.high %v3567, %v3581
    %v3586 = vcombine.low %v322, %v324
    %v3587 = vcombine.high %v322, %v324
    %v3588 = vcombine.low %v326, %v328
    %v3589 = vcombine.high %v326, %v328
    %v3591 = vunpack.c.l.s4 1983009808
    %v3592 = vunpack.c.0.s8 %v3591
    %v3593 = vlaneseq
    %v3594 = vshrl.u32 %v3593, 7
    %v3595 = vsub.s32 %v3592, %v3594
    %v3596 = vrot.slane %v3586, %v3595
    %v3598 = vunpack.c.l.s4 1983009808
    %v3599 = vunpack.c.0.s8 %v3598
    %v3600 = vlaneseq
    %v3601 = vshrl.u32 %v3600, 7
    %v3602 = vsub.s32 %v3599, %v3601
    %v3603 = vrot.slane %v3587, %v3602
    %v3605 = vunpack.c.l.s4 1983009808
    %v3606 = vunpack.c.0.s8 %v3605
    %v3607 = vlaneseq
    %v3608 = vshrl.u32 %v3607, 7
    %v3609 = vsub.s32 %v3606, %v3608
    %v3610 = vrot.slane %v3588, %v3609
    %v3612 = vunpack.c.l.s4 1983009808
    %v3613 = vunpack.c.0.s8 %v3612
    %v3614 = vlaneseq
    %v3615 = vshrl.u32 %v3614, 7
    %v3616 = vsub.s32 %v3613, %v3615
    %v3617 = vrot.slane %v3589, %v3616
    %v3618 = vcombine.low %v3596, %v3610
    %v3619 = vcombine.high %v3596, %v3610
    %v3620 = vcombine.low %v3603, %v3617
    %v3621 = vcombine.low %v329, %v331
    %v3622 = vcombine.high %v329, %v331
    %v3623 = vcombine.low %v333, %v335
    %v3624 = vcombine.high %v333, %v335
    %v3626 = vunpack.c.l.s4 1983009808
    %v3627 = vunpack.c.0.s8 %v3626
    %v3628 = vlaneseq
    %v3629 = vshrl.u32 %v3628, 7
    %v3630 = vsub.s32 %v3627, %v3629
    %v3631 = vrot.slane %v3621, %v3630
    %v3633 = vunpack.c.l.s4 1983009808
    %v3634 = vunpack.c.0.s8 %v3633
    %v3635 = vlaneseq
    %v3636 = vshrl.u32 %v3635, 7
    %v3637 = vsub.s32 %v3634, %v3636
    %v3638 = vrot.slane %v3622, %v3637
    %v3640 = vunpack.c.l.s4 1983009808
    %v3641 = vunpack.c.0.s8 %v3640
    %v3642 = vlaneseq
    %v3643 = vshrl.u32 %v3642, 7
    %v3644 = vsub.s32 %v3641, %v3643
    %v3645 = vrot.slane %v3623, %v3644
    %v3647 = vunpack.c.l.s4 1983009808
    %v3648 = vunpack.c.0.s8 %v3647
    %v3649 = vlaneseq
    %v3650 = vshrl.u32 %v3649, 7
    %v3651 = vsub.s32 %v3648, %v3650
    %v3652 = vrot.slane %v3624, %v3651
    %v3653 = vcombine.low %v3631, %v3645
    %v3654 = vcombine.high %v3631, %v3645
    %v3655 = vcombine.low %v3638, %v3652
    %v3656 = vcombine.high %v3638, %v3652
    %v3657 = vcombine.low %v330, %v332
    %v3658 = vcombine.high %v330, %v332
    %v3659 = vcombine.low %v334, %v336
    %v3660 = vcombine.high %v334, %v336
    %v3662 = vunpack.c.l.s4 1983009808
    %v3663 = vunpack.c.0.s8 %v3662
    %v3664 = vlaneseq
    %v3665 = vshrl.u32 %v3664, 7
    %v3666 = vsub.s32 %v3663, %v3665
    %v3667 = vrot.slane %v3657, %v3666
    %v3669 = vunpack.c.l.s4 1983009808
    %v3670 = vunpack.c.0.s8 %v3669
    %v3671 = vlaneseq
    %v3672 = vshrl.u32 %v3671, 7
    %v3673 = vsub.s32 %v3670, %v3672
    %v3674 = vrot.slane %v3658, %v3673
    %v3676 = vunpack.c.l.s4 1983009808
    %v3677 = vunpack.c.0.s8 %v3676
    %v3678 = vlaneseq
    %v3679 = vshrl.u32 %v3678, 7
    %v3680 = vsub.s32 %v3677, %v3679
    %v3681 = vrot.slane %v3659, %v3680
    %v3683 = vunpack.c.l.s4 1983009808
    %v3684 = vunpack.c.0.s8 %v3683
    %v3685 = vlaneseq
    %v3686 = vshrl.u32 %v3685, 7
    %v3687 = vsub.s32 %v3684, %v3686
    %v3688 = vrot.slane %v3660, %v3687
    %v3689 = vcombine.low %v3667, %v3681
    %v3690 = vcombine.high %v3667, %v3681
    %v3691 = vcombine.low %v3674, %v3688
    %v3692 = vcombine.low %v337, %v339
    %v3693 = vcombine.high %v337, %v339
    %v3694 = vcombine.low %v341, %v343
    %v3695 = vcombine.high %v341, %v343
    %v3697 = vunpack.c.l.s4 1983009808
    %v3698 = vunpack.c.0.s8 %v3697
    %v3699 = vlaneseq
    %v3700 = vshrl.u32 %v3699, 7
    %v3701 = vsub.s32 %v3698, %v3700
    %v3702 = vrot.slane %v3692, %v3701
    %v3704 = vunpack.c.l.s4 1983009808
    %v3705 = vunpack.c.0.s8 %v3704
    %v3706 = vlaneseq
    %v3707 = vshrl.u32 %v3706, 7
    %v3708 = vsub.s32 %v3705, %v3707
    %v3709 = vrot.slane %v3693, %v3708
    %v3711 = vunpack.c.l.s4 1983009808
    %v3712 = vunpack.c.0.s8 %v3711
    %v3713 = vlaneseq
    %v3714 = vshrl.u32 %v3713, 7
    %v3715 = vsub.s32 %v3712, %v3714
    %v3716 = vrot.slane %v3694, %v3715
    %v3718 = vunpack.c.l.s4 1983009808
    %v3719 = vunpack.c.0.s8 %v3718
    %v3720 = vlaneseq
    %v3721 = vshrl.u32 %v3720, 7
    %v3722 = vsub.s32 %v3719, %v3721
    %v3723 = vrot.slane %v3695, %v3722
    %v3724 = vcombine.low %v3702, %v3716
    %v3725 = vcombine.high %v3702, %v3716
    %v3726 = vcombine.low %v3709, %v3723
    %v3727 = vcombine.high %v3709, %v3723
    %v3728 = vcombine.low %v338, %v340
    %v3729 = vcombine.high %v338, %v340
    %v3730 = vcombine.low %v342, %v344
    %v3731 = vcombine.high %v342, %v344
    %v3733 = vunpack.c.l.s4 1983009808
    %v3734 = vunpack.c.0.s8 %v3733
    %v3735 = vlaneseq
    %v3736 = vshrl.u32 %v3735, 7
    %v3737 = vsub.s32 %v3734, %v3736
    %v3738 = vrot.slane %v3728, %v3737
    %v3740 = vunpack.c.l.s4 1983009808
    %v3741 = vunpack.c.0.s8 %v3740
    %v3742 = vlaneseq
    %v3743 = vshrl.u32 %v3742, 7
    %v3744 = vsub.s32 %v3741, %v3743
    %v3745 = vrot.slane %v3729, %v3744
    %v3747 = vunpack.c.l.s4 1983009808
    %v3748 = vunpack.c.0.s8 %v3747
    %v3749 = vlaneseq
    %v3750 = vshrl.u32 %v3749, 7
    %v3751 = vsub.s32 %v3748, %v3750
    %v3752 = vrot.slane %v3730, %v3751
    %v3754 = vunpack.c.l.s4 1983009808
    %v3755 = vunpack.c.0.s8 %v3754
    %v3756 = vlaneseq
    %v3757 = vshrl.u32 %v3756, 7
    %v3758 = vsub.s32 %v3755, %v3757
    %v3759 = vrot.slane %v3731, %v3758
    %v3760 = vcombine.low %v3738, %v3752
    %v3761 = vcombine.high %v3738, %v3752
    %v3762 = vcombine.low %v3745, %v3759
    %v3763 = vcombine.low %v345, %v347
    %v3764 = vcombine.high %v345, %v347
    %v3765 = vcombine.low %v349, %v351
    %v3766 = vcombine.high %v349, %v351
    %v3768 = vunpack.c.l.s4 1983009808
    %v3769 = vunpack.c.0.s8 %v3768
    %v3770 = vlaneseq
    %v3771 = vshrl.u32 %v3770, 7
    %v3772 = vsub.s32 %v3769, %v3771
    %v3773 = vrot.slane %v3763, %v3772
    %v3775 = vunpack.c.l.s4 1983009808
    %v3776 = vunpack.c.0.s8 %v3775
    %v3777 = vlaneseq
    %v3778 = vshrl.u32 %v3777, 7
    %v3779 = vsub.s32 %v3776, %v3778
    %v3780 = vrot.slane %v3764, %v3779
    %v3782 = vunpack.c.l.s4 1983009808
    %v3783 = vunpack.c.0.s8 %v3782
    %v3784 = vlaneseq
    %v3785 = vshrl.u32 %v3784, 7
    %v3786 = vsub.s32 %v3783, %v3785
    %v3787 = vrot.slane %v3765, %v3786
    %v3789 = vunpack.c.l.s4 1983009808
    %v3790 = vunpack.c.0.s8 %v3789
    %v3791 = vlaneseq
    %v3792 = vshrl.u32 %v3791, 7
    %v3793 = vsub.s32 %v3790, %v3792
    %v3794 = vrot.slane %v3766, %v3793
    %v3795 = vcombine.low %v3773, %v3787
    %v3796 = vcombine.high %v3773, %v3787
    %v3797 = vcombine.low %v3780, %v3794
    %v3798 = vcombine.high %v3780, %v3794
    %v3799 = vcombine.low %v346, %v348
    %v3800 = vcombine.high %v346, %v348
    %v3801 = vcombine.low %v350, %v352
    %v3802 = vcombine.high %v350, %v352
    %v3804 = vunpack.c.l.s4 1983009808
    %v3805 = vunpack.c.0.s8 %v3804
    %v3806 = vlaneseq
    %v3807 = vshrl.u32 %v3806, 7
    %v3808 = vsub.s32 %v3805, %v3807
    %v3809 = vrot.slane %v3799, %v3808
    %v3811 = vunpack.c.l.s4 1983009808
    %v3812 = vunpack.c.0.s8 %v3811
    %v3813 = vlaneseq
    %v3814 = vshrl.u32 %v3813, 7
    %v3815 = vsub.s32 %v3812, %v3814
    %v3816 = vrot.slane %v3800, %v3815
    %v3818 = vunpack.c.l.s4 1983009808
    %v3819 = vunpack.c.0.s8 %v3818
    %v3820 = vlaneseq
    %v3821 = vshrl.u32 %v3820, 7
    %v3822 = vsub.s32 %v3819, %v3821
    %v3823 = vrot.slane %v3801, %v3822
    %v3825 = vunpack.c.l.s4 1983009808
    %v3826 = vunpack.c.0.s8 %v3825
    %v3827 = vlaneseq
    %v3828 = vshrl.u32 %v3827, 7
    %v3829 = vsub.s32 %v3826, %v3828
    %v3830 = vrot.slane %v3802, %v3829
    %v3831 = vcombine.low %v3809, %v3823
    %v3832 = vcombine.high %v3809, %v3823
    %v3833 = vcombine.low %v3816, %v3830
    %v3834 = vcombine.low %v353, %v355
    %v3835 = vcombine.high %v353, %v355
    %v3836 = vcombine.low %v357, %v359
    %v3837 = vcombine.high %v357, %v359
    %v3839 = vunpack.c.l.s4 1983009808
    %v3840 = vunpack.c.0.s8 %v3839
    %v3841 = vlaneseq
    %v3842 = vshrl.u32 %v3841, 7
    %v3843 = vsub.s32 %v3840, %v3842
    %v3844 = vrot.slane %v3834, %v3843
    %v3846 = vunpack.c.l.s4 1983009808
    %v3847 = vunpack.c.0.s8 %v3846
    %v3848 = vlaneseq
    %v3849 = vshrl.u32 %v3848, 7
    %v3850 = vsub.s32 %v3847, %v3849
    %v3851 = vrot.slane %v3835, %v3850
    %v3853 = vunpack.c.l.s4 1983009808
    %v3854 = vunpack.c.0.s8 %v3853
    %v3855 = vlaneseq
    %v3856 = vshrl.u32 %v3855, 7
    %v3857 = vsub.s32 %v3854, %v3856
    %v3858 = vrot.slane %v3836, %v3857
    %v3860 = vunpack.c.l.s4 1983009808
    %v3861 = vunpack.c.0.s8 %v3860
    %v3862 = vlaneseq
    %v3863 = vshrl.u32 %v3862, 7
    %v3864 = vsub.s32 %v3861, %v3863
    %v3865 = vrot.slane %v3837, %v3864
    %v3866 = vcombine.low %v3844, %v3858
    %v3867 = vcombine.high %v3844, %v3858
    %v3868 = vcombine.low %v3851, %v3865
    %v3869 = vcombine.high %v3851, %v3865
    %v3870 = vcombine.low %v354, %v356
    %v3871 = vcombine.high %v354, %v356
    %v3872 = vcombine.low %v358, %v360
    %v3873 = vcombine.high %v358, %v360
    %v3875 = vunpack.c.l.s4 1983009808
    %v3876 = vunpack.c.0.s8 %v3875
    %v3877 = vlaneseq
    %v3878 = vshrl.u32 %v3877, 7
    %v3879 = vsub.s32 %v3876, %v3878
    %v3880 = vrot.slane %v3870, %v3879
    %v3882 = vunpack.c.l.s4 1983009808
    %v3883 = vunpack.c.0.s8 %v3882
    %v3884 = vlaneseq
    %v3885 = vshrl.u32 %v3884, 7
    %v3886 = vsub.s32 %v3883, %v3885
    %v3887 = vrot.slane %v3871, %v3886
    %v3889 = vunpack.c.l.s4 1983009808
    %v3890 = vunpack.c.0.s8 %v3889
    %v3891 = vlaneseq
    %v3892 = vshrl.u32 %v3891, 7
    %v3893 = vsub.s32 %v3890, %v3892
    %v3894 = vrot.slane %v3872, %v3893
    %v3896 = vunpack.c.l.s4 1983009808
    %v3897 = vunpack.c.0.s8 %v3896
    %v3898 = vlaneseq
    %v3899 = vshrl.u32 %v3898, 7
    %v3900 = vsub.s32 %v3897, %v3899
    %v3901 = vrot.slane %v3873, %v3900
    %v3902 = vcombine.low %v3880, %v3894
    %v3903 = vcombine.high %v3880, %v3894
    %v3904 = vcombine.low %v3887, %v3901
    %v3905 = vcombine.low %v361, %v363
    %v3906 = vcombine.high %v361, %v363
    %v3907 = vcombine.low %v365, %v367
    %v3908 = vcombine.high %v365, %v367
    %v3910 = vunpack.c.l.s4 1983009808
    %v3911 = vunpack.c.0.s8 %v3910
    %v3912 = vlaneseq
    %v3913 = vshrl.u32 %v3912, 7
    %v3914 = vsub.s32 %v3911, %v3913
    %v3915 = vrot.slane %v3905, %v3914
    %v3917 = vunpack.c.l.s4 1983009808
    %v3918 = vunpack.c.0.s8 %v3917
    %v3919 = vlaneseq
    %v3920 = vshrl.u32 %v3919, 7
    %v3921 = vsub.s32 %v3918, %v3920
    %v3922 = vrot.slane %v3906, %v3921
    %v3924 = vunpack.c.l.s4 1983009808
    %v3925 = vunpack.c.0.s8 %v3924
    %v3926 = vlaneseq
    %v3927 = vshrl.u32 %v3926, 7
    %v3928 = vsub.s32 %v3925, %v3927
    %v3929 = vrot.slane %v3907, %v3928
    %v3931 = vunpack.c.l.s4 1983009808
    %v3932 = vunpack.c.0.s8 %v3931
    %v3933 = vlaneseq
    %v3934 = vshrl.u32 %v3933, 7
    %v3935 = vsub.s32 %v3932, %v3934
    %v3936 = vrot.slane %v3908, %v3935
    %v3937 = vcombine.low %v3915, %v3929
    %v3938 = vcombine.high %v3915, %v3929
    %v3939 = vcombine.low %v3922, %v3936
    %v3940 = vcombine.high %v3922, %v3936
    %v3941 = vcombine.low %v362, %v364
    %v3942 = vcombine.high %v362, %v364
    %v3943 = vcombine.low %v366, %v368
    %v3944 = vcombine.high %v366, %v368
    %v3946 = vunpack.c.l.s4 1983009808
    %v3947 = vunpack.c.0.s8 %v3946
    %v3948 = vlaneseq
    %v3949 = vshrl.u32 %v3948, 7
    %v3950 = vsub.s32 %v3947, %v3949
    %v3951 = vrot.slane %v3941, %v3950
    %v3953 = vunpack.c.l.s4 1983009808
    %v3954 = vunpack.c.0.s8 %v3953
    %v3955 = vlaneseq
    %v3956 = vshrl.u32 %v3955, 7
    %v3957 = vsub.s32 %v3954, %v3956
    %v3958 = vrot.slane %v3942, %v3957
    %v3960 = vunpack.c.l.s4 1983009808
    %v3961 = vunpack.c.0.s8 %v3960
    %v3962 = vlaneseq
    %v3963 = vshrl.u32 %v3962, 7
    %v3964 = vsub.s32 %v3961, %v3963
    %v3965 = vrot.slane %v3943, %v3964
    %v3967 = vunpack.c.l.s4 1983009808
    %v3968 = vunpack.c.0.s8 %v3967
    %v3969 = vlaneseq
    %v3970 = vshrl.u32 %v3969, 7
    %v3971 = vsub.s32 %v3968, %v3970
    %v3972 = vrot.slane %v3944, %v3971
    %v3973 = vcombine.low %v3951, %v3965
    %v3974 = vcombine.high %v3951, %v3965
    %v3975 = vcombine.low %v3958, %v3972
    %v3976 = vcombine.low %v369, %v371
    %v3977 = vcombine.high %v369, %v371
    %v3978 = vcombine.low %v373, %v375
    %v3979 = vcombine.high %v373, %v375
    %v3981 = vunpack.c.l.s4 1983009808
    %v3982 = vunpack.c.0.s8 %v3981
    %v3983 = vlaneseq
    %v3984 = vshrl.u32 %v3983, 7
    %v3985 = vsub.s32 %v3982, %v3984
    %v3986 = vrot.slane %v3976, %v3985
    %v3988 = vunpack.c.l.s4 1983009808
    %v3989 = vunpack.c.0.s8 %v3988
    %v3990 = vlaneseq
    %v3991 = vshrl.u32 %v3990, 7
    %v3992 = vsub.s32 %v3989, %v3991
    %v3993 = vrot.slane %v3977, %v3992
    %v3995 = vunpack.c.l.s4 1983009808
    %v3996 = vunpack.c.0.s8 %v3995
    %v3997 = vlaneseq
    %v3998 = vshrl.u32 %v3997, 7
    %v3999 = vsub.s32 %v3996, %v3998
    %v4000 = vrot.slane %v3978, %v3999
    %v4002 = vunpack.c.l.s4 1983009808
    %v4003 = vunpack.c.0.s8 %v4002
    %v4004 = vlaneseq
    %v4005 = vshrl.u32 %v4004, 7
    %v4006 = vsub.s32 %v4003, %v4005
    %v4007 = vrot.slane %v3979, %v4006
    %v4008 = vcombine.low %v3986, %v4000
    %v4009 = vcombine.high %v3986, %v4000
    %v4010 = vcombine.low %v3993, %v4007
    %v4011 = vcombine.high %v3993, %v4007
    %v4012 = vcombine.low %v370, %v372
    %v4013 = vcombine.high %v370, %v372
    %v4014 = vcombine.low %v374, %v376
    %v4015 = vcombine.high %v374, %v376
    %v4017 = vunpack.c.l.s4 1983009808
    %v4018 = vunpack.c.0.s8 %v4017
    %v4019 = vlaneseq
    %v4020 = vshrl.u32 %v4019, 7
    %v4021 = vsub.s32 %v4018, %v4020
    %v4022 = vrot.slane %v4012, %v4021
    %v4024 = vunpack.c.l.s4 1983009808
    %v4025 = vunpack.c.0.s8 %v4024
    %v4026 = vlaneseq
    %v4027 = vshrl.u32 %v4026, 7
    %v4028 = vsub.s32 %v4025, %v4027
    %v4029 = vrot.slane %v4013, %v4028
    %v4031 = vunpack.c.l.s4 1983009808
    %v4032 = vunpack.c.0.s8 %v4031
    %v4033 = vlaneseq
    %v4034 = vshrl.u32 %v4033, 7
    %v4035 = vsub.s32 %v4032, %v4034
    %v4036 = vrot.slane %v4014, %v4035
    %v4038 = vunpack.c.l.s4 1983009808
    %v4039 = vunpack.c.0.s8 %v4038
    %v4040 = vlaneseq
    %v4041 = vshrl.u32 %v4040, 7
    %v4042 = vsub.s32 %v4039, %v4041
    %v4043 = vrot.slane %v4015, %v4042
    %v4044 = vcombine.low %v4022, %v4036
    %v4045 = vcombine.high %v4022, %v4036
    %v4046 = vcombine.low %v4029, %v4043
    %v4047 = vcombine.low %v377, %v379
    %v4048 = vcombine.high %v377, %v379
    %v4049 = vcombine.low %v381, %v383
    %v4050 = vcombine.high %v381, %v383
    %v4052 = vunpack.c.l.s4 1983009808
    %v4053 = vunpack.c.0.s8 %v4052
    %v4054 = vlaneseq
    %v4055 = vshrl.u32 %v4054, 7
    %v4056 = vsub.s32 %v4053, %v4055
    %v4057 = vrot.slane %v4047, %v4056
    %v4059 = vunpack.c.l.s4 1983009808
    %v4060 = vunpack.c.0.s8 %v4059
    %v4061 = vlaneseq
    %v4062 = vshrl.u32 %v4061, 7
    %v4063 = vsub.s32 %v4060, %v4062
    %v4064 = vrot.slane %v4048, %v4063
    %v4066 = vunpack.c.l.s4 1983009808
    %v4067 = vunpack.c.0.s8 %v4066
    %v4068 = vlaneseq
    %v4069 = vshrl.u32 %v4068, 7
    %v4070 = vsub.s32 %v4067, %v4069
    %v4071 = vrot.slane %v4049, %v4070
    %v4073 = vunpack.c.l.s4 1983009808
    %v4074 = vunpack.c.0.s8 %v4073
    %v4075 = vlaneseq
    %v4076 = vshrl.u32 %v4075, 7
    %v4077 = vsub.s32 %v4074, %v4076
    %v4078 = vrot.slane %v4050, %v4077
    %v4079 = vcombine.low %v4057, %v4071
    %v4080 = vcombine.high %v4057, %v4071
    %v4081 = vcombine.low %v4064, %v4078
    %v4082 = vcombine.high %v4064, %v4078
    %v4083 = vcombine.low %v378, %v380
    %v4084 = vcombine.high %v378, %v380
    %v4085 = vcombine.low %v382, %v384
    %v4086 = vcombine.high %v382, %v384
    %v4088 = vunpack.c.l.s4 1983009808
    %v4089 = vunpack.c.0.s8 %v4088
    %v4090 = vlaneseq
    %v4091 = vshrl.u32 %v4090, 7
    %v4092 = vsub.s32 %v4089, %v4091
    %v4093 = vrot.slane %v4083, %v4092
    %v4095 = vunpack.c.l.s4 1983009808
    %v4096 = vunpack.c.0.s8 %v4095
    %v4097 = vlaneseq
    %v4098 = vshrl.u32 %v4097, 7
    %v4099 = vsub.s32 %v4096, %v4098
    %v4100 = vrot.slane %v4084, %v4099
    %v4102 = vunpack.c.l.s4 1983009808
    %v4103 = vunpack.c.0.s8 %v4102
    %v4104 = vlaneseq
    %v4105 = vshrl.u32 %v4104, 7
    %v4106 = vsub.s32 %v4103, %v4105
    %v4107 = vrot.slane %v4085, %v4106
    %v4109 = vunpack.c.l.s4 1983009808
    %v4110 = vunpack.c.0.s8 %v4109
    %v4111 = vlaneseq
    %v4112 = vshrl.u32 %v4111, 7
    %v4113 = vsub.s32 %v4110, %v4112
    %v4114 = vrot.slane %v4086, %v4113
    %v4115 = vcombine.low %v4093, %v4107
    %v4116 = vcombine.high %v4093, %v4107
    %v4117 = vcombine.low %v4100, %v4114
    %v4118 = vcombine.low %v385, %v387
    %v4119 = vcombine.high %v385, %v387
    %v4120 = vcombine.low %v389, %v391
    %v4121 = vcombine.high %v389, %v391
    %v4123 = vunpack.c.l.s4 1983009808
    %v4124 = vunpack.c.0.s8 %v4123
    %v4125 = vlaneseq
    %v4126 = vshrl.u32 %v4125, 7
    %v4127 = vsub.s32 %v4124, %v4126
    %v4128 = vrot.slane %v4118, %v4127
    %v4130 = vunpack.c.l.s4 1983009808
    %v4131 = vunpack.c.0.s8 %v4130
    %v4132 = vlaneseq
    %v4133 = vshrl.u32 %v4132, 7
    %v4134 = vsub.s32 %v4131, %v4133
    %v4135 = vrot.slane %v4119, %v4134
    %v4137 = vunpack.c.l.s4 1983009808
    %v4138 = vunpack.c.0.s8 %v4137
    %v4139 = vlaneseq
    %v4140 = vshrl.u32 %v4139, 7
    %v4141 = vsub.s32 %v4138, %v4140
    %v4142 = vrot.slane %v4120, %v4141
    %v4144 = vunpack.c.l.s4 1983009808
    %v4145 = vunpack.c.0.s8 %v4144
    %v4146 = vlaneseq
    %v4147 = vshrl.u32 %v4146, 7
    %v4148 = vsub.s32 %v4145, %v4147
    %v4149 = vrot.slane %v4121, %v4148
    %v4150 = vcombine.low %v4128, %v4142
    %v4151 = vcombine.high %v4128, %v4142
    %v4152 = vcombine.low %v4135, %v4149
    %v4153 = vcombine.high %v4135, %v4149
    %v4154 = vcombine.low %v386, %v388
    %v4155 = vcombine.high %v386, %v388
    %v4156 = vcombine.low %v390, %v392
    %v4157 = vcombine.high %v390, %v392
    %v4159 = vunpack.c.l.s4 1983009808
    %v4160 = vunpack.c.0.s8 %v4159
    %v4161 = vlaneseq
    %v4162 = vshrl.u32 %v4161, 7
    %v4163 = vsub.s32 %v4160, %v4162
    %v4164 = vrot.slane %v4154, %v4163
    %v4166 = vunpack.c.l.s4 1983009808
    %v4167 = vunpack.c.0.s8 %v4166
    %v4168 = vlaneseq
    %v4169 = vshrl.u32 %v4168, 7
    %v4170 = vsub.s32 %v4167, %v4169
    %v4171 = vrot.slane %v4155, %v4170
    %v4173 = vunpack.c.l.s4 1983009808
    %v4174 = vunpack.c.0.s8 %v4173
    %v4175 = vlaneseq
    %v4176 = vshrl.u32 %v4175, 7
    %v4177 = vsub.s32 %v4174, %v4176
    %v4178 = vrot.slane %v4156, %v4177
    %v4180 = vunpack.c.l.s4 1983009808
    %v4181 = vunpack.c.0.s8 %v4180
    %v4182 = vlaneseq
    %v4183 = vshrl.u32 %v4182, 7
    %v4184 = vsub.s32 %v4181, %v4183
    %v4185 = vrot.slane %v4157, %v4184
    %v4186 = vcombine.low %v4164, %v4178
    %v4187 = vcombine.high %v4164, %v4178
    %v4188 = vcombine.low %v4171, %v4185
    %v4189 = vcombine.low %v393, %v395
    %v4190 = vcombine.high %v393, %v395
    %v4191 = vcombine.low %v397, %v399
    %v4192 = vcombine.high %v397, %v399
    %v4194 = vunpack.c.l.s4 1983009808
    %v4195 = vunpack.c.0.s8 %v4194
    %v4196 = vlaneseq
    %v4197 = vshrl.u32 %v4196, 7
    %v4198 = vsub.s32 %v4195, %v4197
    %v4199 = vrot.slane %v4189, %v4198
    %v4201 = vunpack.c.l.s4 1983009808
    %v4202 = vunpack.c.0.s8 %v4201
    %v4203 = vlaneseq
    %v4204 = vshrl.u32 %v4203, 7
    %v4205 = vsub.s32 %v4202, %v4204
    %v4206 = vrot.slane %v4190, %v4205
    %v4208 = vunpack.c.l.s4 1983009808
    %v4209 = vunpack.c.0.s8 %v4208
    %v4210 = vlaneseq
    %v4211 = vshrl.u32 %v4210, 7
    %v4212 = vsub.s32 %v4209, %v4211
    %v4213 = vrot.slane %v4191, %v4212
    %v4215 = vunpack.c.l.s4 1983009808
    %v4216 = vunpack.c.0.s8 %v4215
    %v4217 = vlaneseq
    %v4218 = vshrl.u32 %v4217, 7
    %v4219 = vsub.s32 %v4216, %v4218
    %v4220 = vrot.slane %v4192, %v4219
    %v4221 = vcombine.low %v4199, %v4213
    %v4222 = vcombine.high %v4199, %v4213
    %v4223 = vcombine.low %v4206, %v4220
    %v4224 = vcombine.high %v4206, %v4220
    %v4225 = vcombine.low %v394, %v396
    %v4226 = vcombine.high %v394, %v396
    %v4227 = vcombine.low %v398, %v400
    %v4228 = vcombine.high %v398, %v400
    %v4230 = vunpack.c.l.s4 1983009808
    %v4231 = vunpack.c.0.s8 %v4230
    %v4232 = vlaneseq
    %v4233 = vshrl.u32 %v4232, 7
    %v4234 = vsub.s32 %v4231, %v4233
    %v4235 = vrot.slane %v4225, %v4234
    %v4237 = vunpack.c.l.s4 1983009808
    %v4238 = vunpack.c.0.s8 %v4237
    %v4239 = vlaneseq
    %v4240 = vshrl.u32 %v4239, 7
    %v4241 = vsub.s32 %v4238, %v4240
    %v4242 = vrot.slane %v4226, %v4241
    %v4244 = vunpack.c.l.s4 1983009808
    %v4245 = vunpack.c.0.s8 %v4244
    %v4246 = vlaneseq
    %v4247 = vshrl.u32 %v4246, 7
    %v4248 = vsub.s32 %v4245, %v4247
    %v4249 = vrot.slane %v4227, %v4248
    %v4251 = vunpack.c.l.s4 1983009808
    %v4252 = vunpack.c.0.s8 %v4251
    %v4253 = vlaneseq
    %v4254 = vshrl.u32 %v4253, 7
    %v4255 = vsub.s32 %v4252, %v4254
    %v4256 = vrot.slane %v4228, %v4255
    %v4257 = vcombine.low %v4235, %v4249
    %v4258 = vcombine.high %v4235, %v4249
    %v4259 = vcombine.low %v4242, %v4256
    %v4260 = vcombine.low %v401, %v403
    %v4261 = vcombine.high %v401, %v403
    %v4262 = vcombine.low %v405, %v407
    %v4263 = vcombine.high %v405, %v407
    %v4265 = vunpack.c.l.s4 1983009808
    %v4266 = vunpack.c.0.s8 %v4265
    %v4267 = vlaneseq
    %v4268 = vshrl.u32 %v4267, 7
    %v4269 = vsub.s32 %v4266, %v4268
    %v4270 = vrot.slane %v4260, %v4269
    %v4272 = vunpack.c.l.s4 1983009808
    %v4273 = vunpack.c.0.s8 %v4272
    %v4274 = vlaneseq
    %v4275 = vshrl.u32 %v4274, 7
    %v4276 = vsub.s32 %v4273, %v4275
    %v4277 = vrot.slane %v4261, %v4276
    %v4279 = vunpack.c.l.s4 1983009808
    %v4280 = vunpack.c.0.s8 %v4279
    %v4281 = vlaneseq
    %v4282 = vshrl.u32 %v4281, 7
    %v4283 = vsub.s32 %v4280, %v4282
    %v4284 = vrot.slane %v4262, %v4283
    %v4286 = vunpack.c.l.s4 1983009808
    %v4287 = vunpack.c.0.s8 %v4286
    %v4288 = vlaneseq
    %v4289 = vshrl.u32 %v4288, 7
    %v4290 = vsub.s32 %v4287, %v4289
    %v4291 = vrot.slane %v4263, %v4290
    %v4292 = vcombine.low %v4270, %v4284
    %v4293 = vcombine.high %v4270, %v4284
    %v4294 = vcombine.low %v4277, %v4291
    %v4295 = vcombine.high %v4277, %v4291
    %v4296 = vcombine.low %v402, %v404
    %v4297 = vcombine.high %v402, %v404
    %v4298 = vcombine.low %v406, %v408
    %v4299 = vcombine.high %v406, %v408
    %v4301 = vunpack.c.l.s4 1983009808
    %v4302 = vunpack.c.0.s8 %v4301
    %v4303 = vlaneseq
    %v4304 = vshrl.u32 %v4303, 7
    %v4305 = vsub.s32 %v4302, %v4304
    %v4306 = vrot.slane %v4296, %v4305
    %v4308 = vunpack.c.l.s4 1983009808
    %v4309 = vunpack.c.0.s8 %v4308
    %v4310 = vlaneseq
    %v4311 = vshrl.u32 %v4310, 7
    %v4312 = vsub.s32 %v4309, %v4311
    %v4313 = vrot.slane %v4297, %v4312
    %v4315 = vunpack.c.l.s4 1983009808
    %v4316 = vunpack.c.0.s8 %v4315
    %v4317 = vlaneseq
    %v4318 = vshrl.u32 %v4317, 7
    %v4319 = vsub.s32 %v4316, %v4318
    %v4320 = vrot.slane %v4298, %v4319
    %v4322 = vunpack.c.l.s4 1983009808
    %v4323 = vunpack.c.0.s8 %v4322
    %v4324 = vlaneseq
    %v4325 = vshrl.u32 %v4324, 7
    %v4326 = vsub.s32 %v4323, %v4325
    %v4327 = vrot.slane %v4299, %v4326
    %v4328 = vcombine.low %v4306, %v4320
    %v4329 = vcombine.high %v4306, %v4320
    %v4330 = vcombine.low %v4313, %v4327
    %v4331 = vcombine.low %v409, %v411
    %v4332 = vcombine.high %v409, %v411
    %v4333 = vcombine.low %v413, %v415
    %v4334 = vcombine.high %v413, %v415
    %v4336 = vunpack.c.l.s4 1983009808
    %v4337 = vunpack.c.0.s8 %v4336
    %v4338 = vlaneseq
    %v4339 = vshrl.u32 %v4338, 7
    %v4340 = vsub.s32 %v4337, %v4339
    %v4341 = vrot.slane %v4331, %v4340
    %v4343 = vunpack.c.l.s4 1983009808
    %v4344 = vunpack.c.0.s8 %v4343
    %v4345 = vlaneseq
    %v4346 = vshrl.u32 %v4345, 7
    %v4347 = vsub.s32 %v4344, %v4346
    %v4348 = vrot.slane %v4332, %v4347
    %v4350 = vunpack.c.l.s4 1983009808
    %v4351 = vunpack.c.0.s8 %v4350
    %v4352 = vlaneseq
    %v4353 = vshrl.u32 %v4352, 7
    %v4354 = vsub.s32 %v4351, %v4353
    %v4355 = vrot.slane %v4333, %v4354
    %v4357 = vunpack.c.l.s4 1983009808
    %v4358 = vunpack.c.0.s8 %v4357
    %v4359 = vlaneseq
    %v4360 = vshrl.u32 %v4359, 7
    %v4361 = vsub.s32 %v4358, %v4360
    %v4362 = vrot.slane %v4334, %v4361
    %v4363 = vcombine.low %v4341, %v4355
    %v4364 = vcombine.high %v4341, %v4355
    %v4365 = vcombine.low %v4348, %v4362
    %v4366 = vcombine.high %v4348, %v4362
    %v4367 = vcombine.low %v410, %v412
    %v4368 = vcombine.high %v410, %v412
    %v4369 = vcombine.low %v414, %v416
    %v4370 = vcombine.high %v414, %v416
    %v4372 = vunpack.c.l.s4 1983009808
    %v4373 = vunpack.c.0.s8 %v4372
    %v4374 = vlaneseq
    %v4375 = vshrl.u32 %v4374, 7
    %v4376 = vsub.s32 %v4373, %v4375
    %v4377 = vrot.slane %v4367, %v4376
    %v4379 = vunpack.c.l.s4 1983009808
    %v4380 = vunpack.c.0.s8 %v4379
    %v4381 = vlaneseq
    %v4382 = vshrl.u32 %v4381, 7
    %v4383 = vsub.s32 %v4380, %v4382
    %v4384 = vrot.slane %v4368, %v4383
    %v4386 = vunpack.c.l.s4 1983009808
    %v4387 = vunpack.c.0.s8 %v4386
    %v4388 = vlaneseq
    %v4389 = vshrl.u32 %v4388, 7
    %v4390 = vsub.s32 %v4387, %v4389
    %v4391 = vrot.slane %v4369, %v4390
    %v4393 = vunpack.c.l.s4 1983009808
    %v4394 = vunpack.c.0.s8 %v4393
    %v4395 = vlaneseq
    %v4396 = vshrl.u32 %v4395, 7
    %v4397 = vsub.s32 %v4394, %v4396
    %v4398 = vrot.slane %v4370, %v4397
    %v4399 = vcombine.low %v4377, %v4391
    %v4400 = vcombine.high %v4377, %v4391
    %v4401 = vcombine.low %v4384, %v4398
    %v4402 = vcombine.low %v417, %v419
    %v4403 = vcombine.high %v417, %v419
    %v4404 = vcombine.low %v421, %v423
    %v4405 = vcombine.high %v421, %v423
    %v4407 = vunpack.c.l.s4 1983009808
    %v4408 = vunpack.c.0.s8 %v4407
    %v4409 = vlaneseq
    %v4410 = vshrl.u32 %v4409, 7
    %v4411 = vsub.s32 %v4408, %v4410
    %v4412 = vrot.slane %v4402, %v4411
    %v4414 = vunpack.c.l.s4 1983009808
    %v4415 = vunpack.c.0.s8 %v4414
    %v4416 = vlaneseq
    %v4417 = vshrl.u32 %v4416, 7
    %v4418 = vsub.s32 %v4415, %v4417
    %v4419 = vrot.slane %v4403, %v4418
    %v4421 = vunpack.c.l.s4 1983009808
    %v4422 = vunpack.c.0.s8 %v4421
    %v4423 = vlaneseq
    %v4424 = vshrl.u32 %v4423, 7
    %v4425 = vsub.s32 %v4422, %v4424
    %v4426 = vrot.slane %v4404, %v4425
    %v4428 = vunpack.c.l.s4 1983009808
    %v4429 = vunpack.c.0.s8 %v4428
    %v4430 = vlaneseq
    %v4431 = vshrl.u32 %v4430, 7
    %v4432 = vsub.s32 %v4429, %v4431
    %v4433 = vrot.slane %v4405, %v4432
    %v4434 = vcombine.low %v4412, %v4426
    %v4435 = vcombine.high %v4412, %v4426
    %v4436 = vcombine.low %v4419, %v4433
    %v4437 = vcombine.high %v4419, %v4433
    %v4438 = vcombine.low %v418, %v420
    %v4439 = vcombine.high %v418, %v420
    %v4440 = vcombine.low %v422, %v424
    %v4441 = vcombine.high %v422, %v424
    %v4443 = vunpack.c.l.s4 1983009808
    %v4444 = vunpack.c.0.s8 %v4443
    %v4445 = vlaneseq
    %v4446 = vshrl.u32 %v4445, 7
    %v4447 = vsub.s32 %v4444, %v4446
    %v4448 = vrot.slane %v4438, %v4447
    %v4450 = vunpack.c.l.s4 1983009808
    %v4451 = vunpack.c.0.s8 %v4450
    %v4452 = vlaneseq
    %v4453 = vshrl.u32 %v4452, 7
    %v4454 = vsub.s32 %v4451, %v4453
    %v4455 = vrot.slane %v4439, %v4454
    %v4457 = vunpack.c.l.s4 1983009808
    %v4458 = vunpack.c.0.s8 %v4457
    %v4459 = vlaneseq
    %v4460 = vshrl.u32 %v4459, 7
    %v4461 = vsub.s32 %v4458, %v4460
    %v4462 = vrot.slane %v4440, %v4461
    %v4464 = vunpack.c.l.s4 1983009808
    %v4465 = vunpack.c.0.s8 %v4464
    %v4466 = vlaneseq
    %v4467 = vshrl.u32 %v4466, 7
    %v4468 = vsub.s32 %v4465, %v4467
    %v4469 = vrot.slane %v4441, %v4468
    %v4470 = vcombine.low %v4448, %v4462
    %v4471 = vcombine.high %v4448, %v4462
    %v4472 = vcombine.low %v4455, %v4469
    %v4473 = vcombine.low %v425, %v427
    %v4474 = vcombine.high %v425, %v427
    %v4475 = vcombine.low %v429, %v431
    %v4476 = vcombine.high %v429, %v431
    %v4478 = vunpack.c.l.s4 1983009808
    %v4479 = vunpack.c.0.s8 %v4478
    %v4480 = vlaneseq
    %v4481 = vshrl.u32 %v4480, 7
    %v4482 = vsub.s32 %v4479, %v4481
    %v4483 = vrot.slane %v4473, %v4482
    %v4485 = vunpack.c.l.s4 1983009808
    %v4486 = vunpack.c.0.s8 %v4485
    %v4487 = vlaneseq
    %v4488 = vshrl.u32 %v4487, 7
    %v4489 = vsub.s32 %v4486, %v4488
    %v4490 = vrot.slane %v4474, %v4489
    %v4492 = vunpack.c.l.s4 1983009808
    %v4493 = vunpack.c.0.s8 %v4492
    %v4494 = vlaneseq
    %v4495 = vshrl.u32 %v4494, 7
    %v4496 = vsub.s32 %v4493, %v4495
    %v4497 = vrot.slane %v4475, %v4496
    %v4499 = vunpack.c.l.s4 1983009808
    %v4500 = vunpack.c.0.s8 %v4499
    %v4501 = vlaneseq
    %v4502 = vshrl.u32 %v4501, 7
    %v4503 = vsub.s32 %v4500, %v4502
    %v4504 = vrot.slane %v4476, %v4503
    %v4505 = vcombine.low %v4483, %v4497
    %v4506 = vcombine.high %v4483, %v4497
    %v4507 = vcombine.low %v4490, %v4504
    %v4508 = vcombine.high %v4490, %v4504
    %v4509 = vcombine.low %v426, %v428
    %v4510 = vcombine.high %v426, %v428
    %v4511 = vcombine.low %v430, %v432
    %v4512 = vcombine.high %v430, %v432
    %v4514 = vunpack.c.l.s4 1983009808
    %v4515 = vunpack.c.0.s8 %v4514
    %v4516 = vlaneseq
    %v4517 = vshrl.u32 %v4516, 7
    %v4518 = vsub.s32 %v4515, %v4517
    %v4519 = vrot.slane %v4509, %v4518
    %v4521 = vunpack.c.l.s4 1983009808
    %v4522 = vunpack.c.0.s8 %v4521
    %v4523 = vlaneseq
    %v4524 = vshrl.u32 %v4523, 7
    %v4525 = vsub.s32 %v4522, %v4524
    %v4526 = vrot.slane %v4510, %v4525
    %v4528 = vunpack.c.l.s4 1983009808
    %v4529 = vunpack.c.0.s8 %v4528
    %v4530 = vlaneseq
    %v4531 = vshrl.u32 %v4530, 7
    %v4532 = vsub.s32 %v4529, %v4531
    %v4533 = vrot.slane %v4511, %v4532
    %v4535 = vunpack.c.l.s4 1983009808
    %v4536 = vunpack.c.0.s8 %v4535
    %v4537 = vlaneseq
    %v4538 = vshrl.u32 %v4537, 7
    %v4539 = vsub.s32 %v4536, %v4538
    %v4540 = vrot.slane %v4512, %v4539
    %v4541 = vcombine.low %v4519, %v4533
    %v4542 = vcombine.high %v4519, %v4533
    %v4543 = vcombine.low %v4526, %v4540
    %v4544 = vcombine.low %v433, %v435
    %v4545 = vcombine.high %v433, %v435
    %v4546 = vcombine.low %v437, %v439
    %v4547 = vcombine.high %v437, %v439
    %v4549 = vunpack.c.l.s4 1983009808
    %v4550 = vunpack.c.0.s8 %v4549
    %v4551 = vlaneseq
    %v4552 = vshrl.u32 %v4551, 7
    %v4553 = vsub.s32 %v4550, %v4552
    %v4554 = vrot.slane %v4544, %v4553
    %v4556 = vunpack.c.l.s4 1983009808
    %v4557 = vunpack.c.0.s8 %v4556
    %v4558 = vlaneseq
    %v4559 = vshrl.u32 %v4558, 7
    %v4560 = vsub.s32 %v4557, %v4559
    %v4561 = vrot.slane %v4545, %v4560
    %v4563 = vunpack.c.l.s4 1983009808
    %v4564 = vunpack.c.0.s8 %v4563
    %v4565 = vlaneseq
    %v4566 = vshrl.u32 %v4565, 7
    %v4567 = vsub.s32 %v4564, %v4566
    %v4568 = vrot.slane %v4546, %v4567
    %v4570 = vunpack.c.l.s4 1983009808
    %v4571 = vunpack.c.0.s8 %v4570
    %v4572 = vlaneseq
    %v4573 = vshrl.u32 %v4572, 7
    %v4574 = vsub.s32 %v4571, %v4573
    %v4575 = vrot.slane %v4547, %v4574
    %v4576 = vcombine.low %v4554, %v4568
    %v4577 = vcombine.high %v4554, %v4568
    %v4578 = vcombine.low %v4561, %v4575
    %v4579 = vcombine.high %v4561, %v4575
    %v4580 = vcombine.low %v434, %v436
    %v4581 = vcombine.high %v434, %v436
    %v4582 = vcombine.low %v438, %v440
    %v4583 = vcombine.high %v438, %v440
    %v4585 = vunpack.c.l.s4 1983009808
    %v4586 = vunpack.c.0.s8 %v4585
    %v4587 = vlaneseq
    %v4588 = vshrl.u32 %v4587, 7
    %v4589 = vsub.s32 %v4586, %v4588
    %v4590 = vrot.slane %v4580, %v4589
    %v4592 = vunpack.c.l.s4 1983009808
    %v4593 = vunpack.c.0.s8 %v4592
    %v4594 = vlaneseq
    %v4595 = vshrl.u32 %v4594, 7
    %v4596 = vsub.s32 %v4593, %v4595
    %v4597 = vrot.slane %v4581, %v4596
    %v4599 = vunpack.c.l.s4 1983009808
    %v4600 = vunpack.c.0.s8 %v4599
    %v4601 = vlaneseq
    %v4602 = vshrl.u32 %v4601, 7
    %v4603 = vsub.s32 %v4600, %v4602
    %v4604 = vrot.slane %v4582, %v4603
    %v4606 = vunpack.c.l.s4 1983009808
    %v4607 = vunpack.c.0.s8 %v4606
    %v4608 = vlaneseq
    %v4609 = vshrl.u32 %v4608, 7
    %v4610 = vsub.s32 %v4607, %v4609
    %v4611 = vrot.slane %v4583, %v4610
    %v4612 = vcombine.low %v4590, %v4604
    %v4613 = vcombine.high %v4590, %v4604
    %v4614 = vcombine.low %v4597, %v4611
    %v4615 = vcombine.low %v441, %v443
    %v4616 = vcombine.high %v441, %v443
    %v4617 = vcombine.low %v445, %v447
    %v4618 = vcombine.high %v445, %v447
    %v4620 = vunpack.c.l.s4 1983009808
    %v4621 = vunpack.c.0.s8 %v4620
    %v4622 = vlaneseq
    %v4623 = vshrl.u32 %v4622, 7
    %v4624 = vsub.s32 %v4621, %v4623
    %v4625 = vrot.slane %v4615, %v4624
    %v4627 = vunpack.c.l.s4 1983009808
    %v4628 = vunpack.c.0.s8 %v4627
    %v4629 = vlaneseq
    %v4630 = vshrl.u32 %v4629, 7
    %v4631 = vsub.s32 %v4628, %v4630
    %v4632 = vrot.slane %v4616, %v4631
    %v4634 = vunpack.c.l.s4 1983009808
    %v4635 = vunpack.c.0.s8 %v4634
    %v4636 = vlaneseq
    %v4637 = vshrl.u32 %v4636, 7
    %v4638 = vsub.s32 %v4635, %v4637
    %v4639 = vrot.slane %v4617, %v4638
    %v4641 = vunpack.c.l.s4 1983009808
    %v4642 = vunpack.c.0.s8 %v4641
    %v4643 = vlaneseq
    %v4644 = vshrl.u32 %v4643, 7
    %v4645 = vsub.s32 %v4642, %v4644
    %v4646 = vrot.slane %v4618, %v4645
    %v4647 = vcombine.low %v4625, %v4639
    %v4648 = vcombine.high %v4625, %v4639
    %v4649 = vcombine.low %v4632, %v4646
    %v4650 = vcombine.high %v4632, %v4646
    %v4651 = vcombine.low %v442, %v444
    %v4652 = vcombine.high %v442, %v444
    %v4653 = vcombine.low %v446, %v448
    %v4654 = vcombine.high %v446, %v448
    %v4656 = vunpack.c.l.s4 1983009808
    %v4657 = vunpack.c.0.s8 %v4656
    %v4658 = vlaneseq
    %v4659 = vshrl.u32 %v4658, 7
    %v4660 = vsub.s32 %v4657, %v4659
    %v4661 = vrot.slane %v4651, %v4660
    %v4663 = vunpack.c.l.s4 1983009808
    %v4664 = vunpack.c.0.s8 %v4663
    %v4665 = vlaneseq
    %v4666 = vshrl.u32 %v4665, 7
    %v4667 = vsub.s32 %v4664, %v4666
    %v4668 = vrot.slane %v4652, %v4667
    %v4670 = vunpack.c.l.s4 1983009808
    %v4671 = vunpack.c.0.s8 %v4670
    %v4672 = vlaneseq
    %v4673 = vshrl.u32 %v4672, 7
    %v4674 = vsub.s32 %v4671, %v4673
    %v4675 = vrot.slane %v4653, %v4674
    %v4677 = vunpack.c.l.s4 1983009808
    %v4678 = vunpack.c.0.s8 %v4677
    %v4679 = vlaneseq
    %v4680 = vshrl.u32 %v4679, 7
    %v4681 = vsub.s32 %v4678, %v4680
    %v4682 = vrot.slane %v4654, %v4681
    %v4683 = vcombine.low %v4661, %v4675
    %v4684 = vcombine.high %v4661, %v4675
    %v4685 = vcombine.low %v4668, %v4682
    %v4686 = vcombine.low %v449, %v451
    %v4687 = vcombine.high %v449, %v451
    %v4688 = vcombine.low %v453, %v455
    %v4689 = vcombine.high %v453, %v455
    %v4691 = vunpack.c.l.s4 1983009808
    %v4692 = vunpack.c.0.s8 %v4691
    %v4693 = vlaneseq
    %v4694 = vshrl.u32 %v4693, 7
    %v4695 = vsub.s32 %v4692, %v4694
    %v4696 = vrot.slane %v4686, %v4695
    %v4698 = vunpack.c.l.s4 1983009808
    %v4699 = vunpack.c.0.s8 %v4698
    %v4700 = vlaneseq
    %v4701 = vshrl.u32 %v4700, 7
    %v4702 = vsub.s32 %v4699, %v4701
    %v4703 = vrot.slane %v4687, %v4702
    %v4705 = vunpack.c.l.s4 1983009808
    %v4706 = vunpack.c.0.s8 %v4705
    %v4707 = vlaneseq
    %v4708 = vshrl.u32 %v4707, 7
    %v4709 = vsub.s32 %v4706, %v4708
    %v4710 = vrot.slane %v4688, %v4709
    %v4712 = vunpack.c.l.s4 1983009808
    %v4713 = vunpack.c.0.s8 %v4712
    %v4714 = vlaneseq
    %v4715 = vshrl.u32 %v4714, 7
    %v4716 = vsub.s32 %v4713, %v4715
    %v4717 = vrot.slane %v4689, %v4716
    %v4718 = vcombine.low %v4696, %v4710
    %v4719 = vcombine.high %v4696, %v4710
    %v4720 = vcombine.low %v4703, %v4717
    %v4721 = vcombine.high %v4703, %v4717
    %v4722 = vcombine.low %v450, %v452
    %v4723 = vcombine.high %v450, %v452
    %v4724 = vcombine.low %v454, %v456
    %v4725 = vcombine.high %v454, %v456
    %v4727 = vunpack.c.l.s4 1983009808
    %v4728 = vunpack.c.0.s8 %v4727
    %v4729 = vlaneseq
    %v4730 = vshrl.u32 %v4729, 7
    %v4731 = vsub.s32 %v4728, %v4730
    %v4732 = vrot.slane %v4722, %v4731
    %v4734 = vunpack.c.l.s4 1983009808
    %v4735 = vunpack.c.0.s8 %v4734
    %v4736 = vlaneseq
    %v4737 = vshrl.u32 %v4736, 7
    %v4738 = vsub.s32 %v4735, %v4737
    %v4739 = vrot.slane %v4723, %v4738
    %v4741 = vunpack.c.l.s4 1983009808
    %v4742 = vunpack.c.0.s8 %v4741
    %v4743 = vlaneseq
    %v4744 = vshrl.u32 %v4743, 7
    %v4745 = vsub.s32 %v4742, %v4744
    %v4746 = vrot.slane %v4724, %v4745
    %v4748 = vunpack.c.l.s4 1983009808
    %v4749 = vunpack.c.0.s8 %v4748
    %v4750 = vlaneseq
    %v4751 = vshrl.u32 %v4750, 7
    %v4752 = vsub.s32 %v4749, %v4751
    %v4753 = vrot.slane %v4725, %v4752
    %v4754 = vcombine.low %v4732, %v4746
    %v4755 = vcombine.high %v4732, %v4746
    %v4756 = vcombine.low %v4739, %v4753
    %v4757 = vcombine.low %v457, %v459
    %v4758 = vcombine.high %v457, %v459
    %v4759 = vcombine.low %v461, %v463
    %v4760 = vcombine.high %v461, %v463
    %v4762 = vunpack.c.l.s4 1983009808
    %v4763 = vunpack.c.0.s8 %v4762
    %v4764 = vlaneseq
    %v4765 = vshrl.u32 %v4764, 7
    %v4766 = vsub.s32 %v4763, %v4765
    %v4767 = vrot.slane %v4757, %v4766
    %v4769 = vunpack.c.l.s4 1983009808
    %v4770 = vunpack.c.0.s8 %v4769
    %v4771 = vlaneseq
    %v4772 = vshrl.u32 %v4771, 7
    %v4773 = vsub.s32 %v4770, %v4772
    %v4774 = vrot.slane %v4758, %v4773
    %v4776 = vunpack.c.l.s4 1983009808
    %v4777 = vunpack.c.0.s8 %v4776
    %v4778 = vlaneseq
    %v4779 = vshrl.u32 %v4778, 7
    %v4780 = vsub.s32 %v4777, %v4779
    %v4781 = vrot.slane %v4759, %v4780
    %v4783 = vunpack.c.l.s4 1983009808
    %v4784 = vunpack.c.0.s8 %v4783
    %v4785 = vlaneseq
    %v4786 = vshrl.u32 %v4785, 7
    %v4787 = vsub.s32 %v4784, %v4786
    %v4788 = vrot.slane %v4760, %v4787
    %v4789 = vcombine.low %v4767, %v4781
    %v4790 = vcombine.high %v4767, %v4781
    %v4791 = vcombine.low %v4774, %v4788
    %v4792 = vcombine.high %v4774, %v4788
    %v4793 = vcombine.low %v458, %v460
    %v4794 = vcombine.high %v458, %v460
    %v4795 = vcombine.low %v462, %v464
    %v4796 = vcombine.high %v462, %v464
    %v4798 = vunpack.c.l.s4 1983009808
    %v4799 = vunpack.c.0.s8 %v4798
    %v4800 = vlaneseq
    %v4801 = vshrl.u32 %v4800, 7
    %v4802 = vsub.s32 %v4799, %v4801
    %v4803 = vrot.slane %v4793, %v4802
    %v4805 = vunpack.c.l.s4 1983009808
    %v4806 = vunpack.c.0.s8 %v4805
    %v4807 = vlaneseq
    %v4808 = vshrl.u32 %v4807, 7
    %v4809 = vsub.s32 %v4806, %v4808
    %v4810 = vrot.slane %v4794, %v4809
    %v4812 = vunpack.c.l.s4 1983009808
    %v4813 = vunpack.c.0.s8 %v4812
    %v4814 = vlaneseq
    %v4815 = vshrl.u32 %v4814, 7
    %v4816 = vsub.s32 %v4813, %v4815
    %v4817 = vrot.slane %v4795, %v4816
    %v4819 = vunpack.c.l.s4 1983009808
    %v4820 = vunpack.c.0.s8 %v4819
    %v4821 = vlaneseq
    %v4822 = vshrl.u32 %v4821, 7
    %v4823 = vsub.s32 %v4820, %v4822
    %v4824 = vrot.slane %v4796, %v4823
    %v4825 = vcombine.low %v4803, %v4817
    %v4826 = vcombine.high %v4803, %v4817
    %v4827 = vcombine.low %v4810, %v4824
    %v4828 = vcombine.low %v465, %v467
    %v4829 = vcombine.high %v465, %v467
    %v4830 = vcombine.low %v469, %v471
    %v4831 = vcombine.high %v469, %v471
    %v4833 = vunpack.c.l.s4 1983009808
    %v4834 = vunpack.c.0.s8 %v4833
    %v4835 = vlaneseq
    %v4836 = vshrl.u32 %v4835, 7
    %v4837 = vsub.s32 %v4834, %v4836
    %v4838 = vrot.slane %v4828, %v4837
    %v4840 = vunpack.c.l.s4 1983009808
    %v4841 = vunpack.c.0.s8 %v4840
    %v4842 = vlaneseq
    %v4843 = vshrl.u32 %v4842, 7
    %v4844 = vsub.s32 %v4841, %v4843
    %v4845 = vrot.slane %v4829, %v4844
    %v4847 = vunpack.c.l.s4 1983009808
    %v4848 = vunpack.c.0.s8 %v4847
    %v4849 = vlaneseq
    %v4850 = vshrl.u32 %v4849, 7
    %v4851 = vsub.s32 %v4848, %v4850
    %v4852 = vrot.slane %v4830, %v4851
    %v4854 = vunpack.c.l.s4 1983009808
    %v4855 = vunpack.c.0.s8 %v4854
    %v4856 = vlaneseq
    %v4857 = vshrl.u32 %v4856, 7
    %v4858 = vsub.s32 %v4855, %v4857
    %v4859 = vrot.slane %v4831, %v4858
    %v4860 = vcombine.low %v4838, %v4852
    %v4861 = vcombine.high %v4838, %v4852
    %v4862 = vcombine.low %v4845, %v4859
    %v4863 = vcombine.high %v4845, %v4859
    %v4864 = vcombine.low %v466, %v468
    %v4865 = vcombine.high %v466, %v468
    %v4866 = vcombine.low %v470, %v472
    %v4867 = vcombine.high %v470, %v472
    %v4869 = vunpack.c.l.s4 1983009808
    %v4870 = vunpack.c.0.s8 %v4869
    %v4871 = vlaneseq
    %v4872 = vshrl.u32 %v4871, 7
    %v4873 = vsub.s32 %v4870, %v4872
    %v4874 = vrot.slane %v4864, %v4873
    %v4876 = vunpack.c.l.s4 1983009808
    %v4877 = vunpack.c.0.s8 %v4876
    %v4878 = vlaneseq
    %v4879 = vshrl.u32 %v4878, 7
    %v4880 = vsub.s32 %v4877, %v4879
    %v4881 = vrot.slane %v4865, %v4880
    %v4883 = vunpack.c.l.s4 1983009808
    %v4884 = vunpack.c.0.s8 %v4883
    %v4885 = vlaneseq
    %v4886 = vshrl.u32 %v4885, 7
    %v4887 = vsub.s32 %v4884, %v4886
    %v4888 = vrot.slane %v4866, %v4887
    %v4890 = vunpack.c.l.s4 1983009808
    %v4891 = vunpack.c.0.s8 %v4890
    %v4892 = vlaneseq
    %v4893 = vshrl.u32 %v4892, 7
    %v4894 = vsub.s32 %v4891, %v4893
    %v4895 = vrot.slane %v4867, %v4894
    %v4896 = vcombine.low %v4874, %v4888
    %v4897 = vcombine.high %v4874, %v4888
    %v4898 = vcombine.low %v4881, %v4895
    %v4899 = vcombine.low %v473, %v475
    %v4900 = vcombine.high %v473, %v475
    %v4901 = vcombine.low %v477, %v479
    %v4902 = vcombine.high %v477, %v479
    %v4904 = vunpack.c.l.s4 1983009808
    %v4905 = vunpack.c.0.s8 %v4904
    %v4906 = vlaneseq
    %v4907 = vshrl.u32 %v4906, 7
    %v4908 = vsub.s32 %v4905, %v4907
    %v4909 = vrot.slane %v4899, %v4908
    %v4911 = vunpack.c.l.s4 1983009808
    %v4912 = vunpack.c.0.s8 %v4911
    %v4913 = vlaneseq
    %v4914 = vshrl.u32 %v4913, 7
    %v4915 = vsub.s32 %v4912, %v4914
    %v4916 = vrot.slane %v4900, %v4915
    %v4918 = vunpack.c.l.s4 1983009808
    %v4919 = vunpack.c.0.s8 %v4918
    %v4920 = vlaneseq
    %v4921 = vshrl.u32 %v4920, 7
    %v4922 = vsub.s32 %v4919, %v4921
    %v4923 = vrot.slane %v4901, %v4922
    %v4925 = vunpack.c.l.s4 1983009808
    %v4926 = vunpack.c.0.s8 %v4925
    %v4927 = vlaneseq
    %v4928 = vshrl.u32 %v4927, 7
    %v4929 = vsub.s32 %v4926, %v4928
    %v4930 = vrot.slane %v4902, %v4929
    %v4931 = vcombine.low %v4909, %v4923
    %v4932 = vcombine.high %v4909, %v4923
    %v4933 = vcombine.low %v4916, %v4930
    %v4934 = vcombine.high %v4916, %v4930
    %v4935 = vcombine.low %v474, %v476
    %v4936 = vcombine.high %v474, %v476
    %v4937 = vcombine.low %v478, %v480
    %v4938 = vcombine.high %v478, %v480
    %v4940 = vunpack.c.l.s4 1983009808
    %v4941 = vunpack.c.0.s8 %v4940
    %v4942 = vlaneseq
    %v4943 = vshrl.u32 %v4942, 7
    %v4944 = vsub.s32 %v4941, %v4943
    %v4945 = vrot.slane %v4935, %v4944
    %v4947 = vunpack.c.l.s4 1983009808
    %v4948 = vunpack.c.0.s8 %v4947
    %v4949 = vlaneseq
    %v4950 = vshrl.u32 %v4949, 7
    %v4951 = vsub.s32 %v4948, %v4950
    %v4952 = vrot.slane %v4936, %v4951
    %v4954 = vunpack.c.l.s4 1983009808
    %v4955 = vunpack.c.0.s8 %v4954
    %v4956 = vlaneseq
    %v4957 = vshrl.u32 %v4956, 7
    %v4958 = vsub.s32 %v4955, %v4957
    %v4959 = vrot.slane %v4937, %v4958
    %v4961 = vunpack.c.l.s4 1983009808
    %v4962 = vunpack.c.0.s8 %v4961
    %v4963 = vlaneseq
    %v4964 = vshrl.u32 %v4963, 7
    %v4965 = vsub.s32 %v4962, %v4964
    %v4966 = vrot.slane %v4938, %v4965
    %v4967 = vcombine.low %v4945, %v4959
    %v4968 = vcombine.high %v4945, %v4959
    %v4969 = vcombine.low %v4952, %v4966
    %v4970 = vcombine.low %v481, %v483
    %v4971 = vcombine.high %v481, %v483
    %v4972 = vcombine.low %v485, %v487
    %v4973 = vcombine.high %v485, %v487
    %v4975 = vunpack.c.l.s4 1983009808
    %v4976 = vunpack.c.0.s8 %v4975
    %v4977 = vlaneseq
    %v4978 = vshrl.u32 %v4977, 7
    %v4979 = vsub.s32 %v4976, %v4978
    %v4980 = vrot.slane %v4970, %v4979
    %v4982 = vunpack.c.l.s4 1983009808
    %v4983 = vunpack.c.0.s8 %v4982
    %v4984 = vlaneseq
    %v4985 = vshrl.u32 %v4984, 7
    %v4986 = vsub.s32 %v4983, %v4985
    %v4987 = vrot.slane %v4971, %v4986
    %v4989 = vunpack.c.l.s4 1983009808
    %v4990 = vunpack.c.0.s8 %v4989
    %v4991 = vlaneseq
    %v4992 = vshrl.u32 %v4991, 7
    %v4993 = vsub.s32 %v4990, %v4992
    %v4994 = vrot.slane %v4972, %v4993
    %v4996 = vunpack.c.l.s4 1983009808
    %v4997 = vunpack.c.0.s8 %v4996
    %v4998 = vlaneseq
    %v4999 = vshrl.u32 %v4998, 7
    %v5000 = vsub.s32 %v4997, %v4999
    %v5001 = vrot.slane %v4973, %v5000
    %v5002 = vcombine.low %v4980, %v4994
    %v5003 = vcombine.high %v4980, %v4994
    %v5004 = vcombine.low %v4987, %v5001
    %v5005 = vcombine.high %v4987, %v5001
    %v5006 = vcombine.low %v482, %v484
    %v5007 = vcombine.high %v482, %v484
    %v5008 = vcombine.low %v486, %v488
    %v5009 = vcombine.high %v486, %v488
    %v5011 = vunpack.c.l.s4 1983009808
    %v5012 = vunpack.c.0.s8 %v5011
    %v5013 = vlaneseq
    %v5014 = vshrl.u32 %v5013, 7
    %v5015 = vsub.s32 %v5012, %v5014
    %v5016 = vrot.slane %v5006, %v5015
    %v5018 = vunpack.c.l.s4 1983009808
    %v5019 = vunpack.c.0.s8 %v5018
    %v5020 = vlaneseq
    %v5021 = vshrl.u32 %v5020, 7
    %v5022 = vsub.s32 %v5019, %v5021
    %v5023 = vrot.slane %v5007, %v5022
    %v5025 = vunpack.c.l.s4 1983009808
    %v5026 = vunpack.c.0.s8 %v5025
    %v5027 = vlaneseq
    %v5028 = vshrl.u32 %v5027, 7
    %v5029 = vsub.s32 %v5026, %v5028
    %v5030 = vrot.slane %v5008, %v5029
    %v5032 = vunpack.c.l.s4 1983009808
    %v5033 = vunpack.c.0.s8 %v5032
    %v5034 = vlaneseq
    %v5035 = vshrl.u32 %v5034, 7
    %v5036 = vsub.s32 %v5033, %v5035
    %v5037 = vrot.slane %v5009, %v5036
    %v5038 = vcombine.low %v5016, %v5030
    %v5039 = vcombine.high %v5016, %v5030
    %v5040 = vcombine.low %v5023, %v5037
    %v5041 = vcombine.low %v489, %v491
    %v5042 = vcombine.high %v489, %v491
    %v5043 = vcombine.low %v493, %v495
    %v5044 = vcombine.high %v493, %v495
    %v5046 = vunpack.c.l.s4 1983009808
    %v5047 = vunpack.c.0.s8 %v5046
    %v5048 = vlaneseq
    %v5049 = vshrl.u32 %v5048, 7
    %v5050 = vsub.s32 %v5047, %v5049
    %v5051 = vrot.slane %v5041, %v5050
    %v5053 = vunpack.c.l.s4 1983009808
    %v5054 = vunpack.c.0.s8 %v5053
    %v5055 = vlaneseq
    %v5056 = vshrl.u32 %v5055, 7
    %v5057 = vsub.s32 %v5054, %v5056
    %v5058 = vrot.slane %v5042, %v5057
    %v5060 = vunpack.c.l.s4 1983009808
    %v5061 = vunpack.c.0.s8 %v5060
    %v5062 = vlaneseq
    %v5063 = vshrl.u32 %v5062, 7
    %v5064 = vsub.s32 %v5061, %v5063
    %v5065 = vrot.slane %v5043, %v5064
    %v5067 = vunpack.c.l.s4 1983009808
    %v5068 = vunpack.c.0.s8 %v5067
    %v5069 = vlaneseq
    %v5070 = vshrl.u32 %v5069, 7
    %v5071 = vsub.s32 %v5068, %v5070
    %v5072 = vrot.slane %v5044, %v5071
    %v5073 = vcombine.low %v5051, %v5065
    %v5074 = vcombine.high %v5051, %v5065
    %v5075 = vcombine.low %v5058, %v5072
    %v5076 = vcombine.high %v5058, %v5072
    %v5077 = vcombine.low %v490, %v492
    %v5078 = vcombine.high %v490, %v492
    %v5079 = vcombine.low %v494, %v496
    %v5080 = vcombine.high %v494, %v496
    %v5082 = vunpack.c.l.s4 1983009808
    %v5083 = vunpack.c.0.s8 %v5082
    %v5084 = vlaneseq
    %v5085 = vshrl.u32 %v5084, 7
    %v5086 = vsub.s32 %v5083, %v5085
    %v5087 = vrot.slane %v5077, %v5086
    %v5089 = vunpack.c.l.s4 1983009808
    %v5090 = vunpack.c.0.s8 %v5089
    %v5091 = vlaneseq
    %v5092 = vshrl.u32 %v5091, 7
    %v5093 = vsub.s32 %v5090, %v5092
    %v5094 = vrot.slane %v5078, %v5093
    %v5096 = vunpack.c.l.s4 1983009808
    %v5097 = vunpack.c.0.s8 %v5096
    %v5098 = vlaneseq
    %v5099 = vshrl.u32 %v5098, 7
    %v5100 = vsub.s32 %v5097, %v5099
    %v5101 = vrot.slane %v5079, %v5100
    %v5103 = vunpack.c.l.s4 1983009808
    %v5104 = vunpack.c.0.s8 %v5103
    %v5105 = vlaneseq
    %v5106 = vshrl.u32 %v5105, 7
    %v5107 = vsub.s32 %v5104, %v5106
    %v5108 = vrot.slane %v5080, %v5107
    %v5109 = vcombine.low %v5087, %v5101
    %v5110 = vcombine.high %v5087, %v5101
    %v5111 = vcombine.low %v5094, %v5108
    %v5112 = vcombine.low %v497, %v499
    %v5113 = vcombine.high %v497, %v499
    %v5114 = vcombine.low %v501, %v503
    %v5115 = vcombine.high %v501, %v503
    %v5117 = vunpack.c.l.s4 1983009808
    %v5118 = vunpack.c.0.s8 %v5117
    %v5119 = vlaneseq
    %v5120 = vshrl.u32 %v5119, 7
    %v5121 = vsub.s32 %v5118, %v5120
    %v5122 = vrot.slane %v5112, %v5121
    %v5124 = vunpack.c.l.s4 1983009808
    %v5125 = vunpack.c.0.s8 %v5124
    %v5126 = vlaneseq
    %v5127 = vshrl.u32 %v5126, 7
    %v5128 = vsub.s32 %v5125, %v5127
    %v5129 = vrot.slane %v5113, %v5128
    %v5131 = vunpack.c.l.s4 1983009808
    %v5132 = vunpack.c.0.s8 %v5131
    %v5133 = vlaneseq
    %v5134 = vshrl.u32 %v5133, 7
    %v5135 = vsub.s32 %v5132, %v5134
    %v5136 = vrot.slane %v5114, %v5135
    %v5138 = vunpack.c.l.s4 1983009808
    %v5139 = vunpack.c.0.s8 %v5138
    %v5140 = vlaneseq
    %v5141 = vshrl.u32 %v5140, 7
    %v5142 = vsub.s32 %v5139, %v5141
    %v5143 = vrot.slane %v5115, %v5142
    %v5144 = vcombine.low %v5122, %v5136
    %v5145 = vcombine.high %v5122, %v5136
    %v5146 = vcombine.low %v5129, %v5143
    %v5147 = vcombine.high %v5129, %v5143
    %v5148 = vcombine.low %v498, %v500
    %v5149 = vcombine.high %v498, %v500
    %v5150 = vcombine.low %v502, %v504
    %v5151 = vcombine.high %v502, %v504
    %v5153 = vunpack.c.l.s4 1983009808
    %v5154 = vunpack.c.0.s8 %v5153
    %v5155 = vlaneseq
    %v5156 = vshrl.u32 %v5155, 7
    %v5157 = vsub.s32 %v5154, %v5156
    %v5158 = vrot.slane %v5148, %v5157
    %v5160 = vunpack.c.l.s4 1983009808
    %v5161 = vunpack.c.0.s8 %v5160
    %v5162 = vlaneseq
    %v5163 = vshrl.u32 %v5162, 7
    %v5164 = vsub.s32 %v5161, %v5163
    %v5165 = vrot.slane %v5149, %v5164
    %v5167 = vunpack.c.l.s4 1983009808
    %v5168 = vunpack.c.0.s8 %v5167
    %v5169 = vlaneseq
    %v5170 = vshrl.u32 %v5169, 7
    %v5171 = vsub.s32 %v5168, %v5170
    %v5172 = vrot.slane %v5150, %v5171
    %v5174 = vunpack.c.l.s4 1983009808
    %v5175 = vunpack.c.0.s8 %v5174
    %v5176 = vlaneseq
    %v5177 = vshrl.u32 %v5176, 7
    %v5178 = vsub.s32 %v5175, %v5177
    %v5179 = vrot.slane %v5151, %v5178
    %v5180 = vcombine.low %v5158, %v5172
    %v5181 = vcombine.high %v5158, %v5172
    %v5182 = vcombine.low %v5165, %v5179
    %v5183 = vcombine.low %v505, %v507
    %v5184 = vcombine.high %v505, %v507
    %v5185 = vcombine.low %v509, %v511
    %v5186 = vcombine.high %v509, %v511
    %v5188 = vunpack.c.l.s4 1983009808
    %v5189 = vunpack.c.0.s8 %v5188
    %v5190 = vlaneseq
    %v5191 = vshrl.u32 %v5190, 7
    %v5192 = vsub.s32 %v5189, %v5191
    %v5193 = vrot.slane %v5183, %v5192
    %v5195 = vunpack.c.l.s4 1983009808
    %v5196 = vunpack.c.0.s8 %v5195
    %v5197 = vlaneseq
    %v5198 = vshrl.u32 %v5197, 7
    %v5199 = vsub.s32 %v5196, %v5198
    %v5200 = vrot.slane %v5184, %v5199
    %v5202 = vunpack.c.l.s4 1983009808
    %v5203 = vunpack.c.0.s8 %v5202
    %v5204 = vlaneseq
    %v5205 = vshrl.u32 %v5204, 7
    %v5206 = vsub.s32 %v5203, %v5205
    %v5207 = vrot.slane %v5185, %v5206
    %v5209 = vunpack.c.l.s4 1983009808
    %v5210 = vunpack.c.0.s8 %v5209
    %v5211 = vlaneseq
    %v5212 = vshrl.u32 %v5211, 7
    %v5213 = vsub.s32 %v5210, %v5212
    %v5214 = vrot.slane %v5186, %v5213
    %v5215 = vcombine.low %v5193, %v5207
    %v5216 = vcombine.high %v5193, %v5207
    %v5217 = vcombine.low %v5200, %v5214
    %v5218 = vcombine.high %v5200, %v5214
    %v5219 = vcombine.low %v506, %v508
    %v5220 = vcombine.high %v506, %v508
    %v5221 = vcombine.low %v510, %v512
    %v5222 = vcombine.high %v510, %v512
    %v5224 = vunpack.c.l.s4 1983009808
    %v5225 = vunpack.c.0.s8 %v5224
    %v5226 = vlaneseq
    %v5227 = vshrl.u32 %v5226, 7
    %v5228 = vsub.s32 %v5225, %v5227
    %v5229 = vrot.slane %v5219, %v5228
    %v5231 = vunpack.c.l.s4 1983009808
    %v5232 = vunpack.c.0.s8 %v5231
    %v5233 = vlaneseq
    %v5234 = vshrl.u32 %v5233, 7
    %v5235 = vsub.s32 %v5232, %v5234
    %v5236 = vrot.slane %v5220, %v5235
    %v5238 = vunpack.c.l.s4 1983009808
    %v5239 = vunpack.c.0.s8 %v5238
    %v5240 = vlaneseq
    %v5241 = vshrl.u32 %v5240, 7
    %v5242 = vsub.s32 %v5239, %v5241
    %v5243 = vrot.slane %v5221, %v5242
    %v5245 = vunpack.c.l.s4 1983009808
    %v5246 = vunpack.c.0.s8 %v5245
    %v5247 = vlaneseq
    %v5248 = vshrl.u32 %v5247, 7
    %v5249 = vsub.s32 %v5246, %v5248
    %v5250 = vrot.slane %v5222, %v5249
    %v5251 = vcombine.low %v5229, %v5243
    %v5252 = vcombine.high %v5229, %v5243
    %v5253 = vcombine.low %v5236, %v5250
    %v5254 = vcombine.low %v513, %v515
    %v5255 = vcombine.high %v513, %v515
    %v5256 = vcombine.low %v517, %v519
    %v5257 = vcombine.high %v517, %v519
    %v5259 = vunpack.c.l.s4 1983009808
    %v5260 = vunpack.c.0.s8 %v5259
    %v5261 = vlaneseq
    %v5262 = vshrl.u32 %v5261, 7
    %v5263 = vsub.s32 %v5260, %v5262
    %v5264 = vrot.slane %v5254, %v5263
    %v5266 = vunpack.c.l.s4 1983009808
    %v5267 = vunpack.c.0.s8 %v5266
    %v5268 = vlaneseq
    %v5269 = vshrl.u32 %v5268, 7
    %v5270 = vsub.s32 %v5267, %v5269
    %v5271 = vrot.slane %v5255, %v5270
    %v5273 = vunpack.c.l.s4 1983009808
    %v5274 = vunpack.c.0.s8 %v5273
    %v5275 = vlaneseq
    %v5276 = vshrl.u32 %v5275, 7
    %v5277 = vsub.s32 %v5274, %v5276
    %v5278 = vrot.slane %v5256, %v5277
    %v5280 = vunpack.c.l.s4 1983009808
    %v5281 = vunpack.c.0.s8 %v5280
    %v5282 = vlaneseq
    %v5283 = vshrl.u32 %v5282, 7
    %v5284 = vsub.s32 %v5281, %v5283
    %v5285 = vrot.slane %v5257, %v5284
    %v5286 = vcombine.low %v5264, %v5278
    %v5287 = vcombine.high %v5264, %v5278
    %v5288 = vcombine.low %v5271, %v5285
    %v5289 = vcombine.high %v5271, %v5285
    %v5290 = vcombine.low %v514, %v516
    %v5291 = vcombine.high %v514, %v516
    %v5292 = vcombine.low %v518, %v520
    %v5293 = vcombine.high %v518, %v520
    %v5295 = vunpack.c.l.s4 1983009808
    %v5296 = vunpack.c.0.s8 %v5295
    %v5297 = vlaneseq
    %v5298 = vshrl.u32 %v5297, 7
    %v5299 = vsub.s32 %v5296, %v5298
    %v5300 = vrot.slane %v5290, %v5299
    %v5302 = vunpack.c.l.s4 1983009808
    %v5303 = vunpack.c.0.s8 %v5302
    %v5304 = vlaneseq
    %v5305 = vshrl.u32 %v5304, 7
    %v5306 = vsub.s32 %v5303, %v5305
    %v5307 = vrot.slane %v5291, %v5306
    %v5309 = vunpack.c.l.s4 1983009808
    %v5310 = vunpack.c.0.s8 %v5309
    %v5311 = vlaneseq
    %v5312 = vshrl.u32 %v5311, 7
    %v5313 = vsub.s32 %v5310, %v5312
    %v5314 = vrot.slane %v5292, %v5313
    %v5316 = vunpack.c.l.s4 1983009808
    %v5317 = vunpack.c.0.s8 %v5316
    %v5318 = vlaneseq
    %v5319 = vshrl.u32 %v5318, 7
    %v5320 = vsub.s32 %v5317, %v5319
    %v5321 = vrot.slane %v5293, %v5320
    %v5322 = vcombine.low %v5300, %v5314
    %v5323 = vcombine.high %v5300, %v5314
    %v5324 = vcombine.low %v5307, %v5321
    %v5325 = vcombine.low %v521, %v523
    %v5326 = vcombine.high %v521, %v523
    %v5327 = vcombine.low %v525, %v527
    %v5328 = vcombine.high %v525, %v527
    %v5330 = vunpack.c.l.s4 1983009808
    %v5331 = vunpack.c.0.s8 %v5330
    %v5332 = vlaneseq
    %v5333 = vshrl.u32 %v5332, 7
    %v5334 = vsub.s32 %v5331, %v5333
    %v5335 = vrot.slane %v5325, %v5334
    %v5337 = vunpack.c.l.s4 1983009808
    %v5338 = vunpack.c.0.s8 %v5337
    %v5339 = vlaneseq
    %v5340 = vshrl.u32 %v5339, 7
    %v5341 = vsub.s32 %v5338, %v5340
    %v5342 = vrot.slane %v5326, %v5341
    %v5344 = vunpack.c.l.s4 1983009808
    %v5345 = vunpack.c.0.s8 %v5344
    %v5346 = vlaneseq
    %v5347 = vshrl.u32 %v5346, 7
    %v5348 = vsub.s32 %v5345, %v5347
    %v5349 = vrot.slane %v5327, %v5348
    %v5351 = vunpack.c.l.s4 1983009808
    %v5352 = vunpack.c.0.s8 %v5351
    %v5353 = vlaneseq
    %v5354 = vshrl.u32 %v5353, 7
    %v5355 = vsub.s32 %v5352, %v5354
    %v5356 = vrot.slane %v5328, %v5355
    %v5357 = vcombine.low %v5335, %v5349
    %v5358 = vcombine.high %v5335, %v5349
    %v5359 = vcombine.low %v5342, %v5356
    %v5360 = vcombine.high %v5342, %v5356
    %v5361 = vcombine.low %v522, %v524
    %v5362 = vcombine.high %v522, %v524
    %v5363 = vcombine.low %v526, %v528
    %v5364 = vcombine.high %v526, %v528
    %v5366 = vunpack.c.l.s4 1983009808
    %v5367 = vunpack.c.0.s8 %v5366
    %v5368 = vlaneseq
    %v5369 = vshrl.u32 %v5368, 7
    %v5370 = vsub.s32 %v5367, %v5369
    %v5371 = vrot.slane %v5361, %v5370
    %v5373 = vunpack.c.l.s4 1983009808
    %v5374 = vunpack.c.0.s8 %v5373
    %v5375 = vlaneseq
    %v5376 = vshrl.u32 %v5375, 7
    %v5377 = vsub.s32 %v5374, %v5376
    %v5378 = vrot.slane %v5362, %v5377
    %v5380 = vunpack.c.l.s4 1983009808
    %v5381 = vunpack.c.0.s8 %v5380
    %v5382 = vlaneseq
    %v5383 = vshrl.u32 %v5382, 7
    %v5384 = vsub.s32 %v5381, %v5383
    %v5385 = vrot.slane %v5363, %v5384
    %v5387 = vunpack.c.l.s4 1983009808
    %v5388 = vunpack.c.0.s8 %v5387
    %v5389 = vlaneseq
    %v5390 = vshrl.u32 %v5389, 7
    %v5391 = vsub.s32 %v5388, %v5390
    %v5392 = vrot.slane %v5364, %v5391
    %v5393 = vcombine.low %v5371, %v5385
    %v5394 = vcombine.high %v5371, %v5385
    %v5395 = vcombine.low %v5378, %v5392
    %v5396 = vcombine.low %v529, %v531
    %v5397 = vcombine.high %v529, %v531
    %v5398 = vcombine.low %v533, %v535
    %v5399 = vcombine.high %v533, %v535
    %v5401 = vunpack.c.l.s4 1983009808
    %v5402 = vunpack.c.0.s8 %v5401
    %v5403 = vlaneseq
    %v5404 = vshrl.u32 %v5403, 7
    %v5405 = vsub.s32 %v5402, %v5404
    %v5406 = vrot.slane %v5396, %v5405
    %v5408 = vunpack.c.l.s4 1983009808
    %v5409 = vunpack.c.0.s8 %v5408
    %v5410 = vlaneseq
    %v5411 = vshrl.u32 %v5410, 7
    %v5412 = vsub.s32 %v5409, %v5411
    %v5413 = vrot.slane %v5397, %v5412
    %v5415 = vunpack.c.l.s4 1983009808
    %v5416 = vunpack.c.0.s8 %v5415
    %v5417 = vlaneseq
    %v5418 = vshrl.u32 %v5417, 7
    %v5419 = vsub.s32 %v5416, %v5418
    %v5420 = vrot.slane %v5398, %v5419
    %v5422 = vunpack.c.l.s4 1983009808
    %v5423 = vunpack.c.0.s8 %v5422
    %v5424 = vlaneseq
    %v5425 = vshrl.u32 %v5424, 7
    %v5426 = vsub.s32 %v5423, %v5425
    %v5427 = vrot.slane %v5399, %v5426
    %v5428 = vcombine.low %v5406, %v5420
    %v5429 = vcombine.high %v5406, %v5420
    %v5430 = vcombine.low %v5413, %v5427
    %v5431 = vcombine.high %v5413, %v5427
    %v5432 = vcombine.low %v530, %v532
    %v5433 = vcombine.high %v530, %v532
    %v5434 = vcombine.low %v534, %v536
    %v5435 = vcombine.high %v534, %v536
    %v5437 = vunpack.c.l.s4 1983009808
    %v5438 = vunpack.c.0.s8 %v5437
    %v5439 = vlaneseq
    %v5440 = vshrl.u32 %v5439, 7
    %v5441 = vsub.s32 %v5438, %v5440
    %v5442 = vrot.slane %v5432, %v5441
    %v5444 = vunpack.c.l.s4 1983009808
    %v5445 = vunpack.c.0.s8 %v5444
    %v5446 = vlaneseq
    %v5447 = vshrl.u32 %v5446, 7
    %v5448 = vsub.s32 %v5445, %v5447
    %v5449 = vrot.slane %v5433, %v5448
    %v5451 = vunpack.c.l.s4 1983009808
    %v5452 = vunpack.c.0.s8 %v5451
    %v5453 = vlaneseq
    %v5454 = vshrl.u32 %v5453, 7
    %v5455 = vsub.s32 %v5452, %v5454
    %v5456 = vrot.slane %v5434, %v5455
    %v5458 = vunpack.c.l.s4 1983009808
    %v5459 = vunpack.c.0.s8 %v5458
    %v5460 = vlaneseq
    %v5461 = vshrl.u32 %v5460, 7
    %v5462 = vsub.s32 %v5459, %v5461
    %v5463 = vrot.slane %v5435, %v5462
    %v5464 = vcombine.low %v5442, %v5456
    %v5465 = vcombine.high %v5442, %v5456
    %v5466 = vcombine.low %v5449, %v5463
    %v5467 = vcombine.low %v537, %v539
    %v5468 = vcombine.high %v537, %v539
    %v5469 = vcombine.low %v541, %v543
    %v5470 = vcombine.high %v541, %v543
    %v5472 = vunpack.c.l.s4 1983009808
    %v5473 = vunpack.c.0.s8 %v5472
    %v5474 = vlaneseq
    %v5475 = vshrl.u32 %v5474, 7
    %v5476 = vsub.s32 %v5473, %v5475
    %v5477 = vrot.slane %v5467, %v5476
    %v5479 = vunpack.c.l.s4 1983009808
    %v5480 = vunpack.c.0.s8 %v5479
    %v5481 = vlaneseq
    %v5482 = vshrl.u32 %v5481, 7
    %v5483 = vsub.s32 %v5480, %v5482
    %v5484 = vrot.slane %v5468, %v5483
    %v5486 = vunpack.c.l.s4 1983009808
    %v5487 = vunpack.c.0.s8 %v5486
    %v5488 = vlaneseq
    %v5489 = vshrl.u32 %v5488, 7
    %v5490 = vsub.s32 %v5487, %v5489
    %v5491 = vrot.slane %v5469, %v5490
    %v5493 = vunpack.c.l.s4 1983009808
    %v5494 = vunpack.c.0.s8 %v5493
    %v5495 = vlaneseq
    %v5496 = vshrl.u32 %v5495, 7
    %v5497 = vsub.s32 %v5494, %v5496
    %v5498 = vrot.slane %v5470, %v5497
    %v5499 = vcombine.low %v5477, %v5491
    %v5500 = vcombine.high %v5477, %v5491
    %v5501 = vcombine.low %v5484, %v5498
    %v5502 = vcombine.high %v5484, %v5498
    %v5503 = vcombine.low %v538, %v540
    %v5504 = vcombine.high %v538, %v540
    %v5505 = vcombine.low %v542, %v544
    %v5506 = vcombine.high %v542, %v544
    %v5508 = vunpack.c.l.s4 1983009808
    %v5509 = vunpack.c.0.s8 %v5508
    %v5510 = vlaneseq
    %v5511 = vshrl.u32 %v5510, 7
    %v5512 = vsub.s32 %v5509, %v5511
    %v5513 = vrot.slane %v5503, %v5512
    %v5515 = vunpack.c.l.s4 1983009808
    %v5516 = vunpack.c.0.s8 %v5515
    %v5517 = vlaneseq
    %v5518 = vshrl.u32 %v5517, 7
    %v5519 = vsub.s32 %v5516, %v5518
    %v5520 = vrot.slane %v5504, %v5519
    %v5522 = vunpack.c.l.s4 1983009808
    %v5523 = vunpack.c.0.s8 %v5522
    %v5524 = vlaneseq
    %v5525 = vshrl.u32 %v5524, 7
    %v5526 = vsub.s32 %v5523, %v5525
    %v5527 = vrot.slane %v5505, %v5526
    %v5529 = vunpack.c.l.s4 1983009808
    %v5530 = vunpack.c.0.s8 %v5529
    %v5531 = vlaneseq
    %v5532 = vshrl.u32 %v5531, 7
    %v5533 = vsub.s32 %v5530, %v5532
    %v5534 = vrot.slane %v5506, %v5533
    %v5535 = vcombine.low %v5513, %v5527
    %v5536 = vcombine.high %v5513, %v5527
    %v5537 = vcombine.low %v5520, %v5534
    %v5538 = vcombine.low %v545, %v547
    %v5539 = vcombine.high %v545, %v547
    %v5540 = vcombine.low %v549, %v551
    %v5541 = vcombine.high %v549, %v551
    %v5543 = vunpack.c.l.s4 1983009808
    %v5544 = vunpack.c.0.s8 %v5543
    %v5545 = vlaneseq
    %v5546 = vshrl.u32 %v5545, 7
    %v5547 = vsub.s32 %v5544, %v5546
    %v5548 = vrot.slane %v5538, %v5547
    %v5550 = vunpack.c.l.s4 1983009808
    %v5551 = vunpack.c.0.s8 %v5550
    %v5552 = vlaneseq
    %v5553 = vshrl.u32 %v5552, 7
    %v5554 = vsub.s32 %v5551, %v5553
    %v5555 = vrot.slane %v5539, %v5554
    %v5557 = vunpack.c.l.s4 1983009808
    %v5558 = vunpack.c.0.s8 %v5557
    %v5559 = vlaneseq
    %v5560 = vshrl.u32 %v5559, 7
    %v5561 = vsub.s32 %v5558, %v5560
    %v5562 = vrot.slane %v5540, %v5561
    %v5564 = vunpack.c.l.s4 1983009808
    %v5565 = vunpack.c.0.s8 %v5564
    %v5566 = vlaneseq
    %v5567 = vshrl.u32 %v5566, 7
    %v5568 = vsub.s32 %v5565, %v5567
    %v5569 = vrot.slane %v5541, %v5568
    %v5570 = vcombine.low %v5548, %v5562
    %v5571 = vcombine.high %v5548, %v5562
    %v5572 = vcombine.low %v5555, %v5569
    %v5573 = vcombine.high %v5555, %v5569
    %v5574 = vcombine.low %v546, %v548
    %v5575 = vcombine.high %v546, %v548
    %v5576 = vcombine.low %v550, %v552
    %v5577 = vcombine.high %v550, %v552
    %v5579 = vunpack.c.l.s4 1983009808
    %v5580 = vunpack.c.0.s8 %v5579
    %v5581 = vlaneseq
    %v5582 = vshrl.u32 %v5581, 7
    %v5583 = vsub.s32 %v5580, %v5582
    %v5584 = vrot.slane %v5574, %v5583
    %v5586 = vunpack.c.l.s4 1983009808
    %v5587 = vunpack.c.0.s8 %v5586
    %v5588 = vlaneseq
    %v5589 = vshrl.u32 %v5588, 7
    %v5590 = vsub.s32 %v5587, %v5589
    %v5591 = vrot.slane %v5575, %v5590
    %v5593 = vunpack.c.l.s4 1983009808
    %v5594 = vunpack.c.0.s8 %v5593
    %v5595 = vlaneseq
    %v5596 = vshrl.u32 %v5595, 7
    %v5597 = vsub.s32 %v5594, %v5596
    %v5598 = vrot.slane %v5576, %v5597
    %v5600 = vunpack.c.l.s4 1983009808
    %v5601 = vunpack.c.0.s8 %v5600
    %v5602 = vlaneseq
    %v5603 = vshrl.u32 %v5602, 7
    %v5604 = vsub.s32 %v5601, %v5603
    %v5605 = vrot.slane %v5577, %v5604
    %v5606 = vcombine.low %v5584, %v5598
    %v5607 = vcombine.high %v5584, %v5598
    %v5608 = vcombine.low %v5591, %v5605
    %v6057 = vpack.c.bf16 %v1168, %v1097
    %v6058 = vpack.c.bf16 %v1169, %v1098
    %v6059 = vpack.c.bf16 %v1170, %v1099
    %v6060 = vpack.c.bf16 %v1171, %v1100
    %v6061 = vpack.c.bf16 %v1204, %v1133
    %v6062 = vpack.c.bf16 %v1205, %v1134
    %v6063 = vpack.c.bf16 %v1206, %v1135
    %v6064 = vpack.c.bf16 %v1310, %v1239
    %v6065 = vpack.c.bf16 %v1311, %v1240
    %v6066 = vpack.c.bf16 %v1312, %v1241
    %v6067 = vpack.c.bf16 %v1313, %v1242
    %v6068 = vpack.c.bf16 %v1346, %v1275
    %v6069 = vpack.c.bf16 %v1347, %v1276
    %v6070 = vpack.c.bf16 %v1348, %v1277
    %v6071 = vpack.c.bf16 %v1452, %v1381
    %v6072 = vpack.c.bf16 %v1453, %v1382
    %v6073 = vpack.c.bf16 %v1454, %v1383
    %v6074 = vpack.c.bf16 %v1455, %v1384
    %v6075 = vpack.c.bf16 %v1488, %v1417
    %v6076 = vpack.c.bf16 %v1489, %v1418
    %v6077 = vpack.c.bf16 %v1490, %v1419
    %v6078 = vpack.c.bf16 %v1594, %v1523
    %v6079 = vpack.c.bf16 %v1595, %v1524
    %v6080 = vpack.c.bf16 %v1596, %v1525
    %v6081 = vpack.c.bf16 %v1597, %v1526
    %v6082 = vpack.c.bf16 %v1630, %v1559
    %v6083 = vpack.c.bf16 %v1631, %v1560
    %v6084 = vpack.c.bf16 %v1632, %v1561
    %v6085 = vpack.c.bf16 %v1736, %v1665
    %v6086 = vpack.c.bf16 %v1737, %v1666
    %v6087 = vpack.c.bf16 %v1738, %v1667
    %v6088 = vpack.c.bf16 %v1739, %v1668
    %v6089 = vpack.c.bf16 %v1772, %v1701
    %v6090 = vpack.c.bf16 %v1773, %v1702
    %v6091 = vpack.c.bf16 %v1774, %v1703
    %v6092 = vpack.c.bf16 %v1878, %v1807
    %v6093 = vpack.c.bf16 %v1879, %v1808
    %v6094 = vpack.c.bf16 %v1880, %v1809
    %v6095 = vpack.c.bf16 %v1881, %v1810
    %v6096 = vpack.c.bf16 %v1914, %v1843
    %v6097 = vpack.c.bf16 %v1915, %v1844
    %v6098 = vpack.c.bf16 %v1916, %v1845
    %v6099 = vpack.c.bf16 %v2020, %v1949
    %v6100 = vpack.c.bf16 %v2021, %v1950
    %v6101 = vpack.c.bf16 %v2022, %v1951
    %v6102 = vpack.c.bf16 %v2023, %v1952
    %v6103 = vpack.c.bf16 %v2056, %v1985
    %v6104 = vpack.c.bf16 %v2057, %v1986
    %v6105 = vpack.c.bf16 %v2058, %v1987
    %v6106 = vpack.c.bf16 %v2162, %v2091
    %v6107 = vpack.c.bf16 %v2163, %v2092
    %v6108 = vpack.c.bf16 %v2164, %v2093
    %v6109 = vpack.c.bf16 %v2165, %v2094
    %v6110 = vpack.c.bf16 %v2198, %v2127
    %v6111 = vpack.c.bf16 %v2199, %v2128
    %v6112 = vpack.c.bf16 %v2200, %v2129
    %v6113 = vpack.c.bf16 %v2304, %v2233
    %v6114 = vpack.c.bf16 %v2305, %v2234
    %v6115 = vpack.c.bf16 %v2306, %v2235
    %v6116 = vpack.c.bf16 %v2307, %v2236
    %v6117 = vpack.c.bf16 %v2340, %v2269
    %v6118 = vpack.c.bf16 %v2341, %v2270
    %v6119 = vpack.c.bf16 %v2342, %v2271
    %v6120 = vpack.c.bf16 %v2446, %v2375
    %v6121 = vpack.c.bf16 %v2447, %v2376
    %v6122 = vpack.c.bf16 %v2448, %v2377
    %v6123 = vpack.c.bf16 %v2449, %v2378
    %v6124 = vpack.c.bf16 %v2482, %v2411
    %v6125 = vpack.c.bf16 %v2483, %v2412
    %v6126 = vpack.c.bf16 %v2484, %v2413
    %v6127 = vpack.c.bf16 %v2588, %v2517
    %v6128 = vpack.c.bf16 %v2589, %v2518
    %v6129 = vpack.c.bf16 %v2590, %v2519
    %v6130 = vpack.c.bf16 %v2591, %v2520
    %v6131 = vpack.c.bf16 %v2624, %v2553
    %v6132 = vpack.c.bf16 %v2625, %v2554
    %v6133 = vpack.c.bf16 %v2626, %v2555
    %v6134 = vpack.c.bf16 %v2730, %v2659
    %v6135 = vpack.c.bf16 %v2731, %v2660
    %v6136 = vpack.c.bf16 %v2732, %v2661
    %v6137 = vpack.c.bf16 %v2733, %v2662
    %v6138 = vpack.c.bf16 %v2766, %v2695
    %v6139 = vpack.c.bf16 %v2767, %v2696
    %v6140 = vpack.c.bf16 %v2768, %v2697
    %v6141 = vpack.c.bf16 %v2872, %v2801
    %v6142 = vpack.c.bf16 %v2873, %v2802
    %v6143 = vpack.c.bf16 %v2874, %v2803
    %v6144 = vpack.c.bf16 %v2875, %v2804
    %v6145 = vpack.c.bf16 %v2908, %v2837
    %v6146 = vpack.c.bf16 %v2909, %v2838
    %v6147 = vpack.c.bf16 %v2910, %v2839
    %v6148 = vpack.c.bf16 %v3014, %v2943
    %v6149 = vpack.c.bf16 %v3015, %v2944
    %v6150 = vpack.c.bf16 %v3016, %v2945
    %v6151 = vpack.c.bf16 %v3017, %v2946
    %v6152 = vpack.c.bf16 %v3050, %v2979
    %v6153 = vpack.c.bf16 %v3051, %v2980
    %v6154 = vpack.c.bf16 %v3052, %v2981
    %v6155 = vpack.c.bf16 %v3156, %v3085
    %v6156 = vpack.c.bf16 %v3157, %v3086
    %v6157 = vpack.c.bf16 %v3158, %v3087
    %v6158 = vpack.c.bf16 %v3159, %v3088
    %v6159 = vpack.c.bf16 %v3192, %v3121
    %v6160 = vpack.c.bf16 %v3193, %v3122
    %v6161 = vpack.c.bf16 %v3194, %v3123
    %v6162 = vpack.c.bf16 %v3298, %v3227
    %v6163 = vpack.c.bf16 %v3299, %v3228
    %v6164 = vpack.c.bf16 %v3300, %v3229
    %v6165 = vpack.c.bf16 %v3301, %v3230
    %v6166 = vpack.c.bf16 %v3334, %v3263
    %v6167 = vpack.c.bf16 %v3335, %v3264
    %v6168 = vpack.c.bf16 %v3336, %v3265
    %v6169 = vpack.c.bf16 %v3440, %v3369
    %v6170 = vpack.c.bf16 %v3441, %v3370
    %v6171 = vpack.c.bf16 %v3442, %v3371
    %v6172 = vpack.c.bf16 %v3443, %v3372
    %v6173 = vpack.c.bf16 %v3476, %v3405
    %v6174 = vpack.c.bf16 %v3477, %v3406
    %v6175 = vpack.c.bf16 %v3478, %v3407
    %v6176 = vpack.c.bf16 %v3582, %v3511
    %v6177 = vpack.c.bf16 %v3583, %v3512
    %v6178 = vpack.c.bf16 %v3584, %v3513
    %v6179 = vpack.c.bf16 %v3585, %v3514
    %v6180 = vpack.c.bf16 %v3618, %v3547
    %v6181 = vpack.c.bf16 %v3619, %v3548
    %v6182 = vpack.c.bf16 %v3620, %v3549
    %v6183 = vpack.c.bf16 %v3724, %v3653
    %v6184 = vpack.c.bf16 %v3725, %v3654
    %v6185 = vpack.c.bf16 %v3726, %v3655
    %v6186 = vpack.c.bf16 %v3727, %v3656
    %v6187 = vpack.c.bf16 %v3760, %v3689
    %v6188 = vpack.c.bf16 %v3761, %v3690
    %v6189 = vpack.c.bf16 %v3762, %v3691
    %v6190 = vpack.c.bf16 %v3866, %v3795
    %v6191 = vpack.c.bf16 %v3867, %v3796
    %v6192 = vpack.c.bf16 %v3868, %v3797
    %v6193 = vpack.c.bf16 %v3869, %v3798
    %v6194 = vpack.c.bf16 %v3902, %v3831
    %v6195 = vpack.c.bf16 %v3903, %v3832
    %v6196 = vpack.c.bf16 %v3904, %v3833
    %v6197 = vpack.c.bf16 %v4008, %v3937
    %v6198 = vpack.c.bf16 %v4009, %v3938
    %v6199 = vpack.c.bf16 %v4010, %v3939
    %v6200 = vpack.c.bf16 %v4011, %v3940
    %v6201 = vpack.c.bf16 %v4044, %v3973
    %v6202 = vpack.c.bf16 %v4045, %v3974
    %v6203 = vpack.c.bf16 %v4046, %v3975
    %v6204 = vpack.c.bf16 %v4150, %v4079
    %v6205 = vpack.c.bf16 %v4151, %v4080
    %v6206 = vpack.c.bf16 %v4152, %v4081
    %v6207 = vpack.c.bf16 %v4153, %v4082
    %v6208 = vpack.c.bf16 %v4186, %v4115
    %v6209 = vpack.c.bf16 %v4187, %v4116
    %v6210 = vpack.c.bf16 %v4188, %v4117
    %v6211 = vpack.c.bf16 %v4292, %v4221
    %v6212 = vpack.c.bf16 %v4293, %v4222
    %v6213 = vpack.c.bf16 %v4294, %v4223
    %v6214 = vpack.c.bf16 %v4295, %v4224
    %v6215 = vpack.c.bf16 %v4328, %v4257
    %v6216 = vpack.c.bf16 %v4329, %v4258
    %v6217 = vpack.c.bf16 %v4330, %v4259
    %v6218 = vpack.c.bf16 %v4434, %v4363
    %v6219 = vpack.c.bf16 %v4435, %v4364
    %v6220 = vpack.c.bf16 %v4436, %v4365
    %v6221 = vpack.c.bf16 %v4437, %v4366
    %v6222 = vpack.c.bf16 %v4470, %v4399
    %v6223 = vpack.c.bf16 %v4471, %v4400
    %v6224 = vpack.c.bf16 %v4472, %v4401
    %v6225 = vpack.c.bf16 %v4576, %v4505
    %v6226 = vpack.c.bf16 %v4577, %v4506
    %v6227 = vpack.c.bf16 %v4578, %v4507
    %v6228 = vpack.c.bf16 %v4579, %v4508
    %v6229 = vpack.c.bf16 %v4612, %v4541
    %v6230 = vpack.c.bf16 %v4613, %v4542
    %v6231 = vpack.c.bf16 %v4614, %v4543
    %v6232 = vpack.c.bf16 %v4718, %v4647
    %v6233 = vpack.c.bf16 %v4719, %v4648
    %v6234 = vpack.c.bf16 %v4720, %v4649
    %v6235 = vpack.c.bf16 %v4721, %v4650
    %v6236 = vpack.c.bf16 %v4754, %v4683
    %v6237 = vpack.c.bf16 %v4755, %v4684
    %v6238 = vpack.c.bf16 %v4756, %v4685
    %v6239 = vpack.c.bf16 %v4860, %v4789
    %v6240 = vpack.c.bf16 %v4861, %v4790
    %v6241 = vpack.c.bf16 %v4862, %v4791
    %v6242 = vpack.c.bf16 %v4863, %v4792
    %v6243 = vpack.c.bf16 %v4896, %v4825
    %v6244 = vpack.c.bf16 %v4897, %v4826
    %v6245 = vpack.c.bf16 %v4898, %v4827
    %v6246 = vpack.c.bf16 %v5002, %v4931
    %v6247 = vpack.c.bf16 %v5003, %v4932
    %v6248 = vpack.c.bf16 %v5004, %v4933
    %v6249 = vpack.c.bf16 %v5005, %v4934
    %v6250 = vpack.c.bf16 %v5038, %v4967
    %v6251 = vpack.c.bf16 %v5039, %v4968
    %v6252 = vpack.c.bf16 %v5040, %v4969
    %v6253 = vpack.c.bf16 %v5144, %v5073
    %v6254 = vpack.c.bf16 %v5145, %v5074
    %v6255 = vpack.c.bf16 %v5146, %v5075
    %v6256 = vpack.c.bf16 %v5147, %v5076
    %v6257 = vpack.c.bf16 %v5180, %v5109
    %v6258 = vpack.c.bf16 %v5181, %v5110
    %v6259 = vpack.c.bf16 %v5182, %v5111
    %v6260 = vpack.c.bf16 %v5286, %v5215
    %v6261 = vpack.c.bf16 %v5287, %v5216
    %v6262 = vpack.c.bf16 %v5288, %v5217
    %v6263 = vpack.c.bf16 %v5289, %v5218
    %v6264 = vpack.c.bf16 %v5322, %v5251
    %v6265 = vpack.c.bf16 %v5323, %v5252
    %v6266 = vpack.c.bf16 %v5324, %v5253
    %v6267 = vpack.c.bf16 %v5428, %v5357
    %v6268 = vpack.c.bf16 %v5429, %v5358
    %v6269 = vpack.c.bf16 %v5430, %v5359
    %v6270 = vpack.c.bf16 %v5431, %v5360
    %v6271 = vpack.c.bf16 %v5464, %v5393
    %v6272 = vpack.c.bf16 %v5465, %v5394
    %v6273 = vpack.c.bf16 %v5466, %v5395
    %v6274 = vpack.c.bf16 %v5570, %v5499
    %v6275 = vpack.c.bf16 %v5571, %v5500
    %v6276 = vpack.c.bf16 %v5572, %v5501
    %v6277 = vpack.c.bf16 %v5573, %v5502
    %v6278 = vpack.c.bf16 %v5606, %v5535
    %v6279 = vpack.c.bf16 %v5607, %v5536
    %v6280 = vpack.c.bf16 %v5608, %v5537
    %v6281 = vld [vmem:[#allocation2] sm:$0xf]
    %v6282 = vld [vmem:[#allocation2 + $0x4] sm:$0xf]
    %v6283 = vld [vmem:[#allocation2 + $0x8] sm:$0xf]
    %v6284 = vld [vmem:[#allocation2 + $0xc] sm:$0xf]
    %v6285 = vld [vmem:[#allocation2 + $0x10] sm:$0xf]
    %v6286 = vld [vmem:[#allocation2 + $0x14] sm:$0xf]
    %v6287 = vld [vmem:[#allocation2 + $0x18] sm:$0xf]
    %v6288 = vld [vmem:[#allocation2 + $0x1c] sm:$0xf]
    %v6289 = vld [vmem:[#allocation2 + $0x20] sm:$0xf]
    %v6290 = vld [vmem:[#allocation2 + $0x24] sm:$0xf]
    %v6291 = vld [vmem:[#allocation2 + $0x28] sm:$0xf]
    %v6292 = vld [vmem:[#allocation2 + $0x2c] sm:$0xf]
    %v6293 = vld [vmem:[#allocation2 + $0x30] sm:$0xf]
    %v6294 = vld [vmem:[#allocation2 + $0x34] sm:$0xf]
    %v6295 = vld [vmem:[#allocation2 + $0x38] sm:$0xf]
    %v6296 = vld [vmem:[#allocation2 + $0x3c] sm:$0xf]
    %v6297 = vld [vmem:[#allocation2 + $0x40] sm:$0xf]
    %v6298 = vld [vmem:[#allocation2 + $0x44] sm:$0xf]
    %v6299 = vld [vmem:[#allocation2 + $0x48] sm:$0xf]
    %v6300 = vld [vmem:[#allocation2 + $0x4c] sm:$0xf]
    %v6301 = vld [vmem:[#allocation2 + $0x50] sm:$0xf]
    %v6302 = vld [vmem:[#allocation2 + $0x54] sm:$0xf]
    %v6303 = vld [vmem:[#allocation2 + $0x58] sm:$0xf]
    %v6304 = vld [vmem:[#allocation2 + $0x5c] sm:$0xf]
    %v6305 = vld [vmem:[#allocation2 + $0x60] sm:$0xf]
    %v6306 = vld [vmem:[#allocation2 + $0x64] sm:$0xf]
    %v6307 = vld [vmem:[#allocation2 + $0x68] sm:$0xf]
    %v6308 = vld [vmem:[#allocation2 + $0x6c] sm:$0xf]
    %v6309 = vld [vmem:[#allocation2 + $0x70] sm:$0xf]
    %v6310 = vld [vmem:[#allocation2 + $0x74] sm:$0xf]
    %v6311 = vld [vmem:[#allocation2 + $0x78] sm:$0xf]
    %v6312 = vld [vmem:[#allocation2 + $0x7c] sm:$0xf]
    %v6313 = vld [vmem:[#allocation2 + $0x80] sm:$0xf]
    %v6314 = vld [vmem:[#allocation2 + $0x84] sm:$0xf]
    %v6315 = vld [vmem:[#allocation2 + $0x88] sm:$0xf]
    %v6316 = vld [vmem:[#allocation2 + $0x8c] sm:$0xf]
    %v6317 = vld [vmem:[#allocation2 + $0x90] sm:$0xf]
    %v6318 = vld [vmem:[#allocation2 + $0x94] sm:$0xf]
    %v6319 = vld [vmem:[#allocation2 + $0x98] sm:$0xf]
    %v6320 = vld [vmem:[#allocation2 + $0x9c] sm:$0xf]
    %v6321 = vld [vmem:[#allocation2 + $0xa0] sm:$0xf]
    %v6322 = vld [vmem:[#allocation2 + $0xa4] sm:$0xf]
    %v6323 = vld [vmem:[#allocation2 + $0xa8] sm:$0xf]
    %v6324 = vld [vmem:[#allocation2 + $0xac] sm:$0xf]
    %v6325 = vld [vmem:[#allocation2 + $0xb0] sm:$0xf]
    %v6326 = vld [vmem:[#allocation2 + $0xb4] sm:$0xf]
    %v6327 = vld [vmem:[#allocation2 + $0xb8] sm:$0xf]
    %v6328 = vld [vmem:[#allocation2 + $0xbc] sm:$0xf]
    %v6329 = vld [vmem:[#allocation2 + $0xc0] sm:$0xf]
    %v6330 = vld [vmem:[#allocation2 + $0xc4] sm:$0xf]
    %v6331 = vld [vmem:[#allocation2 + $0xc8] sm:$0xf]
    %v6332 = vld [vmem:[#allocation2 + $0xcc] sm:$0xf]
    %v6333 = vld [vmem:[#allocation2 + $0xd0] sm:$0xf]
    %v6334 = vld [vmem:[#allocation2 + $0xd4] sm:$0xf]
    %v6335 = vld [vmem:[#allocation2 + $0xd8] sm:$0xf]
    %v6336 = vld [vmem:[#allocation2 + $0xdc] sm:$0xf]
    %v6337 = vld [vmem:[#allocation2 + $0xe0] sm:$0xf]
    %v6338 = vld [vmem:[#allocation2 + $0xe4] sm:$0xf]
    %v6339 = vld [vmem:[#allocation2 + $0xe8] sm:$0xf]
    %v6340 = vld [vmem:[#allocation2 + $0xec] sm:$0xf]
    %v6341 = vld [vmem:[#allocation2 + $0xf0] sm:$0xf]
    %v6342 = vld [vmem:[#allocation2 + $0xf4] sm:$0xf]
    %v6343 = vld [vmem:[#allocation2 + $0xf8] sm:$0xf]
    %v6344 = vld [vmem:[#allocation2 + $0xfc] sm:$0xf]
    %v6345 = vld [vmem:[#allocation2 + $0x100] sm:$0xf]
    %v6346 = vld [vmem:[#allocation2 + $0x104] sm:$0xf]
    %v6347 = vld [vmem:[#allocation2 + $0x108] sm:$0xf]
    %v6348 = vld [vmem:[#allocation2 + $0x10c] sm:$0xf]
    %v6349 = vld [vmem:[#allocation2 + $0x110] sm:$0xf]
    %v6350 = vld [vmem:[#allocation2 + $0x114] sm:$0xf]
    %v6351 = vld [vmem:[#allocation2 + $0x118] sm:$0xf]
    %v6352 = vld [vmem:[#allocation2 + $0x11c] sm:$0xf]
    %v6353 = vld [vmem:[#allocation2 + $0x120] sm:$0xf]
    %v6354 = vld [vmem:[#allocation2 + $0x124] sm:$0xf]
    %v6355 = vld [vmem:[#allocation2 + $0x128] sm:$0xf]
    %v6356 = vld [vmem:[#allocation2 + $0x12c] sm:$0xf]
    %v6357 = vld [vmem:[#allocation2 + $0x130] sm:$0xf]
    %v6358 = vld [vmem:[#allocation2 + $0x134] sm:$0xf]
    %v6359 = vld [vmem:[#allocation2 + $0x138] sm:$0xf]
    %v6360 = vld [vmem:[#allocation2 + $0x13c] sm:$0xf]
    %v6361 = vld [vmem:[#allocation2 + $0x140] sm:$0xf]
    %v6362 = vld [vmem:[#allocation2 + $0x144] sm:$0xf]
    %v6363 = vld [vmem:[#allocation2 + $0x148] sm:$0xf]
    %v6364 = vld [vmem:[#allocation2 + $0x14c] sm:$0xf]
    %v6365 = vld [vmem:[#allocation2 + $0x150] sm:$0xf]
    %v6366 = vld [vmem:[#allocation2 + $0x154] sm:$0xf]
    %v6367 = vld [vmem:[#allocation2 + $0x158] sm:$0xf]
    %v6368 = vld [vmem:[#allocation2 + $0x15c] sm:$0xf]
    %v6369 = vld [vmem:[#allocation2 + $0x160] sm:$0xf]
    %v6370 = vld [vmem:[#allocation2 + $0x164] sm:$0xf]
    %v6371 = vld [vmem:[#allocation2 + $0x168] sm:$0xf]
    %v6372 = vld [vmem:[#allocation2 + $0x16c] sm:$0xf]
    %v6373 = vld [vmem:[#allocation2 + $0x170] sm:$0xf]
    %v6374 = vld [vmem:[#allocation2 + $0x174] sm:$0xf]
    %v6375 = vld [vmem:[#allocation2 + $0x178] sm:$0xf]
    %v6376 = vld [vmem:[#allocation2 + $0x17c] sm:$0xf]
    %v6377 = vld [vmem:[#allocation2 + $0x180] sm:$0xf]
    %v6378 = vld [vmem:[#allocation2 + $0x184] sm:$0xf]
    %v6379 = vld [vmem:[%s2] sm:$0x1]
    %v6381 = vlaneseq
    %v6382 = vshrl.u32 %v6381, 7
    %v6383 = vsub.s32 0, %v6382
    %v6384 = vrot.slane %v6379, %v6383
    %v6484 = vunpack.c.l.b16 %v6281
    %v6485 = vunpack.c.l.b16 %v6282
    %v6486 = vunpack.c.l.b16 %v6283
    %v6487 = vunpack.c.l.b16 %v6284
    %v6488 = vunpack.c.l.b16 %v6285
    %v6489 = vunpack.c.l.b16 %v6286
    %v6490 = vunpack.c.l.b16 %v6287
    %v6491 = vunpack.c.l.b16 %v6288
    %v6492 = vunpack.c.l.b16 %v6289
    %v6493 = vunpack.c.l.b16 %v6290
    %v6494 = vunpack.c.l.b16 %v6291
    %v6495 = vunpack.c.l.b16 %v6292
    %v6496 = vunpack.c.l.b16 %v6293
    %v6497 = vunpack.c.l.b16 %v6294
    %v6498 = vunpack.c.l.b16 %v6295
    %v6499 = vunpack.c.l.b16 %v6296
    %v6500 = vunpack.c.l.b16 %v6297
    %v6501 = vunpack.c.l.b16 %v6298
    %v6502 = vunpack.c.l.b16 %v6299
    %v6503 = vunpack.c.l.b16 %v6300
    %v6504 = vunpack.c.l.b16 %v6301
    %v6505 = vunpack.c.l.b16 %v6302
    %v6506 = vunpack.c.l.b16 %v6303
    %v6507 = vunpack.c.l.b16 %v6304
    %v6508 = vunpack.c.l.b16 %v6305
    %v6509 = vunpack.c.l.b16 %v6306
    %v6510 = vunpack.c.l.b16 %v6307
    %v6511 = vunpack.c.l.b16 %v6308
    %v6512 = vunpack.c.l.b16 %v6309
    %v6513 = vunpack.c.l.b16 %v6310
    %v6514 = vunpack.c.l.b16 %v6311
    %v6515 = vunpack.c.l.b16 %v6312
    %v6516 = vunpack.c.l.b16 %v6313
    %v6517 = vunpack.c.l.b16 %v6314
    %v6518 = vunpack.c.l.b16 %v6315
    %v6519 = vunpack.c.l.b16 %v6316
    %v6520 = vunpack.c.l.b16 %v6317
    %v6521 = vunpack.c.l.b16 %v6318
    %v6522 = vunpack.c.l.b16 %v6319
    %v6523 = vunpack.c.l.b16 %v6320
    %v6524 = vunpack.c.l.b16 %v6321
    %v6525 = vunpack.c.l.b16 %v6322
    %v6526 = vunpack.c.l.b16 %v6323
    %v6527 = vunpack.c.l.b16 %v6324
    %v6528 = vunpack.c.l.b16 %v6325
    %v6529 = vunpack.c.l.b16 %v6326
    %v6530 = vunpack.c.l.b16 %v6327
    %v6531 = vunpack.c.l.b16 %v6328
    %v6532 = vunpack.c.l.b16 %v6329
    %v6533 = vunpack.c.l.b16 %v6330
    %v6534 = vunpack.c.l.b16 %v6331
    %v6535 = vunpack.c.l.b16 %v6332
    %v6536 = vunpack.c.l.b16 %v6333
    %v6537 = vunpack.c.l.b16 %v6334
    %v6538 = vunpack.c.l.b16 %v6335
    %v6539 = vunpack.c.l.b16 %v6336
    %v6540 = vunpack.c.l.b16 %v6337
    %v6541 = vunpack.c.l.b16 %v6338
    %v6542 = vunpack.c.l.b16 %v6339
    %v6543 = vunpack.c.l.b16 %v6340
    %v6544 = vunpack.c.l.b16 %v6341
    %v6545 = vunpack.c.l.b16 %v6342
    %v6546 = vunpack.c.l.b16 %v6343
    %v6547 = vunpack.c.l.b16 %v6344
    %v6548 = vunpack.c.l.b16 %v6345
    %v6549 = vunpack.c.l.b16 %v6346
    %v6550 = vunpack.c.l.b16 %v6347
    %v6551 = vunpack.c.l.b16 %v6348
    %v6552 = vunpack.c.l.b16 %v6349
    %v6553 = vunpack.c.l.b16 %v6350
    %v6554 = vunpack.c.l.b16 %v6351
    %v6555 = vunpack.c.l.b16 %v6352
    %v6556 = vunpack.c.l.b16 %v6353
    %v6557 = vunpack.c.l.b16 %v6354
    %v6558 = vunpack.c.l.b16 %v6355
    %v6559 = vunpack.c.l.b16 %v6356
    %v6560 = vunpack.c.l.b16 %v6357
    %v6561 = vunpack.c.l.b16 %v6358
    %v6562 = vunpack.c.l.b16 %v6359
    %v6563 = vunpack.c.l.b16 %v6360
    %v6564 = vunpack.c.l.b16 %v6361
    %v6565 = vunpack.c.l.b16 %v6362
    %v6566 = vunpack.c.l.b16 %v6363
    %v6567 = vunpack.c.l.b16 %v6364
    %v6568 = vunpack.c.l.b16 %v6365
    %v6569 = vunpack.c.l.b16 %v6366
    %v6570 = vunpack.c.l.b16 %v6367
    %v6571 = vunpack.c.l.b16 %v6368
    %v6572 = vunpack.c.l.b16 %v6369
    %v6573 = vunpack.c.l.b16 %v6370
    %v6574 = vunpack.c.l.b16 %v6371
    %v6575 = vunpack.c.l.b16 %v6372
    %v6576 = vunpack.c.l.b16 %v6373
    %v6577 = vunpack.c.l.b16 %v6374
    %v6578 = vunpack.c.l.b16 %v6375
    %v6579 = vunpack.c.l.b16 %v6376
    %v6580 = vunpack.c.l.b16 %v6377
    %v6581 = vunpack.c.l.b16 %v6378
    %v6582 = vpack.c.b16 %v6485, %v6484
    %v6583 = vpack.c.b16 %v6487, %v6486
    %v6584 = vpack.c.b16 %v6489, %v6488
    %v6585 = vpack.c.b16 %v6491, %v6490
    %v6586 = vpack.c.b16 %v6493, %v6492
    %v6587 = vpack.c.b16 %v6495, %v6494
    %v6588 = vpack.c.b16 %v6497, %v6496
    %v6589 = vpack.c.b16 %v6499, %v6498
    %v6590 = vpack.c.b16 %v6501, %v6500
    %v6591 = vpack.c.b16 %v6503, %v6502
    %v6592 = vpack.c.b16 %v6505, %v6504
    %v6593 = vpack.c.b16 %v6507, %v6506
    %v6594 = vpack.c.b16 %v6509, %v6508
    %v6595 = vpack.c.b16 %v6511, %v6510
    %v6596 = vpack.c.b16 %v6513, %v6512
    %v6597 = vpack.c.b16 %v6515, %v6514
    %v6598 = vpack.c.b16 %v6517, %v6516
    %v6599 = vpack.c.b16 %v6519, %v6518
    %v6600 = vpack.c.b16 %v6521, %v6520
    %v6601 = vpack.c.b16 %v6523, %v6522
    %v6602 = vpack.c.b16 %v6525, %v6524
    %v6603 = vpack.c.b16 %v6527, %v6526
    %v6604 = vpack.c.b16 %v6529, %v6528
    %v6605 = vpack.c.b16 %v6531, %v6530
    %v6606 = vpack.c.b16 %v6533, %v6532
    %v6607 = vpack.c.b16 %v6535, %v6534
    %v6608 = vpack.c.b16 %v6537, %v6536
    %v6609 = vpack.c.b16 %v6539, %v6538
    %v6610 = vpack.c.b16 %v6541, %v6540
    %v6611 = vpack.c.b16 %v6543, %v6542
    %v6612 = vpack.c.b16 %v6545, %v6544
    %v6613 = vpack.c.b16 %v6547, %v6546
    %v6614 = vpack.c.b16 %v6549, %v6548
    %v6615 = vpack.c.b16 %v6551, %v6550
    %v6616 = vpack.c.b16 %v6553, %v6552
    %v6617 = vpack.c.b16 %v6555, %v6554
    %v6618 = vpack.c.b16 %v6557, %v6556
    %v6619 = vpack.c.b16 %v6559, %v6558
    %v6620 = vpack.c.b16 %v6561, %v6560
    %v6621 = vpack.c.b16 %v6563, %v6562
    %v6622 = vpack.c.b16 %v6565, %v6564
    %v6623 = vpack.c.b16 %v6567, %v6566
    %v6624 = vpack.c.b16 %v6569, %v6568
    %v6625 = vpack.c.b16 %v6571, %v6570
    %v6626 = vpack.c.b16 %v6573, %v6572
    %v6627 = vpack.c.b16 %v6575, %v6574
    %v6628 = vpack.c.b16 %v6577, %v6576
    %v6629 = vpack.c.b16 %v6579, %v6578
    %v6630 = vpack.c.b16 %v6581, %v6580
    %vm6680 = vcmask 130048
    %v6682 = vsel %vm6680, %v6063, 0
    %v6685 = vsel %vm6680, %v6070, 0
    %v6688 = vsel %vm6680, %v6077, 0
    %v6691 = vsel %vm6680, %v6084, 0
    %v6694 = vsel %vm6680, %v6091, 0
    %v6697 = vsel %vm6680, %v6098, 0
    %v6700 = vsel %vm6680, %v6105, 0
    %v6703 = vsel %vm6680, %v6112, 0
    %v6706 = vsel %vm6680, %v6119, 0
    %v6709 = vsel %vm6680, %v6126, 0
    %v6712 = vsel %vm6680, %v6133, 0
    %v6715 = vsel %vm6680, %v6140, 0
    %v6718 = vsel %vm6680, %v6147, 0
    %v6721 = vsel %vm6680, %v6154, 0
    %v6724 = vsel %vm6680, %v6161, 0
    %v6727 = vsel %vm6680, %v6168, 0
    %v6730 = vsel %vm6680, %v6175, 0
    %v6733 = vsel %vm6680, %v6182, 0
    %v6736 = vsel %vm6680, %v6189, 0
    %v6739 = vsel %vm6680, %v6196, 0
    %v6742 = vsel %vm6680, %v6203, 0
    %v6745 = vsel %vm6680, %v6210, 0
    %v6748 = vsel %vm6680, %v6217, 0
    %v6751 = vsel %vm6680, %v6224, 0
    %v6754 = vsel %vm6680, %v6231, 0
    %v6757 = vsel %vm6680, %v6238, 0
    %v6760 = vsel %vm6680, %v6245, 0
    %v6763 = vsel %vm6680, %v6252, 0
    %v6766 = vsel %vm6680, %v6259, 0
    %v6769 = vsel %vm6680, %v6266, 0
    %v6772 = vsel %vm6680, %v6273, 0
    %v6775 = vsel %vm6680, %v6280, 0
    %6777 = vmatprep.subr.bf16.mxu0 0
    %6778 = vmatpush1.bf16.msra.mxu0 %v6589
    %6779 = vmatprep.subr.bf16.mxu0 0
    %6780 = vmatpush1.bf16.msra.mxu0 %v6588
    %6781 = vmatprep.subr.bf16.mxu0 0
    %6782 = vmatpush1.bf16.msra.mxu0 %v6587
    %6783 = vmatprep.subr.bf16.mxu0 0
    %6784 = vmatpush1.bf16.msra.mxu0 %v6586
    %6785 = vmatprep.subr.bf16.mxu0 0
    %6786 = vmatpush1.bf16.msra.mxu0 %v6585
    %6787 = vmatprep.subr.bf16.mxu0 0
    %6788 = vmatpush1.bf16.msra.mxu0 %v6584
    %6789 = vmatprep.subr.bf16.mxu0 0
    %6790 = vmatpush1.bf16.msra.mxu0 %v6583
    %6791 = vmatprep.subr.bf16.mxu0 0
    %6792 = vmatpush1.bf16.msra.mxu0 %v6582
    %6793 = vmatprep.subr.bf16.mxu0 0
    %6794 = vmatpush2.bf16.msra.mxu0 %v6597
    %6795 = vmatprep.subr.bf16.mxu0 0
    %6796 = vmatpush2.bf16.msra.mxu0 %v6596
    %6797 = vmatprep.subr.bf16.mxu0 0
    %6798 = vmatpush2.bf16.msra.mxu0 %v6595
    %6799 = vmatprep.subr.bf16.mxu0 0
    %6800 = vmatpush2.bf16.msra.mxu0 %v6594
    %6801 = vmatprep.subr.bf16.mxu0 0
    %6802 = vmatpush2.bf16.msra.mxu0 %v6593
    %6803 = vmatprep.subr.bf16.mxu0 0
    %6804 = vmatpush2.bf16.msra.mxu0 %v6592
    %6805 = vmatprep.subr.bf16.mxu0 0
    %6806 = vmatpush2.bf16.msra.mxu0 %v6591
    %6807 = vmatprep.subr.bf16.mxu0 0
    %6808 = vmatpush2.bf16.msra.mxu0 %v6590
    %6809 = vmatprep.mubr.bf16.mxu0 %v6058
    %6810 = vmatmul.mubr.bf16.gmra.mxu0 %v6057
    %v6811 = vpop.f32.mrf.mxu0
    %v6812 = vadd.f32 %v6384, %v6811
    %v6813 = vpop.f32.mrf.mxu0
    %v6814 = vpop.f32.mrf.mxu0
    %v6815 = vadd.f32 %v6384, %v6814
    %v6816 = vpop.f32.mrf.mxu0
    %6817 = vmatprep.mubr.bf16.mxu0 %v6065
    %6818 = vmatmul.mubr.bf16.gmra.mxu0 %v6064
    %v6819 = vpop.f32.mrf.mxu0
    %v6820 = vadd.f32 %v6384, %v6819
    %v6821 = vpop.f32.mrf.mxu0
    %v6822 = vpop.f32.mrf.mxu0
    %v6823 = vadd.f32 %v6384, %v6822
    %v6824 = vpop.f32.mrf.mxu0
    %6825 = vmatprep.mubr.bf16.mxu0 %v6072
    %6826 = vmatmul.mubr.bf16.gmra.mxu0 %v6071
    %v6827 = vpop.f32.mrf.mxu0
    %v6828 = vadd.f32 %v6384, %v6827
    %v6829 = vpop.f32.mrf.mxu0
    %v6830 = vpop.f32.mrf.mxu0
    %v6831 = vadd.f32 %v6384, %v6830
    %v6832 = vpop.f32.mrf.mxu0
    %6833 = vmatprep.mubr.bf16.mxu0 %v6079
    %6834 = vmatmul.mubr.bf16.gmra.mxu0 %v6078
    %v6835 = vpop.f32.mrf.mxu0
    %v6836 = vadd.f32 %v6384, %v6835
    %v6837 = vpop.f32.mrf.mxu0
    %v6838 = vpop.f32.mrf.mxu0
    %v6839 = vadd.f32 %v6384, %v6838
    %v6840 = vpop.f32.mrf.mxu0
    %6841 = vmatprep.mubr.bf16.mxu0 %v6086
    %6842 = vmatmul.mubr.bf16.gmra.mxu0 %v6085
    %v6843 = vpop.f32.mrf.mxu0
    %v6844 = vadd.f32 %v6384, %v6843
    %v6845 = vpop.f32.mrf.mxu0
    %v6846 = vpop.f32.mrf.mxu0
    %v6847 = vadd.f32 %v6384, %v6846
    %v6848 = vpop.f32.mrf.mxu0
    %6849 = vmatprep.mubr.bf16.mxu0 %v6093
    %6850 = vmatmul.mubr.bf16.gmra.mxu0 %v6092
    %v6851 = vpop.f32.mrf.mxu0
    %v6852 = vadd.f32 %v6384, %v6851
    %v6853 = vpop.f32.mrf.mxu0
    %v6854 = vpop.f32.mrf.mxu0
    %v6855 = vadd.f32 %v6384, %v6854
    %v6856 = vpop.f32.mrf.mxu0
    %6857 = vmatprep.mubr.bf16.mxu0 %v6100
    %6858 = vmatmul.mubr.bf16.gmra.mxu0 %v6099
    %v6859 = vpop.f32.mrf.mxu0
    %v6860 = vadd.f32 %v6384, %v6859
    %v6861 = vpop.f32.mrf.mxu0
    %v6862 = vpop.f32.mrf.mxu0
    %v6863 = vadd.f32 %v6384, %v6862
    %v6864 = vpop.f32.mrf.mxu0
    %6865 = vmatprep.mubr.bf16.mxu0 %v6107
    %6866 = vmatmul.mubr.bf16.gmra.mxu0 %v6106
    %v6867 = vpop.f32.mrf.mxu0
    %v6868 = vadd.f32 %v6384, %v6867
    %v6869 = vpop.f32.mrf.mxu0
    %v6870 = vpop.f32.mrf.mxu0
    %v6871 = vadd.f32 %v6384, %v6870
    %v6872 = vpop.f32.mrf.mxu0
    %6873 = vmatprep.mubr.bf16.mxu0 %v6114
    %6874 = vmatmul.mubr.bf16.gmra.mxu0 %v6113
    %v6875 = vpop.f32.mrf.mxu0
    %v6876 = vadd.f32 %v6384, %v6875
    %v6877 = vpop.f32.mrf.mxu0
    %v6878 = vpop.f32.mrf.mxu0
    %v6879 = vadd.f32 %v6384, %v6878
    %v6880 = vpop.f32.mrf.mxu0
    %6881 = vmatprep.mubr.bf16.mxu0 %v6121
    %6882 = vmatmul.mubr.bf16.gmra.mxu0 %v6120
    %v6883 = vpop.f32.mrf.mxu0
    %v6884 = vadd.f32 %v6384, %v6883
    %v6885 = vpop.f32.mrf.mxu0
    %v6886 = vpop.f32.mrf.mxu0
    %v6887 = vadd.f32 %v6384, %v6886
    %v6888 = vpop.f32.mrf.mxu0
    %6889 = vmatprep.mubr.bf16.mxu0 %v6128
    %6890 = vmatmul.mubr.bf16.gmra.mxu0 %v6127
    %v6891 = vpop.f32.mrf.mxu0
    %v6892 = vadd.f32 %v6384, %v6891
    %v6893 = vpop.f32.mrf.mxu0
    %v6894 = vpop.f32.mrf.mxu0
    %v6895 = vadd.f32 %v6384, %v6894
    %v6896 = vpop.f32.mrf.mxu0
    %6897 = vmatprep.mubr.bf16.mxu0 %v6135
    %6898 = vmatmul.mubr.bf16.gmra.mxu0 %v6134
    %v6899 = vpop.f32.mrf.mxu0
    %v6900 = vadd.f32 %v6384, %v6899
    %v6901 = vpop.f32.mrf.mxu0
    %v6902 = vpop.f32.mrf.mxu0
    %v6903 = vadd.f32 %v6384, %v6902
    %v6904 = vpop.f32.mrf.mxu0
    %6905 = vmatprep.mubr.bf16.mxu0 %v6142
    %6906 = vmatmul.mubr.bf16.gmra.mxu0 %v6141
    %v6907 = vpop.f32.mrf.mxu0
    %v6908 = vadd.f32 %v6384, %v6907
    %v6909 = vpop.f32.mrf.mxu0
    %v6910 = vpop.f32.mrf.mxu0
    %v6911 = vadd.f32 %v6384, %v6910
    %v6912 = vpop.f32.mrf.mxu0
    %6913 = vmatprep.mubr.bf16.mxu0 %v6149
    %6914 = vmatmul.mubr.bf16.gmra.mxu0 %v6148
    %v6915 = vpop.f32.mrf.mxu0
    %v6916 = vadd.f32 %v6384, %v6915
    %v6917 = vpop.f32.mrf.mxu0
    %v6918 = vpop.f32.mrf.mxu0
    %v6919 = vadd.f32 %v6384, %v6918
    %v6920 = vpop.f32.mrf.mxu0
    %6921 = vmatprep.mubr.bf16.mxu0 %v6156
    %6922 = vmatmul.mubr.bf16.gmra.mxu0 %v6155
    %v6923 = vpop.f32.mrf.mxu0
    %v6924 = vadd.f32 %v6384, %v6923
    %v6925 = vpop.f32.mrf.mxu0
    %v6926 = vpop.f32.mrf.mxu0
    %v6927 = vadd.f32 %v6384, %v6926
    %v6928 = vpop.f32.mrf.mxu0
    %6929 = vmatprep.mubr.bf16.mxu0 %v6163
    %6930 = vmatmul.mubr.bf16.gmra.mxu0 %v6162
    %v6931 = vpop.f32.mrf.mxu0
    %v6932 = vadd.f32 %v6384, %v6931
    %v6933 = vpop.f32.mrf.mxu0
    %v6934 = vpop.f32.mrf.mxu0
    %v6935 = vadd.f32 %v6384, %v6934
    %v6936 = vpop.f32.mrf.mxu0
    %6937 = vmatprep.mubr.bf16.mxu0 %v6170
    %6938 = vmatmul.mubr.bf16.gmra.mxu0 %v6169
    %v6939 = vpop.f32.mrf.mxu0
    %v6940 = vadd.f32 %v6384, %v6939
    %v6941 = vpop.f32.mrf.mxu0
    %v6942 = vpop.f32.mrf.mxu0
    %v6943 = vadd.f32 %v6384, %v6942
    %v6944 = vpop.f32.mrf.mxu0
    %6945 = vmatprep.mubr.bf16.mxu0 %v6177
    %6946 = vmatmul.mubr.bf16.gmra.mxu0 %v6176
    %v6947 = vpop.f32.mrf.mxu0
    %v6948 = vadd.f32 %v6384, %v6947
    %v6949 = vpop.f32.mrf.mxu0
    %v6950 = vpop.f32.mrf.mxu0
    %v6951 = vadd.f32 %v6384, %v6950
    %v6952 = vpop.f32.mrf.mxu0
    %6953 = vmatprep.mubr.bf16.mxu0 %v6184
    %6954 = vmatmul.mubr.bf16.gmra.mxu0 %v6183
    %v6955 = vpop.f32.mrf.mxu0
    %v6956 = vadd.f32 %v6384, %v6955
    %v6957 = vpop.f32.mrf.mxu0
    %v6958 = vpop.f32.mrf.mxu0
    %v6959 = vadd.f32 %v6384, %v6958
    %v6960 = vpop.f32.mrf.mxu0
    %6961 = vmatprep.mubr.bf16.mxu0 %v6191
    %6962 = vmatmul.mubr.bf16.gmra.mxu0 %v6190
    %v6963 = vpop.f32.mrf.mxu0
    %v6964 = vadd.f32 %v6384, %v6963
    %v6965 = vpop.f32.mrf.mxu0
    %v6966 = vpop.f32.mrf.mxu0
    %v6967 = vadd.f32 %v6384, %v6966
    %v6968 = vpop.f32.mrf.mxu0
    %6969 = vmatprep.mubr.bf16.mxu0 %v6198
    %6970 = vmatmul.mubr.bf16.gmra.mxu0 %v6197
    %v6971 = vpop.f32.mrf.mxu0
    %v6972 = vadd.f32 %v6384, %v6971
    %v6973 = vpop.f32.mrf.mxu0
    %v6974 = vpop.f32.mrf.mxu0
    %v6975 = vadd.f32 %v6384, %v6974
    %v6976 = vpop.f32.mrf.mxu0
    %6977 = vmatprep.mubr.bf16.mxu0 %v6205
    %6978 = vmatmul.mubr.bf16.gmra.mxu0 %v6204
    %v6979 = vpop.f32.mrf.mxu0
    %v6980 = vadd.f32 %v6384, %v6979
    %v6981 = vpop.f32.mrf.mxu0
    %v6982 = vpop.f32.mrf.mxu0
    %v6983 = vadd.f32 %v6384, %v6982
    %v6984 = vpop.f32.mrf.mxu0
    %6985 = vmatprep.mubr.bf16.mxu0 %v6212
    %6986 = vmatmul.mubr.bf16.gmra.mxu0 %v6211
    %v6987 = vpop.f32.mrf.mxu0
    %v6988 = vadd.f32 %v6384, %v6987
    %v6989 = vpop.f32.mrf.mxu0
    %v6990 = vpop.f32.mrf.mxu0
    %v6991 = vadd.f32 %v6384, %v6990
    %v6992 = vpop.f32.mrf.mxu0
    %6993 = vmatprep.mubr.bf16.mxu0 %v6219
    %6994 = vmatmul.mubr.bf16.gmra.mxu0 %v6218
    %v6995 = vpop.f32.mrf.mxu0
    %v6996 = vadd.f32 %v6384, %v6995
    %v6997 = vpop.f32.mrf.mxu0
    %v6998 = vpop.f32.mrf.mxu0
    %v6999 = vadd.f32 %v6384, %v6998
    %v7000 = vpop.f32.mrf.mxu0
    %7001 = vmatprep.mubr.bf16.mxu0 %v6226
    %7002 = vmatmul.mubr.bf16.gmra.mxu0 %v6225
    %v7003 = vpop.f32.mrf.mxu0
    %v7004 = vadd.f32 %v6384, %v7003
    %v7005 = vpop.f32.mrf.mxu0
    %v7006 = vpop.f32.mrf.mxu0
    %v7007 = vadd.f32 %v6384, %v7006
    %v7008 = vpop.f32.mrf.mxu0
    %7009 = vmatprep.mubr.bf16.mxu0 %v6233
    %7010 = vmatmul.mubr.bf16.gmra.mxu0 %v6232
    %v7011 = vpop.f32.mrf.mxu0
    %v7012 = vadd.f32 %v6384, %v7011
    %v7013 = vpop.f32.mrf.mxu0
    %v7014 = vpop.f32.mrf.mxu0
    %v7015 = vadd.f32 %v6384, %v7014
    %v7016 = vpop.f32.mrf.mxu0
    %7017 = vmatprep.mubr.bf16.mxu0 %v6240
    %7018 = vmatmul.mubr.bf16.gmra.mxu0 %v6239
    %v7019 = vpop.f32.mrf.mxu0
    %v7020 = vadd.f32 %v6384, %v7019
    %v7021 = vpop.f32.mrf.mxu0
    %v7022 = vpop.f32.mrf.mxu0
    %v7023 = vadd.f32 %v6384, %v7022
    %v7024 = vpop.f32.mrf.mxu0
    %7025 = vmatprep.mubr.bf16.mxu0 %v6247
    %7026 = vmatmul.mubr.bf16.gmra.mxu0 %v6246
    %v7027 = vpop.f32.mrf.mxu0
    %v7028 = vadd.f32 %v6384, %v7027
    %v7029 = vpop.f32.mrf.mxu0
    %v7030 = vpop.f32.mrf.mxu0
    %v7031 = vadd.f32 %v6384, %v7030
    %v7032 = vpop.f32.mrf.mxu0
    %7033 = vmatprep.mubr.bf16.mxu0 %v6254
    %7034 = vmatmul.mubr.bf16.gmra.mxu0 %v6253
    %v7035 = vpop.f32.mrf.mxu0
    %v7036 = vadd.f32 %v6384, %v7035
    %v7037 = vpop.f32.mrf.mxu0
    %v7038 = vpop.f32.mrf.mxu0
    %v7039 = vadd.f32 %v6384, %v7038
    %v7040 = vpop.f32.mrf.mxu0
    %7041 = vmatprep.mubr.bf16.mxu0 %v6261
    %7042 = vmatmul.mubr.bf16.gmra.mxu0 %v6260
    %v7043 = vpop.f32.mrf.mxu0
    %v7044 = vadd.f32 %v6384, %v7043
    %v7045 = vpop.f32.mrf.mxu0
    %v7046 = vpop.f32.mrf.mxu0
    %v7047 = vadd.f32 %v6384, %v7046
    %v7048 = vpop.f32.mrf.mxu0
    %7049 = vmatprep.mubr.bf16.mxu0 %v6268
    %7050 = vmatmul.mubr.bf16.gmra.mxu0 %v6267
    %v7051 = vpop.f32.mrf.mxu0
    %v7052 = vadd.f32 %v6384, %v7051
    %v7053 = vpop.f32.mrf.mxu0
    %v7054 = vpop.f32.mrf.mxu0
    %v7055 = vadd.f32 %v6384, %v7054
    %v7056 = vpop.f32.mrf.mxu0
    %7057 = vmatprep.mubr.bf16.mxu0 %v6275
    %7058 = vmatmul.mubr.bf16.gmra.mxu0 %v6274
    %v7059 = vpop.f32.mrf.mxu0
    %v7060 = vadd.f32 %v6384, %v7059
    %v7061 = vpop.f32.mrf.mxu0
    %v7062 = vpop.f32.mrf.mxu0
    %v7063 = vadd.f32 %v6384, %v7062
    %v7064 = vpop.f32.mrf.mxu0
    %7065 = vdwg.mxu0
    %7066 = vmatprep.subr.bf16.mxu0 0
    %7067 = vmatpush1.bf16.msra.mxu0 %v6605
    %7068 = vmatprep.subr.bf16.mxu0 0
    %7069 = vmatpush1.bf16.msra.mxu0 %v6604
    %7070 = vmatprep.subr.bf16.mxu0 0
    %7071 = vmatpush1.bf16.msra.mxu0 %v6603
    %7072 = vmatprep.subr.bf16.mxu0 0
    %7073 = vmatpush1.bf16.msra.mxu0 %v6602
    %7074 = vmatprep.subr.bf16.mxu0 0
    %7075 = vmatpush1.bf16.msra.mxu0 %v6601
    %7076 = vmatprep.subr.bf16.mxu0 0
    %7077 = vmatpush1.bf16.msra.mxu0 %v6600
    %7078 = vmatprep.subr.bf16.mxu0 0
    %7079 = vmatpush1.bf16.msra.mxu0 %v6599
    %7080 = vmatprep.subr.bf16.mxu0 0
    %7081 = vmatpush1.bf16.msra.mxu0 %v6598
    %7082 = vmatprep.subr.bf16.mxu0 0
    %7083 = vmatpush2.bf16.msra.mxu0 %v6613
    %7084 = vmatprep.subr.bf16.mxu0 0
    %7085 = vmatpush2.bf16.msra.mxu0 %v6612
    %7086 = vmatprep.subr.bf16.mxu0 0
    %7087 = vmatpush2.bf16.msra.mxu0 %v6611
    %7088 = vmatprep.subr.bf16.mxu0 0
    %7089 = vmatpush2.bf16.msra.mxu0 %v6610
    %7090 = vmatprep.subr.bf16.mxu0 0
    %7091 = vmatpush2.bf16.msra.mxu0 %v6609
    %7092 = vmatprep.subr.bf16.mxu0 0
    %7093 = vmatpush2.bf16.msra.mxu0 %v6608
    %7094 = vmatprep.subr.bf16.mxu0 0
    %7095 = vmatpush2.bf16.msra.mxu0 %v6607
    %7096 = vmatprep.subr.bf16.mxu0 0
    %7097 = vmatpush2.bf16.msra.mxu0 %v6606
    %7098 = vmatprep.mubr.bf16.mxu0 %v6060
    %7099 = vmatmul.mubr.bf16.gmra.mxu0 %v6059
    %v7100 = vpop.f32.mrf.mxu0
    %v7101 = vadd.f32 %v6812, %v7100
    %v7102 = vpop.f32.mrf.mxu0
    %v7103 = vpop.f32.mrf.mxu0
    %v7104 = vadd.f32 %v6815, %v7103
    %v7105 = vpop.f32.mrf.mxu0
    %7106 = vmatprep.mubr.bf16.mxu0 %v6067
    %7107 = vmatmul.mubr.bf16.gmra.mxu0 %v6066
    %v7108 = vpop.f32.mrf.mxu0
    %v7109 = vadd.f32 %v6820, %v7108
    %v7110 = vpop.f32.mrf.mxu0
    %v7111 = vpop.f32.mrf.mxu0
    %v7112 = vadd.f32 %v6823, %v7111
    %v7113 = vpop.f32.mrf.mxu0
    %7114 = vmatprep.mubr.bf16.mxu0 %v6074
    %7115 = vmatmul.mubr.bf16.gmra.mxu0 %v6073
    %v7116 = vpop.f32.mrf.mxu0
    %v7117 = vadd.f32 %v6828, %v7116
    %v7118 = vpop.f32.mrf.mxu0
    %v7119 = vpop.f32.mrf.mxu0
    %v7120 = vadd.f32 %v6831, %v7119
    %v7121 = vpop.f32.mrf.mxu0
    %7122 = vmatprep.mubr.bf16.mxu0 %v6081
    %7123 = vmatmul.mubr.bf16.gmra.mxu0 %v6080
    %v7124 = vpop.f32.mrf.mxu0
    %v7125 = vadd.f32 %v6836, %v7124
    %v7126 = vpop.f32.mrf.mxu0
    %v7127 = vpop.f32.mrf.mxu0
    %v7128 = vadd.f32 %v6839, %v7127
    %v7129 = vpop.f32.mrf.mxu0
    %7130 = vmatprep.mubr.bf16.mxu0 %v6088
    %7131 = vmatmul.mubr.bf16.gmra.mxu0 %v6087
    %v7132 = vpop.f32.mrf.mxu0
    %v7133 = vadd.f32 %v6844, %v7132
    %v7134 = vpop.f32.mrf.mxu0
    %v7135 = vpop.f32.mrf.mxu0
    %v7136 = vadd.f32 %v6847, %v7135
    %v7137 = vpop.f32.mrf.mxu0
    %7138 = vmatprep.mubr.bf16.mxu0 %v6095
    %7139 = vmatmul.mubr.bf16.gmra.mxu0 %v6094
    %v7140 = vpop.f32.mrf.mxu0
    %v7141 = vadd.f32 %v6852, %v7140
    %v7142 = vpop.f32.mrf.mxu0
    %v7143 = vpop.f32.mrf.mxu0
    %v7144 = vadd.f32 %v6855, %v7143
    %v7145 = vpop.f32.mrf.mxu0
    %7146 = vmatprep.mubr.bf16.mxu0 %v6102
    %7147 = vmatmul.mubr.bf16.gmra.mxu0 %v6101
    %v7148 = vpop.f32.mrf.mxu0
    %v7149 = vadd.f32 %v6860, %v7148
    %v7150 = vpop.f32.mrf.mxu0
    %v7151 = vpop.f32.mrf.mxu0
    %v7152 = vadd.f32 %v6863, %v7151
    %v7153 = vpop.f32.mrf.mxu0
    %7154 = vmatprep.mubr.bf16.mxu0 %v6109
    %7155 = vmatmul.mubr.bf16.gmra.mxu0 %v6108
    %v7156 = vpop.f32.mrf.mxu0
    %v7157 = vadd.f32 %v6868, %v7156
    %v7158 = vpop.f32.mrf.mxu0
    %v7159 = vpop.f32.mrf.mxu0
    %v7160 = vadd.f32 %v6871, %v7159
    %v7161 = vpop.f32.mrf.mxu0
    %7162 = vmatprep.mubr.bf16.mxu0 %v6116
    %7163 = vmatmul.mubr.bf16.gmra.mxu0 %v6115
    %v7164 = vpop.f32.mrf.mxu0
    %v7165 = vadd.f32 %v6876, %v7164
    %v7166 = vpop.f32.mrf.mxu0
    %v7167 = vpop.f32.mrf.mxu0
    %v7168 = vadd.f32 %v6879, %v7167
    %v7169 = vpop.f32.mrf.mxu0
    %7170 = vmatprep.mubr.bf16.mxu0 %v6123
    %7171 = vmatmul.mubr.bf16.gmra.mxu0 %v6122
    %v7172 = vpop.f32.mrf.mxu0
    %v7173 = vadd.f32 %v6884, %v7172
    %v7174 = vpop.f32.mrf.mxu0
    %v7175 = vpop.f32.mrf.mxu0
    %v7176 = vadd.f32 %v6887, %v7175
    %v7177 = vpop.f32.mrf.mxu0
    %7178 = vmatprep.mubr.bf16.mxu0 %v6130
    %7179 = vmatmul.mubr.bf16.gmra.mxu0 %v6129
    %v7180 = vpop.f32.mrf.mxu0
    %v7181 = vadd.f32 %v6892, %v7180
    %v7182 = vpop.f32.mrf.mxu0
    %v7183 = vpop.f32.mrf.mxu0
    %v7184 = vadd.f32 %v6895, %v7183
    %v7185 = vpop.f32.mrf.mxu0
    %7186 = vmatprep.mubr.bf16.mxu0 %v6137
    %7187 = vmatmul.mubr.bf16.gmra.mxu0 %v6136
    %v7188 = vpop.f32.mrf.mxu0
    %v7189 = vadd.f32 %v6900, %v7188
    %v7190 = vpop.f32.mrf.mxu0
    %v7191 = vpop.f32.mrf.mxu0
    %v7192 = vadd.f32 %v6903, %v7191
    %v7193 = vpop.f32.mrf.mxu0
    %7194 = vmatprep.mubr.bf16.mxu0 %v6144
    %7195 = vmatmul.mubr.bf16.gmra.mxu0 %v6143
    %v7196 = vpop.f32.mrf.mxu0
    %v7197 = vadd.f32 %v6908, %v7196
    %v7198 = vpop.f32.mrf.mxu0
    %v7199 = vpop.f32.mrf.mxu0
    %v7200 = vadd.f32 %v6911, %v7199
    %v7201 = vpop.f32.mrf.mxu0
    %7202 = vmatprep.mubr.bf16.mxu0 %v6151
    %7203 = vmatmul.mubr.bf16.gmra.mxu0 %v6150
    %v7204 = vpop.f32.mrf.mxu0
    %v7205 = vadd.f32 %v6916, %v7204
    %v7206 = vpop.f32.mrf.mxu0
    %v7207 = vpop.f32.mrf.mxu0
    %v7208 = vadd.f32 %v6919, %v7207
    %v7209 = vpop.f32.mrf.mxu0
    %7210 = vmatprep.mubr.bf16.mxu0 %v6158
    %7211 = vmatmul.mubr.bf16.gmra.mxu0 %v6157
    %v7212 = vpop.f32.mrf.mxu0
    %v7213 = vadd.f32 %v6924, %v7212
    %v7214 = vpop.f32.mrf.mxu0
    %v7215 = vpop.f32.mrf.mxu0
    %v7216 = vadd.f32 %v6927, %v7215
    %v7217 = vpop.f32.mrf.mxu0
    %7218 = vmatprep.mubr.bf16.mxu0 %v6165
    %7219 = vmatmul.mubr.bf16.gmra.mxu0 %v6164
    %v7220 = vpop.f32.mrf.mxu0
    %v7221 = vadd.f32 %v6932, %v7220
    %v7222 = vpop.f32.mrf.mxu0
    %v7223 = vpop.f32.mrf.mxu0
    %v7224 = vadd.f32 %v6935, %v7223
    %v7225 = vpop.f32.mrf.mxu0
    %7226 = vmatprep.mubr.bf16.mxu0 %v6172
    %7227 = vmatmul.mubr.bf16.gmra.mxu0 %v6171
    %v7228 = vpop.f32.mrf.mxu0
    %v7229 = vadd.f32 %v6940, %v7228
    %v7230 = vpop.f32.mrf.mxu0
    %v7231 = vpop.f32.mrf.mxu0
    %v7232 = vadd.f32 %v6943, %v7231
    %v7233 = vpop.f32.mrf.mxu0
    %7234 = vmatprep.mubr.bf16.mxu0 %v6179
    %7235 = vmatmul.mubr.bf16.gmra.mxu0 %v6178
    %v7236 = vpop.f32.mrf.mxu0
    %v7237 = vadd.f32 %v6948, %v7236
    %v7238 = vpop.f32.mrf.mxu0
    %v7239 = vpop.f32.mrf.mxu0
    %v7240 = vadd.f32 %v6951, %v7239
    %v7241 = vpop.f32.mrf.mxu0
    %7242 = vmatprep.mubr.bf16.mxu0 %v6186
    %7243 = vmatmul.mubr.bf16.gmra.mxu0 %v6185
    %v7244 = vpop.f32.mrf.mxu0
    %v7245 = vadd.f32 %v6956, %v7244
    %v7246 = vpop.f32.mrf.mxu0
    %v7247 = vpop.f32.mrf.mxu0
    %v7248 = vadd.f32 %v6959, %v7247
    %v7249 = vpop.f32.mrf.mxu0
    %7250 = vmatprep.mubr.bf16.mxu0 %v6193
    %7251 = vmatmul.mubr.bf16.gmra.mxu0 %v6192
    %v7252 = vpop.f32.mrf.mxu0
    %v7253 = vadd.f32 %v6964, %v7252
    %v7254 = vpop.f32.mrf.mxu0
    %v7255 = vpop.f32.mrf.mxu0
    %v7256 = vadd.f32 %v6967, %v7255
    %v7257 = vpop.f32.mrf.mxu0
    %7258 = vmatprep.mubr.bf16.mxu0 %v6200
    %7259 = vmatmul.mubr.bf16.gmra.mxu0 %v6199
    %v7260 = vpop.f32.mrf.mxu0
    %v7261 = vadd.f32 %v6972, %v7260
    %v7262 = vpop.f32.mrf.mxu0
    %v7263 = vpop.f32.mrf.mxu0
    %v7264 = vadd.f32 %v6975, %v7263
    %v7265 = vpop.f32.mrf.mxu0
    %7266 = vmatprep.mubr.bf16.mxu0 %v6207
    %7267 = vmatmul.mubr.bf16.gmra.mxu0 %v6206
    %v7268 = vpop.f32.mrf.mxu0
    %v7269 = vadd.f32 %v6980, %v7268
    %v7270 = vpop.f32.mrf.mxu0
    %v7271 = vpop.f32.mrf.mxu0
    %v7272 = vadd.f32 %v6983, %v7271
    %v7273 = vpop.f32.mrf.mxu0
    %7274 = vmatprep.mubr.bf16.mxu0 %v6214
    %7275 = vmatmul.mubr.bf16.gmra.mxu0 %v6213
    %v7276 = vpop.f32.mrf.mxu0
    %v7277 = vadd.f32 %v6988, %v7276
    %v7278 = vpop.f32.mrf.mxu0
    %v7279 = vpop.f32.mrf.mxu0
    %v7280 = vadd.f32 %v6991, %v7279
    %v7281 = vpop.f32.mrf.mxu0
    %7282 = vmatprep.mubr.bf16.mxu0 %v6221
    %7283 = vmatmul.mubr.bf16.gmra.mxu0 %v6220
    %v7284 = vpop.f32.mrf.mxu0
    %v7285 = vadd.f32 %v6996, %v7284
    %v7286 = vpop.f32.mrf.mxu0
    %v7287 = vpop.f32.mrf.mxu0
    %v7288 = vadd.f32 %v6999, %v7287
    %v7289 = vpop.f32.mrf.mxu0
    %7290 = vmatprep.mubr.bf16.mxu0 %v6228
    %7291 = vmatmul.mubr.bf16.gmra.mxu0 %v6227
    %v7292 = vpop.f32.mrf.mxu0
    %v7293 = vadd.f32 %v7004, %v7292
    %v7294 = vpop.f32.mrf.mxu0
    %v7295 = vpop.f32.mrf.mxu0
    %v7296 = vadd.f32 %v7007, %v7295
    %v7297 = vpop.f32.mrf.mxu0
    %7298 = vmatprep.mubr.bf16.mxu0 %v6235
    %7299 = vmatmul.mubr.bf16.gmra.mxu0 %v6234
    %v7300 = vpop.f32.mrf.mxu0
    %v7301 = vadd.f32 %v7012, %v7300
    %v7302 = vpop.f32.mrf.mxu0
    %v7303 = vpop.f32.mrf.mxu0
    %v7304 = vadd.f32 %v7015, %v7303
    %v7305 = vpop.f32.mrf.mxu0
    %7306 = vmatprep.mubr.bf16.mxu0 %v6242
    %7307 = vmatmul.mubr.bf16.gmra.mxu0 %v6241
    %v7308 = vpop.f32.mrf.mxu0
    %v7309 = vadd.f32 %v7020, %v7308
    %v7310 = vpop.f32.mrf.mxu0
    %v7311 = vpop.f32.mrf.mxu0
    %v7312 = vadd.f32 %v7023, %v7311
    %v7313 = vpop.f32.mrf.mxu0
    %7314 = vmatprep.mubr.bf16.mxu0 %v6249
    %7315 = vmatmul.mubr.bf16.gmra.mxu0 %v6248
    %v7316 = vpop.f32.mrf.mxu0
    %v7317 = vadd.f32 %v7028, %v7316
    %v7318 = vpop.f32.mrf.mxu0
    %v7319 = vpop.f32.mrf.mxu0
    %v7320 = vadd.f32 %v7031, %v7319
    %v7321 = vpop.f32.mrf.mxu0
    %7322 = vmatprep.mubr.bf16.mxu0 %v6256
    %7323 = vmatmul.mubr.bf16.gmra.mxu0 %v6255
    %v7324 = vpop.f32.mrf.mxu0
    %v7325 = vadd.f32 %v7036, %v7324
    %v7326 = vpop.f32.mrf.mxu0
    %v7327 = vpop.f32.mrf.mxu0
    %v7328 = vadd.f32 %v7039, %v7327
    %v7329 = vpop.f32.mrf.mxu0
    %7330 = vmatprep.mubr.bf16.mxu0 %v6263
    %7331 = vmatmul.mubr.bf16.gmra.mxu0 %v6262
    %v7332 = vpop.f32.mrf.mxu0
    %v7333 = vadd.f32 %v7044, %v7332
    %v7334 = vpop.f32.mrf.mxu0
    %v7335 = vpop.f32.mrf.mxu0
    %v7336 = vadd.f32 %v7047, %v7335
    %v7337 = vpop.f32.mrf.mxu0
    %7338 = vmatprep.mubr.bf16.mxu0 %v6270
    %7339 = vmatmul.mubr.bf16.gmra.mxu0 %v6269
    %v7340 = vpop.f32.mrf.mxu0
    %v7341 = vadd.f32 %v7052, %v7340
    %v7342 = vpop.f32.mrf.mxu0
    %v7343 = vpop.f32.mrf.mxu0
    %v7344 = vadd.f32 %v7055, %v7343
    %v7345 = vpop.f32.mrf.mxu0
    %7346 = vmatprep.mubr.bf16.mxu0 %v6277
    %7347 = vmatmul.mubr.bf16.gmra.mxu0 %v6276
    %v7348 = vpop.f32.mrf.mxu0
    %v7349 = vadd.f32 %v7060, %v7348
    %v7350 = vpop.f32.mrf.mxu0
    %v7351 = vpop.f32.mrf.mxu0
    %v7352 = vadd.f32 %v7063, %v7351
    %v7353 = vpop.f32.mrf.mxu0
    %7354 = vdwg.mxu0
    %7355 = vmatprep.subr.bf16.mxu0 0
    %7356 = vmatpush1.bf16.msra.mxu0 %v6621
    %7357 = vmatprep.subr.bf16.mxu0 0
    %7358 = vmatpush1.bf16.msra.mxu0 %v6620
    %7359 = vmatprep.subr.bf16.mxu0 0
    %7360 = vmatpush1.bf16.msra.mxu0 %v6619
    %7361 = vmatprep.subr.bf16.mxu0 0
    %7362 = vmatpush1.bf16.msra.mxu0 %v6618
    %7363 = vmatprep.subr.bf16.mxu0 0
    %7364 = vmatpush1.bf16.msra.mxu0 %v6617
    %7365 = vmatprep.subr.bf16.mxu0 0
    %7366 = vmatpush1.bf16.msra.mxu0 %v6616
    %7367 = vmatprep.subr.bf16.mxu0 0
    %7368 = vmatpush1.bf16.msra.mxu0 %v6615
    %7369 = vmatprep.subr.bf16.mxu0 0
    %7370 = vmatpush1.bf16.msra.mxu0 %v6614
    %7371 = vmatprep.subr.bf16.mxu0 0
    %7372 = vmatpush2.bf16.msra.mxu0 %v6629
    %7373 = vmatprep.subr.bf16.mxu0 0
    %7374 = vmatpush2.bf16.msra.mxu0 %v6628
    %7375 = vmatprep.subr.bf16.mxu0 0
    %7376 = vmatpush2.bf16.msra.mxu0 %v6627
    %7377 = vmatprep.subr.bf16.mxu0 0
    %7378 = vmatpush2.bf16.msra.mxu0 %v6626
    %7379 = vmatprep.subr.bf16.mxu0 0
    %7380 = vmatpush2.bf16.msra.mxu0 %v6625
    %7381 = vmatprep.subr.bf16.mxu0 0
    %7382 = vmatpush2.bf16.msra.mxu0 %v6624
    %7383 = vmatprep.subr.bf16.mxu0 0
    %7384 = vmatpush2.bf16.msra.mxu0 %v6623
    %7385 = vmatprep.subr.bf16.mxu0 0
    %7386 = vmatpush2.bf16.msra.mxu0 %v6622
    %7387 = vmatprep.mubr.bf16.mxu0 %v6062
    %7388 = vmatmul.mubr.bf16.gmra.mxu0 %v6061
    %v7389 = vpop.f32.mrf.mxu0
    %v7390 = vadd.f32 %v7101, %v7389
    %v7391 = vpop.f32.mrf.mxu0
    %v7392 = vpop.f32.mrf.mxu0
    %v7393 = vadd.f32 %v7104, %v7392
    %v7394 = vpop.f32.mrf.mxu0
    %7395 = vmatprep.mubr.bf16.mxu0 %v6069
    %7396 = vmatmul.mubr.bf16.gmra.mxu0 %v6068
    %v7397 = vpop.f32.mrf.mxu0
    %v7398 = vadd.f32 %v7109, %v7397
    %v7399 = vpop.f32.mrf.mxu0
    %v7400 = vpop.f32.mrf.mxu0
    %v7401 = vadd.f32 %v7112, %v7400
    %v7402 = vpop.f32.mrf.mxu0
    %7403 = vmatprep.mubr.bf16.mxu0 %v6076
    %7404 = vmatmul.mubr.bf16.gmra.mxu0 %v6075
    %v7405 = vpop.f32.mrf.mxu0
    %v7406 = vadd.f32 %v7117, %v7405
    %v7407 = vpop.f32.mrf.mxu0
    %v7408 = vpop.f32.mrf.mxu0
    %v7409 = vadd.f32 %v7120, %v7408
    %v7410 = vpop.f32.mrf.mxu0
    %7411 = vmatprep.mubr.bf16.mxu0 %v6083
    %7412 = vmatmul.mubr.bf16.gmra.mxu0 %v6082
    %v7413 = vpop.f32.mrf.mxu0
    %v7414 = vadd.f32 %v7125, %v7413
    %v7415 = vpop.f32.mrf.mxu0
    %v7416 = vpop.f32.mrf.mxu0
    %v7417 = vadd.f32 %v7128, %v7416
    %v7418 = vpop.f32.mrf.mxu0
    %7419 = vmatprep.mubr.bf16.mxu0 %v6090
    %7420 = vmatmul.mubr.bf16.gmra.mxu0 %v6089
    %v7421 = vpop.f32.mrf.mxu0
    %v7422 = vadd.f32 %v7133, %v7421
    %v7423 = vpop.f32.mrf.mxu0
    %v7424 = vpop.f32.mrf.mxu0
    %v7425 = vadd.f32 %v7136, %v7424
    %v7426 = vpop.f32.mrf.mxu0
    %7427 = vmatprep.mubr.bf16.mxu0 %v6097
    %7428 = vmatmul.mubr.bf16.gmra.mxu0 %v6096
    %v7429 = vpop.f32.mrf.mxu0
    %v7430 = vadd.f32 %v7141, %v7429
    %v7431 = vpop.f32.mrf.mxu0
    %v7432 = vpop.f32.mrf.mxu0
    %v7433 = vadd.f32 %v7144, %v7432
    %v7434 = vpop.f32.mrf.mxu0
    %7435 = vmatprep.mubr.bf16.mxu0 %v6104
    %7436 = vmatmul.mubr.bf16.gmra.mxu0 %v6103
    %v7437 = vpop.f32.mrf.mxu0
    %v7438 = vadd.f32 %v7149, %v7437
    %v7439 = vpop.f32.mrf.mxu0
    %v7440 = vpop.f32.mrf.mxu0
    %v7441 = vadd.f32 %v7152, %v7440
    %v7442 = vpop.f32.mrf.mxu0
    %7443 = vmatprep.mubr.bf16.mxu0 %v6111
    %7444 = vmatmul.mubr.bf16.gmra.mxu0 %v6110
    %v7445 = vpop.f32.mrf.mxu0
    %v7446 = vadd.f32 %v7157, %v7445
    %v7447 = vpop.f32.mrf.mxu0
    %v7448 = vpop.f32.mrf.mxu0
    %v7449 = vadd.f32 %v7160, %v7448
    %v7450 = vpop.f32.mrf.mxu0
    %7451 = vmatprep.mubr.bf16.mxu0 %v6118
    %7452 = vmatmul.mubr.bf16.gmra.mxu0 %v6117
    %v7453 = vpop.f32.mrf.mxu0
    %v7454 = vadd.f32 %v7165, %v7453
    %v7455 = vpop.f32.mrf.mxu0
    %v7456 = vpop.f32.mrf.mxu0
    %v7457 = vadd.f32 %v7168, %v7456
    %v7458 = vpop.f32.mrf.mxu0
    %7459 = vmatprep.mubr.bf16.mxu0 %v6125
    %7460 = vmatmul.mubr.bf16.gmra.mxu0 %v6124
    %v7461 = vpop.f32.mrf.mxu0
    %v7462 = vadd.f32 %v7173, %v7461
    %v7463 = vpop.f32.mrf.mxu0
    %v7464 = vpop.f32.mrf.mxu0
    %v7465 = vadd.f32 %v7176, %v7464
    %v7466 = vpop.f32.mrf.mxu0
    %7467 = vmatprep.mubr.bf16.mxu0 %v6132
    %7468 = vmatmul.mubr.bf16.gmra.mxu0 %v6131
    %v7469 = vpop.f32.mrf.mxu0
    %v7470 = vadd.f32 %v7181, %v7469
    %v7471 = vpop.f32.mrf.mxu0
    %v7472 = vpop.f32.mrf.mxu0
    %v7473 = vadd.f32 %v7184, %v7472
    %v7474 = vpop.f32.mrf.mxu0
    %7475 = vmatprep.mubr.bf16.mxu0 %v6139
    %7476 = vmatmul.mubr.bf16.gmra.mxu0 %v6138
    %v7477 = vpop.f32.mrf.mxu0
    %v7478 = vadd.f32 %v7189, %v7477
    %v7479 = vpop.f32.mrf.mxu0
    %v7480 = vpop.f32.mrf.mxu0
    %v7481 = vadd.f32 %v7192, %v7480
    %v7482 = vpop.f32.mrf.mxu0
    %7483 = vmatprep.mubr.bf16.mxu0 %v6146
    %7484 = vmatmul.mubr.bf16.gmra.mxu0 %v6145
    %v7485 = vpop.f32.mrf.mxu0
    %v7486 = vadd.f32 %v7197, %v7485
    %v7487 = vpop.f32.mrf.mxu0
    %v7488 = vpop.f32.mrf.mxu0
    %v7489 = vadd.f32 %v7200, %v7488
    %v7490 = vpop.f32.mrf.mxu0
    %7491 = vmatprep.mubr.bf16.mxu0 %v6153
    %7492 = vmatmul.mubr.bf16.gmra.mxu0 %v6152
    %v7493 = vpop.f32.mrf.mxu0
    %v7494 = vadd.f32 %v7205, %v7493
    %v7495 = vpop.f32.mrf.mxu0
    %v7496 = vpop.f32.mrf.mxu0
    %v7497 = vadd.f32 %v7208, %v7496
    %v7498 = vpop.f32.mrf.mxu0
    %7499 = vmatprep.mubr.bf16.mxu0 %v6160
    %7500 = vmatmul.mubr.bf16.gmra.mxu0 %v6159
    %v7501 = vpop.f32.mrf.mxu0
    %v7502 = vadd.f32 %v7213, %v7501
    %v7503 = vpop.f32.mrf.mxu0
    %v7504 = vpop.f32.mrf.mxu0
    %v7505 = vadd.f32 %v7216, %v7504
    %v7506 = vpop.f32.mrf.mxu0
    %7507 = vmatprep.mubr.bf16.mxu0 %v6167
    %7508 = vmatmul.mubr.bf16.gmra.mxu0 %v6166
    %v7509 = vpop.f32.mrf.mxu0
    %v7510 = vadd.f32 %v7221, %v7509
    %v7511 = vpop.f32.mrf.mxu0
    %v7512 = vpop.f32.mrf.mxu0
    %v7513 = vadd.f32 %v7224, %v7512
    %v7514 = vpop.f32.mrf.mxu0
    %7515 = vmatprep.mubr.bf16.mxu0 %v6174
    %7516 = vmatmul.mubr.bf16.gmra.mxu0 %v6173
    %v7517 = vpop.f32.mrf.mxu0
    %v7518 = vadd.f32 %v7229, %v7517
    %v7519 = vpop.f32.mrf.mxu0
    %v7520 = vpop.f32.mrf.mxu0
    %v7521 = vadd.f32 %v7232, %v7520
    %v7522 = vpop.f32.mrf.mxu0
    %7523 = vmatprep.mubr.bf16.mxu0 %v6181
    %7524 = vmatmul.mubr.bf16.gmra.mxu0 %v6180
    %v7525 = vpop.f32.mrf.mxu0
    %v7526 = vadd.f32 %v7237, %v7525
    %v7527 = vpop.f32.mrf.mxu0
    %v7528 = vpop.f32.mrf.mxu0
    %v7529 = vadd.f32 %v7240, %v7528
    %v7530 = vpop.f32.mrf.mxu0
    %7531 = vmatprep.mubr.bf16.mxu0 %v6188
    %7532 = vmatmul.mubr.bf16.gmra.mxu0 %v6187
    %v7533 = vpop.f32.mrf.mxu0
    %v7534 = vadd.f32 %v7245, %v7533
    %v7535 = vpop.f32.mrf.mxu0
    %v7536 = vpop.f32.mrf.mxu0
    %v7537 = vadd.f32 %v7248, %v7536
    %v7538 = vpop.f32.mrf.mxu0
    %7539 = vmatprep.mubr.bf16.mxu0 %v6195
    %7540 = vmatmul.mubr.bf16.gmra.mxu0 %v6194
    %v7541 = vpop.f32.mrf.mxu0
    %v7542 = vadd.f32 %v7253, %v7541
    %v7543 = vpop.f32.mrf.mxu0
    %v7544 = vpop.f32.mrf.mxu0
    %v7545 = vadd.f32 %v7256, %v7544
    %v7546 = vpop.f32.mrf.mxu0
    %7547 = vmatprep.mubr.bf16.mxu0 %v6202
    %7548 = vmatmul.mubr.bf16.gmra.mxu0 %v6201
    %v7549 = vpop.f32.mrf.mxu0
    %v7550 = vadd.f32 %v7261, %v7549
    %v7551 = vpop.f32.mrf.mxu0
    %v7552 = vpop.f32.mrf.mxu0
    %v7553 = vadd.f32 %v7264, %v7552
    %v7554 = vpop.f32.mrf.mxu0
    %7555 = vmatprep.mubr.bf16.mxu0 %v6209
    %7556 = vmatmul.mubr.bf16.gmra.mxu0 %v6208
    %v7557 = vpop.f32.mrf.mxu0
    %v7558 = vadd.f32 %v7269, %v7557
    %v7559 = vpop.f32.mrf.mxu0
    %v7560 = vpop.f32.mrf.mxu0
    %v7561 = vadd.f32 %v7272, %v7560
    %v7562 = vpop.f32.mrf.mxu0
    %7563 = vmatprep.mubr.bf16.mxu0 %v6216
    %7564 = vmatmul.mubr.bf16.gmra.mxu0 %v6215
    %v7565 = vpop.f32.mrf.mxu0
    %v7566 = vadd.f32 %v7277, %v7565
    %v7567 = vpop.f32.mrf.mxu0
    %v7568 = vpop.f32.mrf.mxu0
    %v7569 = vadd.f32 %v7280, %v7568
    %v7570 = vpop.f32.mrf.mxu0
    %7571 = vmatprep.mubr.bf16.mxu0 %v6223
    %7572 = vmatmul.mubr.bf16.gmra.mxu0 %v6222
    %v7573 = vpop.f32.mrf.mxu0
    %v7574 = vadd.f32 %v7285, %v7573
    %v7575 = vpop.f32.mrf.mxu0
    %v7576 = vpop.f32.mrf.mxu0
    %v7577 = vadd.f32 %v7288, %v7576
    %v7578 = vpop.f32.mrf.mxu0
    %7579 = vmatprep.mubr.bf16.mxu0 %v6230
    %7580 = vmatmul.mubr.bf16.gmra.mxu0 %v6229
    %v7581 = vpop.f32.mrf.mxu0
    %v7582 = vadd.f32 %v7293, %v7581
    %v7583 = vpop.f32.mrf.mxu0
    %v7584 = vpop.f32.mrf.mxu0
    %v7585 = vadd.f32 %v7296, %v7584
    %v7586 = vpop.f32.mrf.mxu0
    %7587 = vmatprep.mubr.bf16.mxu0 %v6237
    %7588 = vmatmul.mubr.bf16.gmra.mxu0 %v6236
    %v7589 = vpop.f32.mrf.mxu0
    %v7590 = vadd.f32 %v7301, %v7589
    %v7591 = vpop.f32.mrf.mxu0
    %v7592 = vpop.f32.mrf.mxu0
    %v7593 = vadd.f32 %v7304, %v7592
    %v7594 = vpop.f32.mrf.mxu0
    %7595 = vmatprep.mubr.bf16.mxu0 %v6244
    %7596 = vmatmul.mubr.bf16.gmra.mxu0 %v6243
    %v7597 = vpop.f32.mrf.mxu0
    %v7598 = vadd.f32 %v7309, %v7597
    %v7599 = vpop.f32.mrf.mxu0
    %v7600 = vpop.f32.mrf.mxu0
    %v7601 = vadd.f32 %v7312, %v7600
    %v7602 = vpop.f32.mrf.mxu0
    %7603 = vmatprep.mubr.bf16.mxu0 %v6251
    %7604 = vmatmul.mubr.bf16.gmra.mxu0 %v6250
    %v7605 = vpop.f32.mrf.mxu0
    %v7606 = vadd.f32 %v7317, %v7605
    %v7607 = vpop.f32.mrf.mxu0
    %v7608 = vpop.f32.mrf.mxu0
    %v7609 = vadd.f32 %v7320, %v7608
    %v7610 = vpop.f32.mrf.mxu0
    %7611 = vmatprep.mubr.bf16.mxu0 %v6258
    %7612 = vmatmul.mubr.bf16.gmra.mxu0 %v6257
    %v7613 = vpop.f32.mrf.mxu0
    %v7614 = vadd.f32 %v7325, %v7613
    %v7615 = vpop.f32.mrf.mxu0
    %v7616 = vpop.f32.mrf.mxu0
    %v7617 = vadd.f32 %v7328, %v7616
    %v7618 = vpop.f32.mrf.mxu0
    %7619 = vmatprep.mubr.bf16.mxu0 %v6265
    %7620 = vmatmul.mubr.bf16.gmra.mxu0 %v6264
    %v7621 = vpop.f32.mrf.mxu0
    %v7622 = vadd.f32 %v7333, %v7621
    %v7623 = vpop.f32.mrf.mxu0
    %v7624 = vpop.f32.mrf.mxu0
    %v7625 = vadd.f32 %v7336, %v7624
    %v7626 = vpop.f32.mrf.mxu0
    %7627 = vmatprep.mubr.bf16.mxu0 %v6272
    %7628 = vmatmul.mubr.bf16.gmra.mxu0 %v6271
    %v7629 = vpop.f32.mrf.mxu0
    %v7630 = vadd.f32 %v7341, %v7629
    %v7631 = vpop.f32.mrf.mxu0
    %v7632 = vpop.f32.mrf.mxu0
    %v7633 = vadd.f32 %v7344, %v7632
    %v7634 = vpop.f32.mrf.mxu0
    %7635 = vmatprep.mubr.bf16.mxu0 %v6279
    %7636 = vmatmul.mubr.bf16.gmra.mxu0 %v6278
    %v7637 = vpop.f32.mrf.mxu0
    %v7638 = vadd.f32 %v7349, %v7637
    %v7639 = vpop.f32.mrf.mxu0
    %v7640 = vpop.f32.mrf.mxu0
    %v7641 = vadd.f32 %v7352, %v7640
    %v7642 = vpop.f32.mrf.mxu0
    %7643 = vdwg.mxu0
    %7644 = vmatprep.subr.bf16.mxu0 0
    %7645 = vmatpush1.bf16.msra.mxu0 0
    %7646 = vmatprep.subr.bf16.mxu0 0
    %7647 = vmatpush1.bf16.msra.mxu0 0
    %7648 = vmatprep.subr.bf16.mxu0 0
    %7649 = vmatpush1.bf16.msra.mxu0 0
    %7650 = vmatprep.subr.bf16.mxu0 0
    %7651 = vmatpush1.bf16.msra.mxu0 0
    %7652 = vmatprep.subr.bf16.mxu0 0
    %7653 = vmatpush1.bf16.msra.mxu0 0
    %7654 = vmatprep.subr.bf16.mxu0 0
    %7655 = vmatpush1.bf16.msra.mxu0 0
    %7656 = vmatprep.subr.bf16.mxu0 0
    %7657 = vmatpush1.bf16.msra.mxu0 0
    %7658 = vmatprep.subr.bf16.mxu0 0
    %7659 = vmatpush1.bf16.msra.mxu0 %v6630
    %7660 = vmatprep.subr.bf16.mxu0 0
    %7661 = vmatpush2.bf16.msra.mxu0 0
    %7662 = vmatprep.subr.bf16.mxu0 0
    %7663 = vmatpush2.bf16.msra.mxu0 0
    %7664 = vmatprep.subr.bf16.mxu0 0
    %7665 = vmatpush2.bf16.msra.mxu0 0
    %7666 = vmatprep.subr.bf16.mxu0 0
    %7667 = vmatpush2.bf16.msra.mxu0 0
    %7668 = vmatprep.subr.bf16.mxu0 0
    %7669 = vmatpush2.bf16.msra.mxu0 0
    %7670 = vmatprep.subr.bf16.mxu0 0
    %7671 = vmatpush2.bf16.msra.mxu0 0
    %7672 = vmatprep.subr.bf16.mxu0 0
    %7673 = vmatpush2.bf16.msra.mxu0 0
    %7674 = vmatprep.subr.bf16.mxu0 0
    %7675 = vmatpush2.bf16.msra.mxu0 0
    %7676 = vmatprep.mubr.bf16.mxu0 0
    %7677 = vmatmul.mubr.bf16.gmra.mxu0 %v6682
    %v7678 = vpop.f32.mrf.mxu0
    %v7679 = vadd.f32 %v7390, %v7678
    %v7680 = vpop.f32.mrf.mxu0
    %v7681 = vpop.f32.mrf.mxu0
    %v7682 = vadd.f32 %v7393, %v7681
    %v7683 = vpop.f32.mrf.mxu0
    %7684 = vmatprep.mubr.bf16.mxu0 0
    %7685 = vmatmul.mubr.bf16.gmra.mxu0 %v6685
    %v7686 = vpop.f32.mrf.mxu0
    %v7687 = vadd.f32 %v7398, %v7686
    %v7688 = vpop.f32.mrf.mxu0
    %v7689 = vpop.f32.mrf.mxu0
    %v7690 = vadd.f32 %v7401, %v7689
    %v7691 = vpop.f32.mrf.mxu0
    %7692 = vmatprep.mubr.bf16.mxu0 0
    %7693 = vmatmul.mubr.bf16.gmra.mxu0 %v6688
    %v7694 = vpop.f32.mrf.mxu0
    %v7695 = vadd.f32 %v7406, %v7694
    %v7696 = vpop.f32.mrf.mxu0
    %v7697 = vpop.f32.mrf.mxu0
    %v7698 = vadd.f32 %v7409, %v7697
    %v7699 = vpop.f32.mrf.mxu0
    %7700 = vmatprep.mubr.bf16.mxu0 0
    %7701 = vmatmul.mubr.bf16.gmra.mxu0 %v6691
    %v7702 = vpop.f32.mrf.mxu0
    %v7703 = vadd.f32 %v7414, %v7702
    %v7704 = vpop.f32.mrf.mxu0
    %v7705 = vpop.f32.mrf.mxu0
    %v7706 = vadd.f32 %v7417, %v7705
    %v7707 = vpop.f32.mrf.mxu0
    %7708 = vmatprep.mubr.bf16.mxu0 0
    %7709 = vmatmul.mubr.bf16.gmra.mxu0 %v6694
    %v7710 = vpop.f32.mrf.mxu0
    %v7711 = vadd.f32 %v7422, %v7710
    %v7712 = vpop.f32.mrf.mxu0
    %v7713 = vpop.f32.mrf.mxu0
    %v7714 = vadd.f32 %v7425, %v7713
    %v7715 = vpop.f32.mrf.mxu0
    %7716 = vmatprep.mubr.bf16.mxu0 0
    %7717 = vmatmul.mubr.bf16.gmra.mxu0 %v6697
    %v7718 = vpop.f32.mrf.mxu0
    %v7719 = vadd.f32 %v7430, %v7718
    %v7720 = vpop.f32.mrf.mxu0
    %v7721 = vpop.f32.mrf.mxu0
    %v7722 = vadd.f32 %v7433, %v7721
    %v7723 = vpop.f32.mrf.mxu0
    %7724 = vmatprep.mubr.bf16.mxu0 0
    %7725 = vmatmul.mubr.bf16.gmra.mxu0 %v6700
    %v7726 = vpop.f32.mrf.mxu0
    %v7727 = vadd.f32 %v7438, %v7726
    %v7728 = vpop.f32.mrf.mxu0
    %v7729 = vpop.f32.mrf.mxu0
    %v7730 = vadd.f32 %v7441, %v7729
    %v7731 = vpop.f32.mrf.mxu0
    %7732 = vmatprep.mubr.bf16.mxu0 0
    %7733 = vmatmul.mubr.bf16.gmra.mxu0 %v6703
    %v7734 = vpop.f32.mrf.mxu0
    %v7735 = vadd.f32 %v7446, %v7734
    %v7736 = vpop.f32.mrf.mxu0
    %v7737 = vpop.f32.mrf.mxu0
    %v7738 = vadd.f32 %v7449, %v7737
    %v7739 = vpop.f32.mrf.mxu0
    %7740 = vmatprep.mubr.bf16.mxu0 0
    %7741 = vmatmul.mubr.bf16.gmra.mxu0 %v6706
    %v7742 = vpop.f32.mrf.mxu0
    %v7743 = vadd.f32 %v7454, %v7742
    %v7744 = vpop.f32.mrf.mxu0
    %v7745 = vpop.f32.mrf.mxu0
    %v7746 = vadd.f32 %v7457, %v7745
    %v7747 = vpop.f32.mrf.mxu0
    %7748 = vmatprep.mubr.bf16.mxu0 0
    %7749 = vmatmul.mubr.bf16.gmra.mxu0 %v6709
    %v7750 = vpop.f32.mrf.mxu0
    %v7751 = vadd.f32 %v7462, %v7750
    %v7752 = vpop.f32.mrf.mxu0
    %v7753 = vpop.f32.mrf.mxu0
    %v7754 = vadd.f32 %v7465, %v7753
    %v7755 = vpop.f32.mrf.mxu0
    %7756 = vmatprep.mubr.bf16.mxu0 0
    %7757 = vmatmul.mubr.bf16.gmra.mxu0 %v6712
    %v7758 = vpop.f32.mrf.mxu0
    %v7759 = vadd.f32 %v7470, %v7758
    %v7760 = vpop.f32.mrf.mxu0
    %v7761 = vpop.f32.mrf.mxu0
    %v7762 = vadd.f32 %v7473, %v7761
    %v7763 = vpop.f32.mrf.mxu0
    %7764 = vmatprep.mubr.bf16.mxu0 0
    %7765 = vmatmul.mubr.bf16.gmra.mxu0 %v6715
    %v7766 = vpop.f32.mrf.mxu0
    %v7767 = vadd.f32 %v7478, %v7766
    %v7768 = vpop.f32.mrf.mxu0
    %v7769 = vpop.f32.mrf.mxu0
    %v7770 = vadd.f32 %v7481, %v7769
    %v7771 = vpop.f32.mrf.mxu0
    %7772 = vmatprep.mubr.bf16.mxu0 0
    %7773 = vmatmul.mubr.bf16.gmra.mxu0 %v6718
    %v7774 = vpop.f32.mrf.mxu0
    %v7775 = vadd.f32 %v7486, %v7774
    %v7776 = vpop.f32.mrf.mxu0
    %v7777 = vpop.f32.mrf.mxu0
    %v7778 = vadd.f32 %v7489, %v7777
    %v7779 = vpop.f32.mrf.mxu0
    %7780 = vmatprep.mubr.bf16.mxu0 0
    %7781 = vmatmul.mubr.bf16.gmra.mxu0 %v6721
    %v7782 = vpop.f32.mrf.mxu0
    %v7783 = vadd.f32 %v7494, %v7782
    %v7784 = vpop.f32.mrf.mxu0
    %v7785 = vpop.f32.mrf.mxu0
    %v7786 = vadd.f32 %v7497, %v7785
    %v7787 = vpop.f32.mrf.mxu0
    %7788 = vmatprep.mubr.bf16.mxu0 0
    %7789 = vmatmul.mubr.bf16.gmra.mxu0 %v6724
    %v7790 = vpop.f32.mrf.mxu0
    %v7791 = vadd.f32 %v7502, %v7790
    %v7792 = vpop.f32.mrf.mxu0
    %v7793 = vpop.f32.mrf.mxu0
    %v7794 = vadd.f32 %v7505, %v7793
    %v7795 = vpop.f32.mrf.mxu0
    %7796 = vmatprep.mubr.bf16.mxu0 0
    %7797 = vmatmul.mubr.bf16.gmra.mxu0 %v6727
    %v7798 = vpop.f32.mrf.mxu0
    %v7799 = vadd.f32 %v7510, %v7798
    %v7800 = vpop.f32.mrf.mxu0
    %v7801 = vpop.f32.mrf.mxu0
    %v7802 = vadd.f32 %v7513, %v7801
    %v7803 = vpop.f32.mrf.mxu0
    %7804 = vmatprep.mubr.bf16.mxu0 0
    %7805 = vmatmul.mubr.bf16.gmra.mxu0 %v6730
    %v7806 = vpop.f32.mrf.mxu0
    %v7807 = vadd.f32 %v7518, %v7806
    %v7808 = vpop.f32.mrf.mxu0
    %v7809 = vpop.f32.mrf.mxu0
    %v7810 = vadd.f32 %v7521, %v7809
    %v7811 = vpop.f32.mrf.mxu0
    %7812 = vmatprep.mubr.bf16.mxu0 0
    %7813 = vmatmul.mubr.bf16.gmra.mxu0 %v6733
    %v7814 = vpop.f32.mrf.mxu0
    %v7815 = vadd.f32 %v7526, %v7814
    %v7816 = vpop.f32.mrf.mxu0
    %v7817 = vpop.f32.mrf.mxu0
    %v7818 = vadd.f32 %v7529, %v7817
    %v7819 = vpop.f32.mrf.mxu0
    %7820 = vmatprep.mubr.bf16.mxu0 0
    %7821 = vmatmul.mubr.bf16.gmra.mxu0 %v6736
    %v7822 = vpop.f32.mrf.mxu0
    %v7823 = vadd.f32 %v7534, %v7822
    %v7824 = vpop.f32.mrf.mxu0
    %v7825 = vpop.f32.mrf.mxu0
    %v7826 = vadd.f32 %v7537, %v7825
    %v7827 = vpop.f32.mrf.mxu0
    %7828 = vmatprep.mubr.bf16.mxu0 0
    %7829 = vmatmul.mubr.bf16.gmra.mxu0 %v6739
    %v7830 = vpop.f32.mrf.mxu0
    %v7831 = vadd.f32 %v7542, %v7830
    %v7832 = vpop.f32.mrf.mxu0
    %v7833 = vpop.f32.mrf.mxu0
    %v7834 = vadd.f32 %v7545, %v7833
    %v7835 = vpop.f32.mrf.mxu0
    %7836 = vmatprep.mubr.bf16.mxu0 0
    %7837 = vmatmul.mubr.bf16.gmra.mxu0 %v6742
    %v7838 = vpop.f32.mrf.mxu0
    %v7839 = vadd.f32 %v7550, %v7838
    %v7840 = vpop.f32.mrf.mxu0
    %v7841 = vpop.f32.mrf.mxu0
    %v7842 = vadd.f32 %v7553, %v7841
    %v7843 = vpop.f32.mrf.mxu0
    %7844 = vmatprep.mubr.bf16.mxu0 0
    %7845 = vmatmul.mubr.bf16.gmra.mxu0 %v6745
    %v7846 = vpop.f32.mrf.mxu0
    %v7847 = vadd.f32 %v7558, %v7846
    %v7848 = vpop.f32.mrf.mxu0
    %v7849 = vpop.f32.mrf.mxu0
    %v7850 = vadd.f32 %v7561, %v7849
    %v7851 = vpop.f32.mrf.mxu0
    %7852 = vmatprep.mubr.bf16.mxu0 0
    %7853 = vmatmul.mubr.bf16.gmra.mxu0 %v6748
    %v7854 = vpop.f32.mrf.mxu0
    %v7855 = vadd.f32 %v7566, %v7854
    %v7856 = vpop.f32.mrf.mxu0
    %v7857 = vpop.f32.mrf.mxu0
    %v7858 = vadd.f32 %v7569, %v7857
    %v7859 = vpop.f32.mrf.mxu0
    %7860 = vmatprep.mubr.bf16.mxu0 0
    %7861 = vmatmul.mubr.bf16.gmra.mxu0 %v6751
    %v7862 = vpop.f32.mrf.mxu0
    %v7863 = vadd.f32 %v7574, %v7862
    %v7864 = vpop.f32.mrf.mxu0
    %v7865 = vpop.f32.mrf.mxu0
    %v7866 = vadd.f32 %v7577, %v7865
    %v7867 = vpop.f32.mrf.mxu0
    %7868 = vmatprep.mubr.bf16.mxu0 0
    %7869 = vmatmul.mubr.bf16.gmra.mxu0 %v6754
    %v7870 = vpop.f32.mrf.mxu0
    %v7871 = vadd.f32 %v7582, %v7870
    %v7872 = vpop.f32.mrf.mxu0
    %v7873 = vpop.f32.mrf.mxu0
    %v7874 = vadd.f32 %v7585, %v7873
    %v7875 = vpop.f32.mrf.mxu0
    %7876 = vmatprep.mubr.bf16.mxu0 0
    %7877 = vmatmul.mubr.bf16.gmra.mxu0 %v6757
    %v7878 = vpop.f32.mrf.mxu0
    %v7879 = vadd.f32 %v7590, %v7878
    %v7880 = vpop.f32.mrf.mxu0
    %v7881 = vpop.f32.mrf.mxu0
    %v7882 = vadd.f32 %v7593, %v7881
    %v7883 = vpop.f32.mrf.mxu0
    %7884 = vmatprep.mubr.bf16.mxu0 0
    %7885 = vmatmul.mubr.bf16.gmra.mxu0 %v6760
    %v7886 = vpop.f32.mrf.mxu0
    %v7887 = vadd.f32 %v7598, %v7886
    %v7888 = vpop.f32.mrf.mxu0
    %v7889 = vpop.f32.mrf.mxu0
    %v7890 = vadd.f32 %v7601, %v7889
    %v7891 = vpop.f32.mrf.mxu0
    %7892 = vmatprep.mubr.bf16.mxu0 0
    %7893 = vmatmul.mubr.bf16.gmra.mxu0 %v6763
    %v7894 = vpop.f32.mrf.mxu0
    %v7895 = vadd.f32 %v7606, %v7894
    %v7896 = vpop.f32.mrf.mxu0
    %v7897 = vpop.f32.mrf.mxu0
    %v7898 = vadd.f32 %v7609, %v7897
    %v7899 = vpop.f32.mrf.mxu0
    %7900 = vmatprep.mubr.bf16.mxu0 0
    %7901 = vmatmul.mubr.bf16.gmra.mxu0 %v6766
    %v7902 = vpop.f32.mrf.mxu0
    %v7903 = vadd.f32 %v7614, %v7902
    %v7904 = vpop.f32.mrf.mxu0
    %v7905 = vpop.f32.mrf.mxu0
    %v7906 = vadd.f32 %v7617, %v7905
    %v7907 = vpop.f32.mrf.mxu0
    %7908 = vmatprep.mubr.bf16.mxu0 0
    %7909 = vmatmul.mubr.bf16.gmra.mxu0 %v6769
    %v7910 = vpop.f32.mrf.mxu0
    %v7911 = vadd.f32 %v7622, %v7910
    %v7912 = vpop.f32.mrf.mxu0
    %v7913 = vpop.f32.mrf.mxu0
    %v7914 = vadd.f32 %v7625, %v7913
    %v7915 = vpop.f32.mrf.mxu0
    %7916 = vmatprep.mubr.bf16.mxu0 0
    %7917 = vmatmul.mubr.bf16.gmra.mxu0 %v6772
    %v7918 = vpop.f32.mrf.mxu0
    %v7919 = vadd.f32 %v7630, %v7918
    %v7920 = vpop.f32.mrf.mxu0
    %v7921 = vpop.f32.mrf.mxu0
    %v7922 = vadd.f32 %v7633, %v7921
    %v7923 = vpop.f32.mrf.mxu0
    %7924 = vmatprep.mubr.bf16.mxu0 0
    %7925 = vmatmul.mubr.bf16.gmra.mxu0 %v6775
    %v7926 = vpop.f32.mrf.mxu0
    %v7927 = vadd.f32 %v7638, %v7926
    %v7928 = vpop.f32.mrf.mxu0
    %v7929 = vpop.f32.mrf.mxu0
    %v7930 = vadd.f32 %v7641, %v7929
    %v7931 = vpop.f32.mrf.mxu0
    %7932 = vdwg.mxu0
    %v7933 = vmax.f32 %v7679, 0.0
    %v7934 = vmax.f32 %v7682, 0.0
    %v7935 = vmax.f32 %v7687, 0.0
    %v7936 = vmax.f32 %v7690, 0.0
    %v7937 = vmax.f32 %v7695, 0.0
    %v7938 = vmax.f32 %v7698, 0.0
    %v7939 = vmax.f32 %v7703, 0.0
    %v7940 = vmax.f32 %v7706, 0.0
    %v7941 = vmax.f32 %v7711, 0.0
    %v7942 = vmax.f32 %v7714, 0.0
    %v7943 = vmax.f32 %v7719, 0.0
    %v7944 = vmax.f32 %v7722, 0.0
    %v7945 = vmax.f32 %v7727, 0.0
    %v7946 = vmax.f32 %v7730, 0.0
    %v7947 = vmax.f32 %v7735, 0.0
    %v7948 = vmax.f32 %v7738, 0.0
    %v7949 = vmax.f32 %v7743, 0.0
    %v7950 = vmax.f32 %v7746, 0.0
    %v7951 = vmax.f32 %v7751, 0.0
    %v7952 = vmax.f32 %v7754, 0.0
    %v7953 = vmax.f32 %v7759, 0.0
    %v7954 = vmax.f32 %v7762, 0.0
    %v7955 = vmax.f32 %v7767, 0.0
    %v7956 = vmax.f32 %v7770, 0.0
    %v7957 = vmax.f32 %v7775, 0.0
    %v7958 = vmax.f32 %v7778, 0.0
    %v7959 = vmax.f32 %v7783, 0.0
    %v7960 = vmax.f32 %v7786, 0.0
    %v7961 = vmax.f32 %v7791, 0.0
    %v7962 = vmax.f32 %v7794, 0.0
    %v7963 = vmax.f32 %v7799, 0.0
    %v7964 = vmax.f32 %v7802, 0.0
    %v7965 = vmax.f32 %v7807, 0.0
    %v7966 = vmax.f32 %v7810, 0.0
    %v7967 = vmax.f32 %v7815, 0.0
    %v7968 = vmax.f32 %v7818, 0.0
    %v7969 = vmax.f32 %v7823, 0.0
    %v7970 = vmax.f32 %v7826, 0.0
    %v7971 = vmax.f32 %v7831, 0.0
    %v7972 = vmax.f32 %v7834, 0.0
    %v7973 = vmax.f32 %v7839, 0.0
    %v7974 = vmax.f32 %v7842, 0.0
    %v7975 = vmax.f32 %v7847, 0.0
    %v7976 = vmax.f32 %v7850, 0.0
    %v7977 = vmax.f32 %v7855, 0.0
    %v7978 = vmax.f32 %v7858, 0.0
    %v7979 = vmax.f32 %v7863, 0.0
    %v7980 = vmax.f32 %v7866, 0.0
    %v7981 = vmax.f32 %v7871, 0.0
    %v7982 = vmax.f32 %v7874, 0.0
    %v7983 = vmax.f32 %v7879, 0.0
    %v7984 = vmax.f32 %v7882, 0.0
    %v7985 = vmax.f32 %v7887, 0.0
    %v7986 = vmax.f32 %v7890, 0.0
    %v7987 = vmax.f32 %v7895, 0.0
    %v7988 = vmax.f32 %v7898, 0.0
    %v7989 = vmax.f32 %v7903, 0.0
    %v7990 = vmax.f32 %v7906, 0.0
    %v7991 = vmax.f32 %v7911, 0.0
    %v7992 = vmax.f32 %v7914, 0.0
    %v7993 = vmax.f32 %v7919, 0.0
    %v7994 = vmax.f32 %v7922, 0.0
    %v7995 = vmax.f32 %v7927, 0.0
    %v7996 = vmax.f32 %v7930, 0.0
    %v7997 = vpack.c.bf16 %v7934, %v7933
    %v7998 = vpack.c.bf16 %v7936, %v7935
    %v7999 = vpack.c.bf16 %v7938, %v7937
    %v8000 = vpack.c.bf16 %v7940, %v7939
    %v8001 = vpack.c.bf16 %v7942, %v7941
    %v8002 = vpack.c.bf16 %v7944, %v7943
    %v8003 = vpack.c.bf16 %v7946, %v7945
    %v8004 = vpack.c.bf16 %v7948, %v7947
    %v8005 = vpack.c.bf16 %v7950, %v7949
    %v8006 = vpack.c.bf16 %v7952, %v7951
    %v8007 = vpack.c.bf16 %v7954, %v7953
    %v8008 = vpack.c.bf16 %v7956, %v7955
    %v8009 = vpack.c.bf16 %v7958, %v7957
    %v8010 = vpack.c.bf16 %v7960, %v7959
    %v8011 = vpack.c.bf16 %v7962, %v7961
    %v8012 = vpack.c.bf16 %v7964, %v7963
    %v8013 = vpack.c.bf16 %v7966, %v7965
    %v8014 = vpack.c.bf16 %v7968, %v7967
    %v8015 = vpack.c.bf16 %v7970, %v7969
    %v8016 = vpack.c.bf16 %v7972, %v7971
    %v8017 = vpack.c.bf16 %v7974, %v7973
    %v8018 = vpack.c.bf16 %v7976, %v7975
    %v8019 = vpack.c.bf16 %v7978, %v7977
    %v8020 = vpack.c.bf16 %v7980, %v7979
    %v8021 = vpack.c.bf16 %v7982, %v7981
    %v8022 = vpack.c.bf16 %v7984, %v7983
    %v8023 = vpack.c.bf16 %v7986, %v7985
    %v8024 = vpack.c.bf16 %v7988, %v7987
    %v8025 = vpack.c.bf16 %v7990, %v7989
    %v8026 = vpack.c.bf16 %v7992, %v7991
    %v8027 = vpack.c.bf16 %v7994, %v7993
    %v8028 = vpack.c.bf16 %v7996, %v7995
    %v8029 = vld [vmem:[%s3] sm:$0xf]
    %v8030 = vld [vmem:[%s3 + $0x4] sm:$0xf]
    %v8031 = vld [vmem:[%s3 + $0x8] sm:$0xf]
    %v8032 = vld [vmem:[%s3 + $0xc] sm:$0xf]
    %v8033 = vld [vmem:[%s3 + $0x10] sm:$0xf]
    %v8034 = vld [vmem:[%s3 + $0x14] sm:$0xf]
    %v8035 = vld [vmem:[%s3 + $0x18] sm:$0xf]
    %v8036 = vld [vmem:[%s3 + $0x1c] sm:$0xf]
    %v8037 = vld [vmem:[%s3 + $0x20] sm:$0xf]
    %v8038 = vld [vmem:[%s3 + $0x24] sm:$0xf]
    %v8039 = vld [vmem:[%s3 + $0x28] sm:$0xf]
    %v8040 = vld [vmem:[%s3 + $0x2c] sm:$0xf]
    %v8041 = vld [vmem:[%s3 + $0x30] sm:$0xf]
    %v8042 = vld [vmem:[%s3 + $0x34] sm:$0xf]
    %v8043 = vld [vmem:[%s3 + $0x38] sm:$0xf]
    %v8044 = vld [vmem:[%s3 + $0x3c] sm:$0xf]
    %v8045 = vld [vmem:[%s4] sm:$0x1]
    %v8047 = vlaneseq
    %v8048 = vshrl.u32 %v8047, 7
    %v8049 = vsub.s32 0, %v8048
    %v8050 = vrot.slane %v8045, %v8049
    %v8068 = vunpack.c.l.b16 %v8029
    %v8069 = vunpack.c.l.b16 %v8030
    %v8070 = vunpack.c.l.b16 %v8031
    %v8071 = vunpack.c.l.b16 %v8032
    %v8072 = vunpack.c.l.b16 %v8033
    %v8073 = vunpack.c.l.b16 %v8034
    %v8074 = vunpack.c.l.b16 %v8035
    %v8075 = vunpack.c.l.b16 %v8036
    %v8076 = vunpack.c.l.b16 %v8037
    %v8077 = vunpack.c.l.b16 %v8038
    %v8078 = vunpack.c.l.b16 %v8039
    %v8079 = vunpack.c.l.b16 %v8040
    %v8080 = vunpack.c.l.b16 %v8041
    %v8081 = vunpack.c.l.b16 %v8042
    %v8082 = vunpack.c.l.b16 %v8043
    %v8083 = vunpack.c.l.b16 %v8044
    %v8084 = vpack.c.b16 %v8069, %v8068
    %v8085 = vpack.c.b16 %v8071, %v8070
    %v8086 = vpack.c.b16 %v8073, %v8072
    %v8087 = vpack.c.b16 %v8075, %v8074
    %v8088 = vpack.c.b16 %v8077, %v8076
    %v8089 = vpack.c.b16 %v8079, %v8078
    %v8090 = vpack.c.b16 %v8081, %v8080
    %v8091 = vpack.c.b16 %v8083, %v8082
    %8100 = vmatprep.subr.bf16.mxu0 0
    %8101 = vmatpush1.bf16.msra.mxu0 %v8091
    %8102 = vmatprep.subr.bf16.mxu0 0
    %8103 = vmatpush1.bf16.msra.mxu0 %v8090
    %8104 = vmatprep.subr.bf16.mxu0 0
    %8105 = vmatpush1.bf16.msra.mxu0 %v8089
    %8106 = vmatprep.subr.bf16.mxu0 0
    %8107 = vmatpush1.bf16.msra.mxu0 %v8088
    %8108 = vmatprep.subr.bf16.mxu0 0
    %8109 = vmatpush1.bf16.msra.mxu0 %v8087
    %8110 = vmatprep.subr.bf16.mxu0 0
    %8111 = vmatpush1.bf16.msra.mxu0 %v8086
    %8112 = vmatprep.subr.bf16.mxu0 0
    %8113 = vmatpush1.bf16.msra.mxu0 %v8085
    %8114 = vmatprep.subr.bf16.mxu0 0
    %8115 = vmatpush1.bf16.msra.mxu0 %v8084
    %8116 = vmatprep.subr.bf16.mxu0 0
    %8117 = vmatpush2.bf16.msra.mxu0 0
    %8118 = vmatprep.subr.bf16.mxu0 0
    %8119 = vmatpush2.bf16.msra.mxu0 0
    %8120 = vmatprep.subr.bf16.mxu0 0
    %8121 = vmatpush2.bf16.msra.mxu0 0
    %8122 = vmatprep.subr.bf16.mxu0 0
    %8123 = vmatpush2.bf16.msra.mxu0 0
    %8124 = vmatprep.subr.bf16.mxu0 0
    %8125 = vmatpush2.bf16.msra.mxu0 0
    %8126 = vmatprep.subr.bf16.mxu0 0
    %8127 = vmatpush2.bf16.msra.mxu0 0
    %8128 = vmatprep.subr.bf16.mxu0 0
    %8129 = vmatpush2.bf16.msra.mxu0 0
    %8130 = vmatprep.subr.bf16.mxu0 0
    %8131 = vmatpush2.bf16.msra.mxu0 0
    %8132 = vmatprep.mubr.bf16.mxu0 0
    %8133 = vmatmul.mubr.bf16.gmra.mxu0 %v7997
    %v8134 = vpop.f32.mrf.mxu0
    %v8135 = vadd.f32 %v8050, %v8134
    %v8136 = vpop.f32.mrf.mxu0
    %v8137 = vpop.f32.mrf.mxu0
    %v8138 = vadd.f32 %v8050, %v8137
    %v8139 = vpop.f32.mrf.mxu0
    %8140 = vmatprep.mubr.bf16.mxu0 0
    %8141 = vmatmul.mubr.bf16.gmra.mxu0 %v7998
    %v8142 = vpop.f32.mrf.mxu0
    %v8143 = vadd.f32 %v8050, %v8142
    %v8144 = vpop.f32.mrf.mxu0
    %v8145 = vpop.f32.mrf.mxu0
    %v8146 = vadd.f32 %v8050, %v8145
    %v8147 = vpop.f32.mrf.mxu0
    %8148 = vmatprep.mubr.bf16.mxu0 0
    %8149 = vmatmul.mubr.bf16.gmra.mxu0 %v7999
    %v8150 = vpop.f32.mrf.mxu0
    %v8151 = vadd.f32 %v8050, %v8150
    %v8152 = vpop.f32.mrf.mxu0
    %v8153 = vpop.f32.mrf.mxu0
    %v8154 = vadd.f32 %v8050, %v8153
    %v8155 = vpop.f32.mrf.mxu0
    %8156 = vmatprep.mubr.bf16.mxu0 0
    %8157 = vmatmul.mubr.bf16.gmra.mxu0 %v8000
    %v8158 = vpop.f32.mrf.mxu0
    %v8159 = vadd.f32 %v8050, %v8158
    %v8160 = vpop.f32.mrf.mxu0
    %v8161 = vpop.f32.mrf.mxu0
    %v8162 = vadd.f32 %v8050, %v8161
    %v8163 = vpop.f32.mrf.mxu0
    %8164 = vmatprep.mubr.bf16.mxu0 0
    %8165 = vmatmul.mubr.bf16.gmra.mxu0 %v8001
    %v8166 = vpop.f32.mrf.mxu0
    %v8167 = vadd.f32 %v8050, %v8166
    %v8168 = vpop.f32.mrf.mxu0
    %v8169 = vpop.f32.mrf.mxu0
    %v8170 = vadd.f32 %v8050, %v8169
    %v8171 = vpop.f32.mrf.mxu0
    %8172 = vmatprep.mubr.bf16.mxu0 0
    %8173 = vmatmul.mubr.bf16.gmra.mxu0 %v8002
    %v8174 = vpop.f32.mrf.mxu0
    %v8175 = vadd.f32 %v8050, %v8174
    %v8176 = vpop.f32.mrf.mxu0
    %v8177 = vpop.f32.mrf.mxu0
    %v8178 = vadd.f32 %v8050, %v8177
    %v8179 = vpop.f32.mrf.mxu0
    %8180 = vmatprep.mubr.bf16.mxu0 0
    %8181 = vmatmul.mubr.bf16.gmra.mxu0 %v8003
    %v8182 = vpop.f32.mrf.mxu0
    %v8183 = vadd.f32 %v8050, %v8182
    %v8184 = vpop.f32.mrf.mxu0
    %v8185 = vpop.f32.mrf.mxu0
    %v8186 = vadd.f32 %v8050, %v8185
    %v8187 = vpop.f32.mrf.mxu0
    %8188 = vmatprep.mubr.bf16.mxu0 0
    %8189 = vmatmul.mubr.bf16.gmra.mxu0 %v8004
    %v8190 = vpop.f32.mrf.mxu0
    %v8191 = vadd.f32 %v8050, %v8190
    %v8192 = vpop.f32.mrf.mxu0
    %v8193 = vpop.f32.mrf.mxu0
    %v8194 = vadd.f32 %v8050, %v8193
    %v8195 = vpop.f32.mrf.mxu0
    %8196 = vmatprep.mubr.bf16.mxu0 0
    %8197 = vmatmul.mubr.bf16.gmra.mxu0 %v8005
    %v8198 = vpop.f32.mrf.mxu0
    %v8199 = vadd.f32 %v8050, %v8198
    %v8200 = vpop.f32.mrf.mxu0
    %v8201 = vpop.f32.mrf.mxu0
    %v8202 = vadd.f32 %v8050, %v8201
    %v8203 = vpop.f32.mrf.mxu0
    %8204 = vmatprep.mubr.bf16.mxu0 0
    %8205 = vmatmul.mubr.bf16.gmra.mxu0 %v8006
    %v8206 = vpop.f32.mrf.mxu0
    %v8207 = vadd.f32 %v8050, %v8206
    %v8208 = vpop.f32.mrf.mxu0
    %v8209 = vpop.f32.mrf.mxu0
    %v8210 = vadd.f32 %v8050, %v8209
    %v8211 = vpop.f32.mrf.mxu0
    %8212 = vmatprep.mubr.bf16.mxu0 0
    %8213 = vmatmul.mubr.bf16.gmra.mxu0 %v8007
    %v8214 = vpop.f32.mrf.mxu0
    %v8215 = vadd.f32 %v8050, %v8214
    %v8216 = vpop.f32.mrf.mxu0
    %v8217 = vpop.f32.mrf.mxu0
    %v8218 = vadd.f32 %v8050, %v8217
    %v8219 = vpop.f32.mrf.mxu0
    %8220 = vmatprep.mubr.bf16.mxu0 0
    %8221 = vmatmul.mubr.bf16.gmra.mxu0 %v8008
    %v8222 = vpop.f32.mrf.mxu0
    %v8223 = vadd.f32 %v8050, %v8222
    %v8224 = vpop.f32.mrf.mxu0
    %v8225 = vpop.f32.mrf.mxu0
    %v8226 = vadd.f32 %v8050, %v8225
    %v8227 = vpop.f32.mrf.mxu0
    %8228 = vmatprep.mubr.bf16.mxu0 0
    %8229 = vmatmul.mubr.bf16.gmra.mxu0 %v8009
    %v8230 = vpop.f32.mrf.mxu0
    %v8231 = vadd.f32 %v8050, %v8230
    %v8232 = vpop.f32.mrf.mxu0
    %v8233 = vpop.f32.mrf.mxu0
    %v8234 = vadd.f32 %v8050, %v8233
    %v8235 = vpop.f32.mrf.mxu0
    %8236 = vmatprep.mubr.bf16.mxu0 0
    %8237 = vmatmul.mubr.bf16.gmra.mxu0 %v8010
    %v8238 = vpop.f32.mrf.mxu0
    %v8239 = vadd.f32 %v8050, %v8238
    %v8240 = vpop.f32.mrf.mxu0
    %v8241 = vpop.f32.mrf.mxu0
    %v8242 = vadd.f32 %v8050, %v8241
    %v8243 = vpop.f32.mrf.mxu0
    %8244 = vmatprep.mubr.bf16.mxu0 0
    %8245 = vmatmul.mubr.bf16.gmra.mxu0 %v8011
    %v8246 = vpop.f32.mrf.mxu0
    %v8247 = vadd.f32 %v8050, %v8246
    %v8248 = vpop.f32.mrf.mxu0
    %v8249 = vpop.f32.mrf.mxu0
    %v8250 = vadd.f32 %v8050, %v8249
    %v8251 = vpop.f32.mrf.mxu0
    %8252 = vmatprep.mubr.bf16.mxu0 0
    %8253 = vmatmul.mubr.bf16.gmra.mxu0 %v8012
    %v8254 = vpop.f32.mrf.mxu0
    %v8255 = vadd.f32 %v8050, %v8254
    %v8256 = vpop.f32.mrf.mxu0
    %v8257 = vpop.f32.mrf.mxu0
    %v8258 = vadd.f32 %v8050, %v8257
    %v8259 = vpop.f32.mrf.mxu0
    %8260 = vmatprep.mubr.bf16.mxu0 0
    %8261 = vmatmul.mubr.bf16.gmra.mxu0 %v8013
    %v8262 = vpop.f32.mrf.mxu0
    %v8263 = vadd.f32 %v8050, %v8262
    %v8264 = vpop.f32.mrf.mxu0
    %v8265 = vpop.f32.mrf.mxu0
    %v8266 = vadd.f32 %v8050, %v8265
    %v8267 = vpop.f32.mrf.mxu0
    %8268 = vmatprep.mubr.bf16.mxu0 0
    %8269 = vmatmul.mubr.bf16.gmra.mxu0 %v8014
    %v8270 = vpop.f32.mrf.mxu0
    %v8271 = vadd.f32 %v8050, %v8270
    %v8272 = vpop.f32.mrf.mxu0
    %v8273 = vpop.f32.mrf.mxu0
    %v8274 = vadd.f32 %v8050, %v8273
    %v8275 = vpop.f32.mrf.mxu0
    %8276 = vmatprep.mubr.bf16.mxu0 0
    %8277 = vmatmul.mubr.bf16.gmra.mxu0 %v8015
    %v8278 = vpop.f32.mrf.mxu0
    %v8279 = vadd.f32 %v8050, %v8278
    %v8280 = vpop.f32.mrf.mxu0
    %v8281 = vpop.f32.mrf.mxu0
    %v8282 = vadd.f32 %v8050, %v8281
    %v8283 = vpop.f32.mrf.mxu0
    %8284 = vmatprep.mubr.bf16.mxu0 0
    %8285 = vmatmul.mubr.bf16.gmra.mxu0 %v8016
    %v8286 = vpop.f32.mrf.mxu0
    %v8287 = vadd.f32 %v8050, %v8286
    %v8288 = vpop.f32.mrf.mxu0
    %v8289 = vpop.f32.mrf.mxu0
    %v8290 = vadd.f32 %v8050, %v8289
    %v8291 = vpop.f32.mrf.mxu0
    %8292 = vmatprep.mubr.bf16.mxu0 0
    %8293 = vmatmul.mubr.bf16.gmra.mxu0 %v8017
    %v8294 = vpop.f32.mrf.mxu0
    %v8295 = vadd.f32 %v8050, %v8294
    %v8296 = vpop.f32.mrf.mxu0
    %v8297 = vpop.f32.mrf.mxu0
    %v8298 = vadd.f32 %v8050, %v8297
    %v8299 = vpop.f32.mrf.mxu0
    %8300 = vmatprep.mubr.bf16.mxu0 0
    %8301 = vmatmul.mubr.bf16.gmra.mxu0 %v8018
    %v8302 = vpop.f32.mrf.mxu0
    %v8303 = vadd.f32 %v8050, %v8302
    %v8304 = vpop.f32.mrf.mxu0
    %v8305 = vpop.f32.mrf.mxu0
    %v8306 = vadd.f32 %v8050, %v8305
    %v8307 = vpop.f32.mrf.mxu0
    %8308 = vmatprep.mubr.bf16.mxu0 0
    %8309 = vmatmul.mubr.bf16.gmra.mxu0 %v8019
    %v8310 = vpop.f32.mrf.mxu0
    %v8311 = vadd.f32 %v8050, %v8310
    %v8312 = vpop.f32.mrf.mxu0
    %v8313 = vpop.f32.mrf.mxu0
    %v8314 = vadd.f32 %v8050, %v8313
    %v8315 = vpop.f32.mrf.mxu0
    %8316 = vmatprep.mubr.bf16.mxu0 0
    %8317 = vmatmul.mubr.bf16.gmra.mxu0 %v8020
    %v8318 = vpop.f32.mrf.mxu0
    %v8319 = vadd.f32 %v8050, %v8318
    %v8320 = vpop.f32.mrf.mxu0
    %v8321 = vpop.f32.mrf.mxu0
    %v8322 = vadd.f32 %v8050, %v8321
    %v8323 = vpop.f32.mrf.mxu0
    %8324 = vmatprep.mubr.bf16.mxu0 0
    %8325 = vmatmul.mubr.bf16.gmra.mxu0 %v8021
    %v8326 = vpop.f32.mrf.mxu0
    %v8327 = vadd.f32 %v8050, %v8326
    %v8328 = vpop.f32.mrf.mxu0
    %v8329 = vpop.f32.mrf.mxu0
    %v8330 = vadd.f32 %v8050, %v8329
    %v8331 = vpop.f32.mrf.mxu0
    %8332 = vmatprep.mubr.bf16.mxu0 0
    %8333 = vmatmul.mubr.bf16.gmra.mxu0 %v8022
    %v8334 = vpop.f32.mrf.mxu0
    %v8335 = vadd.f32 %v8050, %v8334
    %v8336 = vpop.f32.mrf.mxu0
    %v8337 = vpop.f32.mrf.mxu0
    %v8338 = vadd.f32 %v8050, %v8337
    %v8339 = vpop.f32.mrf.mxu0
    %8340 = vmatprep.mubr.bf16.mxu0 0
    %8341 = vmatmul.mubr.bf16.gmra.mxu0 %v8023
    %v8342 = vpop.f32.mrf.mxu0
    %v8343 = vadd.f32 %v8050, %v8342
    %v8344 = vpop.f32.mrf.mxu0
    %v8345 = vpop.f32.mrf.mxu0
    %v8346 = vadd.f32 %v8050, %v8345
    %v8347 = vpop.f32.mrf.mxu0
    %8348 = vmatprep.mubr.bf16.mxu0 0
    %8349 = vmatmul.mubr.bf16.gmra.mxu0 %v8024
    %v8350 = vpop.f32.mrf.mxu0
    %v8351 = vadd.f32 %v8050, %v8350
    %v8352 = vpop.f32.mrf.mxu0
    %v8353 = vpop.f32.mrf.mxu0
    %v8354 = vadd.f32 %v8050, %v8353
    %v8355 = vpop.f32.mrf.mxu0
    %8356 = vmatprep.mubr.bf16.mxu0 0
    %8357 = vmatmul.mubr.bf16.gmra.mxu0 %v8025
    %v8358 = vpop.f32.mrf.mxu0
    %v8359 = vadd.f32 %v8050, %v8358
    %v8360 = vpop.f32.mrf.mxu0
    %v8361 = vpop.f32.mrf.mxu0
    %v8362 = vadd.f32 %v8050, %v8361
    %v8363 = vpop.f32.mrf.mxu0
    %8364 = vmatprep.mubr.bf16.mxu0 0
    %8365 = vmatmul.mubr.bf16.gmra.mxu0 %v8026
    %v8366 = vpop.f32.mrf.mxu0
    %v8367 = vadd.f32 %v8050, %v8366
    %v8368 = vpop.f32.mrf.mxu0
    %v8369 = vpop.f32.mrf.mxu0
    %v8370 = vadd.f32 %v8050, %v8369
    %v8371 = vpop.f32.mrf.mxu0
    %8372 = vmatprep.mubr.bf16.mxu0 0
    %8373 = vmatmul.mubr.bf16.gmra.mxu0 %v8027
    %v8374 = vpop.f32.mrf.mxu0
    %v8375 = vadd.f32 %v8050, %v8374
    %v8376 = vpop.f32.mrf.mxu0
    %v8377 = vpop.f32.mrf.mxu0
    %v8378 = vadd.f32 %v8050, %v8377
    %v8379 = vpop.f32.mrf.mxu0
    %8380 = vmatprep.mubr.bf16.mxu0 0
    %8381 = vmatmul.mubr.bf16.gmra.mxu0 %v8028
    %v8382 = vpop.f32.mrf.mxu0
    %v8383 = vadd.f32 %v8050, %v8382
    %v8384 = vpop.f32.mrf.mxu0
    %v8385 = vpop.f32.mrf.mxu0
    %v8386 = vadd.f32 %v8050, %v8385
    %v8387 = vpop.f32.mrf.mxu0
    %8388 = vdwg.mxu0
    %v8389 = vmax.f32 %v8135, 0.0
    %v8390 = vmax.f32 %v8138, 0.0
    %v8391 = vmax.f32 %v8143, 0.0
    %v8392 = vmax.f32 %v8146, 0.0
    %v8393 = vmax.f32 %v8151, 0.0
    %v8394 = vmax.f32 %v8154, 0.0
    %v8395 = vmax.f32 %v8159, 0.0
    %v8396 = vmax.f32 %v8162, 0.0
    %v8397 = vmax.f32 %v8167, 0.0
    %v8398 = vmax.f32 %v8170, 0.0
    %v8399 = vmax.f32 %v8175, 0.0
    %v8400 = vmax.f32 %v8178, 0.0
    %v8401 = vmax.f32 %v8183, 0.0
    %v8402 = vmax.f32 %v8186, 0.0
    %v8403 = vmax.f32 %v8191, 0.0
    %v8404 = vmax.f32 %v8194, 0.0
    %v8405 = vmax.f32 %v8199, 0.0
    %v8406 = vmax.f32 %v8202, 0.0
    %v8407 = vmax.f32 %v8207, 0.0
    %v8408 = vmax.f32 %v8210, 0.0
    %v8409 = vmax.f32 %v8215, 0.0
    %v8410 = vmax.f32 %v8218, 0.0
    %v8411 = vmax.f32 %v8223, 0.0
    %v8412 = vmax.f32 %v8226, 0.0
    %v8413 = vmax.f32 %v8231, 0.0
    %v8414 = vmax.f32 %v8234, 0.0
    %v8415 = vmax.f32 %v8239, 0.0
    %v8416 = vmax.f32 %v8242, 0.0
    %v8417 = vmax.f32 %v8247, 0.0
    %v8418 = vmax.f32 %v8250, 0.0
    %v8419 = vmax.f32 %v8255, 0.0
    %v8420 = vmax.f32 %v8258, 0.0
    %v8421 = vmax.f32 %v8263, 0.0
    %v8422 = vmax.f32 %v8266, 0.0
    %v8423 = vmax.f32 %v8271, 0.0
    %v8424 = vmax.f32 %v8274, 0.0
    %v8425 = vmax.f32 %v8279, 0.0
    %v8426 = vmax.f32 %v8282, 0.0
    %v8427 = vmax.f32 %v8287, 0.0
    %v8428 = vmax.f32 %v8290, 0.0
    %v8429 = vmax.f32 %v8295, 0.0
    %v8430 = vmax.f32 %v8298, 0.0
    %v8431 = vmax.f32 %v8303, 0.0
    %v8432 = vmax.f32 %v8306, 0.0
    %v8433 = vmax.f32 %v8311, 0.0
    %v8434 = vmax.f32 %v8314, 0.0
    %v8435 = vmax.f32 %v8319, 0.0
    %v8436 = vmax.f32 %v8322, 0.0
    %v8437 = vmax.f32 %v8327, 0.0
    %v8438 = vmax.f32 %v8330, 0.0
    %v8439 = vmax.f32 %v8335, 0.0
    %v8440 = vmax.f32 %v8338, 0.0
    %v8441 = vmax.f32 %v8343, 0.0
    %v8442 = vmax.f32 %v8346, 0.0
    %v8443 = vmax.f32 %v8351, 0.0
    %v8444 = vmax.f32 %v8354, 0.0
    %v8445 = vmax.f32 %v8359, 0.0
    %v8446 = vmax.f32 %v8362, 0.0
    %v8447 = vmax.f32 %v8367, 0.0
    %v8448 = vmax.f32 %v8370, 0.0
    %v8449 = vmax.f32 %v8375, 0.0
    %v8450 = vmax.f32 %v8378, 0.0
    %v8451 = vmax.f32 %v8383, 0.0
    %v8452 = vmax.f32 %v8386, 0.0
    %v8453 = vpack.c.bf16 %v8390, %v8389
    %v8454 = vpack.c.bf16 %v8392, %v8391
    %v8455 = vpack.c.bf16 %v8394, %v8393
    %v8456 = vpack.c.bf16 %v8396, %v8395
    %v8457 = vpack.c.bf16 %v8398, %v8397
    %v8458 = vpack.c.bf16 %v8400, %v8399
    %v8459 = vpack.c.bf16 %v8402, %v8401
    %v8460 = vpack.c.bf16 %v8404, %v8403
    %v8461 = vpack.c.bf16 %v8406, %v8405
    %v8462 = vpack.c.bf16 %v8408, %v8407
    %v8463 = vpack.c.bf16 %v8410, %v8409
    %v8464 = vpack.c.bf16 %v8412, %v8411
    %v8465 = vpack.c.bf16 %v8414, %v8413
    %v8466 = vpack.c.bf16 %v8416, %v8415
    %v8467 = vpack.c.bf16 %v8418, %v8417
    %v8468 = vpack.c.bf16 %v8420, %v8419
    %v8469 = vpack.c.bf16 %v8422, %v8421
    %v8470 = vpack.c.bf16 %v8424, %v8423
    %v8471 = vpack.c.bf16 %v8426, %v8425
    %v8472 = vpack.c.bf16 %v8428, %v8427
    %v8473 = vpack.c.bf16 %v8430, %v8429
    %v8474 = vpack.c.bf16 %v8432, %v8431
    %v8475 = vpack.c.bf16 %v8434, %v8433
    %v8476 = vpack.c.bf16 %v8436, %v8435
    %v8477 = vpack.c.bf16 %v8438, %v8437
    %v8478 = vpack.c.bf16 %v8440, %v8439
    %v8479 = vpack.c.bf16 %v8442, %v8441
    %v8480 = vpack.c.bf16 %v8444, %v8443
    %v8481 = vpack.c.bf16 %v8446, %v8445
    %v8482 = vpack.c.bf16 %v8448, %v8447
    %v8483 = vpack.c.bf16 %v8450, %v8449
    %v8484 = vpack.c.bf16 %v8452, %v8451
    %v8485 = vld [vmem:[%s5] sm:$0xf]
    %v8486 = vld [vmem:[%s5 + $0x4] sm:$0xf]
    %v8487 = vld [vmem:[%s5 + $0x8] sm:$0xf]
    %v8488 = vld [vmem:[%s5 + $0xc] sm:$0xf]
    %v8489 = vld [vmem:[%s5 + $0x10] sm:$0xf]
    %v8490 = vld [vmem:[%s5 + $0x14] sm:$0xf]
    %v8491 = vld [vmem:[%s5 + $0x18] sm:$0xf]
    %v8492 = vld [vmem:[%s5 + $0x1c] sm:$0xf]
    %v8493 = vld [vmem:[%s5 + $0x20] sm:$0xf]
    %v8494 = vld [vmem:[%s5 + $0x24] sm:$0xf]
    %v8495 = vld [vmem:[%s5 + $0x28] sm:$0xf]
    %v8496 = vld [vmem:[%s5 + $0x2c] sm:$0xf]
    %v8497 = vld [vmem:[%s5 + $0x30] sm:$0xf]
    %v8498 = vld [vmem:[%s5 + $0x34] sm:$0xf]
    %v8499 = vld [vmem:[%s5 + $0x38] sm:$0xf]
    %v8500 = vld [vmem:[%s5 + $0x3c] sm:$0xf]
    %v8501 = vld [vmem:[%s6] sm:$0x1]
    %v8503 = vlaneseq
    %v8504 = vshrl.u32 %v8503, 7
    %v8505 = vsub.s32 0, %v8504
    %v8506 = vrot.slane %v8501, %v8505
    %v8524 = vunpack.c.l.b16 %v8485
    %v8525 = vunpack.c.l.b16 %v8486
    %v8526 = vunpack.c.l.b16 %v8487
    %v8527 = vunpack.c.l.b16 %v8488
    %v8528 = vunpack.c.l.b16 %v8489
    %v8529 = vunpack.c.l.b16 %v8490
    %v8530 = vunpack.c.l.b16 %v8491
    %v8531 = vunpack.c.l.b16 %v8492
    %v8532 = vunpack.c.l.b16 %v8493
    %v8533 = vunpack.c.l.b16 %v8494
    %v8534 = vunpack.c.l.b16 %v8495
    %v8535 = vunpack.c.l.b16 %v8496
    %v8536 = vunpack.c.l.b16 %v8497
    %v8537 = vunpack.c.l.b16 %v8498
    %v8538 = vunpack.c.l.b16 %v8499
    %v8539 = vunpack.c.l.b16 %v8500
    %v8540 = vpack.c.b16 %v8525, %v8524
    %v8541 = vpack.c.b16 %v8527, %v8526
    %v8542 = vpack.c.b16 %v8529, %v8528
    %v8543 = vpack.c.b16 %v8531, %v8530
    %v8544 = vpack.c.b16 %v8533, %v8532
    %v8545 = vpack.c.b16 %v8535, %v8534
    %v8546 = vpack.c.b16 %v8537, %v8536
    %v8547 = vpack.c.b16 %v8539, %v8538
    %8556 = vmatprep.subr.bf16.mxu0 0
    %8557 = vmatpush1.bf16.msra.mxu0 %v8547
    %8558 = vmatprep.subr.bf16.mxu0 0
    %8559 = vmatpush1.bf16.msra.mxu0 %v8546
    %8560 = vmatprep.subr.bf16.mxu0 0
    %8561 = vmatpush1.bf16.msra.mxu0 %v8545
    %8562 = vmatprep.subr.bf16.mxu0 0
    %8563 = vmatpush1.bf16.msra.mxu0 %v8544
    %8564 = vmatprep.subr.bf16.mxu0 0
    %8565 = vmatpush1.bf16.msra.mxu0 %v8543
    %8566 = vmatprep.subr.bf16.mxu0 0
    %8567 = vmatpush1.bf16.msra.mxu0 %v8542
    %8568 = vmatprep.subr.bf16.mxu0 0
    %8569 = vmatpush1.bf16.msra.mxu0 %v8541
    %8570 = vmatprep.subr.bf16.mxu0 0
    %8571 = vmatpush1.bf16.msra.mxu0 %v8540
    %8572 = vmatprep.subr.bf16.mxu0 0
    %8573 = vmatpush2.bf16.msra.mxu0 0
    %8574 = vmatprep.subr.bf16.mxu0 0
    %8575 = vmatpush2.bf16.msra.mxu0 0
    %8576 = vmatprep.subr.bf16.mxu0 0
    %8577 = vmatpush2.bf16.msra.mxu0 0
    %8578 = vmatprep.subr.bf16.mxu0 0
    %8579 = vmatpush2.bf16.msra.mxu0 0
    %8580 = vmatprep.subr.bf16.mxu0 0
    %8581 = vmatpush2.bf16.msra.mxu0 0
    %8582 = vmatprep.subr.bf16.mxu0 0
    %8583 = vmatpush2.bf16.msra.mxu0 0
    %8584 = vmatprep.subr.bf16.mxu0 0
    %8585 = vmatpush2.bf16.msra.mxu0 0
    %8586 = vmatprep.subr.bf16.mxu0 0
    %8587 = vmatpush2.bf16.msra.mxu0 0
    %8588 = vmatprep.mubr.bf16.mxu0 0
    %8589 = vmatmul.mubr.bf16.gmra.mxu0 %v8453
    %v8590 = vpop.f32.mrf.mxu0
    %v8591 = vadd.f32 %v8506, %v8590
    %v8592 = vpop.f32.mrf.mxu0
    %v8593 = vpop.f32.mrf.mxu0
    %v8594 = vadd.f32 %v8506, %v8593
    %v8595 = vpop.f32.mrf.mxu0
    %8596 = vmatprep.mubr.bf16.mxu0 0
    %8597 = vmatmul.mubr.bf16.gmra.mxu0 %v8454
    %v8598 = vpop.f32.mrf.mxu0
    %v8599 = vadd.f32 %v8506, %v8598
    %v8600 = vpop.f32.mrf.mxu0
    %v8601 = vpop.f32.mrf.mxu0
    %v8602 = vadd.f32 %v8506, %v8601
    %v8603 = vpop.f32.mrf.mxu0
    %8604 = vmatprep.mubr.bf16.mxu0 0
    %8605 = vmatmul.mubr.bf16.gmra.mxu0 %v8455
    %v8606 = vpop.f32.mrf.mxu0
    %v8607 = vadd.f32 %v8506, %v8606
    %v8608 = vpop.f32.mrf.mxu0
    %v8609 = vpop.f32.mrf.mxu0
    %v8610 = vadd.f32 %v8506, %v8609
    %v8611 = vpop.f32.mrf.mxu0
    %8612 = vmatprep.mubr.bf16.mxu0 0
    %8613 = vmatmul.mubr.bf16.gmra.mxu0 %v8456
    %v8614 = vpop.f32.mrf.mxu0
    %v8615 = vadd.f32 %v8506, %v8614
    %v8616 = vpop.f32.mrf.mxu0
    %v8617 = vpop.f32.mrf.mxu0
    %v8618 = vadd.f32 %v8506, %v8617
    %v8619 = vpop.f32.mrf.mxu0
    %8620 = vmatprep.mubr.bf16.mxu0 0
    %8621 = vmatmul.mubr.bf16.gmra.mxu0 %v8457
    %v8622 = vpop.f32.mrf.mxu0
    %v8623 = vadd.f32 %v8506, %v8622
    %v8624 = vpop.f32.mrf.mxu0
    %v8625 = vpop.f32.mrf.mxu0
    %v8626 = vadd.f32 %v8506, %v8625
    %v8627 = vpop.f32.mrf.mxu0
    %8628 = vmatprep.mubr.bf16.mxu0 0
    %8629 = vmatmul.mubr.bf16.gmra.mxu0 %v8458
    %v8630 = vpop.f32.mrf.mxu0
    %v8631 = vadd.f32 %v8506, %v8630
    %v8632 = vpop.f32.mrf.mxu0
    %v8633 = vpop.f32.mrf.mxu0
    %v8634 = vadd.f32 %v8506, %v8633
    %v8635 = vpop.f32.mrf.mxu0
    %8636 = vmatprep.mubr.bf16.mxu0 0
    %8637 = vmatmul.mubr.bf16.gmra.mxu0 %v8459
    %v8638 = vpop.f32.mrf.mxu0
    %v8639 = vadd.f32 %v8506, %v8638
    %v8640 = vpop.f32.mrf.mxu0
    %v8641 = vpop.f32.mrf.mxu0
    %v8642 = vadd.f32 %v8506, %v8641
    %v8643 = vpop.f32.mrf.mxu0
    %8644 = vmatprep.mubr.bf16.mxu0 0
    %8645 = vmatmul.mubr.bf16.gmra.mxu0 %v8460
    %v8646 = vpop.f32.mrf.mxu0
    %v8647 = vadd.f32 %v8506, %v8646
    %v8648 = vpop.f32.mrf.mxu0
    %v8649 = vpop.f32.mrf.mxu0
    %v8650 = vadd.f32 %v8506, %v8649
    %v8651 = vpop.f32.mrf.mxu0
    %8652 = vmatprep.mubr.bf16.mxu0 0
    %8653 = vmatmul.mubr.bf16.gmra.mxu0 %v8461
    %v8654 = vpop.f32.mrf.mxu0
    %v8655 = vadd.f32 %v8506, %v8654
    %v8656 = vpop.f32.mrf.mxu0
    %v8657 = vpop.f32.mrf.mxu0
    %v8658 = vadd.f32 %v8506, %v8657
    %v8659 = vpop.f32.mrf.mxu0
    %8660 = vmatprep.mubr.bf16.mxu0 0
    %8661 = vmatmul.mubr.bf16.gmra.mxu0 %v8462
    %v8662 = vpop.f32.mrf.mxu0
    %v8663 = vadd.f32 %v8506, %v8662
    %v8664 = vpop.f32.mrf.mxu0
    %v8665 = vpop.f32.mrf.mxu0
    %v8666 = vadd.f32 %v8506, %v8665
    %v8667 = vpop.f32.mrf.mxu0
    %8668 = vmatprep.mubr.bf16.mxu0 0
    %8669 = vmatmul.mubr.bf16.gmra.mxu0 %v8463
    %v8670 = vpop.f32.mrf.mxu0
    %v8671 = vadd.f32 %v8506, %v8670
    %v8672 = vpop.f32.mrf.mxu0
    %v8673 = vpop.f32.mrf.mxu0
    %v8674 = vadd.f32 %v8506, %v8673
    %v8675 = vpop.f32.mrf.mxu0
    %8676 = vmatprep.mubr.bf16.mxu0 0
    %8677 = vmatmul.mubr.bf16.gmra.mxu0 %v8464
    %v8678 = vpop.f32.mrf.mxu0
    %v8679 = vadd.f32 %v8506, %v8678
    %v8680 = vpop.f32.mrf.mxu0
    %v8681 = vpop.f32.mrf.mxu0
    %v8682 = vadd.f32 %v8506, %v8681
    %v8683 = vpop.f32.mrf.mxu0
    %8684 = vmatprep.mubr.bf16.mxu0 0
    %8685 = vmatmul.mubr.bf16.gmra.mxu0 %v8465
    %v8686 = vpop.f32.mrf.mxu0
    %v8687 = vadd.f32 %v8506, %v8686
    %v8688 = vpop.f32.mrf.mxu0
    %v8689 = vpop.f32.mrf.mxu0
    %v8690 = vadd.f32 %v8506, %v8689
    %v8691 = vpop.f32.mrf.mxu0
    %8692 = vmatprep.mubr.bf16.mxu0 0
    %8693 = vmatmul.mubr.bf16.gmra.mxu0 %v8466
    %v8694 = vpop.f32.mrf.mxu0
    %v8695 = vadd.f32 %v8506, %v8694
    %v8696 = vpop.f32.mrf.mxu0
    %v8697 = vpop.f32.mrf.mxu0
    %v8698 = vadd.f32 %v8506, %v8697
    %v8699 = vpop.f32.mrf.mxu0
    %8700 = vmatprep.mubr.bf16.mxu0 0
    %8701 = vmatmul.mubr.bf16.gmra.mxu0 %v8467
    %v8702 = vpop.f32.mrf.mxu0
    %v8703 = vadd.f32 %v8506, %v8702
    %v8704 = vpop.f32.mrf.mxu0
    %v8705 = vpop.f32.mrf.mxu0
    %v8706 = vadd.f32 %v8506, %v8705
    %v8707 = vpop.f32.mrf.mxu0
    %8708 = vmatprep.mubr.bf16.mxu0 0
    %8709 = vmatmul.mubr.bf16.gmra.mxu0 %v8468
    %v8710 = vpop.f32.mrf.mxu0
    %v8711 = vadd.f32 %v8506, %v8710
    %v8712 = vpop.f32.mrf.mxu0
    %v8713 = vpop.f32.mrf.mxu0
    %v8714 = vadd.f32 %v8506, %v8713
    %v8715 = vpop.f32.mrf.mxu0
    %8716 = vmatprep.mubr.bf16.mxu0 0
    %8717 = vmatmul.mubr.bf16.gmra.mxu0 %v8469
    %v8718 = vpop.f32.mrf.mxu0
    %v8719 = vadd.f32 %v8506, %v8718
    %v8720 = vpop.f32.mrf.mxu0
    %v8721 = vpop.f32.mrf.mxu0
    %v8722 = vadd.f32 %v8506, %v8721
    %v8723 = vpop.f32.mrf.mxu0
    %8724 = vmatprep.mubr.bf16.mxu0 0
    %8725 = vmatmul.mubr.bf16.gmra.mxu0 %v8470
    %v8726 = vpop.f32.mrf.mxu0
    %v8727 = vadd.f32 %v8506, %v8726
    %v8728 = vpop.f32.mrf.mxu0
    %v8729 = vpop.f32.mrf.mxu0
    %v8730 = vadd.f32 %v8506, %v8729
    %v8731 = vpop.f32.mrf.mxu0
    %8732 = vmatprep.mubr.bf16.mxu0 0
    %8733 = vmatmul.mubr.bf16.gmra.mxu0 %v8471
    %v8734 = vpop.f32.mrf.mxu0
    %v8735 = vadd.f32 %v8506, %v8734
    %v8736 = vpop.f32.mrf.mxu0
    %v8737 = vpop.f32.mrf.mxu0
    %v8738 = vadd.f32 %v8506, %v8737
    %v8739 = vpop.f32.mrf.mxu0
    %8740 = vmatprep.mubr.bf16.mxu0 0
    %8741 = vmatmul.mubr.bf16.gmra.mxu0 %v8472
    %v8742 = vpop.f32.mrf.mxu0
    %v8743 = vadd.f32 %v8506, %v8742
    %v8744 = vpop.f32.mrf.mxu0
    %v8745 = vpop.f32.mrf.mxu0
    %v8746 = vadd.f32 %v8506, %v8745
    %v8747 = vpop.f32.mrf.mxu0
    %8748 = vmatprep.mubr.bf16.mxu0 0
    %8749 = vmatmul.mubr.bf16.gmra.mxu0 %v8473
    %v8750 = vpop.f32.mrf.mxu0
    %v8751 = vadd.f32 %v8506, %v8750
    %v8752 = vpop.f32.mrf.mxu0
    %v8753 = vpop.f32.mrf.mxu0
    %v8754 = vadd.f32 %v8506, %v8753
    %v8755 = vpop.f32.mrf.mxu0
    %8756 = vmatprep.mubr.bf16.mxu0 0
    %8757 = vmatmul.mubr.bf16.gmra.mxu0 %v8474
    %v8758 = vpop.f32.mrf.mxu0
    %v8759 = vadd.f32 %v8506, %v8758
    %v8760 = vpop.f32.mrf.mxu0
    %v8761 = vpop.f32.mrf.mxu0
    %v8762 = vadd.f32 %v8506, %v8761
    %v8763 = vpop.f32.mrf.mxu0
    %8764 = vmatprep.mubr.bf16.mxu0 0
    %8765 = vmatmul.mubr.bf16.gmra.mxu0 %v8475
    %v8766 = vpop.f32.mrf.mxu0
    %v8767 = vadd.f32 %v8506, %v8766
    %v8768 = vpop.f32.mrf.mxu0
    %v8769 = vpop.f32.mrf.mxu0
    %v8770 = vadd.f32 %v8506, %v8769
    %v8771 = vpop.f32.mrf.mxu0
    %8772 = vmatprep.mubr.bf16.mxu0 0
    %8773 = vmatmul.mubr.bf16.gmra.mxu0 %v8476
    %v8774 = vpop.f32.mrf.mxu0
    %v8775 = vadd.f32 %v8506, %v8774
    %v8776 = vpop.f32.mrf.mxu0
    %v8777 = vpop.f32.mrf.mxu0
    %v8778 = vadd.f32 %v8506, %v8777
    %v8779 = vpop.f32.mrf.mxu0
    %8780 = vmatprep.mubr.bf16.mxu0 0
    %8781 = vmatmul.mubr.bf16.gmra.mxu0 %v8477
    %v8782 = vpop.f32.mrf.mxu0
    %v8783 = vadd.f32 %v8506, %v8782
    %v8784 = vpop.f32.mrf.mxu0
    %v8785 = vpop.f32.mrf.mxu0
    %v8786 = vadd.f32 %v8506, %v8785
    %v8787 = vpop.f32.mrf.mxu0
    %8788 = vmatprep.mubr.bf16.mxu0 0
    %8789 = vmatmul.mubr.bf16.gmra.mxu0 %v8478
    %v8790 = vpop.f32.mrf.mxu0
    %v8791 = vadd.f32 %v8506, %v8790
    %v8792 = vpop.f32.mrf.mxu0
    %v8793 = vpop.f32.mrf.mxu0
    %v8794 = vadd.f32 %v8506, %v8793
    %v8795 = vpop.f32.mrf.mxu0
    %8796 = vmatprep.mubr.bf16.mxu0 0
    %8797 = vmatmul.mubr.bf16.gmra.mxu0 %v8479
    %v8798 = vpop.f32.mrf.mxu0
    %v8799 = vadd.f32 %v8506, %v8798
    %v8800 = vpop.f32.mrf.mxu0
    %v8801 = vpop.f32.mrf.mxu0
    %v8802 = vadd.f32 %v8506, %v8801
    %v8803 = vpop.f32.mrf.mxu0
    %8804 = vmatprep.mubr.bf16.mxu0 0
    %8805 = vmatmul.mubr.bf16.gmra.mxu0 %v8480
    %v8806 = vpop.f32.mrf.mxu0
    %v8807 = vadd.f32 %v8506, %v8806
    %v8808 = vpop.f32.mrf.mxu0
    %v8809 = vpop.f32.mrf.mxu0
    %v8810 = vadd.f32 %v8506, %v8809
    %v8811 = vpop.f32.mrf.mxu0
    %8812 = vmatprep.mubr.bf16.mxu0 0
    %8813 = vmatmul.mubr.bf16.gmra.mxu0 %v8481
    %v8814 = vpop.f32.mrf.mxu0
    %v8815 = vadd.f32 %v8506, %v8814
    %v8816 = vpop.f32.mrf.mxu0
    %v8817 = vpop.f32.mrf.mxu0
    %v8818 = vadd.f32 %v8506, %v8817
    %v8819 = vpop.f32.mrf.mxu0
    %8820 = vmatprep.mubr.bf16.mxu0 0
    %8821 = vmatmul.mubr.bf16.gmra.mxu0 %v8482
    %v8822 = vpop.f32.mrf.mxu0
    %v8823 = vadd.f32 %v8506, %v8822
    %v8824 = vpop.f32.mrf.mxu0
    %v8825 = vpop.f32.mrf.mxu0
    %v8826 = vadd.f32 %v8506, %v8825
    %v8827 = vpop.f32.mrf.mxu0
    %8828 = vmatprep.mubr.bf16.mxu0 0
    %8829 = vmatmul.mubr.bf16.gmra.mxu0 %v8483
    %v8830 = vpop.f32.mrf.mxu0
    %v8831 = vadd.f32 %v8506, %v8830
    %v8832 = vpop.f32.mrf.mxu0
    %v8833 = vpop.f32.mrf.mxu0
    %v8834 = vadd.f32 %v8506, %v8833
    %v8835 = vpop.f32.mrf.mxu0
    %8836 = vmatprep.mubr.bf16.mxu0 0
    %8837 = vmatmul.mubr.bf16.gmra.mxu0 %v8484
    %v8838 = vpop.f32.mrf.mxu0
    %v8839 = vadd.f32 %v8506, %v8838
    %v8840 = vpop.f32.mrf.mxu0
    %v8841 = vpop.f32.mrf.mxu0
    %v8842 = vadd.f32 %v8506, %v8841
    %v8843 = vpop.f32.mrf.mxu0
    %8844 = vdwg.mxu0
    %v8845 = vpack.c.bf16 %v8594, %v8591
    %v8846 = vpack.c.bf16 %v8602, %v8599
    %v8847 = vpack.c.bf16 %v8610, %v8607
    %v8848 = vpack.c.bf16 %v8618, %v8615
    %v8849 = vpack.c.bf16 %v8626, %v8623
    %v8850 = vpack.c.bf16 %v8634, %v8631
    %v8851 = vpack.c.bf16 %v8642, %v8639
    %v8852 = vpack.c.bf16 %v8650, %v8647
    %v8853 = vpack.c.bf16 %v8658, %v8655
    %v8854 = vpack.c.bf16 %v8666, %v8663
    %v8855 = vpack.c.bf16 %v8674, %v8671
    %v8856 = vpack.c.bf16 %v8682, %v8679
    %v8857 = vpack.c.bf16 %v8690, %v8687
    %v8858 = vpack.c.bf16 %v8698, %v8695
    %v8859 = vpack.c.bf16 %v8706, %v8703
    %v8860 = vpack.c.bf16 %v8714, %v8711
    %v8861 = vpack.c.bf16 %v8722, %v8719
    %v8862 = vpack.c.bf16 %v8730, %v8727
    %v8863 = vpack.c.bf16 %v8738, %v8735
    %v8864 = vpack.c.bf16 %v8746, %v8743
    %v8865 = vpack.c.bf16 %v8754, %v8751
    %v8866 = vpack.c.bf16 %v8762, %v8759
    %v8867 = vpack.c.bf16 %v8770, %v8767
    %v8868 = vpack.c.bf16 %v8778, %v8775
    %v8869 = vpack.c.bf16 %v8786, %v8783
    %v8870 = vpack.c.bf16 %v8794, %v8791
    %v8871 = vpack.c.bf16 %v8802, %v8799
    %v8872 = vpack.c.bf16 %v8810, %v8807
    %v8873 = vpack.c.bf16 %v8818, %v8815
    %v8874 = vpack.c.bf16 %v8826, %v8823
    %v8875 = vpack.c.bf16 %v8834, %v8831
    %v8876 = vpack.c.bf16 %v8842, %v8839
    %v8909 = vcombine.high %v8845, %v8845
    %v8911 = vunpack.c.l.s4 1966171168
    %v8912 = vunpack.c.0.s8 %v8911
    %v8913 = vlaneseq
    %v8914 = vshrl.u32 %v8913, 7
    %v8915 = vsub.s32 %v8912, %v8914
    %v8916 = vrot.slane %v8845, %v8915
    %v8918 = vunpack.c.l.s4 1966171168
    %v8919 = vunpack.c.0.s8 %v8918
    %v8920 = vlaneseq
    %v8921 = vshrl.u32 %v8920, 7
    %v8922 = vsub.s32 %v8919, %v8921
    %v8923 = vrot.slane %v8909, %v8922
    %v8924 = vcombine.high %v8916, %v8916
    %v8925 = vcombine.high %v8923, %v8923
    %v8927 = vunpack.c.l.s4 1966171168
    %v8928 = vunpack.c.0.s8 %v8927
    %v8929 = vlaneseq
    %v8930 = vshrl.u32 %v8929, 7
    %v8931 = vsub.s32 %v8928, %v8930
    %v8932 = vrot.slane %v8916, %v8931
    %v8934 = vunpack.c.l.s4 1966171168
    %v8935 = vunpack.c.0.s8 %v8934
    %v8936 = vlaneseq
    %v8937 = vshrl.u32 %v8936, 7
    %v8938 = vsub.s32 %v8935, %v8937
    %v8939 = vrot.slane %v8923, %v8938
    %v8941 = vunpack.c.l.s4 1966171168
    %v8942 = vunpack.c.0.s8 %v8941
    %v8943 = vlaneseq
    %v8944 = vshrl.u32 %v8943, 7
    %v8945 = vsub.s32 %v8942, %v8944
    %v8946 = vrot.slane %v8924, %v8945
    %v8948 = vunpack.c.l.s4 1966171168
    %v8949 = vunpack.c.0.s8 %v8948
    %v8950 = vlaneseq
    %v8951 = vshrl.u32 %v8950, 7
    %v8952 = vsub.s32 %v8949, %v8951
    %v8953 = vrot.slane %v8925, %v8952
    %v8954 = vcombine.high %v8932, %v8932
    %v8955 = vcombine.high %v8939, %v8939
    %v8956 = vcombine.high %v8946, %v8946
    %v8957 = vcombine.high %v8953, %v8953
    %v8958 = vcombine.high %v8846, %v8846
    %v8960 = vunpack.c.l.s4 1966171168
    %v8961 = vunpack.c.0.s8 %v8960
    %v8962 = vlaneseq
    %v8963 = vshrl.u32 %v8962, 7
    %v8964 = vsub.s32 %v8961, %v8963
    %v8965 = vrot.slane %v8846, %v8964
    %v8967 = vunpack.c.l.s4 1966171168
    %v8968 = vunpack.c.0.s8 %v8967
    %v8969 = vlaneseq
    %v8970 = vshrl.u32 %v8969, 7
    %v8971 = vsub.s32 %v8968, %v8970
    %v8972 = vrot.slane %v8958, %v8971
    %v8973 = vcombine.high %v8965, %v8965
    %v8974 = vcombine.high %v8972, %v8972
    %v8976 = vunpack.c.l.s4 1966171168
    %v8977 = vunpack.c.0.s8 %v8976
    %v8978 = vlaneseq
    %v8979 = vshrl.u32 %v8978, 7
    %v8980 = vsub.s32 %v8977, %v8979
    %v8981 = vrot.slane %v8965, %v8980
    %v8983 = vunpack.c.l.s4 1966171168
    %v8984 = vunpack.c.0.s8 %v8983
    %v8985 = vlaneseq
    %v8986 = vshrl.u32 %v8985, 7
    %v8987 = vsub.s32 %v8984, %v8986
    %v8988 = vrot.slane %v8972, %v8987
    %v8990 = vunpack.c.l.s4 1966171168
    %v8991 = vunpack.c.0.s8 %v8990
    %v8992 = vlaneseq
    %v8993 = vshrl.u32 %v8992, 7
    %v8994 = vsub.s32 %v8991, %v8993
    %v8995 = vrot.slane %v8973, %v8994
    %v8997 = vunpack.c.l.s4 1966171168
    %v8998 = vunpack.c.0.s8 %v8997
    %v8999 = vlaneseq
    %v9000 = vshrl.u32 %v8999, 7
    %v9001 = vsub.s32 %v8998, %v9000
    %v9002 = vrot.slane %v8974, %v9001
    %v9003 = vcombine.high %v8981, %v8981
    %v9004 = vcombine.high %v8988, %v8988
    %v9005 = vcombine.high %v8995, %v8995
    %v9006 = vcombine.high %v9002, %v9002
    %v9007 = vcombine.high %v8847, %v8847
    %v9009 = vunpack.c.l.s4 1966171168
    %v9010 = vunpack.c.0.s8 %v9009
    %v9011 = vlaneseq
    %v9012 = vshrl.u32 %v9011, 7
    %v9013 = vsub.s32 %v9010, %v9012
    %v9014 = vrot.slane %v8847, %v9013
    %v9016 = vunpack.c.l.s4 1966171168
    %v9017 = vunpack.c.0.s8 %v9016
    %v9018 = vlaneseq
    %v9019 = vshrl.u32 %v9018, 7
    %v9020 = vsub.s32 %v9017, %v9019
    %v9021 = vrot.slane %v9007, %v9020
    %v9022 = vcombine.high %v9014, %v9014
    %v9023 = vcombine.high %v9021, %v9021
    %v9025 = vunpack.c.l.s4 1966171168
    %v9026 = vunpack.c.0.s8 %v9025
    %v9027 = vlaneseq
    %v9028 = vshrl.u32 %v9027, 7
    %v9029 = vsub.s32 %v9026, %v9028
    %v9030 = vrot.slane %v9014, %v9029
    %v9032 = vunpack.c.l.s4 1966171168
    %v9033 = vunpack.c.0.s8 %v9032
    %v9034 = vlaneseq
    %v9035 = vshrl.u32 %v9034, 7
    %v9036 = vsub.s32 %v9033, %v9035
    %v9037 = vrot.slane %v9021, %v9036
    %v9039 = vunpack.c.l.s4 1966171168
    %v9040 = vunpack.c.0.s8 %v9039
    %v9041 = vlaneseq
    %v9042 = vshrl.u32 %v9041, 7
    %v9043 = vsub.s32 %v9040, %v9042
    %v9044 = vrot.slane %v9022, %v9043
    %v9046 = vunpack.c.l.s4 1966171168
    %v9047 = vunpack.c.0.s8 %v9046
    %v9048 = vlaneseq
    %v9049 = vshrl.u32 %v9048, 7
    %v9050 = vsub.s32 %v9047, %v9049
    %v9051 = vrot.slane %v9023, %v9050
    %v9052 = vcombine.high %v9030, %v9030
    %v9053 = vcombine.high %v9037, %v9037
    %v9054 = vcombine.high %v9044, %v9044
    %v9055 = vcombine.high %v9051, %v9051
    %v9056 = vcombine.high %v8848, %v8848
    %v9058 = vunpack.c.l.s4 1966171168
    %v9059 = vunpack.c.0.s8 %v9058
    %v9060 = vlaneseq
    %v9061 = vshrl.u32 %v9060, 7
    %v9062 = vsub.s32 %v9059, %v9061
    %v9063 = vrot.slane %v8848, %v9062
    %v9065 = vunpack.c.l.s4 1966171168
    %v9066 = vunpack.c.0.s8 %v9065
    %v9067 = vlaneseq
    %v9068 = vshrl.u32 %v9067, 7
    %v9069 = vsub.s32 %v9066, %v9068
    %v9070 = vrot.slane %v9056, %v9069
    %v9071 = vcombine.high %v9063, %v9063
    %v9072 = vcombine.high %v9070, %v9070
    %v9074 = vunpack.c.l.s4 1966171168
    %v9075 = vunpack.c.0.s8 %v9074
    %v9076 = vlaneseq
    %v9077 = vshrl.u32 %v9076, 7
    %v9078 = vsub.s32 %v9075, %v9077
    %v9079 = vrot.slane %v9063, %v9078
    %v9081 = vunpack.c.l.s4 1966171168
    %v9082 = vunpack.c.0.s8 %v9081
    %v9083 = vlaneseq
    %v9084 = vshrl.u32 %v9083, 7
    %v9085 = vsub.s32 %v9082, %v9084
    %v9086 = vrot.slane %v9070, %v9085
    %v9088 = vunpack.c.l.s4 1966171168
    %v9089 = vunpack.c.0.s8 %v9088
    %v9090 = vlaneseq
    %v9091 = vshrl.u32 %v9090, 7
    %v9092 = vsub.s32 %v9089, %v9091
    %v9093 = vrot.slane %v9071, %v9092
    %v9095 = vunpack.c.l.s4 1966171168
    %v9096 = vunpack.c.0.s8 %v9095
    %v9097 = vlaneseq
    %v9098 = vshrl.u32 %v9097, 7
    %v9099 = vsub.s32 %v9096, %v9098
    %v9100 = vrot.slane %v9072, %v9099
    %v9101 = vcombine.high %v9079, %v9079
    %v9102 = vcombine.high %v9086, %v9086
    %v9103 = vcombine.high %v9093, %v9093
    %v9104 = vcombine.high %v9100, %v9100
    %v9105 = vcombine.high %v8849, %v8849
    %v9107 = vunpack.c.l.s4 1966171168
    %v9108 = vunpack.c.0.s8 %v9107
    %v9109 = vlaneseq
    %v9110 = vshrl.u32 %v9109, 7
    %v9111 = vsub.s32 %v9108, %v9110
    %v9112 = vrot.slane %v8849, %v9111
    %v9114 = vunpack.c.l.s4 1966171168
    %v9115 = vunpack.c.0.s8 %v9114
    %v9116 = vlaneseq
    %v9117 = vshrl.u32 %v9116, 7
    %v9118 = vsub.s32 %v9115, %v9117
    %v9119 = vrot.slane %v9105, %v9118
    %v9120 = vcombine.high %v9112, %v9112
    %v9121 = vcombine.high %v9119, %v9119
    %v9123 = vunpack.c.l.s4 1966171168
    %v9124 = vunpack.c.0.s8 %v9123
    %v9125 = vlaneseq
    %v9126 = vshrl.u32 %v9125, 7
    %v9127 = vsub.s32 %v9124, %v9126
    %v9128 = vrot.slane %v9112, %v9127
    %v9130 = vunpack.c.l.s4 1966171168
    %v9131 = vunpack.c.0.s8 %v9130
    %v9132 = vlaneseq
    %v9133 = vshrl.u32 %v9132, 7
    %v9134 = vsub.s32 %v9131, %v9133
    %v9135 = vrot.slane %v9119, %v9134
    %v9137 = vunpack.c.l.s4 1966171168
    %v9138 = vunpack.c.0.s8 %v9137
    %v9139 = vlaneseq
    %v9140 = vshrl.u32 %v9139, 7
    %v9141 = vsub.s32 %v9138, %v9140
    %v9142 = vrot.slane %v9120, %v9141
    %v9144 = vunpack.c.l.s4 1966171168
    %v9145 = vunpack.c.0.s8 %v9144
    %v9146 = vlaneseq
    %v9147 = vshrl.u32 %v9146, 7
    %v9148 = vsub.s32 %v9145, %v9147
    %v9149 = vrot.slane %v9121, %v9148
    %v9150 = vcombine.high %v9128, %v9128
    %v9151 = vcombine.high %v9135, %v9135
    %v9152 = vcombine.high %v9142, %v9142
    %v9153 = vcombine.high %v9149, %v9149
    %v9154 = vcombine.high %v8850, %v8850
    %v9156 = vunpack.c.l.s4 1966171168
    %v9157 = vunpack.c.0.s8 %v9156
    %v9158 = vlaneseq
    %v9159 = vshrl.u32 %v9158, 7
    %v9160 = vsub.s32 %v9157, %v9159
    %v9161 = vrot.slane %v8850, %v9160
    %v9163 = vunpack.c.l.s4 1966171168
    %v9164 = vunpack.c.0.s8 %v9163
    %v9165 = vlaneseq
    %v9166 = vshrl.u32 %v9165, 7
    %v9167 = vsub.s32 %v9164, %v9166
    %v9168 = vrot.slane %v9154, %v9167
    %v9169 = vcombine.high %v9161, %v9161
    %v9170 = vcombine.high %v9168, %v9168
    %v9172 = vunpack.c.l.s4 1966171168
    %v9173 = vunpack.c.0.s8 %v9172
    %v9174 = vlaneseq
    %v9175 = vshrl.u32 %v9174, 7
    %v9176 = vsub.s32 %v9173, %v9175
    %v9177 = vrot.slane %v9161, %v9176
    %v9179 = vunpack.c.l.s4 1966171168
    %v9180 = vunpack.c.0.s8 %v9179
    %v9181 = vlaneseq
    %v9182 = vshrl.u32 %v9181, 7
    %v9183 = vsub.s32 %v9180, %v9182
    %v9184 = vrot.slane %v9168, %v9183
    %v9186 = vunpack.c.l.s4 1966171168
    %v9187 = vunpack.c.0.s8 %v9186
    %v9188 = vlaneseq
    %v9189 = vshrl.u32 %v9188, 7
    %v9190 = vsub.s32 %v9187, %v9189
    %v9191 = vrot.slane %v9169, %v9190
    %v9193 = vunpack.c.l.s4 1966171168
    %v9194 = vunpack.c.0.s8 %v9193
    %v9195 = vlaneseq
    %v9196 = vshrl.u32 %v9195, 7
    %v9197 = vsub.s32 %v9194, %v9196
    %v9198 = vrot.slane %v9170, %v9197
    %v9199 = vcombine.high %v9177, %v9177
    %v9200 = vcombine.high %v9184, %v9184
    %v9201 = vcombine.high %v9191, %v9191
    %v9202 = vcombine.high %v9198, %v9198
    %v9203 = vcombine.high %v8851, %v8851
    %v9205 = vunpack.c.l.s4 1966171168
    %v9206 = vunpack.c.0.s8 %v9205
    %v9207 = vlaneseq
    %v9208 = vshrl.u32 %v9207, 7
    %v9209 = vsub.s32 %v9206, %v9208
    %v9210 = vrot.slane %v8851, %v9209
    %v9212 = vunpack.c.l.s4 1966171168
    %v9213 = vunpack.c.0.s8 %v9212
    %v9214 = vlaneseq
    %v9215 = vshrl.u32 %v9214, 7
    %v9216 = vsub.s32 %v9213, %v9215
    %v9217 = vrot.slane %v9203, %v9216
    %v9218 = vcombine.high %v9210, %v9210
    %v9219 = vcombine.high %v9217, %v9217
    %v9221 = vunpack.c.l.s4 1966171168
    %v9222 = vunpack.c.0.s8 %v9221
    %v9223 = vlaneseq
    %v9224 = vshrl.u32 %v9223, 7
    %v9225 = vsub.s32 %v9222, %v9224
    %v9226 = vrot.slane %v9210, %v9225
    %v9228 = vunpack.c.l.s4 1966171168
    %v9229 = vunpack.c.0.s8 %v9228
    %v9230 = vlaneseq
    %v9231 = vshrl.u32 %v9230, 7
    %v9232 = vsub.s32 %v9229, %v9231
    %v9233 = vrot.slane %v9217, %v9232
    %v9235 = vunpack.c.l.s4 1966171168
    %v9236 = vunpack.c.0.s8 %v9235
    %v9237 = vlaneseq
    %v9238 = vshrl.u32 %v9237, 7
    %v9239 = vsub.s32 %v9236, %v9238
    %v9240 = vrot.slane %v9218, %v9239
    %v9242 = vunpack.c.l.s4 1966171168
    %v9243 = vunpack.c.0.s8 %v9242
    %v9244 = vlaneseq
    %v9245 = vshrl.u32 %v9244, 7
    %v9246 = vsub.s32 %v9243, %v9245
    %v9247 = vrot.slane %v9219, %v9246
    %v9248 = vcombine.high %v9226, %v9226
    %v9249 = vcombine.high %v9233, %v9233
    %v9250 = vcombine.high %v9240, %v9240
    %v9251 = vcombine.high %v9247, %v9247
    %v9252 = vcombine.high %v8852, %v8852
    %v9254 = vunpack.c.l.s4 1966171168
    %v9255 = vunpack.c.0.s8 %v9254
    %v9256 = vlaneseq
    %v9257 = vshrl.u32 %v9256, 7
    %v9258 = vsub.s32 %v9255, %v9257
    %v9259 = vrot.slane %v8852, %v9258
    %v9261 = vunpack.c.l.s4 1966171168
    %v9262 = vunpack.c.0.s8 %v9261
    %v9263 = vlaneseq
    %v9264 = vshrl.u32 %v9263, 7
    %v9265 = vsub.s32 %v9262, %v9264
    %v9266 = vrot.slane %v9252, %v9265
    %v9267 = vcombine.high %v9259, %v9259
    %v9268 = vcombine.high %v9266, %v9266
    %v9270 = vunpack.c.l.s4 1966171168
    %v9271 = vunpack.c.0.s8 %v9270
    %v9272 = vlaneseq
    %v9273 = vshrl.u32 %v9272, 7
    %v9274 = vsub.s32 %v9271, %v9273
    %v9275 = vrot.slane %v9259, %v9274
    %v9277 = vunpack.c.l.s4 1966171168
    %v9278 = vunpack.c.0.s8 %v9277
    %v9279 = vlaneseq
    %v9280 = vshrl.u32 %v9279, 7
    %v9281 = vsub.s32 %v9278, %v9280
    %v9282 = vrot.slane %v9266, %v9281
    %v9284 = vunpack.c.l.s4 1966171168
    %v9285 = vunpack.c.0.s8 %v9284
    %v9286 = vlaneseq
    %v9287 = vshrl.u32 %v9286, 7
    %v9288 = vsub.s32 %v9285, %v9287
    %v9289 = vrot.slane %v9267, %v9288
    %v9291 = vunpack.c.l.s4 1966171168
    %v9292 = vunpack.c.0.s8 %v9291
    %v9293 = vlaneseq
    %v9294 = vshrl.u32 %v9293, 7
    %v9295 = vsub.s32 %v9292, %v9294
    %v9296 = vrot.slane %v9268, %v9295
    %v9297 = vcombine.high %v9275, %v9275
    %v9298 = vcombine.high %v9282, %v9282
    %v9299 = vcombine.high %v9289, %v9289
    %v9300 = vcombine.high %v9296, %v9296
    %v9301 = vcombine.high %v8853, %v8853
    %v9303 = vunpack.c.l.s4 1966171168
    %v9304 = vunpack.c.0.s8 %v9303
    %v9305 = vlaneseq
    %v9306 = vshrl.u32 %v9305, 7
    %v9307 = vsub.s32 %v9304, %v9306
    %v9308 = vrot.slane %v8853, %v9307
    %v9310 = vunpack.c.l.s4 1966171168
    %v9311 = vunpack.c.0.s8 %v9310
    %v9312 = vlaneseq
    %v9313 = vshrl.u32 %v9312, 7
    %v9314 = vsub.s32 %v9311, %v9313
    %v9315 = vrot.slane %v9301, %v9314
    %v9316 = vcombine.high %v9308, %v9308
    %v9317 = vcombine.high %v9315, %v9315
    %v9319 = vunpack.c.l.s4 1966171168
    %v9320 = vunpack.c.0.s8 %v9319
    %v9321 = vlaneseq
    %v9322 = vshrl.u32 %v9321, 7
    %v9323 = vsub.s32 %v9320, %v9322
    %v9324 = vrot.slane %v9308, %v9323
    %v9326 = vunpack.c.l.s4 1966171168
    %v9327 = vunpack.c.0.s8 %v9326
    %v9328 = vlaneseq
    %v9329 = vshrl.u32 %v9328, 7
    %v9330 = vsub.s32 %v9327, %v9329
    %v9331 = vrot.slane %v9315, %v9330
    %v9333 = vunpack.c.l.s4 1966171168
    %v9334 = vunpack.c.0.s8 %v9333
    %v9335 = vlaneseq
    %v9336 = vshrl.u32 %v9335, 7
    %v9337 = vsub.s32 %v9334, %v9336
    %v9338 = vrot.slane %v9316, %v9337
    %v9340 = vunpack.c.l.s4 1966171168
    %v9341 = vunpack.c.0.s8 %v9340
    %v9342 = vlaneseq
    %v9343 = vshrl.u32 %v9342, 7
    %v9344 = vsub.s32 %v9341, %v9343
    %v9345 = vrot.slane %v9317, %v9344
    %v9346 = vcombine.high %v9324, %v9324
    %v9347 = vcombine.high %v9331, %v9331
    %v9348 = vcombine.high %v9338, %v9338
    %v9349 = vcombine.high %v9345, %v9345
    %v9350 = vcombine.high %v8854, %v8854
    %v9352 = vunpack.c.l.s4 1966171168
    %v9353 = vunpack.c.0.s8 %v9352
    %v9354 = vlaneseq
    %v9355 = vshrl.u32 %v9354, 7
    %v9356 = vsub.s32 %v9353, %v9355
    %v9357 = vrot.slane %v8854, %v9356
    %v9359 = vunpack.c.l.s4 1966171168
    %v9360 = vunpack.c.0.s8 %v9359
    %v9361 = vlaneseq
    %v9362 = vshrl.u32 %v9361, 7
    %v9363 = vsub.s32 %v9360, %v9362
    %v9364 = vrot.slane %v9350, %v9363
    %v9365 = vcombine.high %v9357, %v9357
    %v9366 = vcombine.high %v9364, %v9364
    %v9368 = vunpack.c.l.s4 1966171168
    %v9369 = vunpack.c.0.s8 %v9368
    %v9370 = vlaneseq
    %v9371 = vshrl.u32 %v9370, 7
    %v9372 = vsub.s32 %v9369, %v9371
    %v9373 = vrot.slane %v9357, %v9372
    %v9375 = vunpack.c.l.s4 1966171168
    %v9376 = vunpack.c.0.s8 %v9375
    %v9377 = vlaneseq
    %v9378 = vshrl.u32 %v9377, 7
    %v9379 = vsub.s32 %v9376, %v9378
    %v9380 = vrot.slane %v9364, %v9379
    %v9382 = vunpack.c.l.s4 1966171168
    %v9383 = vunpack.c.0.s8 %v9382
    %v9384 = vlaneseq
    %v9385 = vshrl.u32 %v9384, 7
    %v9386 = vsub.s32 %v9383, %v9385
    %v9387 = vrot.slane %v9365, %v9386
    %v9389 = vunpack.c.l.s4 1966171168
    %v9390 = vunpack.c.0.s8 %v9389
    %v9391 = vlaneseq
    %v9392 = vshrl.u32 %v9391, 7
    %v9393 = vsub.s32 %v9390, %v9392
    %v9394 = vrot.slane %v9366, %v9393
    %v9395 = vcombine.high %v9373, %v9373
    %v9396 = vcombine.high %v9380, %v9380
    %v9397 = vcombine.high %v9387, %v9387
    %v9398 = vcombine.high %v9394, %v9394
    %v9399 = vcombine.high %v8855, %v8855
    %v9401 = vunpack.c.l.s4 1966171168
    %v9402 = vunpack.c.0.s8 %v9401
    %v9403 = vlaneseq
    %v9404 = vshrl.u32 %v9403, 7
    %v9405 = vsub.s32 %v9402, %v9404
    %v9406 = vrot.slane %v8855, %v9405
    %v9408 = vunpack.c.l.s4 1966171168
    %v9409 = vunpack.c.0.s8 %v9408
    %v9410 = vlaneseq
    %v9411 = vshrl.u32 %v9410, 7
    %v9412 = vsub.s32 %v9409, %v9411
    %v9413 = vrot.slane %v9399, %v9412
    %v9414 = vcombine.high %v9406, %v9406
    %v9415 = vcombine.high %v9413, %v9413
    %v9417 = vunpack.c.l.s4 1966171168
    %v9418 = vunpack.c.0.s8 %v9417
    %v9419 = vlaneseq
    %v9420 = vshrl.u32 %v9419, 7
    %v9421 = vsub.s32 %v9418, %v9420
    %v9422 = vrot.slane %v9406, %v9421
    %v9424 = vunpack.c.l.s4 1966171168
    %v9425 = vunpack.c.0.s8 %v9424
    %v9426 = vlaneseq
    %v9427 = vshrl.u32 %v9426, 7
    %v9428 = vsub.s32 %v9425, %v9427
    %v9429 = vrot.slane %v9413, %v9428
    %v9431 = vunpack.c.l.s4 1966171168
    %v9432 = vunpack.c.0.s8 %v9431
    %v9433 = vlaneseq
    %v9434 = vshrl.u32 %v9433, 7
    %v9435 = vsub.s32 %v9432, %v9434
    %v9436 = vrot.slane %v9414, %v9435
    %v9438 = vunpack.c.l.s4 1966171168
    %v9439 = vunpack.c.0.s8 %v9438
    %v9440 = vlaneseq
    %v9441 = vshrl.u32 %v9440, 7
    %v9442 = vsub.s32 %v9439, %v9441
    %v9443 = vrot.slane %v9415, %v9442
    %v9444 = vcombine.high %v9422, %v9422
    %v9445 = vcombine.high %v9429, %v9429
    %v9446 = vcombine.high %v9436, %v9436
    %v9447 = vcombine.high %v9443, %v9443
    %v9448 = vcombine.high %v8856, %v8856
    %v9450 = vunpack.c.l.s4 1966171168
    %v9451 = vunpack.c.0.s8 %v9450
    %v9452 = vlaneseq
    %v9453 = vshrl.u32 %v9452, 7
    %v9454 = vsub.s32 %v9451, %v9453
    %v9455 = vrot.slane %v8856, %v9454
    %v9457 = vunpack.c.l.s4 1966171168
    %v9458 = vunpack.c.0.s8 %v9457
    %v9459 = vlaneseq
    %v9460 = vshrl.u32 %v9459, 7
    %v9461 = vsub.s32 %v9458, %v9460
    %v9462 = vrot.slane %v9448, %v9461
    %v9463 = vcombine.high %v9455, %v9455
    %v9464 = vcombine.high %v9462, %v9462
    %v9466 = vunpack.c.l.s4 1966171168
    %v9467 = vunpack.c.0.s8 %v9466
    %v9468 = vlaneseq
    %v9469 = vshrl.u32 %v9468, 7
    %v9470 = vsub.s32 %v9467, %v9469
    %v9471 = vrot.slane %v9455, %v9470
    %v9473 = vunpack.c.l.s4 1966171168
    %v9474 = vunpack.c.0.s8 %v9473
    %v9475 = vlaneseq
    %v9476 = vshrl.u32 %v9475, 7
    %v9477 = vsub.s32 %v9474, %v9476
    %v9478 = vrot.slane %v9462, %v9477
    %v9480 = vunpack.c.l.s4 1966171168
    %v9481 = vunpack.c.0.s8 %v9480
    %v9482 = vlaneseq
    %v9483 = vshrl.u32 %v9482, 7
    %v9484 = vsub.s32 %v9481, %v9483
    %v9485 = vrot.slane %v9463, %v9484
    %v9487 = vunpack.c.l.s4 1966171168
    %v9488 = vunpack.c.0.s8 %v9487
    %v9489 = vlaneseq
    %v9490 = vshrl.u32 %v9489, 7
    %v9491 = vsub.s32 %v9488, %v9490
    %v9492 = vrot.slane %v9464, %v9491
    %v9493 = vcombine.high %v9471, %v9471
    %v9494 = vcombine.high %v9478, %v9478
    %v9495 = vcombine.high %v9485, %v9485
    %v9496 = vcombine.high %v9492, %v9492
    %v9497 = vcombine.high %v8857, %v8857
    %v9499 = vunpack.c.l.s4 1966171168
    %v9500 = vunpack.c.0.s8 %v9499
    %v9501 = vlaneseq
    %v9502 = vshrl.u32 %v9501, 7
    %v9503 = vsub.s32 %v9500, %v9502
    %v9504 = vrot.slane %v8857, %v9503
    %v9506 = vunpack.c.l.s4 1966171168
    %v9507 = vunpack.c.0.s8 %v9506
    %v9508 = vlaneseq
    %v9509 = vshrl.u32 %v9508, 7
    %v9510 = vsub.s32 %v9507, %v9509
    %v9511 = vrot.slane %v9497, %v9510
    %v9512 = vcombine.high %v9504, %v9504
    %v9513 = vcombine.high %v9511, %v9511
    %v9515 = vunpack.c.l.s4 1966171168
    %v9516 = vunpack.c.0.s8 %v9515
    %v9517 = vlaneseq
    %v9518 = vshrl.u32 %v9517, 7
    %v9519 = vsub.s32 %v9516, %v9518
    %v9520 = vrot.slane %v9504, %v9519
    %v9522 = vunpack.c.l.s4 1966171168
    %v9523 = vunpack.c.0.s8 %v9522
    %v9524 = vlaneseq
    %v9525 = vshrl.u32 %v9524, 7
    %v9526 = vsub.s32 %v9523, %v9525
    %v9527 = vrot.slane %v9511, %v9526
    %v9529 = vunpack.c.l.s4 1966171168
    %v9530 = vunpack.c.0.s8 %v9529
    %v9531 = vlaneseq
    %v9532 = vshrl.u32 %v9531, 7
    %v9533 = vsub.s32 %v9530, %v9532
    %v9534 = vrot.slane %v9512, %v9533
    %v9536 = vunpack.c.l.s4 1966171168
    %v9537 = vunpack.c.0.s8 %v9536
    %v9538 = vlaneseq
    %v9539 = vshrl.u32 %v9538, 7
    %v9540 = vsub.s32 %v9537, %v9539
    %v9541 = vrot.slane %v9513, %v9540
    %v9542 = vcombine.high %v9520, %v9520
    %v9543 = vcombine.high %v9527, %v9527
    %v9544 = vcombine.high %v9534, %v9534
    %v9545 = vcombine.high %v9541, %v9541
    %v9546 = vcombine.high %v8858, %v8858
    %v9548 = vunpack.c.l.s4 1966171168
    %v9549 = vunpack.c.0.s8 %v9548
    %v9550 = vlaneseq
    %v9551 = vshrl.u32 %v9550, 7
    %v9552 = vsub.s32 %v9549, %v9551
    %v9553 = vrot.slane %v8858, %v9552
    %v9555 = vunpack.c.l.s4 1966171168
    %v9556 = vunpack.c.0.s8 %v9555
    %v9557 = vlaneseq
    %v9558 = vshrl.u32 %v9557, 7
    %v9559 = vsub.s32 %v9556, %v9558
    %v9560 = vrot.slane %v9546, %v9559
    %v9561 = vcombine.high %v9553, %v9553
    %v9562 = vcombine.high %v9560, %v9560
    %v9564 = vunpack.c.l.s4 1966171168
    %v9565 = vunpack.c.0.s8 %v9564
    %v9566 = vlaneseq
    %v9567 = vshrl.u32 %v9566, 7
    %v9568 = vsub.s32 %v9565, %v9567
    %v9569 = vrot.slane %v9553, %v9568
    %v9571 = vunpack.c.l.s4 1966171168
    %v9572 = vunpack.c.0.s8 %v9571
    %v9573 = vlaneseq
    %v9574 = vshrl.u32 %v9573, 7
    %v9575 = vsub.s32 %v9572, %v9574
    %v9576 = vrot.slane %v9560, %v9575
    %v9578 = vunpack.c.l.s4 1966171168
    %v9579 = vunpack.c.0.s8 %v9578
    %v9580 = vlaneseq
    %v9581 = vshrl.u32 %v9580, 7
    %v9582 = vsub.s32 %v9579, %v9581
    %v9583 = vrot.slane %v9561, %v9582
    %v9585 = vunpack.c.l.s4 1966171168
    %v9586 = vunpack.c.0.s8 %v9585
    %v9587 = vlaneseq
    %v9588 = vshrl.u32 %v9587, 7
    %v9589 = vsub.s32 %v9586, %v9588
    %v9590 = vrot.slane %v9562, %v9589
    %v9591 = vcombine.high %v9569, %v9569
    %v9592 = vcombine.high %v9576, %v9576
    %v9593 = vcombine.high %v9583, %v9583
    %v9594 = vcombine.high %v9590, %v9590
    %v9595 = vcombine.high %v8859, %v8859
    %v9597 = vunpack.c.l.s4 1966171168
    %v9598 = vunpack.c.0.s8 %v9597
    %v9599 = vlaneseq
    %v9600 = vshrl.u32 %v9599, 7
    %v9601 = vsub.s32 %v9598, %v9600
    %v9602 = vrot.slane %v8859, %v9601
    %v9604 = vunpack.c.l.s4 1966171168
    %v9605 = vunpack.c.0.s8 %v9604
    %v9606 = vlaneseq
    %v9607 = vshrl.u32 %v9606, 7
    %v9608 = vsub.s32 %v9605, %v9607
    %v9609 = vrot.slane %v9595, %v9608
    %v9610 = vcombine.high %v9602, %v9602
    %v9611 = vcombine.high %v9609, %v9609
    %v9613 = vunpack.c.l.s4 1966171168
    %v9614 = vunpack.c.0.s8 %v9613
    %v9615 = vlaneseq
    %v9616 = vshrl.u32 %v9615, 7
    %v9617 = vsub.s32 %v9614, %v9616
    %v9618 = vrot.slane %v9602, %v9617
    %v9620 = vunpack.c.l.s4 1966171168
    %v9621 = vunpack.c.0.s8 %v9620
    %v9622 = vlaneseq
    %v9623 = vshrl.u32 %v9622, 7
    %v9624 = vsub.s32 %v9621, %v9623
    %v9625 = vrot.slane %v9609, %v9624
    %v9627 = vunpack.c.l.s4 1966171168
    %v9628 = vunpack.c.0.s8 %v9627
    %v9629 = vlaneseq
    %v9630 = vshrl.u32 %v9629, 7
    %v9631 = vsub.s32 %v9628, %v9630
    %v9632 = vrot.slane %v9610, %v9631
    %v9634 = vunpack.c.l.s4 1966171168
    %v9635 = vunpack.c.0.s8 %v9634
    %v9636 = vlaneseq
    %v9637 = vshrl.u32 %v9636, 7
    %v9638 = vsub.s32 %v9635, %v9637
    %v9639 = vrot.slane %v9611, %v9638
    %v9640 = vcombine.high %v9618, %v9618
    %v9641 = vcombine.high %v9625, %v9625
    %v9642 = vcombine.high %v9632, %v9632
    %v9643 = vcombine.high %v9639, %v9639
    %v9644 = vcombine.high %v8860, %v8860
    %v9646 = vunpack.c.l.s4 1966171168
    %v9647 = vunpack.c.0.s8 %v9646
    %v9648 = vlaneseq
    %v9649 = vshrl.u32 %v9648, 7
    %v9650 = vsub.s32 %v9647, %v9649
    %v9651 = vrot.slane %v8860, %v9650
    %v9653 = vunpack.c.l.s4 1966171168
    %v9654 = vunpack.c.0.s8 %v9653
    %v9655 = vlaneseq
    %v9656 = vshrl.u32 %v9655, 7
    %v9657 = vsub.s32 %v9654, %v9656
    %v9658 = vrot.slane %v9644, %v9657
    %v9659 = vcombine.high %v9651, %v9651
    %v9660 = vcombine.high %v9658, %v9658
    %v9662 = vunpack.c.l.s4 1966171168
    %v9663 = vunpack.c.0.s8 %v9662
    %v9664 = vlaneseq
    %v9665 = vshrl.u32 %v9664, 7
    %v9666 = vsub.s32 %v9663, %v9665
    %v9667 = vrot.slane %v9651, %v9666
    %v9669 = vunpack.c.l.s4 1966171168
    %v9670 = vunpack.c.0.s8 %v9669
    %v9671 = vlaneseq
    %v9672 = vshrl.u32 %v9671, 7
    %v9673 = vsub.s32 %v9670, %v9672
    %v9674 = vrot.slane %v9658, %v9673
    %v9676 = vunpack.c.l.s4 1966171168
    %v9677 = vunpack.c.0.s8 %v9676
    %v9678 = vlaneseq
    %v9679 = vshrl.u32 %v9678, 7
    %v9680 = vsub.s32 %v9677, %v9679
    %v9681 = vrot.slane %v9659, %v9680
    %v9683 = vunpack.c.l.s4 1966171168
    %v9684 = vunpack.c.0.s8 %v9683
    %v9685 = vlaneseq
    %v9686 = vshrl.u32 %v9685, 7
    %v9687 = vsub.s32 %v9684, %v9686
    %v9688 = vrot.slane %v9660, %v9687
    %v9689 = vcombine.high %v9667, %v9667
    %v9690 = vcombine.high %v9674, %v9674
    %v9691 = vcombine.high %v9681, %v9681
    %v9692 = vcombine.high %v9688, %v9688
    %v9693 = vcombine.high %v8861, %v8861
    %v9695 = vunpack.c.l.s4 1966171168
    %v9696 = vunpack.c.0.s8 %v9695
    %v9697 = vlaneseq
    %v9698 = vshrl.u32 %v9697, 7
    %v9699 = vsub.s32 %v9696, %v9698
    %v9700 = vrot.slane %v8861, %v9699
    %v9702 = vunpack.c.l.s4 1966171168
    %v9703 = vunpack.c.0.s8 %v9702
    %v9704 = vlaneseq
    %v9705 = vshrl.u32 %v9704, 7
    %v9706 = vsub.s32 %v9703, %v9705
    %v9707 = vrot.slane %v9693, %v9706
    %v9708 = vcombine.high %v9700, %v9700
    %v9709 = vcombine.high %v9707, %v9707
    %v9711 = vunpack.c.l.s4 1966171168
    %v9712 = vunpack.c.0.s8 %v9711
    %v9713 = vlaneseq
    %v9714 = vshrl.u32 %v9713, 7
    %v9715 = vsub.s32 %v9712, %v9714
    %v9716 = vrot.slane %v9700, %v9715
    %v9718 = vunpack.c.l.s4 1966171168
    %v9719 = vunpack.c.0.s8 %v9718
    %v9720 = vlaneseq
    %v9721 = vshrl.u32 %v9720, 7
    %v9722 = vsub.s32 %v9719, %v9721
    %v9723 = vrot.slane %v9707, %v9722
    %v9725 = vunpack.c.l.s4 1966171168
    %v9726 = vunpack.c.0.s8 %v9725
    %v9727 = vlaneseq
    %v9728 = vshrl.u32 %v9727, 7
    %v9729 = vsub.s32 %v9726, %v9728
    %v9730 = vrot.slane %v9708, %v9729
    %v9732 = vunpack.c.l.s4 1966171168
    %v9733 = vunpack.c.0.s8 %v9732
    %v9734 = vlaneseq
    %v9735 = vshrl.u32 %v9734, 7
    %v9736 = vsub.s32 %v9733, %v9735
    %v9737 = vrot.slane %v9709, %v9736
    %v9738 = vcombine.high %v9716, %v9716
    %v9739 = vcombine.high %v9723, %v9723
    %v9740 = vcombine.high %v9730, %v9730
    %v9741 = vcombine.high %v9737, %v9737
    %v9742 = vcombine.high %v8862, %v8862
    %v9744 = vunpack.c.l.s4 1966171168
    %v9745 = vunpack.c.0.s8 %v9744
    %v9746 = vlaneseq
    %v9747 = vshrl.u32 %v9746, 7
    %v9748 = vsub.s32 %v9745, %v9747
    %v9749 = vrot.slane %v8862, %v9748
    %v9751 = vunpack.c.l.s4 1966171168
    %v9752 = vunpack.c.0.s8 %v9751
    %v9753 = vlaneseq
    %v9754 = vshrl.u32 %v9753, 7
    %v9755 = vsub.s32 %v9752, %v9754
    %v9756 = vrot.slane %v9742, %v9755
    %v9757 = vcombine.high %v9749, %v9749
    %v9758 = vcombine.high %v9756, %v9756
    %v9760 = vunpack.c.l.s4 1966171168
    %v9761 = vunpack.c.0.s8 %v9760
    %v9762 = vlaneseq
    %v9763 = vshrl.u32 %v9762, 7
    %v9764 = vsub.s32 %v9761, %v9763
    %v9765 = vrot.slane %v9749, %v9764
    %v9767 = vunpack.c.l.s4 1966171168
    %v9768 = vunpack.c.0.s8 %v9767
    %v9769 = vlaneseq
    %v9770 = vshrl.u32 %v9769, 7
    %v9771 = vsub.s32 %v9768, %v9770
    %v9772 = vrot.slane %v9756, %v9771
    %v9774 = vunpack.c.l.s4 1966171168
    %v9775 = vunpack.c.0.s8 %v9774
    %v9776 = vlaneseq
    %v9777 = vshrl.u32 %v9776, 7
    %v9778 = vsub.s32 %v9775, %v9777
    %v9779 = vrot.slane %v9757, %v9778
    %v9781 = vunpack.c.l.s4 1966171168
    %v9782 = vunpack.c.0.s8 %v9781
    %v9783 = vlaneseq
    %v9784 = vshrl.u32 %v9783, 7
    %v9785 = vsub.s32 %v9782, %v9784
    %v9786 = vrot.slane %v9758, %v9785
    %v9787 = vcombine.high %v9765, %v9765
    %v9788 = vcombine.high %v9772, %v9772
    %v9789 = vcombine.high %v9779, %v9779
    %v9790 = vcombine.high %v9786, %v9786
    %v9791 = vcombine.high %v8863, %v8863
    %v9793 = vunpack.c.l.s4 1966171168
    %v9794 = vunpack.c.0.s8 %v9793
    %v9795 = vlaneseq
    %v9796 = vshrl.u32 %v9795, 7
    %v9797 = vsub.s32 %v9794, %v9796
    %v9798 = vrot.slane %v8863, %v9797
    %v9800 = vunpack.c.l.s4 1966171168
    %v9801 = vunpack.c.0.s8 %v9800
    %v9802 = vlaneseq
    %v9803 = vshrl.u32 %v9802, 7
    %v9804 = vsub.s32 %v9801, %v9803
    %v9805 = vrot.slane %v9791, %v9804
    %v9806 = vcombine.high %v9798, %v9798
    %v9807 = vcombine.high %v9805, %v9805
    %v9809 = vunpack.c.l.s4 1966171168
    %v9810 = vunpack.c.0.s8 %v9809
    %v9811 = vlaneseq
    %v9812 = vshrl.u32 %v9811, 7
    %v9813 = vsub.s32 %v9810, %v9812
    %v9814 = vrot.slane %v9798, %v9813
    %v9816 = vunpack.c.l.s4 1966171168
    %v9817 = vunpack.c.0.s8 %v9816
    %v9818 = vlaneseq
    %v9819 = vshrl.u32 %v9818, 7
    %v9820 = vsub.s32 %v9817, %v9819
    %v9821 = vrot.slane %v9805, %v9820
    %v9823 = vunpack.c.l.s4 1966171168
    %v9824 = vunpack.c.0.s8 %v9823
    %v9825 = vlaneseq
    %v9826 = vshrl.u32 %v9825, 7
    %v9827 = vsub.s32 %v9824, %v9826
    %v9828 = vrot.slane %v9806, %v9827
    %v9830 = vunpack.c.l.s4 1966171168
    %v9831 = vunpack.c.0.s8 %v9830
    %v9832 = vlaneseq
    %v9833 = vshrl.u32 %v9832, 7
    %v9834 = vsub.s32 %v9831, %v9833
    %v9835 = vrot.slane %v9807, %v9834
    %v9836 = vcombine.high %v9814, %v9814
    %v9837 = vcombine.high %v9821, %v9821
    %v9838 = vcombine.high %v9828, %v9828
    %v9839 = vcombine.high %v9835, %v9835
    %v9840 = vcombine.high %v8864, %v8864
    %v9842 = vunpack.c.l.s4 1966171168
    %v9843 = vunpack.c.0.s8 %v9842
    %v9844 = vlaneseq
    %v9845 = vshrl.u32 %v9844, 7
    %v9846 = vsub.s32 %v9843, %v9845
    %v9847 = vrot.slane %v8864, %v9846
    %v9849 = vunpack.c.l.s4 1966171168
    %v9850 = vunpack.c.0.s8 %v9849
    %v9851 = vlaneseq
    %v9852 = vshrl.u32 %v9851, 7
    %v9853 = vsub.s32 %v9850, %v9852
    %v9854 = vrot.slane %v9840, %v9853
    %v9855 = vcombine.high %v9847, %v9847
    %v9856 = vcombine.high %v9854, %v9854
    %v9858 = vunpack.c.l.s4 1966171168
    %v9859 = vunpack.c.0.s8 %v9858
    %v9860 = vlaneseq
    %v9861 = vshrl.u32 %v9860, 7
    %v9862 = vsub.s32 %v9859, %v9861
    %v9863 = vrot.slane %v9847, %v9862
    %v9865 = vunpack.c.l.s4 1966171168
    %v9866 = vunpack.c.0.s8 %v9865
    %v9867 = vlaneseq
    %v9868 = vshrl.u32 %v9867, 7
    %v9869 = vsub.s32 %v9866, %v9868
    %v9870 = vrot.slane %v9854, %v9869
    %v9872 = vunpack.c.l.s4 1966171168
    %v9873 = vunpack.c.0.s8 %v9872
    %v9874 = vlaneseq
    %v9875 = vshrl.u32 %v9874, 7
    %v9876 = vsub.s32 %v9873, %v9875
    %v9877 = vrot.slane %v9855, %v9876
    %v9879 = vunpack.c.l.s4 1966171168
    %v9880 = vunpack.c.0.s8 %v9879
    %v9881 = vlaneseq
    %v9882 = vshrl.u32 %v9881, 7
    %v9883 = vsub.s32 %v9880, %v9882
    %v9884 = vrot.slane %v9856, %v9883
    %v9885 = vcombine.high %v9863, %v9863
    %v9886 = vcombine.high %v9870, %v9870
    %v9887 = vcombine.high %v9877, %v9877
    %v9888 = vcombine.high %v9884, %v9884
    %v9889 = vcombine.high %v8865, %v8865
    %v9891 = vunpack.c.l.s4 1966171168
    %v9892 = vunpack.c.0.s8 %v9891
    %v9893 = vlaneseq
    %v9894 = vshrl.u32 %v9893, 7
    %v9895 = vsub.s32 %v9892, %v9894
    %v9896 = vrot.slane %v8865, %v9895
    %v9898 = vunpack.c.l.s4 1966171168
    %v9899 = vunpack.c.0.s8 %v9898
    %v9900 = vlaneseq
    %v9901 = vshrl.u32 %v9900, 7
    %v9902 = vsub.s32 %v9899, %v9901
    %v9903 = vrot.slane %v9889, %v9902
    %v9904 = vcombine.high %v9896, %v9896
    %v9905 = vcombine.high %v9903, %v9903
    %v9907 = vunpack.c.l.s4 1966171168
    %v9908 = vunpack.c.0.s8 %v9907
    %v9909 = vlaneseq
    %v9910 = vshrl.u32 %v9909, 7
    %v9911 = vsub.s32 %v9908, %v9910
    %v9912 = vrot.slane %v9896, %v9911
    %v9914 = vunpack.c.l.s4 1966171168
    %v9915 = vunpack.c.0.s8 %v9914
    %v9916 = vlaneseq
    %v9917 = vshrl.u32 %v9916, 7
    %v9918 = vsub.s32 %v9915, %v9917
    %v9919 = vrot.slane %v9903, %v9918
    %v9921 = vunpack.c.l.s4 1966171168
    %v9922 = vunpack.c.0.s8 %v9921
    %v9923 = vlaneseq
    %v9924 = vshrl.u32 %v9923, 7
    %v9925 = vsub.s32 %v9922, %v9924
    %v9926 = vrot.slane %v9904, %v9925
    %v9928 = vunpack.c.l.s4 1966171168
    %v9929 = vunpack.c.0.s8 %v9928
    %v9930 = vlaneseq
    %v9931 = vshrl.u32 %v9930, 7
    %v9932 = vsub.s32 %v9929, %v9931
    %v9933 = vrot.slane %v9905, %v9932
    %v9934 = vcombine.high %v9912, %v9912
    %v9935 = vcombine.high %v9919, %v9919
    %v9936 = vcombine.high %v9926, %v9926
    %v9937 = vcombine.high %v9933, %v9933
    %v9938 = vcombine.high %v8866, %v8866
    %v9940 = vunpack.c.l.s4 1966171168
    %v9941 = vunpack.c.0.s8 %v9940
    %v9942 = vlaneseq
    %v9943 = vshrl.u32 %v9942, 7
    %v9944 = vsub.s32 %v9941, %v9943
    %v9945 = vrot.slane %v8866, %v9944
    %v9947 = vunpack.c.l.s4 1966171168
    %v9948 = vunpack.c.0.s8 %v9947
    %v9949 = vlaneseq
    %v9950 = vshrl.u32 %v9949, 7
    %v9951 = vsub.s32 %v9948, %v9950
    %v9952 = vrot.slane %v9938, %v9951
    %v9953 = vcombine.high %v9945, %v9945
    %v9954 = vcombine.high %v9952, %v9952
    %v9956 = vunpack.c.l.s4 1966171168
    %v9957 = vunpack.c.0.s8 %v9956
    %v9958 = vlaneseq
    %v9959 = vshrl.u32 %v9958, 7
    %v9960 = vsub.s32 %v9957, %v9959
    %v9961 = vrot.slane %v9945, %v9960
    %v9963 = vunpack.c.l.s4 1966171168
    %v9964 = vunpack.c.0.s8 %v9963
    %v9965 = vlaneseq
    %v9966 = vshrl.u32 %v9965, 7
    %v9967 = vsub.s32 %v9964, %v9966
    %v9968 = vrot.slane %v9952, %v9967
    %v9970 = vunpack.c.l.s4 1966171168
    %v9971 = vunpack.c.0.s8 %v9970
    %v9972 = vlaneseq
    %v9973 = vshrl.u32 %v9972, 7
    %v9974 = vsub.s32 %v9971, %v9973
    %v9975 = vrot.slane %v9953, %v9974
    %v9977 = vunpack.c.l.s4 1966171168
    %v9978 = vunpack.c.0.s8 %v9977
    %v9979 = vlaneseq
    %v9980 = vshrl.u32 %v9979, 7
    %v9981 = vsub.s32 %v9978, %v9980
    %v9982 = vrot.slane %v9954, %v9981
    %v9983 = vcombine.high %v9961, %v9961
    %v9984 = vcombine.high %v9968, %v9968
    %v9985 = vcombine.high %v9975, %v9975
    %v9986 = vcombine.high %v9982, %v9982
    %v9987 = vcombine.high %v8867, %v8867
    %v9989 = vunpack.c.l.s4 1966171168
    %v9990 = vunpack.c.0.s8 %v9989
    %v9991 = vlaneseq
    %v9992 = vshrl.u32 %v9991, 7
    %v9993 = vsub.s32 %v9990, %v9992
    %v9994 = vrot.slane %v8867, %v9993
    %v9996 = vunpack.c.l.s4 1966171168
    %v9997 = vunpack.c.0.s8 %v9996
    %v9998 = vlaneseq
    %v9999 = vshrl.u32 %v9998, 7
    %v10000 = vsub.s32 %v9997, %v9999
    %v10001 = vrot.slane %v9987, %v10000
    %v10002 = vcombine.high %v9994, %v9994
    %v10003 = vcombine.high %v10001, %v10001
    %v10005 = vunpack.c.l.s4 1966171168
    %v10006 = vunpack.c.0.s8 %v10005
    %v10007 = vlaneseq
    %v10008 = vshrl.u32 %v10007, 7
    %v10009 = vsub.s32 %v10006, %v10008
    %v10010 = vrot.slane %v9994, %v10009
    %v10012 = vunpack.c.l.s4 1966171168
    %v10013 = vunpack.c.0.s8 %v10012
    %v10014 = vlaneseq
    %v10015 = vshrl.u32 %v10014, 7
    %v10016 = vsub.s32 %v10013, %v10015
    %v10017 = vrot.slane %v10001, %v10016
    %v10019 = vunpack.c.l.s4 1966171168
    %v10020 = vunpack.c.0.s8 %v10019
    %v10021 = vlaneseq
    %v10022 = vshrl.u32 %v10021, 7
    %v10023 = vsub.s32 %v10020, %v10022
    %v10024 = vrot.slane %v10002, %v10023
    %v10026 = vunpack.c.l.s4 1966171168
    %v10027 = vunpack.c.0.s8 %v10026
    %v10028 = vlaneseq
    %v10029 = vshrl.u32 %v10028, 7
    %v10030 = vsub.s32 %v10027, %v10029
    %v10031 = vrot.slane %v10003, %v10030
    %v10032 = vcombine.high %v10010, %v10010
    %v10033 = vcombine.high %v10017, %v10017
    %v10034 = vcombine.high %v10024, %v10024
    %v10035 = vcombine.high %v10031, %v10031
    %v10036 = vcombine.high %v8868, %v8868
    %v10038 = vunpack.c.l.s4 1966171168
    %v10039 = vunpack.c.0.s8 %v10038
    %v10040 = vlaneseq
    %v10041 = vshrl.u32 %v10040, 7
    %v10042 = vsub.s32 %v10039, %v10041
    %v10043 = vrot.slane %v8868, %v10042
    %v10045 = vunpack.c.l.s4 1966171168
    %v10046 = vunpack.c.0.s8 %v10045
    %v10047 = vlaneseq
    %v10048 = vshrl.u32 %v10047, 7
    %v10049 = vsub.s32 %v10046, %v10048
    %v10050 = vrot.slane %v10036, %v10049
    %v10051 = vcombine.high %v10043, %v10043
    %v10052 = vcombine.high %v10050, %v10050
    %v10054 = vunpack.c.l.s4 1966171168
    %v10055 = vunpack.c.0.s8 %v10054
    %v10056 = vlaneseq
    %v10057 = vshrl.u32 %v10056, 7
    %v10058 = vsub.s32 %v10055, %v10057
    %v10059 = vrot.slane %v10043, %v10058
    %v10061 = vunpack.c.l.s4 1966171168
    %v10062 = vunpack.c.0.s8 %v10061
    %v10063 = vlaneseq
    %v10064 = vshrl.u32 %v10063, 7
    %v10065 = vsub.s32 %v10062, %v10064
    %v10066 = vrot.slane %v10050, %v10065
    %v10068 = vunpack.c.l.s4 1966171168
    %v10069 = vunpack.c.0.s8 %v10068
    %v10070 = vlaneseq
    %v10071 = vshrl.u32 %v10070, 7
    %v10072 = vsub.s32 %v10069, %v10071
    %v10073 = vrot.slane %v10051, %v10072
    %v10075 = vunpack.c.l.s4 1966171168
    %v10076 = vunpack.c.0.s8 %v10075
    %v10077 = vlaneseq
    %v10078 = vshrl.u32 %v10077, 7
    %v10079 = vsub.s32 %v10076, %v10078
    %v10080 = vrot.slane %v10052, %v10079
    %v10081 = vcombine.high %v10059, %v10059
    %v10082 = vcombine.high %v10066, %v10066
    %v10083 = vcombine.high %v10073, %v10073
    %v10084 = vcombine.high %v10080, %v10080
    %v10085 = vcombine.high %v8869, %v8869
    %v10087 = vunpack.c.l.s4 1966171168
    %v10088 = vunpack.c.0.s8 %v10087
    %v10089 = vlaneseq
    %v10090 = vshrl.u32 %v10089, 7
    %v10091 = vsub.s32 %v10088, %v10090
    %v10092 = vrot.slane %v8869, %v10091
    %v10094 = vunpack.c.l.s4 1966171168
    %v10095 = vunpack.c.0.s8 %v10094
    %v10096 = vlaneseq
    %v10097 = vshrl.u32 %v10096, 7
    %v10098 = vsub.s32 %v10095, %v10097
    %v10099 = vrot.slane %v10085, %v10098
    %v10100 = vcombine.high %v10092, %v10092
    %v10101 = vcombine.high %v10099, %v10099
    %v10103 = vunpack.c.l.s4 1966171168
    %v10104 = vunpack.c.0.s8 %v10103
    %v10105 = vlaneseq
    %v10106 = vshrl.u32 %v10105, 7
    %v10107 = vsub.s32 %v10104, %v10106
    %v10108 = vrot.slane %v10092, %v10107
    %v10110 = vunpack.c.l.s4 1966171168
    %v10111 = vunpack.c.0.s8 %v10110
    %v10112 = vlaneseq
    %v10113 = vshrl.u32 %v10112, 7
    %v10114 = vsub.s32 %v10111, %v10113
    %v10115 = vrot.slane %v10099, %v10114
    %v10117 = vunpack.c.l.s4 1966171168
    %v10118 = vunpack.c.0.s8 %v10117
    %v10119 = vlaneseq
    %v10120 = vshrl.u32 %v10119, 7
    %v10121 = vsub.s32 %v10118, %v10120
    %v10122 = vrot.slane %v10100, %v10121
    %v10124 = vunpack.c.l.s4 1966171168
    %v10125 = vunpack.c.0.s8 %v10124
    %v10126 = vlaneseq
    %v10127 = vshrl.u32 %v10126, 7
    %v10128 = vsub.s32 %v10125, %v10127
    %v10129 = vrot.slane %v10101, %v10128
    %v10130 = vcombine.high %v10108, %v10108
    %v10131 = vcombine.high %v10115, %v10115
    %v10132 = vcombine.high %v10122, %v10122
    %v10133 = vcombine.high %v10129, %v10129
    %v10134 = vcombine.high %v8870, %v8870
    %v10136 = vunpack.c.l.s4 1966171168
    %v10137 = vunpack.c.0.s8 %v10136
    %v10138 = vlaneseq
    %v10139 = vshrl.u32 %v10138, 7
    %v10140 = vsub.s32 %v10137, %v10139
    %v10141 = vrot.slane %v8870, %v10140
    %v10143 = vunpack.c.l.s4 1966171168
    %v10144 = vunpack.c.0.s8 %v10143
    %v10145 = vlaneseq
    %v10146 = vshrl.u32 %v10145, 7
    %v10147 = vsub.s32 %v10144, %v10146
    %v10148 = vrot.slane %v10134, %v10147
    %v10149 = vcombine.high %v10141, %v10141
    %v10150 = vcombine.high %v10148, %v10148
    %v10152 = vunpack.c.l.s4 1966171168
    %v10153 = vunpack.c.0.s8 %v10152
    %v10154 = vlaneseq
    %v10155 = vshrl.u32 %v10154, 7
    %v10156 = vsub.s32 %v10153, %v10155
    %v10157 = vrot.slane %v10141, %v10156
    %v10159 = vunpack.c.l.s4 1966171168
    %v10160 = vunpack.c.0.s8 %v10159
    %v10161 = vlaneseq
    %v10162 = vshrl.u32 %v10161, 7
    %v10163 = vsub.s32 %v10160, %v10162
    %v10164 = vrot.slane %v10148, %v10163
    %v10166 = vunpack.c.l.s4 1966171168
    %v10167 = vunpack.c.0.s8 %v10166
    %v10168 = vlaneseq
    %v10169 = vshrl.u32 %v10168, 7
    %v10170 = vsub.s32 %v10167, %v10169
    %v10171 = vrot.slane %v10149, %v10170
    %v10173 = vunpack.c.l.s4 1966171168
    %v10174 = vunpack.c.0.s8 %v10173
    %v10175 = vlaneseq
    %v10176 = vshrl.u32 %v10175, 7
    %v10177 = vsub.s32 %v10174, %v10176
    %v10178 = vrot.slane %v10150, %v10177
    %v10179 = vcombine.high %v10157, %v10157
    %v10180 = vcombine.high %v10164, %v10164
    %v10181 = vcombine.high %v10171, %v10171
    %v10182 = vcombine.high %v10178, %v10178
    %v10183 = vcombine.high %v8871, %v8871
    %v10185 = vunpack.c.l.s4 1966171168
    %v10186 = vunpack.c.0.s8 %v10185
    %v10187 = vlaneseq
    %v10188 = vshrl.u32 %v10187, 7
    %v10189 = vsub.s32 %v10186, %v10188
    %v10190 = vrot.slane %v8871, %v10189
    %v10192 = vunpack.c.l.s4 1966171168
    %v10193 = vunpack.c.0.s8 %v10192
    %v10194 = vlaneseq
    %v10195 = vshrl.u32 %v10194, 7
    %v10196 = vsub.s32 %v10193, %v10195
    %v10197 = vrot.slane %v10183, %v10196
    %v10198 = vcombine.high %v10190, %v10190
    %v10199 = vcombine.high %v10197, %v10197
    %v10201 = vunpack.c.l.s4 1966171168
    %v10202 = vunpack.c.0.s8 %v10201
    %v10203 = vlaneseq
    %v10204 = vshrl.u32 %v10203, 7
    %v10205 = vsub.s32 %v10202, %v10204
    %v10206 = vrot.slane %v10190, %v10205
    %v10208 = vunpack.c.l.s4 1966171168
    %v10209 = vunpack.c.0.s8 %v10208
    %v10210 = vlaneseq
    %v10211 = vshrl.u32 %v10210, 7
    %v10212 = vsub.s32 %v10209, %v10211
    %v10213 = vrot.slane %v10197, %v10212
    %v10215 = vunpack.c.l.s4 1966171168
    %v10216 = vunpack.c.0.s8 %v10215
    %v10217 = vlaneseq
    %v10218 = vshrl.u32 %v10217, 7
    %v10219 = vsub.s32 %v10216, %v10218
    %v10220 = vrot.slane %v10198, %v10219
    %v10222 = vunpack.c.l.s4 1966171168
    %v10223 = vunpack.c.0.s8 %v10222
    %v10224 = vlaneseq
    %v10225 = vshrl.u32 %v10224, 7
    %v10226 = vsub.s32 %v10223, %v10225
    %v10227 = vrot.slane %v10199, %v10226
    %v10228 = vcombine.high %v10206, %v10206
    %v10229 = vcombine.high %v10213, %v10213
    %v10230 = vcombine.high %v10220, %v10220
    %v10231 = vcombine.high %v10227, %v10227
    %v10232 = vcombine.high %v8872, %v8872
    %v10234 = vunpack.c.l.s4 1966171168
    %v10235 = vunpack.c.0.s8 %v10234
    %v10236 = vlaneseq
    %v10237 = vshrl.u32 %v10236, 7
    %v10238 = vsub.s32 %v10235, %v10237
    %v10239 = vrot.slane %v8872, %v10238
    %v10241 = vunpack.c.l.s4 1966171168
    %v10242 = vunpack.c.0.s8 %v10241
    %v10243 = vlaneseq
    %v10244 = vshrl.u32 %v10243, 7
    %v10245 = vsub.s32 %v10242, %v10244
    %v10246 = vrot.slane %v10232, %v10245
    %v10247 = vcombine.high %v10239, %v10239
    %v10248 = vcombine.high %v10246, %v10246
    %v10250 = vunpack.c.l.s4 1966171168
    %v10251 = vunpack.c.0.s8 %v10250
    %v10252 = vlaneseq
    %v10253 = vshrl.u32 %v10252, 7
    %v10254 = vsub.s32 %v10251, %v10253
    %v10255 = vrot.slane %v10239, %v10254
    %v10257 = vunpack.c.l.s4 1966171168
    %v10258 = vunpack.c.0.s8 %v10257
    %v10259 = vlaneseq
    %v10260 = vshrl.u32 %v10259, 7
    %v10261 = vsub.s32 %v10258, %v10260
    %v10262 = vrot.slane %v10246, %v10261
    %v10264 = vunpack.c.l.s4 1966171168
    %v10265 = vunpack.c.0.s8 %v10264
    %v10266 = vlaneseq
    %v10267 = vshrl.u32 %v10266, 7
    %v10268 = vsub.s32 %v10265, %v10267
    %v10269 = vrot.slane %v10247, %v10268
    %v10271 = vunpack.c.l.s4 1966171168
    %v10272 = vunpack.c.0.s8 %v10271
    %v10273 = vlaneseq
    %v10274 = vshrl.u32 %v10273, 7
    %v10275 = vsub.s32 %v10272, %v10274
    %v10276 = vrot.slane %v10248, %v10275
    %v10277 = vcombine.high %v10255, %v10255
    %v10278 = vcombine.high %v10262, %v10262
    %v10279 = vcombine.high %v10269, %v10269
    %v10280 = vcombine.high %v10276, %v10276
    %v10281 = vcombine.high %v8873, %v8873
    %v10283 = vunpack.c.l.s4 1966171168
    %v10284 = vunpack.c.0.s8 %v10283
    %v10285 = vlaneseq
    %v10286 = vshrl.u32 %v10285, 7
    %v10287 = vsub.s32 %v10284, %v10286
    %v10288 = vrot.slane %v8873, %v10287
    %v10290 = vunpack.c.l.s4 1966171168
    %v10291 = vunpack.c.0.s8 %v10290
    %v10292 = vlaneseq
    %v10293 = vshrl.u32 %v10292, 7
    %v10294 = vsub.s32 %v10291, %v10293
    %v10295 = vrot.slane %v10281, %v10294
    %v10296 = vcombine.high %v10288, %v10288
    %v10297 = vcombine.high %v10295, %v10295
    %v10299 = vunpack.c.l.s4 1966171168
    %v10300 = vunpack.c.0.s8 %v10299
    %v10301 = vlaneseq
    %v10302 = vshrl.u32 %v10301, 7
    %v10303 = vsub.s32 %v10300, %v10302
    %v10304 = vrot.slane %v10288, %v10303
    %v10306 = vunpack.c.l.s4 1966171168
    %v10307 = vunpack.c.0.s8 %v10306
    %v10308 = vlaneseq
    %v10309 = vshrl.u32 %v10308, 7
    %v10310 = vsub.s32 %v10307, %v10309
    %v10311 = vrot.slane %v10295, %v10310
    %v10313 = vunpack.c.l.s4 1966171168
    %v10314 = vunpack.c.0.s8 %v10313
    %v10315 = vlaneseq
    %v10316 = vshrl.u32 %v10315, 7
    %v10317 = vsub.s32 %v10314, %v10316
    %v10318 = vrot.slane %v10296, %v10317
    %v10320 = vunpack.c.l.s4 1966171168
    %v10321 = vunpack.c.0.s8 %v10320
    %v10322 = vlaneseq
    %v10323 = vshrl.u32 %v10322, 7
    %v10324 = vsub.s32 %v10321, %v10323
    %v10325 = vrot.slane %v10297, %v10324
    %v10326 = vcombine.high %v10304, %v10304
    %v10327 = vcombine.high %v10311, %v10311
    %v10328 = vcombine.high %v10318, %v10318
    %v10329 = vcombine.high %v10325, %v10325
    %v10330 = vcombine.high %v8874, %v8874
    %v10332 = vunpack.c.l.s4 1966171168
    %v10333 = vunpack.c.0.s8 %v10332
    %v10334 = vlaneseq
    %v10335 = vshrl.u32 %v10334, 7
    %v10336 = vsub.s32 %v10333, %v10335
    %v10337 = vrot.slane %v8874, %v10336
    %v10339 = vunpack.c.l.s4 1966171168
    %v10340 = vunpack.c.0.s8 %v10339
    %v10341 = vlaneseq
    %v10342 = vshrl.u32 %v10341, 7
    %v10343 = vsub.s32 %v10340, %v10342
    %v10344 = vrot.slane %v10330, %v10343
    %v10345 = vcombine.high %v10337, %v10337
    %v10346 = vcombine.high %v10344, %v10344
    %v10348 = vunpack.c.l.s4 1966171168
    %v10349 = vunpack.c.0.s8 %v10348
    %v10350 = vlaneseq
    %v10351 = vshrl.u32 %v10350, 7
    %v10352 = vsub.s32 %v10349, %v10351
    %v10353 = vrot.slane %v10337, %v10352
    %v10355 = vunpack.c.l.s4 1966171168
    %v10356 = vunpack.c.0.s8 %v10355
    %v10357 = vlaneseq
    %v10358 = vshrl.u32 %v10357, 7
    %v10359 = vsub.s32 %v10356, %v10358
    %v10360 = vrot.slane %v10344, %v10359
    %v10362 = vunpack.c.l.s4 1966171168
    %v10363 = vunpack.c.0.s8 %v10362
    %v10364 = vlaneseq
    %v10365 = vshrl.u32 %v10364, 7
    %v10366 = vsub.s32 %v10363, %v10365
    %v10367 = vrot.slane %v10345, %v10366
    %v10369 = vunpack.c.l.s4 1966171168
    %v10370 = vunpack.c.0.s8 %v10369
    %v10371 = vlaneseq
    %v10372 = vshrl.u32 %v10371, 7
    %v10373 = vsub.s32 %v10370, %v10372
    %v10374 = vrot.slane %v10346, %v10373
    %v10375 = vcombine.high %v10353, %v10353
    %v10376 = vcombine.high %v10360, %v10360
    %v10377 = vcombine.high %v10367, %v10367
    %v10378 = vcombine.high %v10374, %v10374
    %v10379 = vcombine.high %v8875, %v8875
    %v10381 = vunpack.c.l.s4 1966171168
    %v10382 = vunpack.c.0.s8 %v10381
    %v10383 = vlaneseq
    %v10384 = vshrl.u32 %v10383, 7
    %v10385 = vsub.s32 %v10382, %v10384
    %v10386 = vrot.slane %v8875, %v10385
    %v10388 = vunpack.c.l.s4 1966171168
    %v10389 = vunpack.c.0.s8 %v10388
    %v10390 = vlaneseq
    %v10391 = vshrl.u32 %v10390, 7
    %v10392 = vsub.s32 %v10389, %v10391
    %v10393 = vrot.slane %v10379, %v10392
    %v10394 = vcombine.high %v10386, %v10386
    %v10395 = vcombine.high %v10393, %v10393
    %v10397 = vunpack.c.l.s4 1966171168
    %v10398 = vunpack.c.0.s8 %v10397
    %v10399 = vlaneseq
    %v10400 = vshrl.u32 %v10399, 7
    %v10401 = vsub.s32 %v10398, %v10400
    %v10402 = vrot.slane %v10386, %v10401
    %v10404 = vunpack.c.l.s4 1966171168
    %v10405 = vunpack.c.0.s8 %v10404
    %v10406 = vlaneseq
    %v10407 = vshrl.u32 %v10406, 7
    %v10408 = vsub.s32 %v10405, %v10407
    %v10409 = vrot.slane %v10393, %v10408
    %v10411 = vunpack.c.l.s4 1966171168
    %v10412 = vunpack.c.0.s8 %v10411
    %v10413 = vlaneseq
    %v10414 = vshrl.u32 %v10413, 7
    %v10415 = vsub.s32 %v10412, %v10414
    %v10416 = vrot.slane %v10394, %v10415
    %v10418 = vunpack.c.l.s4 1966171168
    %v10419 = vunpack.c.0.s8 %v10418
    %v10420 = vlaneseq
    %v10421 = vshrl.u32 %v10420, 7
    %v10422 = vsub.s32 %v10419, %v10421
    %v10423 = vrot.slane %v10395, %v10422
    %v10424 = vcombine.high %v10402, %v10402
    %v10425 = vcombine.high %v10409, %v10409
    %v10426 = vcombine.high %v10416, %v10416
    %v10427 = vcombine.high %v10423, %v10423
    %v10428 = vcombine.high %v8876, %v8876
    %v10430 = vunpack.c.l.s4 1966171168
    %v10431 = vunpack.c.0.s8 %v10430
    %v10432 = vlaneseq
    %v10433 = vshrl.u32 %v10432, 7
    %v10434 = vsub.s32 %v10431, %v10433
    %v10435 = vrot.slane %v8876, %v10434
    %v10437 = vunpack.c.l.s4 1966171168
    %v10438 = vunpack.c.0.s8 %v10437
    %v10439 = vlaneseq
    %v10440 = vshrl.u32 %v10439, 7
    %v10441 = vsub.s32 %v10438, %v10440
    %v10442 = vrot.slane %v10428, %v10441
    %v10443 = vcombine.high %v10435, %v10435
    %v10444 = vcombine.high %v10442, %v10442
    %v10446 = vunpack.c.l.s4 1966171168
    %v10447 = vunpack.c.0.s8 %v10446
    %v10448 = vlaneseq
    %v10449 = vshrl.u32 %v10448, 7
    %v10450 = vsub.s32 %v10447, %v10449
    %v10451 = vrot.slane %v10435, %v10450
    %v10453 = vunpack.c.l.s4 1966171168
    %v10454 = vunpack.c.0.s8 %v10453
    %v10455 = vlaneseq
    %v10456 = vshrl.u32 %v10455, 7
    %v10457 = vsub.s32 %v10454, %v10456
    %v10458 = vrot.slane %v10442, %v10457
    %v10460 = vunpack.c.l.s4 1966171168
    %v10461 = vunpack.c.0.s8 %v10460
    %v10462 = vlaneseq
    %v10463 = vshrl.u32 %v10462, 7
    %v10464 = vsub.s32 %v10461, %v10463
    %v10465 = vrot.slane %v10443, %v10464
    %v10467 = vunpack.c.l.s4 1966171168
    %v10468 = vunpack.c.0.s8 %v10467
    %v10469 = vlaneseq
    %v10470 = vshrl.u32 %v10469, 7
    %v10471 = vsub.s32 %v10468, %v10470
    %v10472 = vrot.slane %v10444, %v10471
    %v10473 = vcombine.high %v10451, %v10451
    %v10474 = vcombine.high %v10458, %v10458
    %v10475 = vcombine.high %v10465, %v10465
    %v10476 = vcombine.high %v10472, %v10472
    %10733 = vst [vmem:[#allocation4] sm:$0x1] %v8932
    %10734 = vst [vmem:[#allocation4 + $0x1] sm:$0x1] %v8946
    %10735 = vst [vmem:[#allocation4 + $0x2] sm:$0x1] %v8954
    %10736 = vst [vmem:[#allocation4 + $0x3] sm:$0x1] %v8956
    %10737 = vst [vmem:[#allocation4 + $0x4] sm:$0x1] %v8939
    %10738 = vst [vmem:[#allocation4 + $0x5] sm:$0x1] %v8953
    %10739 = vst [vmem:[#allocation4 + $0x6] sm:$0x1] %v8955
    %10740 = vst [vmem:[#allocation4 + $0x7] sm:$0x1] %v8957
    %10741 = vst [vmem:[#allocation4 + $0x8] sm:$0x1] %v8981
    %10742 = vst [vmem:[#allocation4 + $0x9] sm:$0x1] %v8995
    %10743 = vst [vmem:[#allocation4 + $0xa] sm:$0x1] %v9003
    %10744 = vst [vmem:[#allocation4 + $0xb] sm:$0x1] %v9005
    %10745 = vst [vmem:[#allocation4 + $0xc] sm:$0x1] %v8988
    %10746 = vst [vmem:[#allocation4 + $0xd] sm:$0x1] %v9002
    %10747 = vst [vmem:[#allocation4 + $0xe] sm:$0x1] %v9004
    %10748 = vst [vmem:[#allocation4 + $0xf] sm:$0x1] %v9006
    %10749 = vst [vmem:[#allocation4 + $0x10] sm:$0x1] %v9030
    %10750 = vst [vmem:[#allocation4 + $0x11] sm:$0x1] %v9044
    %10751 = vst [vmem:[#allocation4 + $0x12] sm:$0x1] %v9052
    %10752 = vst [vmem:[#allocation4 + $0x13] sm:$0x1] %v9054
    %10753 = vst [vmem:[#allocation4 + $0x14] sm:$0x1] %v9037
    %10754 = vst [vmem:[#allocation4 + $0x15] sm:$0x1] %v9051
    %10755 = vst [vmem:[#allocation4 + $0x16] sm:$0x1] %v9053
    %10756 = vst [vmem:[#allocation4 + $0x17] sm:$0x1] %v9055
    %10757 = vst [vmem:[#allocation4 + $0x18] sm:$0x1] %v9079
    %10758 = vst [vmem:[#allocation4 + $0x19] sm:$0x1] %v9093
    %10759 = vst [vmem:[#allocation4 + $0x1a] sm:$0x1] %v9101
    %10760 = vst [vmem:[#allocation4 + $0x1b] sm:$0x1] %v9103
    %10761 = vst [vmem:[#allocation4 + $0x1c] sm:$0x1] %v9086
    %10762 = vst [vmem:[#allocation4 + $0x1d] sm:$0x1] %v9100
    %10763 = vst [vmem:[#allocation4 + $0x1e] sm:$0x1] %v9102
    %10764 = vst [vmem:[#allocation4 + $0x1f] sm:$0x1] %v9104
    %10765 = vst [vmem:[#allocation4 + $0x20] sm:$0x1] %v9128
    %10766 = vst [vmem:[#allocation4 + $0x21] sm:$0x1] %v9142
    %10767 = vst [vmem:[#allocation4 + $0x22] sm:$0x1] %v9150
    %10768 = vst [vmem:[#allocation4 + $0x23] sm:$0x1] %v9152
    %10769 = vst [vmem:[#allocation4 + $0x24] sm:$0x1] %v9135
    %10770 = vst [vmem:[#allocation4 + $0x25] sm:$0x1] %v9149
    %10771 = vst [vmem:[#allocation4 + $0x26] sm:$0x1] %v9151
    %10772 = vst [vmem:[#allocation4 + $0x27] sm:$0x1] %v9153
    %10773 = vst [vmem:[#allocation4 + $0x28] sm:$0x1] %v9177
    %10774 = vst [vmem:[#allocation4 + $0x29] sm:$0x1] %v9191
    %10775 = vst [vmem:[#allocation4 + $0x2a] sm:$0x1] %v9199
    %10776 = vst [vmem:[#allocation4 + $0x2b] sm:$0x1] %v9201
    %10777 = vst [vmem:[#allocation4 + $0x2c] sm:$0x1] %v9184
    %10778 = vst [vmem:[#allocation4 + $0x2d] sm:$0x1] %v9198
    %10779 = vst [vmem:[#allocation4 + $0x2e] sm:$0x1] %v9200
    %10780 = vst [vmem:[#allocation4 + $0x2f] sm:$0x1] %v9202
    %10781 = vst [vmem:[#allocation4 + $0x30] sm:$0x1] %v9226
    %10782 = vst [vmem:[#allocation4 + $0x31] sm:$0x1] %v9240
    %10783 = vst [vmem:[#allocation4 + $0x32] sm:$0x1] %v9248
    %10784 = vst [vmem:[#allocation4 + $0x33] sm:$0x1] %v9250
    %10785 = vst [vmem:[#allocation4 + $0x34] sm:$0x1] %v9233
    %10786 = vst [vmem:[#allocation4 + $0x35] sm:$0x1] %v9247
    %10787 = vst [vmem:[#allocation4 + $0x36] sm:$0x1] %v9249
    %10788 = vst [vmem:[#allocation4 + $0x37] sm:$0x1] %v9251
    %10789 = vst [vmem:[#allocation4 + $0x38] sm:$0x1] %v9275
    %10790 = vst [vmem:[#allocation4 + $0x39] sm:$0x1] %v9289
    %10791 = vst [vmem:[#allocation4 + $0x3a] sm:$0x1] %v9297
    %10792 = vst [vmem:[#allocation4 + $0x3b] sm:$0x1] %v9299
    %10793 = vst [vmem:[#allocation4 + $0x3c] sm:$0x1] %v9282
    %10794 = vst [vmem:[#allocation4 + $0x3d] sm:$0x1] %v9296
    %10795 = vst [vmem:[#allocation4 + $0x3e] sm:$0x1] %v9298
    %10796 = vst [vmem:[#allocation4 + $0x3f] sm:$0x1] %v9300
    %10797 = vst [vmem:[#allocation4 + $0x40] sm:$0x1] %v9324
    %10798 = vst [vmem:[#allocation4 + $0x41] sm:$0x1] %v9338
    %10799 = vst [vmem:[#allocation4 + $0x42] sm:$0x1] %v9346
    %10800 = vst [vmem:[#allocation4 + $0x43] sm:$0x1] %v9348
    %10801 = vst [vmem:[#allocation4 + $0x44] sm:$0x1] %v9331
    %10802 = vst [vmem:[#allocation4 + $0x45] sm:$0x1] %v9345
    %10803 = vst [vmem:[#allocation4 + $0x46] sm:$0x1] %v9347
    %10804 = vst [vmem:[#allocation4 + $0x47] sm:$0x1] %v9349
    %10805 = vst [vmem:[#allocation4 + $0x48] sm:$0x1] %v9373
    %10806 = vst [vmem:[#allocation4 + $0x49] sm:$0x1] %v9387
    %10807 = vst [vmem:[#allocation4 + $0x4a] sm:$0x1] %v9395
    %10808 = vst [vmem:[#allocation4 + $0x4b] sm:$0x1] %v9397
    %10809 = vst [vmem:[#allocation4 + $0x4c] sm:$0x1] %v9380
    %10810 = vst [vmem:[#allocation4 + $0x4d] sm:$0x1] %v9394
    %10811 = vst [vmem:[#allocation4 + $0x4e] sm:$0x1] %v9396
    %10812 = vst [vmem:[#allocation4 + $0x4f] sm:$0x1] %v9398
    %10813 = vst [vmem:[#allocation4 + $0x50] sm:$0x1] %v9422
    %10814 = vst [vmem:[#allocation4 + $0x51] sm:$0x1] %v9436
    %10815 = vst [vmem:[#allocation4 + $0x52] sm:$0x1] %v9444
    %10816 = vst [vmem:[#allocation4 + $0x53] sm:$0x1] %v9446
    %10817 = vst [vmem:[#allocation4 + $0x54] sm:$0x1] %v9429
    %10818 = vst [vmem:[#allocation4 + $0x55] sm:$0x1] %v9443
    %10819 = vst [vmem:[#allocation4 + $0x56] sm:$0x1] %v9445
    %10820 = vst [vmem:[#allocation4 + $0x57] sm:$0x1] %v9447
    %10821 = vst [vmem:[#allocation4 + $0x58] sm:$0x1] %v9471
    %10822 = vst [vmem:[#allocation4 + $0x59] sm:$0x1] %v9485
    %10823 = vst [vmem:[#allocation4 + $0x5a] sm:$0x1] %v9493
    %10824 = vst [vmem:[#allocation4 + $0x5b] sm:$0x1] %v9495
    %10825 = vst [vmem:[#allocation4 + $0x5c] sm:$0x1] %v9478
    %10826 = vst [vmem:[#allocation4 + $0x5d] sm:$0x1] %v9492
    %10827 = vst [vmem:[#allocation4 + $0x5e] sm:$0x1] %v9494
    %10828 = vst [vmem:[#allocation4 + $0x5f] sm:$0x1] %v9496
    %10829 = vst [vmem:[#allocation4 + $0x60] sm:$0x1] %v9520
    %10830 = vst [vmem:[#allocation4 + $0x61] sm:$0x1] %v9534
    %10831 = vst [vmem:[#allocation4 + $0x62] sm:$0x1] %v9542
    %10832 = vst [vmem:[#allocation4 + $0x63] sm:$0x1] %v9544
    %10833 = vst [vmem:[#allocation4 + $0x64] sm:$0x1] %v9527
    %10834 = vst [vmem:[#allocation4 + $0x65] sm:$0x1] %v9541
    %10835 = vst [vmem:[#allocation4 + $0x66] sm:$0x1] %v9543
    %10836 = vst [vmem:[#allocation4 + $0x67] sm:$0x1] %v9545
    %10837 = vst [vmem:[#allocation4 + $0x68] sm:$0x1] %v9569
    %10838 = vst [vmem:[#allocation4 + $0x69] sm:$0x1] %v9583
    %10839 = vst [vmem:[#allocation4 + $0x6a] sm:$0x1] %v9591
    %10840 = vst [vmem:[#allocation4 + $0x6b] sm:$0x1] %v9593
    %10841 = vst [vmem:[#allocation4 + $0x6c] sm:$0x1] %v9576
    %10842 = vst [vmem:[#allocation4 + $0x6d] sm:$0x1] %v9590
    %10843 = vst [vmem:[#allocation4 + $0x6e] sm:$0x1] %v9592
    %10844 = vst [vmem:[#allocation4 + $0x6f] sm:$0x1] %v9594
    %10845 = vst [vmem:[#allocation4 + $0x70] sm:$0x1] %v9618
    %10846 = vst [vmem:[#allocation4 + $0x71] sm:$0x1] %v9632
    %10847 = vst [vmem:[#allocation4 + $0x72] sm:$0x1] %v9640
    %10848 = vst [vmem:[#allocation4 + $0x73] sm:$0x1] %v9642
    %10849 = vst [vmem:[#allocation4 + $0x74] sm:$0x1] %v9625
    %10850 = vst [vmem:[#allocation4 + $0x75] sm:$0x1] %v9639
    %10851 = vst [vmem:[#allocation4 + $0x76] sm:$0x1] %v9641
    %10852 = vst [vmem:[#allocation4 + $0x77] sm:$0x1] %v9643
    %10853 = vst [vmem:[#allocation4 + $0x78] sm:$0x1] %v9667
    %10854 = vst [vmem:[#allocation4 + $0x79] sm:$0x1] %v9681
    %10855 = vst [vmem:[#allocation4 + $0x7a] sm:$0x1] %v9689
    %10856 = vst [vmem:[#allocation4 + $0x7b] sm:$0x1] %v9691
    %10857 = vst [vmem:[#allocation4 + $0x7c] sm:$0x1] %v9674
    %10858 = vst [vmem:[#allocation4 + $0x7d] sm:$0x1] %v9688
    %10859 = vst [vmem:[#allocation4 + $0x7e] sm:$0x1] %v9690
    %10860 = vst [vmem:[#allocation4 + $0x7f] sm:$0x1] %v9692
    %10861 = vst [vmem:[#allocation4 + $0x80] sm:$0x1] %v9716
    %10862 = vst [vmem:[#allocation4 + $0x81] sm:$0x1] %v9730
    %10863 = vst [vmem:[#allocation4 + $0x82] sm:$0x1] %v9738
    %10864 = vst [vmem:[#allocation4 + $0x83] sm:$0x1] %v9740
    %10865 = vst [vmem:[#allocation4 + $0x84] sm:$0x1] %v9723
    %10866 = vst [vmem:[#allocation4 + $0x85] sm:$0x1] %v9737
    %10867 = vst [vmem:[#allocation4 + $0x86] sm:$0x1] %v9739
    %10868 = vst [vmem:[#allocation4 + $0x87] sm:$0x1] %v9741
    %10869 = vst [vmem:[#allocation4 + $0x88] sm:$0x1] %v9765
    %10870 = vst [vmem:[#allocation4 + $0x89] sm:$0x1] %v9779
    %10871 = vst [vmem:[#allocation4 + $0x8a] sm:$0x1] %v9787
    %10872 = vst [vmem:[#allocation4 + $0x8b] sm:$0x1] %v9789
    %10873 = vst [vmem:[#allocation4 + $0x8c] sm:$0x1] %v9772
    %10874 = vst [vmem:[#allocation4 + $0x8d] sm:$0x1] %v9786
    %10875 = vst [vmem:[#allocation4 + $0x8e] sm:$0x1] %v9788
    %10876 = vst [vmem:[#allocation4 + $0x8f] sm:$0x1] %v9790
    %10877 = vst [vmem:[#allocation4 + $0x90] sm:$0x1] %v9814
    %10878 = vst [vmem:[#allocation4 + $0x91] sm:$0x1] %v9828
    %10879 = vst [vmem:[#allocation4 + $0x92] sm:$0x1] %v9836
    %10880 = vst [vmem:[#allocation4 + $0x93] sm:$0x1] %v9838
    %10881 = vst [vmem:[#allocation4 + $0x94] sm:$0x1] %v9821
    %10882 = vst [vmem:[#allocation4 + $0x95] sm:$0x1] %v9835
    %10883 = vst [vmem:[#allocation4 + $0x96] sm:$0x1] %v9837
    %10884 = vst [vmem:[#allocation4 + $0x97] sm:$0x1] %v9839
    %10885 = vst [vmem:[#allocation4 + $0x98] sm:$0x1] %v9863
    %10886 = vst [vmem:[#allocation4 + $0x99] sm:$0x1] %v9877
    %10887 = vst [vmem:[#allocation4 + $0x9a] sm:$0x1] %v9885
    %10888 = vst [vmem:[#allocation4 + $0x9b] sm:$0x1] %v9887
    %10889 = vst [vmem:[#allocation4 + $0x9c] sm:$0x1] %v9870
    %10890 = vst [vmem:[#allocation4 + $0x9d] sm:$0x1] %v9884
    %10891 = vst [vmem:[#allocation4 + $0x9e] sm:$0x1] %v9886
    %10892 = vst [vmem:[#allocation4 + $0x9f] sm:$0x1] %v9888
    %10893 = vst [vmem:[#allocation4 + $0xa0] sm:$0x1] %v9912
    %10894 = vst [vmem:[#allocation4 + $0xa1] sm:$0x1] %v9926
    %10895 = vst [vmem:[#allocation4 + $0xa2] sm:$0x1] %v9934
    %10896 = vst [vmem:[#allocation4 + $0xa3] sm:$0x1] %v9936
    %10897 = vst [vmem:[#allocation4 + $0xa4] sm:$0x1] %v9919
    %10898 = vst [vmem:[#allocation4 + $0xa5] sm:$0x1] %v9933
    %10899 = vst [vmem:[#allocation4 + $0xa6] sm:$0x1] %v9935
    %10900 = vst [vmem:[#allocation4 + $0xa7] sm:$0x1] %v9937
    %10901 = vst [vmem:[#allocation4 + $0xa8] sm:$0x1] %v9961
    %10902 = vst [vmem:[#allocation4 + $0xa9] sm:$0x1] %v9975
    %10903 = vst [vmem:[#allocation4 + $0xaa] sm:$0x1] %v9983
    %10904 = vst [vmem:[#allocation4 + $0xab] sm:$0x1] %v9985
    %10905 = vst [vmem:[#allocation4 + $0xac] sm:$0x1] %v9968
    %10906 = vst [vmem:[#allocation4 + $0xad] sm:$0x1] %v9982
    %10907 = vst [vmem:[#allocation4 + $0xae] sm:$0x1] %v9984
    %10908 = vst [vmem:[#allocation4 + $0xaf] sm:$0x1] %v9986
    %10909 = vst [vmem:[#allocation4 + $0xb0] sm:$0x1] %v10010
    %10910 = vst [vmem:[#allocation4 + $0xb1] sm:$0x1] %v10024
    %10911 = vst [vmem:[#allocation4 + $0xb2] sm:$0x1] %v10032
    %10912 = vst [vmem:[#allocation4 + $0xb3] sm:$0x1] %v10034
    %10913 = vst [vmem:[#allocation4 + $0xb4] sm:$0x1] %v10017
    %10914 = vst [vmem:[#allocation4 + $0xb5] sm:$0x1] %v10031
    %10915 = vst [vmem:[#allocation4 + $0xb6] sm:$0x1] %v10033
    %10916 = vst [vmem:[#allocation4 + $0xb7] sm:$0x1] %v10035
    %10917 = vst [vmem:[#allocation4 + $0xb8] sm:$0x1] %v10059
    %10918 = vst [vmem:[#allocation4 + $0xb9] sm:$0x1] %v10073
    %10919 = vst [vmem:[#allocation4 + $0xba] sm:$0x1] %v10081
    %10920 = vst [vmem:[#allocation4 + $0xbb] sm:$0x1] %v10083
    %10921 = vst [vmem:[#allocation4 + $0xbc] sm:$0x1] %v10066
    %10922 = vst [vmem:[#allocation4 + $0xbd] sm:$0x1] %v10080
    %10923 = vst [vmem:[#allocation4 + $0xbe] sm:$0x1] %v10082
    %10924 = vst [vmem:[#allocation4 + $0xbf] sm:$0x1] %v10084
    %10925 = vst [vmem:[#allocation4 + $0xc0] sm:$0x1] %v10108
    %10926 = vst [vmem:[#allocation4 + $0xc1] sm:$0x1] %v10122
    %10927 = vst [vmem:[#allocation4 + $0xc2] sm:$0x1] %v10130
    %10928 = vst [vmem:[#allocation4 + $0xc3] sm:$0x1] %v10132
    %10929 = vst [vmem:[#allocation4 + $0xc4] sm:$0x1] %v10115
    %10930 = vst [vmem:[#allocation4 + $0xc5] sm:$0x1] %v10129
    %10931 = vst [vmem:[#allocation4 + $0xc6] sm:$0x1] %v10131
    %10932 = vst [vmem:[#allocation4 + $0xc7] sm:$0x1] %v10133
    %10933 = vst [vmem:[#allocation4 + $0xc8] sm:$0x1] %v10157
    %10934 = vst [vmem:[#allocation4 + $0xc9] sm:$0x1] %v10171
    %10935 = vst [vmem:[#allocation4 + $0xca] sm:$0x1] %v10179
    %10936 = vst [vmem:[#allocation4 + $0xcb] sm:$0x1] %v10181
    %10937 = vst [vmem:[#allocation4 + $0xcc] sm:$0x1] %v10164
    %10938 = vst [vmem:[#allocation4 + $0xcd] sm:$0x1] %v10178
    %10939 = vst [vmem:[#allocation4 + $0xce] sm:$0x1] %v10180
    %10940 = vst [vmem:[#allocation4 + $0xcf] sm:$0x1] %v10182
    %10941 = vst [vmem:[#allocation4 + $0xd0] sm:$0x1] %v10206
    %10942 = vst [vmem:[#allocation4 + $0xd1] sm:$0x1] %v10220
    %10943 = vst [vmem:[#allocation4 + $0xd2] sm:$0x1] %v10228
    %10944 = vst [vmem:[#allocation4 + $0xd3] sm:$0x1] %v10230
    %10945 = vst [vmem:[#allocation4 + $0xd4] sm:$0x1] %v10213
    %10946 = vst [vmem:[#allocation4 + $0xd5] sm:$0x1] %v10227
    %10947 = vst [vmem:[#allocation4 + $0xd6] sm:$0x1] %v10229
    %10948 = vst [vmem:[#allocation4 + $0xd7] sm:$0x1] %v10231
    %10949 = vst [vmem:[#allocation4 + $0xd8] sm:$0x1] %v10255
    %10950 = vst [vmem:[#allocation4 + $0xd9] sm:$0x1] %v10269
    %10951 = vst [vmem:[#allocation4 + $0xda] sm:$0x1] %v10277
    %10952 = vst [vmem:[#allocation4 + $0xdb] sm:$0x1] %v10279
    %10953 = vst [vmem:[#allocation4 + $0xdc] sm:$0x1] %v10262
    %10954 = vst [vmem:[#allocation4 + $0xdd] sm:$0x1] %v10276
    %10955 = vst [vmem:[#allocation4 + $0xde] sm:$0x1] %v10278
    %10956 = vst [vmem:[#allocation4 + $0xdf] sm:$0x1] %v10280
    %10957 = vst [vmem:[#allocation4 + $0xe0] sm:$0x1] %v10304
    %10958 = vst [vmem:[#allocation4 + $0xe1] sm:$0x1] %v10318
    %10959 = vst [vmem:[#allocation4 + $0xe2] sm:$0x1] %v10326
    %10960 = vst [vmem:[#allocation4 + $0xe3] sm:$0x1] %v10328
    %10961 = vst [vmem:[#allocation4 + $0xe4] sm:$0x1] %v10311
    %10962 = vst [vmem:[#allocation4 + $0xe5] sm:$0x1] %v10325
    %10963 = vst [vmem:[#allocation4 + $0xe6] sm:$0x1] %v10327
    %10964 = vst [vmem:[#allocation4 + $0xe7] sm:$0x1] %v10329
    %10965 = vst [vmem:[#allocation4 + $0xe8] sm:$0x1] %v10353
    %10966 = vst [vmem:[#allocation4 + $0xe9] sm:$0x1] %v10367
    %10967 = vst [vmem:[#allocation4 + $0xea] sm:$0x1] %v10375
    %10968 = vst [vmem:[#allocation4 + $0xeb] sm:$0x1] %v10377
    %10969 = vst [vmem:[#allocation4 + $0xec] sm:$0x1] %v10360
    %10970 = vst [vmem:[#allocation4 + $0xed] sm:$0x1] %v10374
    %10971 = vst [vmem:[#allocation4 + $0xee] sm:$0x1] %v10376
    %10972 = vst [vmem:[#allocation4 + $0xef] sm:$0x1] %v10378
    %10973 = vst [vmem:[#allocation4 + $0xf0] sm:$0x1] %v10402
    %10974 = vst [vmem:[#allocation4 + $0xf1] sm:$0x1] %v10416
    %10975 = vst [vmem:[#allocation4 + $0xf2] sm:$0x1] %v10424
    %10976 = vst [vmem:[#allocation4 + $0xf3] sm:$0x1] %v10426
    %10977 = vst [vmem:[#allocation4 + $0xf4] sm:$0x1] %v10409
    %10978 = vst [vmem:[#allocation4 + $0xf5] sm:$0x1] %v10423
    %10979 = vst [vmem:[#allocation4 + $0xf6] sm:$0x1] %v10425
    %10980 = vst [vmem:[#allocation4 + $0xf7] sm:$0x1] %v10427
    %10981 = vst [vmem:[#allocation4 + $0xf8] sm:$0x1] %v10451
    %10982 = vst [vmem:[#allocation4 + $0xf9] sm:$0x1] %v10465
    %10983 = vst [vmem:[#allocation4 + $0xfa] sm:$0x1] %v10473
    %10984 = vst [vmem:[#allocation4 + $0xfb] sm:$0x1] %v10475
    %10985 = vst [vmem:[#allocation4 + $0xfc] sm:$0x1] %v10458
    %10986 = vst [vmem:[#allocation4 + $0xfd] sm:$0x1] %v10472
    %10987 = vst [vmem:[#allocation4 + $0xfe] sm:$0x1] %v10474
    %10988 = vst [vmem:[#allocation4 + $0xff] sm:$0x1] %v10476
    // Predicated region
    $region34: #{mlp_forward.1} parent=1 // pred_check
      _
    $region35: #{mlp_forward.1} parent=1 // pred_check_branch
      %10990 = sbr.rel (0) target = $region37
    $region36: #{mlp_forward.1} parent=1 // pred_region
      // Predicated region
      $region38: #{mlp_forward.1} parent=36 // pred_check
        _
      $region39: #{mlp_forward.1} parent=36 // pred_check_branch
        %10992 = sbr.rel (0) target = $region41
      $region40: #{mlp_forward.1} parent=36 // pred_region
        // Predicated region
        $region42: #{mlp_forward.1} parent=40 // pred_check
          _
        $region43: #{mlp_forward.1} parent=40 // pred_check_branch
          %10994 = sbr.rel target = $region45
        $region44: #{mlp_forward.1} parent=40 // pred_region
          // Predicated region
          $region57: #{mlp_forward.1} parent=44 // pred_check
            _
          $region58: #{mlp_forward.1} parent=44 // pred_check_branch
            %11010 = sbr.rel (0) target = $region60
          $region59: #{mlp_forward.1} parent=44 // pred_region
            %s11012 = ssub.s32 2, 1
            loop: start=0, step=1, limit=1
            $region61: #{mlp_forward.1} parent=59 // loop_pre_header
              _
            $region62: #{mlp_forward.1} parent=59 // loop_header
              %s11014 = sphi 0, %s11018
              %p11015 = scmp.ge.s32.totalorder %s11014, 1
              %s11019 = sphi [#allocation4], [#allocation4]
              %s11020 = sphi %s7, %s7
            $region63: #{mlp_forward.1} parent=59 // loop_header_branch
              %11017 = sbr.rel (%p11015) target = $region67
            $region64: #{mlp_forward.1} parent=59 // loop_body
              %v11021 = vld [vmem:[%s11019] sm:%s11012]
              %11022 = vst [vmem:[%s11020] sm:%s11012] %v11021
            $region65: #{mlp_forward.1} parent=59 // loop_footer
              %s11018 = sadd.s32 1, %s11014
            $region66: #{mlp_forward.1} parent=59 // loop_footer_branch
              %11013 = sbr.rel target = $region62
            $region67: #{mlp_forward.1} parent=59 // loop_exit
              _
          $region60: #{mlp_forward.1} parent=44 // pred_fallthru
            _
        $region45: #{mlp_forward.1} parent=40 // pred_fallthru
          _
        // Predicated region
        $region46: #{mlp_forward.1} parent=40 // pred_check
          _
        $region47: #{mlp_forward.1} parent=40 // pred_check_branch
          %10996 = sbr.rel (0) target = $region49
        $region48: #{mlp_forward.1} parent=40 // pred_region
          %s10998 = ssub.s32 2, 1
          loop: start=0, step=1, limit=1
          $region50: #{mlp_forward.1} parent=48 // loop_pre_header
            _
          $region51: #{mlp_forward.1} parent=48 // loop_header
            %s11000 = sphi 0, %s11004
            %p11001 = scmp.ge.s32.totalorder %s11000, 1
            %s11005 = sphi [#allocation4], [#allocation4]
            %s11006 = sphi %s7, %s7
          $region52: #{mlp_forward.1} parent=48 // loop_header_branch
            %11003 = sbr.rel (%p11001) target = $region56
          $region53: #{mlp_forward.1} parent=48 // loop_body
            %v11007 = vld [vmem:[%s11005] sm:%s10998]
            %11008 = vst [vmem:[%s11006] sm:%s10998] %v11007
          $region54: #{mlp_forward.1} parent=48 // loop_footer
            %s11004 = sadd.s32 1, %s11000
          $region55: #{mlp_forward.1} parent=48 // loop_footer_branch
            %10999 = sbr.rel target = $region51
          $region56: #{mlp_forward.1} parent=48 // loop_exit
            _
        $region49: #{mlp_forward.1} parent=40 // pred_fallthru
          _
      $region41: #{mlp_forward.1} parent=36 // pred_fallthru
        _
      %11023 = vnop
    $region37: #{mlp_forward.1} parent=1 // pred_fallthru
      _
    // Predicated region
    $region68: #{mlp_forward.1} parent=1 // pred_check
      _
    $region69: #{mlp_forward.1} parent=1 // pred_check_branch
      %11025 = sbr.rel (0) target = $region71
    $region70: #{mlp_forward.1} parent=1 // pred_region
      _
    $region71: #{mlp_forward.1} parent=1 // pred_fallthru
      _
    %11026 = vsyncpa [#allocation3], 1

</llo_original>
